<compile_context>
chip_gen: v7x
topology: tpu7x:2x2x1
jax: 0.10.0
libtpu: 0.0.40
codegen_flags: <defaults>
</compile_context>

<pallas_src>
import numpy as np
import jax
import jax.numpy as jnp
from jax.experimental import pallas as pl
from jax.experimental.pallas import tpu as pltpu

# --------------------------------- config ---------------------------------
N = 2               # batch
DIM_IN = 16         # input channels of head outputs
H = W = 8           # head-output spatial size
KERNEL = 4          # cfg.MODEL.ROI_DENSEPOSE_HEAD.DECONV_KERNEL
UP_SCALE = 2        # cfg.MODEL.ROI_DENSEPOSE_HEAD.UP_SCALE
NUM_CLASSES = 25    # SCORING_CLS_NUM
SEGM_C = 25         # fine_segm channels
HD, WD = 2 * H, 2 * W                     # after ConvTranspose2d(stride=2)
HO, WO = UP_SCALE * HD, UP_SCALE * WD     # after bilinear x2 (== fine_segm size)
PIX = H * W                               # 64
OPIX = HO * WO                            # 1024
FC = 256
CONF_HIDDEN = 64


# ========================== host-side constant builders ==========================
def _bilinear_matrix(s_in, scale):
    """Interp matrix matching torch bilinear upsample, align_corners=False."""
    s_out = s_in * scale
    a = np.zeros((s_out, s_in), dtype=np.float32)
    for o in range(s_out):
        src = (o + 0.5) / scale - 0.5
        src = max(src, 0.0)
        i0 = int(np.floor(src))
        frac = src - i0
        i0c = min(max(i0, 0), s_in - 1)
        i1c = min(max(i0 + 1, 0), s_in - 1)
        a[o, i0c] += 1.0 - frac
        a[o, i1c] += frac
    return a


def _shift_matrices():
    """(9, PIX, PIX) 0/1 matrices with (x @ S)[ci, q*W+p] = x[ci, q+sh, p+sw] (0 OOB)."""
    mats = np.zeros((9, PIX, PIX), np.float32)
    k = 0
    for sh in (-1, 0, 1):
        for sw in (-1, 0, 1):
            for q in range(H):
                for p_ in range(W):
                    qq, pp = q + sh, p_ + sw
                    if 0 <= qq < H and 0 <= pp < W:
                        mats[k, qq * W + pp, q * W + p_] = 1.0
            k += 1
    return mats


def _phase_deconv_weights(wt):
    """wt: ConvTranspose2d weight (DIM_IN, NUM_CLASSES, 4, 4) (PyTorch layout).
    Returns per-phase stacked weights (4, NUM_CLASSES, 4*DIM_IN):
      wdec[rh*2+rw, co, (dh*2+dw)*DIM_IN + ci] = wt[ci, co, 2*dh+1-rh, 2*dw+1-rw]."""
    wdec = np.zeros((4, NUM_CLASSES, 4 * DIM_IN), np.float32)
    for rh in range(2):
        for rw in range(2):
            ph = rh * 2 + rw
            for dh in range(2):
                for dw in range(2):
                    t = dh * 2 + dw
                    kh = 2 * dh + 1 - rh
                    kw = 2 * dw + 1 - rw
                    wdec[ph, :, t * DIM_IN:(t + 1) * DIM_IN] = wt[:, :, kh, kw].T
    return wdec


def _interp_matrix():
    """(4*PIX, OPIX) phase-major bilinear-x2 matrix.
    Row ph*64 + q*8 + p corresponds to deconv output pixel (2q+rh, 2p+rw)."""
    a_h = _bilinear_matrix(HD, UP_SCALE)        # (HO, HD)
    a_w = _bilinear_matrix(WD, UP_SCALE)        # (WO, WD)
    A = np.zeros((4, H, W, HO, WO), np.float32)
    for rh in range(2):
        for rw in range(2):
            Ah = a_h[:, rh::2]                  # (HO, H)   columns 2q+rh
            Aw = a_w[:, rw::2]                  # (WO, W)   columns 2p+rw
            A[rh * 2 + rw] = np.einsum('oq,wp->qpow', Ah, Aw)
    return A.reshape(4 * PIX, OPIX)


# ================================ fused kernel ================================
def _fused_kernel(x_ref, seg_ref, sm_ref, wdec_ref, bdec_ref, a_ref,
                  w1_ref, b1_ref, w2_ref, b2_ref,
                  wfc1_ref, bfc1_ref, wfc2_ref, bfc2_ref,
                  whead_ref, bhead_ref, gamma_ref,
                  dp_ref, sc_ref,
                  y_scr, stat_scr):
    f32 = jnp.float32
    x = x_ref[...]                                            # (DIM_IN, PIX)

    # ---- ConvTranspose2d(stride=2, k=4, pad=1): 4-phase subpixel decomposition
    # shifted[(sh,sw)][ci, q*W+p] = x[ci, q+sh, p+sw] (0 outside), via matmuls
    shift_ids = {}
    k = 0
    for sh in (-1, 0, 1):
        for sw in (-1, 0, 1):
            shift_ids[(sh, sw)] = k
            k += 1
    shifted = {key: jnp.dot(x, sm_ref[idx], preferred_element_type=f32)
               for key, idx in shift_ids.items()}             # each (DIM_IN, PIX)

    for rh in range(2):
        for rw in range(2):
            ph = rh * 2 + rw
            xs = jnp.concatenate(
                [shifted[(rh - dh, rw - dw)] for dh in range(2) for dw in range(2)],
                axis=0)                                       # (4*DIM_IN, PIX)
            y_ph = jnp.dot(wdec_ref[ph], xs,
                           preferred_element_type=f32)        # (NUM_CLASSES, PIX)
            y_scr[:, ph * PIX:(ph + 1) * PIX] = y_ph

    y = y_scr[...] + bdec_ref[...]                            # (NUM_CLASSES, 4*PIX)

    # ---- bilinear x2 upsample: one K=256 matmul with precomputed matrix
    z = jnp.dot(y, a_ref[...], preferred_element_type=f32)    # (NUM_CLASSES, OPIX)

    # ---- quality: softmax over channels -> top-4 -> stat(5) -> i_conf (1x1 convs)
    seg = seg_ref[...]                                        # (SEGM_C, OPIX)
    m = jnp.max(seg, axis=0, keepdims=True)
    e = jnp.exp(seg - m)
    prob = e / jnp.sum(e, axis=0, keepdims=True)

    cidx = jax.lax.broadcasted_iota(jnp.int32, prob.shape, 0)
    cur = prob
    tops = []
    for s in range(4):                                        # sorted, descending
        v = jnp.max(cur, axis=0, keepdims=True)               # (1, OPIX)
        stat_scr[s:s + 1, :] = v
        tops.append(v)
        # mask out only the first occurrence of the max (torch.topk semantics);
        # -1 sentinel is safe because softmax values are >= 0
        first = jnp.min(jnp.where(cur == v, cidx, SEGM_C), axis=0, keepdims=True)
        cur = jnp.where(cidx == first, -1.0, cur)
    stat_scr[4:5, :] = 0.25 * (tops[0] + tops[1] + tops[2] + tops[3])

    hcf = jnp.dot(w1_ref[...], stat_scr[...],
                  preferred_element_type=f32) + b1_ref[...]   # (64, OPIX)
    hcf = jnp.maximum(hcf, 0.0)
    qual = jnp.dot(w2_ref[...], hcf,
                   preferred_element_type=f32) + b2_ref[...]  # (NUM_CLASSES, OPIX)

    # ---- fuse: densepose_score = interp(deconv(x)) + gamma * quality
    dp_ref[...] = z + gamma_ref[0] * qual                     # lane-dense store

    # ---- avgpool + fc1/relu + fc2/relu + fused mask/i/uv heads
    pooled = jnp.mean(x, axis=1, keepdims=True)               # (DIM_IN, 1)
    h1 = jnp.maximum(jnp.dot(wfc1_ref[...], pooled,
                             preferred_element_type=f32) + bfc1_ref[...], 0.0)
    h2 = jnp.maximum(jnp.dot(wfc2_ref[...], h1,
                             preferred_element_type=f32) + bfc2_ref[...], 0.0)
    sc_ref[...] = jnp.dot(whead_ref[...], h2,
                          preferred_element_type=f32) + bhead_ref[...]   # (3, 1)


# ================================== wrapper ==================================
def densepose_scoring_forward(head_outputs, fine_segm, p):
    """head_outputs: (N, DIM_IN, H, W) NCHW; fine_segm: (N, 25, 4H, 4W) NCHW."""
    n = head_outputs.shape[0]
    x = head_outputs.reshape(n, DIM_IN, PIX)                  # free reshape (NCHW kept)

    if fine_segm.shape[0] != 0:
        seg = fine_segm.reshape(n, SEGM_C, OPIX)
        gamma = p["gamma"]
    else:
        # reference sets quality_score = 0.0 -> drop its contribution
        seg = jnp.zeros((n, SEGM_C, OPIX), jnp.float32)
        gamma = jnp.zeros_like(p["gamma"])

    def const(shape):
        return pl.BlockSpec(shape, lambda b, _s=len(shape): (0,) * _s)

    dp, scores = pl.pallas_call(
        _fused_kernel,
        out_shape=(jax.ShapeDtypeStruct((n, NUM_CLASSES, OPIX), jnp.float32),
                   jax.ShapeDtypeStruct((n, 3, 1), jnp.float32)),
        grid=(n,),
        in_specs=[
            pl.BlockSpec((None, DIM_IN, PIX), lambda b: (b, 0, 0)),       # x
            pl.BlockSpec((None, SEGM_C, OPIX), lambda b: (b, 0, 0)),      # fine_segm
            const((9, PIX, PIX)),                                         # shift mats
            const((4, NUM_CLASSES, 4 * DIM_IN)),                          # wdec
            const((NUM_CLASSES, 1)),                                      # bdec
            const((4 * PIX, OPIX)),                                       # interp A
            const((CONF_HIDDEN, 5)),                                      # i_conf w1
            const((CONF_HIDDEN, 1)),                                      # i_conf b1
            const((NUM_CLASSES, CONF_HIDDEN)),                            # i_conf w2
            const((NUM_CLASSES, 1)),                                      # i_conf b2
            const((FC, DIM_IN)),                                          # fc1
            const((FC, 1)),
            const((FC, FC)),                                              # fc2
            const((FC, 1)),
            const((3, FC)),                                               # fused heads
            const((3, 1)),
            pl.BlockSpec(memory_space=pltpu.MemorySpace.SMEM),            # gamma (1,)
        ],
        out_specs=(pl.BlockSpec((None, NUM_CLASSES, OPIX), lambda b: (b, 0, 0)),
                   pl.BlockSpec((None, 3, 1), lambda b: (b, 0, 0))),
        scratch_shapes=[pltpu.VMEM((NUM_CLASSES, 4 * PIX), jnp.float32),
                        pltpu.VMEM((5, OPIX), jnp.float32)],
        compiler_params=pltpu.CompilerParams(
            dimension_semantics=("parallel",)),   # megacore-shardable on v7x
    )(x, seg, p["shift_m"], p["wdec"], p["bdec"], p["interp"],
      p["w1"], p["b1"], p["w2"], p["b2"],
      p["wfc1"], p["bfc1"], p["wfc2"], p["bfc2"],
      p["whead"], p["bhead"], gamma)

    densepose_score = dp.reshape(n, NUM_CLASSES, HO, WO)      # NCHW, free reshape
    scores = scores.reshape(n, 3)
    return densepose_score, scores[:, 0:1], scores[:, 1:2], scores[:, 2:3]


# --------------------------- synthetic parameters ---------------------------
def init_params(key):
    ks = jax.random.split(key, 6)
    p = {}
    # i_conf: Conv2d(5,64,1) -> ReLU -> Conv2d(64,25,1)  (column-major matmul form)
    p["w1"] = 0.1 * jax.random.normal(ks[0], (CONF_HIDDEN, 5), jnp.float32)
    p["b1"] = jnp.zeros((CONF_HIDDEN, 1), jnp.float32)
    p["w2"] = 0.1 * jax.random.normal(ks[1], (NUM_CLASSES, CONF_HIDDEN), jnp.float32)
    p["b2"] = jnp.zeros((NUM_CLASSES, 1), jnp.float32)
    p["gamma"] = jnp.zeros((1,), jnp.float32)       # nn.Parameter(torch.zeros(1))
    # scoring_lowres: ConvTranspose2d(DIM_IN, 25, 4, stride=2, pad=1)
    wt = np.asarray(0.01 * jax.random.normal(
        ks[2], (DIM_IN, NUM_CLASSES, KERNEL, KERNEL), jnp.float32))
    p["wdec"] = jnp.asarray(_phase_deconv_weights(wt))
    p["bdec"] = jnp.zeros((NUM_CLASSES, 1), jnp.float32)
    # mask-iou MLP (PyTorch Linear layout (out, in)) + fused [mask_iou; i_acc; uv_acc]
    p["wfc1"] = 0.05 * jax.random.normal(ks[3], (FC, DIM_IN), jnp.float32)
    p["bfc1"] = jnp.zeros((FC, 1), jnp.float32)
    p["wfc2"] = 0.05 * jax.random.normal(ks[4], (FC, FC), jnp.float32)
    p["bfc2"] = jnp.zeros((FC, 1), jnp.float32)
    p["whead"] = 0.05 * jax.random.normal(ks[5], (3, FC), jnp.float32)
    p["bhead"] = jnp.zeros((3, 1), jnp.float32)
    # kernel constants (deconv phase shifts, bilinear interp matrix)
    p["shift_m"] = jnp.asarray(_shift_matrices())
    p["interp"] = jnp.asarray(_interp_matrix())
    return p


if __name__ == "__main__":
    key = jax.random.PRNGKey(0)
    k_head, k_segm, k_par = jax.random.split(key, 3)
    head_outputs = jax.random.normal(k_head, (N, DIM_IN, H, W), jnp.float32)
    fine_segm = jax.random.normal(k_segm, (N, SEGM_C, HO, WO), jnp.float32)
    params = init_params(k_par)

    dp, ms, isc, uvs = densepose_scoring_forward(head_outputs, fine_segm, params)
    for t in (dp, ms, isc, uvs):
        jax.block_until_ready(t)

    assert dp.shape == (N, NUM_CLASSES, HO, WO)
    assert ms.shape == (N, 1) and isc.shape == (N, 1) and uvs.shape == (N, 1)
    assert bool(jnp.all(jnp.isfinite(dp)))
    assert bool(jnp.all(jnp.isfinite(ms)))
    assert bool(jnp.all(jnp.isfinite(isc)))
    assert bool(jnp.all(jnp.isfinite(uvs)))
    print("KERNEL_OK")
</pallas_src>

<mosaic_0001>
module attributes {stable_mosaic.version = 11 : i64} {
  func.func @_fused_kernel(%arg0: i32, %arg1: memref<1x16x64xf32, #tpu.memory_space<vmem>>, %arg2: memref<1x25x1024xf32, #tpu.memory_space<vmem>>, %arg3: memref<9x64x64xf32, #tpu.memory_space<vmem>>, %arg4: memref<4x25x64xf32, #tpu.memory_space<vmem>>, %arg5: memref<25x1xf32, #tpu.memory_space<vmem>>, %arg6: memref<256x1024xf32, #tpu.memory_space<vmem>>, %arg7: memref<64x5xf32, #tpu.memory_space<vmem>>, %arg8: memref<64x1xf32, #tpu.memory_space<vmem>>, %arg9: memref<25x64xf32, #tpu.memory_space<vmem>>, %arg10: memref<25x1xf32, #tpu.memory_space<vmem>>, %arg11: memref<256x16xf32, #tpu.memory_space<vmem>>, %arg12: memref<256x1xf32, #tpu.memory_space<vmem>>, %arg13: memref<256x256xf32, #tpu.memory_space<vmem>>, %arg14: memref<256x1xf32, #tpu.memory_space<vmem>>, %arg15: memref<3x256xf32, #tpu.memory_space<vmem>>, %arg16: memref<3x1xf32, #tpu.memory_space<vmem>>, %arg17: memref<1xf32, #tpu.memory_space<smem>>, %arg18: memref<1x25x1024xf32, #tpu.memory_space<vmem>>, %arg19: memref<1x3x1xf32, #tpu.memory_space<vmem>>, %arg20: memref<25x256xf32, #tpu.memory_space<vmem>>, %arg21: memref<5x1024xf32, #tpu.memory_space<vmem>>) attributes {dimension_semantics = [#tpu.dimension_semantics<parallel>], iteration_bounds = array<i64: 2>, scalar_prefetch = 0 : i64, scratch_operands = 2 : i64, tpu.core_type = #tpu.core_type<tc>, window_params = [{transform_indices = @transform_0, window_bounds = array<i64: 1, 16, 64>}, {transform_indices = @transform_1, window_bounds = array<i64: 1, 25, 1024>}, {pipeline_mode = #tpu.pipeline_mode<synchronous>, transform_indices = @transform_2, window_bounds = array<i64: 9, 64, 64>}, {pipeline_mode = #tpu.pipeline_mode<synchronous>, transform_indices = @transform_3, window_bounds = array<i64: 4, 25, 64>}, {pipeline_mode = #tpu.pipeline_mode<synchronous>, transform_indices = @transform_4, window_bounds = array<i64: 25, 1>}, {pipeline_mode = #tpu.pipeline_mode<synchronous>, transform_indices = @transform_5, window_bounds = array<i64: 256, 1024>}, {pipeline_mode = #tpu.pipeline_mode<synchronous>, transform_indices = @transform_6, window_bounds = array<i64: 64, 5>}, {pipeline_mode = #tpu.pipeline_mode<synchronous>, transform_indices = @transform_7, window_bounds = array<i64: 64, 1>}, {pipeline_mode = #tpu.pipeline_mode<synchronous>, transform_indices = @transform_8, window_bounds = array<i64: 25, 64>}, {pipeline_mode = #tpu.pipeline_mode<synchronous>, transform_indices = @transform_9, window_bounds = array<i64: 25, 1>}, {pipeline_mode = #tpu.pipeline_mode<synchronous>, transform_indices = @transform_10, window_bounds = array<i64: 256, 16>}, {pipeline_mode = #tpu.pipeline_mode<synchronous>, transform_indices = @transform_11, window_bounds = array<i64: 256, 1>}, {pipeline_mode = #tpu.pipeline_mode<synchronous>, transform_indices = @transform_12, window_bounds = array<i64: 256, 256>}, {pipeline_mode = #tpu.pipeline_mode<synchronous>, transform_indices = @transform_13, window_bounds = array<i64: 256, 1>}, {pipeline_mode = #tpu.pipeline_mode<synchronous>, transform_indices = @transform_14, window_bounds = array<i64: 3, 256>}, {pipeline_mode = #tpu.pipeline_mode<synchronous>, transform_indices = @transform_15, window_bounds = array<i64: 3, 1>}, {transform_indices = @transform_16, window_bounds = array<i64: 1>}, {transform_indices = @transform_17, window_bounds = array<i64: 1, 25, 1024>}, {transform_indices = @transform_18, window_bounds = array<i64: 1, 3, 1>}]} {
    %c0 = arith.constant 0 : index
    %c0_0 = arith.constant 0 : index
    %c0_1 = arith.constant 0 : index
    %0 = vector.load %arg1[%c0, %c0_0, %c0_1] : memref<1x16x64xf32, #tpu.memory_space<vmem>>, vector<1x16x64xf32>
    %1 = vector.shape_cast %0 : vector<1x16x64xf32> to vector<16x64xf32>
    %c0_2 = arith.constant 0 : index
    %c0_3 = arith.constant 0 : index
    %c0_4 = arith.constant 0 : index
    %2 = vector.load %arg3[%c0_2, %c0_3, %c0_4] : memref<9x64x64xf32, #tpu.memory_space<vmem>>, vector<1x64x64xf32>
    %3 = vector.shape_cast %2 : vector<1x64x64xf32> to vector<64x64xf32>
    %cst = arith.constant dense<0.000000e+00> : vector<16x64xf32>
    %4 = tpu.matmul %1, %3, %cst {dimension_numbers = #tpu.dot_dimension_numbers<[1], [0], [0], [1], [0, 0, 1, 1], [], []>} : vector<16x64xf32>, vector<64x64xf32>, vector<16x64xf32> -> vector<16x64xf32>
    %c1 = arith.constant 1 : index
    %c0_5 = arith.constant 0 : index
    %c0_6 = arith.constant 0 : index
    %5 = vector.load %arg3[%c1, %c0_5, %c0_6] : memref<9x64x64xf32, #tpu.memory_space<vmem>>, vector<1x64x64xf32>
    %6 = vector.shape_cast %5 : vector<1x64x64xf32> to vector<64x64xf32>
    %cst_7 = arith.constant dense<0.000000e+00> : vector<16x64xf32>
    %7 = tpu.matmul %1, %6, %cst_7 {dimension_numbers = #tpu.dot_dimension_numbers<[1], [0], [0], [1], [0, 0, 1, 1], [], []>} : vector<16x64xf32>, vector<64x64xf32>, vector<16x64xf32> -> vector<16x64xf32>
    %c2 = arith.constant 2 : index
    %c0_8 = arith.constant 0 : index
    %c0_9 = arith.constant 0 : index
    %8 = vector.load %arg3[%c2, %c0_8, %c0_9] : memref<9x64x64xf32, #tpu.memory_space<vmem>>, vector<1x64x64xf32>
    %9 = vector.shape_cast %8 : vector<1x64x64xf32> to vector<64x64xf32>
    %cst_10 = arith.constant dense<0.000000e+00> : vector<16x64xf32>
    %10 = tpu.matmul %1, %9, %cst_10 {dimension_numbers = #tpu.dot_dimension_numbers<[1], [0], [0], [1], [0, 0, 1, 1], [], []>} : vector<16x64xf32>, vector<64x64xf32>, vector<16x64xf32> -> vector<16x64xf32>
    %c3 = arith.constant 3 : index
    %c0_11 = arith.constant 0 : index
    %c0_12 = arith.constant 0 : index
    %11 = vector.load %arg3[%c3, %c0_11, %c0_12] : memref<9x64x64xf32, #tpu.memory_space<vmem>>, vector<1x64x64xf32>
    %12 = vector.shape_cast %11 : vector<1x64x64xf32> to vector<64x64xf32>
    %cst_13 = arith.constant dense<0.000000e+00> : vector<16x64xf32>
    %13 = tpu.matmul %1, %12, %cst_13 {dimension_numbers = #tpu.dot_dimension_numbers<[1], [0], [0], [1], [0, 0, 1, 1], [], []>} : vector<16x64xf32>, vector<64x64xf32>, vector<16x64xf32> -> vector<16x64xf32>
    %c4 = arith.constant 4 : index
    %c0_14 = arith.constant 0 : index
    %c0_15 = arith.constant 0 : index
    %14 = vector.load %arg3[%c4, %c0_14, %c0_15] : memref<9x64x64xf32, #tpu.memory_space<vmem>>, vector<1x64x64xf32>
    %15 = vector.shape_cast %14 : vector<1x64x64xf32> to vector<64x64xf32>
    %cst_16 = arith.constant dense<0.000000e+00> : vector<16x64xf32>
    %16 = tpu.matmul %1, %15, %cst_16 {dimension_numbers = #tpu.dot_dimension_numbers<[1], [0], [0], [1], [0, 0, 1, 1], [], []>} : vector<16x64xf32>, vector<64x64xf32>, vector<16x64xf32> -> vector<16x64xf32>
    %c5 = arith.constant 5 : index
    %c0_17 = arith.constant 0 : index
    %c0_18 = arith.constant 0 : index
    %17 = vector.load %arg3[%c5, %c0_17, %c0_18] : memref<9x64x64xf32, #tpu.memory_space<vmem>>, vector<1x64x64xf32>
    %18 = vector.shape_cast %17 : vector<1x64x64xf32> to vector<64x64xf32>
    %cst_19 = arith.constant dense<0.000000e+00> : vector<16x64xf32>
    %19 = tpu.matmul %1, %18, %cst_19 {dimension_numbers = #tpu.dot_dimension_numbers<[1], [0], [0], [1], [0, 0, 1, 1], [], []>} : vector<16x64xf32>, vector<64x64xf32>, vector<16x64xf32> -> vector<16x64xf32>
    %c6 = arith.constant 6 : index
    %c0_20 = arith.constant 0 : index
    %c0_21 = arith.constant 0 : index
    %20 = vector.load %arg3[%c6, %c0_20, %c0_21] : memref<9x64x64xf32, #tpu.memory_space<vmem>>, vector<1x64x64xf32>
    %21 = vector.shape_cast %20 : vector<1x64x64xf32> to vector<64x64xf32>
    %cst_22 = arith.constant dense<0.000000e+00> : vector<16x64xf32>
    %22 = tpu.matmul %1, %21, %cst_22 {dimension_numbers = #tpu.dot_dimension_numbers<[1], [0], [0], [1], [0, 0, 1, 1], [], []>} : vector<16x64xf32>, vector<64x64xf32>, vector<16x64xf32> -> vector<16x64xf32>
    %c7 = arith.constant 7 : index
    %c0_23 = arith.constant 0 : index
    %c0_24 = arith.constant 0 : index
    %23 = vector.load %arg3[%c7, %c0_23, %c0_24] : memref<9x64x64xf32, #tpu.memory_space<vmem>>, vector<1x64x64xf32>
    %24 = vector.shape_cast %23 : vector<1x64x64xf32> to vector<64x64xf32>
    %cst_25 = arith.constant dense<0.000000e+00> : vector<16x64xf32>
    %25 = tpu.matmul %1, %24, %cst_25 {dimension_numbers = #tpu.dot_dimension_numbers<[1], [0], [0], [1], [0, 0, 1, 1], [], []>} : vector<16x64xf32>, vector<64x64xf32>, vector<16x64xf32> -> vector<16x64xf32>
    %c8 = arith.constant 8 : index
    %c0_26 = arith.constant 0 : index
    %c0_27 = arith.constant 0 : index
    %26 = vector.load %arg3[%c8, %c0_26, %c0_27] : memref<9x64x64xf32, #tpu.memory_space<vmem>>, vector<1x64x64xf32>
    %27 = vector.shape_cast %26 : vector<1x64x64xf32> to vector<64x64xf32>
    %cst_28 = arith.constant dense<0.000000e+00> : vector<16x64xf32>
    %28 = tpu.matmul %1, %27, %cst_28 {dimension_numbers = #tpu.dot_dimension_numbers<[1], [0], [0], [1], [0, 0, 1, 1], [], []>} : vector<16x64xf32>, vector<64x64xf32>, vector<16x64xf32> -> vector<16x64xf32>
    %29 = tpu.concatenate %16, %13, %7, %4 in 0 : vector<16x64xf32>, vector<16x64xf32>, vector<16x64xf32>, vector<16x64xf32> -> vector<64x64xf32>
    %c0_29 = arith.constant 0 : index
    %c0_30 = arith.constant 0 : index
    %c0_31 = arith.constant 0 : index
    %30 = vector.load %arg4[%c0_29, %c0_30, %c0_31] : memref<4x25x64xf32, #tpu.memory_space<vmem>>, vector<1x25x64xf32>
    %31 = vector.shape_cast %30 : vector<1x25x64xf32> to vector<25x64xf32>
    %cst_32 = arith.constant dense<0.000000e+00> : vector<25x64xf32>
    %32 = tpu.matmul %31, %29, %cst_32 {dimension_numbers = #tpu.dot_dimension_numbers<[1], [0], [0], [1], [0, 0, 1, 1], [], []>} : vector<25x64xf32>, vector<64x64xf32>, vector<25x64xf32> -> vector<25x64xf32>
    %c0_33 = arith.constant 0 : index
    %c0_34 = arith.constant 0 : index
    %33 = vector.load %arg20[%c0_33, %c0_34] : memref<25x256xf32, #tpu.memory_space<vmem>>, vector<25x64xf32>
    tpu.vector_store %arg20[%c0_33, %c0_34], %32 {strides = array<i32>} : memref<25x256xf32, #tpu.memory_space<vmem>>, vector<25x64xf32>,
    %34 = tpu.concatenate %19, %16, %10, %7 in 0 : vector<16x64xf32>, vector<16x64xf32>, vector<16x64xf32>, vector<16x64xf32> -> vector<64x64xf32>
    %c1_35 = arith.constant 1 : index
    %c0_36 = arith.constant 0 : index
    %c0_37 = arith.constant 0 : index
    %35 = vector.load %arg4[%c1_35, %c0_36, %c0_37] : memref<4x25x64xf32, #tpu.memory_space<vmem>>, vector<1x25x64xf32>
    %36 = vector.shape_cast %35 : vector<1x25x64xf32> to vector<25x64xf32>
    %cst_38 = arith.constant dense<0.000000e+00> : vector<25x64xf32>
    %37 = tpu.matmul %36, %34, %cst_38 {dimension_numbers = #tpu.dot_dimension_numbers<[1], [0], [0], [1], [0, 0, 1, 1], [], []>} : vector<25x64xf32>, vector<64x64xf32>, vector<25x64xf32> -> vector<25x64xf32>
    %c0_39 = arith.constant 0 : index
    %c64 = arith.constant 64 : index
    %38 = vector.load %arg20[%c0_39, %c64] : memref<25x256xf32, #tpu.memory_space<vmem>>, vector<25x64xf32>
    tpu.vector_store %arg20[%c0_39, %c64], %37 {strides = array<i32>} : memref<25x256xf32, #tpu.memory_space<vmem>>, vector<25x64xf32>,
    %39 = tpu.concatenate %25, %22, %16, %13 in 0 : vector<16x64xf32>, vector<16x64xf32>, vector<16x64xf32>, vector<16x64xf32> -> vector<64x64xf32>
    %c2_40 = arith.constant 2 : index
    %c0_41 = arith.constant 0 : index
    %c0_42 = arith.constant 0 : index
    %40 = vector.load %arg4[%c2_40, %c0_41, %c0_42] : memref<4x25x64xf32, #tpu.memory_space<vmem>>, vector<1x25x64xf32>
    %41 = vector.shape_cast %40 : vector<1x25x64xf32> to vector<25x64xf32>
    %cst_43 = arith.constant dense<0.000000e+00> : vector<25x64xf32>
    %42 = tpu.matmul %41, %39, %cst_43 {dimension_numbers = #tpu.dot_dimension_numbers<[1], [0], [0], [1], [0, 0, 1, 1], [], []>} : vector<25x64xf32>, vector<64x64xf32>, vector<25x64xf32> -> vector<25x64xf32>
    %c0_44 = arith.constant 0 : index
    %c128 = arith.constant 128 : index
    %43 = vector.load %arg20[%c0_44, %c128] : memref<25x256xf32, #tpu.memory_space<vmem>>, vector<25x64xf32>
    tpu.vector_store %arg20[%c0_44, %c128], %42 {strides = array<i32>} : memref<25x256xf32, #tpu.memory_space<vmem>>, vector<25x64xf32>,
    %44 = tpu.concatenate %28, %25, %19, %16 in 0 : vector<16x64xf32>, vector<16x64xf32>, vector<16x64xf32>, vector<16x64xf32> -> vector<64x64xf32>
    %c3_45 = arith.constant 3 : index
    %c0_46 = arith.constant 0 : index
    %c0_47 = arith.constant 0 : index
    %45 = vector.load %arg4[%c3_45, %c0_46, %c0_47] : memref<4x25x64xf32, #tpu.memory_space<vmem>>, vector<1x25x64xf32>
    %46 = vector.shape_cast %45 : vector<1x25x64xf32> to vector<25x64xf32>
    %cst_48 = arith.constant dense<0.000000e+00> : vector<25x64xf32>
    %47 = tpu.matmul %46, %44, %cst_48 {dimension_numbers = #tpu.dot_dimension_numbers<[1], [0], [0], [1], [0, 0, 1, 1], [], []>} : vector<25x64xf32>, vector<64x64xf32>, vector<25x64xf32> -> vector<25x64xf32>
    %c0_49 = arith.constant 0 : index
    %c192 = arith.constant 192 : index
    %48 = vector.load %arg20[%c0_49, %c192] : memref<25x256xf32, #tpu.memory_space<vmem>>, vector<25x64xf32>
    tpu.vector_store %arg20[%c0_49, %c192], %47 {strides = array<i32>} : memref<25x256xf32, #tpu.memory_space<vmem>>, vector<25x64xf32>,
    %c0_50 = arith.constant 0 : index
    %c0_51 = arith.constant 0 : index
    %49 = vector.load %arg20[%c0_50, %c0_51] : memref<25x256xf32, #tpu.memory_space<vmem>>, vector<25x256xf32>
    %c0_52 = arith.constant 0 : index
    %c0_53 = arith.constant 0 : index
    %50 = vector.load %arg5[%c0_52, %c0_53] : memref<25x1xf32, #tpu.memory_space<vmem>>, vector<25x1xf32>
    %51 = vector.broadcast %50 : vector<25x1xf32> to vector<25x256xf32>
    %52 = arith.addf %49, %51 : vector<25x256xf32>
    %c0_54 = arith.constant 0 : index
    %c0_55 = arith.constant 0 : index
    %53 = vector.load %arg6[%c0_54, %c0_55] : memref<256x1024xf32, #tpu.memory_space<vmem>>, vector<256x1024xf32>
    %cst_56 = arith.constant dense<0.000000e+00> : vector<25x1024xf32>
    %54 = tpu.matmul %52, %53, %cst_56 {dimension_numbers = #tpu.dot_dimension_numbers<[1], [0], [0], [1], [0, 0, 1, 1], [], []>} : vector<25x256xf32>, vector<256x1024xf32>, vector<25x1024xf32> -> vector<25x1024xf32>
    %c0_57 = arith.constant 0 : index
    %c0_58 = arith.constant 0 : index
    %c0_59 = arith.constant 0 : index
    %55 = vector.load %arg2[%c0_57, %c0_58, %c0_59] : memref<1x25x1024xf32, #tpu.memory_space<vmem>>, vector<1x25x1024xf32>
    %56 = vector.shape_cast %55 : vector<1x25x1024xf32> to vector<25x1024xf32>
    %cst_60 = arith.constant dense<0xFF800000> : vector<1024xf32>
    %57 = vector.multi_reduction <maximumf>, %56, %cst_60 [0] : vector<25x1024xf32> to vector<1024xf32>
    %58 = vector.shape_cast %57 : vector<1024xf32> to vector<1x1024xf32>
    %59 = vector.broadcast %58 : vector<1x1024xf32> to vector<25x1024xf32>
    %60 = arith.subf %56, %59 : vector<25x1024xf32>
    %61 = math.exp %60 : vector<25x1024xf32>
    %cst_61 = arith.constant dense<0.000000e+00> : vector<1024xf32>
    %62 = vector.multi_reduction <add>, %61, %cst_61 [0] : vector<25x1024xf32> to vector<1024xf32>
    %63 = vector.shape_cast %62 : vector<1024xf32> to vector<1x1024xf32>
    %64 = vector.broadcast %63 : vector<1x1024xf32> to vector<25x1024xf32>
    %65 = arith.divf %61, %64 : vector<25x1024xf32>
    %66 = tpu.iota {dimensions = array<i32: 0>} : vector<25x1024xi32>
    %cst_62 = arith.constant dense<0xFF800000> : vector<1024xf32>
    %67 = vector.multi_reduction <maximumf>, %65, %cst_62 [0] : vector<25x1024xf32> to vector<1024xf32>
    %68 = vector.shape_cast %67 : vector<1024xf32> to vector<1x1024xf32>
    %c0_63 = arith.constant 0 : index
    %c0_64 = arith.constant 0 : index
    %69 = vector.load %arg21[%c0_63, %c0_64] : memref<5x1024xf32, #tpu.memory_space<vmem>>, vector<1x1024xf32>
    tpu.vector_store %arg21[%c0_63, %c0_64], %68 {strides = array<i32>} : memref<5x1024xf32, #tpu.memory_space<vmem>>, vector<1x1024xf32>,
    %70 = vector.broadcast %68 : vector<1x1024xf32> to vector<25x1024xf32>
    %71 = arith.cmpf oeq, %65, %70 : vector<25x1024xf32>
    %c25_i32 = arith.constant 25 : i32
    %72 = vector.broadcast %c25_i32 : i32 to vector<25x1024xi32>
    %73 = arith.select %71, %66, %72 : vector<25x1024xi1>, vector<25x1024xi32>
    %cst_65 = arith.constant dense<2147483647> : vector<1024xi32>
    %74 = vector.multi_reduction <minsi>, %73, %cst_65 [0] : vector<25x1024xi32> to vector<1024xi32>
    %75 = vector.shape_cast %74 : vector<1024xi32> to vector<1x1024xi32>
    %76 = vector.broadcast %75 : vector<1x1024xi32> to vector<25x1024xi32>
    %77 = arith.cmpi eq, %66, %76 : vector<25x1024xi32>
    %cst_66 = arith.constant -1.000000e+00 : f32
    %78 = vector.broadcast %cst_66 : f32 to vector<25x1024xf32>
    %79 = arith.select %77, %78, %65 : vector<25x1024xi1>, vector<25x1024xf32>
    %cst_67 = arith.constant dense<0xFF800000> : vector<1024xf32>
    %80 = vector.multi_reduction <maximumf>, %79, %cst_67 [0] : vector<25x1024xf32> to vector<1024xf32>
    %81 = vector.shape_cast %80 : vector<1024xf32> to vector<1x1024xf32>
    %c1_68 = arith.constant 1 : index
    %c0_69 = arith.constant 0 : index
    %82 = vector.load %arg21[%c1_68, %c0_69] : memref<5x1024xf32, #tpu.memory_space<vmem>>, vector<1x1024xf32>
    tpu.vector_store %arg21[%c1_68, %c0_69], %81 {strides = array<i32>} : memref<5x1024xf32, #tpu.memory_space<vmem>>, vector<1x1024xf32>,
    %83 = vector.broadcast %81 : vector<1x1024xf32> to vector<25x1024xf32>
    %84 = arith.cmpf oeq, %79, %83 : vector<25x1024xf32>
    %c25_i32_70 = arith.constant 25 : i32
    %85 = vector.broadcast %c25_i32_70 : i32 to vector<25x1024xi32>
    %86 = arith.select %84, %66, %85 : vector<25x1024xi1>, vector<25x1024xi32>
    %cst_71 = arith.constant dense<2147483647> : vector<1024xi32>
    %87 = vector.multi_reduction <minsi>, %86, %cst_71 [0] : vector<25x1024xi32> to vector<1024xi32>
    %88 = vector.shape_cast %87 : vector<1024xi32> to vector<1x1024xi32>
    %89 = vector.broadcast %88 : vector<1x1024xi32> to vector<25x1024xi32>
    %90 = arith.cmpi eq, %66, %89 : vector<25x1024xi32>
    %cst_72 = arith.constant -1.000000e+00 : f32
    %91 = vector.broadcast %cst_72 : f32 to vector<25x1024xf32>
    %92 = arith.select %90, %91, %79 : vector<25x1024xi1>, vector<25x1024xf32>
    %cst_73 = arith.constant dense<0xFF800000> : vector<1024xf32>
    %93 = vector.multi_reduction <maximumf>, %92, %cst_73 [0] : vector<25x1024xf32> to vector<1024xf32>
    %94 = vector.shape_cast %93 : vector<1024xf32> to vector<1x1024xf32>
    %c2_74 = arith.constant 2 : index
    %c0_75 = arith.constant 0 : index
    %95 = vector.load %arg21[%c2_74, %c0_75] : memref<5x1024xf32, #tpu.memory_space<vmem>>, vector<1x1024xf32>
    tpu.vector_store %arg21[%c2_74, %c0_75], %94 {strides = array<i32>} : memref<5x1024xf32, #tpu.memory_space<vmem>>, vector<1x1024xf32>,
    %96 = vector.broadcast %94 : vector<1x1024xf32> to vector<25x1024xf32>
    %97 = arith.cmpf oeq, %92, %96 : vector<25x1024xf32>
    %c25_i32_76 = arith.constant 25 : i32
    %98 = vector.broadcast %c25_i32_76 : i32 to vector<25x1024xi32>
    %99 = arith.select %97, %66, %98 : vector<25x1024xi1>, vector<25x1024xi32>
    %cst_77 = arith.constant dense<2147483647> : vector<1024xi32>
    %100 = vector.multi_reduction <minsi>, %99, %cst_77 [0] : vector<25x1024xi32> to vector<1024xi32>
    %101 = vector.shape_cast %100 : vector<1024xi32> to vector<1x1024xi32>
    %102 = vector.broadcast %101 : vector<1x1024xi32> to vector<25x1024xi32>
    %103 = arith.cmpi eq, %66, %102 : vector<25x1024xi32>
    %cst_78 = arith.constant -1.000000e+00 : f32
    %104 = vector.broadcast %cst_78 : f32 to vector<25x1024xf32>
    %105 = arith.select %103, %104, %92 : vector<25x1024xi1>, vector<25x1024xf32>
    %cst_79 = arith.constant dense<0xFF800000> : vector<1024xf32>
    %106 = vector.multi_reduction <maximumf>, %105, %cst_79 [0] : vector<25x1024xf32> to vector<1024xf32>
    %107 = vector.shape_cast %106 : vector<1024xf32> to vector<1x1024xf32>
    %c3_80 = arith.constant 3 : index
    %c0_81 = arith.constant 0 : index
    %108 = vector.load %arg21[%c3_80, %c0_81] : memref<5x1024xf32, #tpu.memory_space<vmem>>, vector<1x1024xf32>
    tpu.vector_store %arg21[%c3_80, %c0_81], %107 {strides = array<i32>} : memref<5x1024xf32, #tpu.memory_space<vmem>>, vector<1x1024xf32>,
    %109 = arith.addf %68, %81 : vector<1x1024xf32>
    %110 = arith.addf %109, %94 : vector<1x1024xf32>
    %111 = arith.addf %110, %107 : vector<1x1024xf32>
    %cst_82 = arith.constant 2.500000e-01 : f32
    %112 = vector.broadcast %cst_82 : f32 to vector<1x1024xf32>
    %113 = arith.mulf %112, %111 : vector<1x1024xf32>
    %c4_83 = arith.constant 4 : index
    %c0_84 = arith.constant 0 : index
    %114 = vector.load %arg21[%c4_83, %c0_84] : memref<5x1024xf32, #tpu.memory_space<vmem>>, vector<1x1024xf32>
    tpu.vector_store %arg21[%c4_83, %c0_84], %113 {strides = array<i32>} : memref<5x1024xf32, #tpu.memory_space<vmem>>, vector<1x1024xf32>,
    %c0_85 = arith.constant 0 : index
    %c0_86 = arith.constant 0 : index
    %115 = vector.load %arg7[%c0_85, %c0_86] : memref<64x5xf32, #tpu.memory_space<vmem>>, vector<64x5xf32>
    %c0_87 = arith.constant 0 : index
    %c0_88 = arith.constant 0 : index
    %116 = vector.load %arg21[%c0_87, %c0_88] : memref<5x1024xf32, #tpu.memory_space<vmem>>, vector<5x1024xf32>
    %cst_89 = arith.constant dense<0.000000e+00> : vector<64x1024xf32>
    %117 = tpu.matmul %115, %116, %cst_89 {dimension_numbers = #tpu.dot_dimension_numbers<[1], [0], [0], [1], [0, 0, 1, 1], [], []>} : vector<64x5xf32>, vector<5x1024xf32>, vector<64x1024xf32> -> vector<64x1024xf32>
    %c0_90 = arith.constant 0 : index
    %c0_91 = arith.constant 0 : index
    %118 = vector.load %arg8[%c0_90, %c0_91] : memref<64x1xf32, #tpu.memory_space<vmem>>, vector<64x1xf32>
    %119 = vector.broadcast %118 : vector<64x1xf32> to vector<64x1024xf32>
    %120 = arith.addf %117, %119 : vector<64x1024xf32>
    %cst_92 = arith.constant 0.000000e+00 : f32
    %121 = vector.broadcast %cst_92 : f32 to vector<64x1024xf32>
    %122 = arith.maximumf %120, %121 : vector<64x1024xf32>
    %c0_93 = arith.constant 0 : index
    %c0_94 = arith.constant 0 : index
    %123 = vector.load %arg9[%c0_93, %c0_94] : memref<25x64xf32, #tpu.memory_space<vmem>>, vector<25x64xf32>
    %cst_95 = arith.constant dense<0.000000e+00> : vector<25x1024xf32>
    %124 = tpu.matmul %123, %122, %cst_95 {dimension_numbers = #tpu.dot_dimension_numbers<[1], [0], [0], [1], [0, 0, 1, 1], [], []>} : vector<25x64xf32>, vector<64x1024xf32>, vector<25x1024xf32> -> vector<25x1024xf32>
    %c0_96 = arith.constant 0 : index
    %c0_97 = arith.constant 0 : index
    %125 = vector.load %arg10[%c0_96, %c0_97] : memref<25x1xf32, #tpu.memory_space<vmem>>, vector<25x1xf32>
    %126 = vector.broadcast %125 : vector<25x1xf32> to vector<25x1024xf32>
    %127 = arith.addf %124, %126 : vector<25x1024xf32>
    %c0_98 = arith.constant 0 : index
    %128 = memref.load %arg17[%c0_98] : memref<1xf32, #tpu.memory_space<smem>>
    %129 = vector.broadcast %128 : f32 to vector<25x1024xf32>
    %130 = arith.mulf %129, %127 : vector<25x1024xf32>
    %131 = arith.addf %54, %130 : vector<25x1024xf32>
    %c0_99 = arith.constant 0 : index
    %c0_100 = arith.constant 0 : index
    %c0_101 = arith.constant 0 : index
    %132 = vector.load %arg18[%c0_99, %c0_100, %c0_101] : memref<1x25x1024xf32, #tpu.memory_space<vmem>>, vector<1x25x1024xf32>
    %133 = vector.shape_cast %132 : vector<1x25x1024xf32> to vector<25x1024xf32>
    %134 = vector.shape_cast %131 : vector<25x1024xf32> to vector<1x25x1024xf32>
    tpu.vector_store %arg18[%c0_99, %c0_100, %c0_101], %134 {strides = array<i32>} : memref<1x25x1024xf32, #tpu.memory_space<vmem>>, vector<1x25x1024xf32>,
    %cst_102 = arith.constant dense<0.000000e+00> : vector<16xf32>
    %135 = vector.multi_reduction <add>, %1, %cst_102 [1] : vector<16x64xf32> to vector<16xf32>
    %136 = vector.shape_cast %135 : vector<16xf32> to vector<16x1xf32>
    %cst_103 = arith.constant 6.400000e+01 : f32
    %137 = vector.broadcast %cst_103 : f32 to vector<16x1xf32>
    %138 = arith.divf %136, %137 : vector<16x1xf32>
    %c0_104 = arith.constant 0 : index
    %c0_105 = arith.constant 0 : index
    %139 = vector.load %arg11[%c0_104, %c0_105] : memref<256x16xf32, #tpu.memory_space<vmem>>, vector<256x16xf32>
    %cst_106 = arith.constant dense<0.000000e+00> : vector<256x1xf32>
    %140 = tpu.matmul %139, %138, %cst_106 {dimension_numbers = #tpu.dot_dimension_numbers<[1], [0], [0], [1], [0, 0, 1, 1], [], []>} : vector<256x16xf32>, vector<16x1xf32>, vector<256x1xf32> -> vector<256x1xf32>
    %c0_107 = arith.constant 0 : index
    %c0_108 = arith.constant 0 : index
    %141 = vector.load %arg12[%c0_107, %c0_108] : memref<256x1xf32, #tpu.memory_space<vmem>>, vector<256x1xf32>
    %142 = arith.addf %140, %141 : vector<256x1xf32>
    %cst_109 = arith.constant 0.000000e+00 : f32
    %143 = vector.broadcast %cst_109 : f32 to vector<256x1xf32>
    %144 = arith.maximumf %142, %143 : vector<256x1xf32>
    %c0_110 = arith.constant 0 : index
    %c0_111 = arith.constant 0 : index
    %145 = vector.load %arg13[%c0_110, %c0_111] : memref<256x256xf32, #tpu.memory_space<vmem>>, vector<256x256xf32>
    %cst_112 = arith.constant dense<0.000000e+00> : vector<256x1xf32>
    %146 = tpu.matmul %145, %144, %cst_112 {dimension_numbers = #tpu.dot_dimension_numbers<[1], [0], [0], [1], [0, 0, 1, 1], [], []>} : vector<256x256xf32>, vector<256x1xf32>, vector<256x1xf32> -> vector<256x1xf32>
    %c0_113 = arith.constant 0 : index
    %c0_114 = arith.constant 0 : index
    %147 = vector.load %arg14[%c0_113, %c0_114] : memref<256x1xf32, #tpu.memory_space<vmem>>, vector<256x1xf32>
    %148 = arith.addf %146, %147 : vector<256x1xf32>
    %cst_115 = arith.constant 0.000000e+00 : f32
    %149 = vector.broadcast %cst_115 : f32 to vector<256x1xf32>
    %150 = arith.maximumf %148, %149 : vector<256x1xf32>
    %c0_116 = arith.constant 0 : index
    %c0_117 = arith.constant 0 : index
    %151 = vector.load %arg15[%c0_116, %c0_117] : memref<3x256xf32, #tpu.memory_space<vmem>>, vector<3x256xf32>
    %cst_118 = arith.constant dense<0.000000e+00> : vector<3x1xf32>
    %152 = tpu.matmul %151, %150, %cst_118 {dimension_numbers = #tpu.dot_dimension_numbers<[1], [0], [0], [1], [0, 0, 1, 1], [], []>} : vector<3x256xf32>, vector<256x1xf32>, vector<3x1xf32> -> vector<3x1xf32>
    %c0_119 = arith.constant 0 : index
    %c0_120 = arith.constant 0 : index
    %153 = vector.load %arg16[%c0_119, %c0_120] : memref<3x1xf32, #tpu.memory_space<vmem>>, vector<3x1xf32>
    %154 = arith.addf %152, %153 : vector<3x1xf32>
    %c0_121 = arith.constant 0 : index
    %c0_122 = arith.constant 0 : index
    %c0_123 = arith.constant 0 : index
    %155 = vector.load %arg19[%c0_121, %c0_122, %c0_123] : memref<1x3x1xf32, #tpu.memory_space<vmem>>, vector<1x3x1xf32>
    %156 = vector.shape_cast %155 : vector<1x3x1xf32> to vector<3x1xf32>
    %157 = vector.shape_cast %154 : vector<3x1xf32> to vector<1x3x1xf32>
    tpu.vector_store %arg19[%c0_121, %c0_122, %c0_123], %157 {strides = array<i32>} : memref<1x3x1xf32, #tpu.memory_space<vmem>>, vector<1x3x1xf32>,
    return
  }
  func.func @transform_0(%arg0: i32) -> (i32, i32, i32) {
    %c0_i32 = arith.constant 0 : i32
    %c0_i32_0 = arith.constant 0 : i32
    %c0_i32_1 = arith.constant 0 : i32
    return %arg0, %c0_i32, %c0_i32_0 : i32, i32, i32
  }
  func.func @transform_1(%arg0: i32) -> (i32, i32, i32) {
    %c0_i32 = arith.constant 0 : i32
    %c0_i32_0 = arith.constant 0 : i32
    %c0_i32_1 = arith.constant 0 : i32
    return %arg0, %c0_i32, %c0_i32_0 : i32, i32, i32
  }
  func.func @transform_2(%arg0: i32) -> (i32, i32, i32) {
    %c0_i32 = arith.constant 0 : i32
    %c0_i32_0 = arith.constant 0 : i32
    %c0_i32_1 = arith.constant 0 : i32
    %c0_i32_2 = arith.constant 0 : i32
    return %c0_i32, %c0_i32_0, %c0_i32_1 : i32, i32, i32
  }
  func.func @transform_3(%arg0: i32) -> (i32, i32, i32) {
    %c0_i32 = arith.constant 0 : i32
    %c0_i32_0 = arith.constant 0 : i32
    %c0_i32_1 = arith.constant 0 : i32
    %c0_i32_2 = arith.constant 0 : i32
    return %c0_i32, %c0_i32_0, %c0_i32_1 : i32, i32, i32
  }
  func.func @transform_4(%arg0: i32) -> (i32, i32) {
    %c0_i32 = arith.constant 0 : i32
    %c0_i32_0 = arith.constant 0 : i32
    %c0_i32_1 = arith.constant 0 : i32
    return %c0_i32, %c0_i32_0 : i32, i32
  }
  func.func @transform_5(%arg0: i32) -> (i32, i32) {
    %c0_i32 = arith.constant 0 : i32
    %c0_i32_0 = arith.constant 0 : i32
    %c0_i32_1 = arith.constant 0 : i32
    return %c0_i32, %c0_i32_0 : i32, i32
  }
  func.func @transform_6(%arg0: i32) -> (i32, i32) {
    %c0_i32 = arith.constant 0 : i32
    %c0_i32_0 = arith.constant 0 : i32
    %c0_i32_1 = arith.constant 0 : i32
    return %c0_i32, %c0_i32_0 : i32, i32
  }
  func.func @transform_7(%arg0: i32) -> (i32, i32) {
    %c0_i32 = arith.constant 0 : i32
    %c0_i32_0 = arith.constant 0 : i32
    %c0_i32_1 = arith.constant 0 : i32
    return %c0_i32, %c0_i32_0 : i32, i32
  }
  func.func @transform_8(%arg0: i32) -> (i32, i32) {
    %c0_i32 = arith.constant 0 : i32
    %c0_i32_0 = arith.constant 0 : i32
    %c0_i32_1 = arith.constant 0 : i32
    return %c0_i32, %c0_i32_0 : i32, i32
  }
  func.func @transform_9(%arg0: i32) -> (i32, i32) {
    %c0_i32 = arith.constant 0 : i32
    %c0_i32_0 = arith.constant 0 : i32
    %c0_i32_1 = arith.constant 0 : i32
    return %c0_i32, %c0_i32_0 : i32, i32
  }
  func.func @transform_10(%arg0: i32) -> (i32, i32) {
    %c0_i32 = arith.constant 0 : i32
    %c0_i32_0 = arith.constant 0 : i32
    %c0_i32_1 = arith.constant 0 : i32
    return %c0_i32, %c0_i32_0 : i32, i32
  }
  func.func @transform_11(%arg0: i32) -> (i32, i32) {
    %c0_i32 = arith.constant 0 : i32
    %c0_i32_0 = arith.constant 0 : i32
    %c0_i32_1 = arith.constant 0 : i32
    return %c0_i32, %c0_i32_0 : i32, i32
  }
  func.func @transform_12(%arg0: i32) -> (i32, i32) {
    %c0_i32 = arith.constant 0 : i32
    %c0_i32_0 = arith.constant 0 : i32
    %c0_i32_1 = arith.constant 0 : i32
    return %c0_i32, %c0_i32_0 : i32, i32
  }
  func.func @transform_13(%arg0: i32) -> (i32, i32) {
    %c0_i32 = arith.constant 0 : i32
    %c0_i32_0 = arith.constant 0 : i32
    %c0_i32_1 = arith.constant 0 : i32
    return %c0_i32, %c0_i32_0 : i32, i32
  }
  func.func @transform_14(%arg0: i32) -> (i32, i32) {
    %c0_i32 = arith.constant 0 : i32
    %c0_i32_0 = arith.constant 0 : i32
    %c0_i32_1 = arith.constant 0 : i32
    return %c0_i32, %c0_i32_0 : i32, i32
  }
  func.func @transform_15(%arg0: i32) -> (i32, i32) {
    %c0_i32 = arith.constant 0 : i32
    %c0_i32_0 = arith.constant 0 : i32
    %c0_i32_1 = arith.constant 0 : i32
    return %c0_i32, %c0_i32_0 : i32, i32
  }
  func.func @transform_16(%arg0: i32) -> i32 {
    %c0_i32 = arith.constant 0 : i32
    %c0_i32_0 = arith.constant 0 : i32
    return %c0_i32 : i32
  }
  func.func @transform_17(%arg0: i32) -> (i32, i32, i32) {
    %c0_i32 = arith.constant 0 : i32
    %c0_i32_0 = arith.constant 0 : i32
    %c0_i32_1 = arith.constant 0 : i32
    return %arg0, %c0_i32, %c0_i32_0 : i32, i32, i32
  }
  func.func @transform_18(%arg0: i32) -> (i32, i32, i32) {
    %c0_i32 = arith.constant 0 : i32
    %c0_i32_0 = arith.constant 0 : i32
    %c0_i32_1 = arith.constant 0 : i32
    return %arg0, %c0_i32, %c0_i32_0 : i32, i32, i32
  }
}

</mosaic_0001>

<llo_original>
// kernel: tpu_custom_call.1
$region0: #{tpu_custom_call.1}
  #allocation0 [shape = 'u32[]', space=smem, size = 0x4, offset = 0x4, fixed_abs, tag = 'smem constant byte address 0x4 - core index']
  #allocation1 [shape = 'u32[144,128]{1,0:T(1,128)}', space=vmem, size = 0x12000, scoped, tag = 'internal scratch']
  #allocation2 [shape = 'f32[25,256]{1,0:T(8,128)}', space=vmem, size = 0x8000, scoped, tag = 'scratch operand']
  #allocation3 [shape = 'f32[5,1024]{1,0:T(8,128)}', space=vmem, size = 0x8000, scoped, tag = 'scratch operand']
  #allocation4 [shape = 'f32[1]{0:T(128)S(6)}', space=smem, size = 0x200, scoped, tag = 'scoped memory for tpu_custom_call.1']
  %s0 = inlined_call_operand.vmem [shape: f32[2,16,64], index: 0, kind: input, shape index: {}]
  %s1 = inlined_call_operand.vmem [shape: f32[2,25,1024], index: 1, kind: input, shape index: {}]
  %s2 = inlined_call_operand.hbm [shape: f32[9,64,64], index: 2, kind: input, shape index: {}]
  %s3 = inlined_call_operand.vmem [shape: f32[4,25,64], index: 3, kind: input, shape index: {}]
  %s4 = inlined_call_operand.vmem [shape: f32[25,1], index: 4, kind: input, shape index: {}]
  %s5 = inlined_call_operand.vmem [shape: f32[256,1024], index: 5, kind: input, shape index: {}]
  %s6 = inlined_call_operand.vmem [shape: f32[64,5], index: 6, kind: input, shape index: {}]
  %s7 = inlined_call_operand.vmem [shape: f32[64,1], index: 7, kind: input, shape index: {}]
  %s8 = inlined_call_operand.vmem [shape: f32[25,64], index: 8, kind: input, shape index: {}]
  %s9 = inlined_call_operand.vmem [shape: f32[25,1], index: 9, kind: input, shape index: {}]
  %s10 = inlined_call_operand.vmem [shape: f32[256,16], index: 10, kind: input, shape index: {}]
  %s11 = inlined_call_operand.vmem [shape: f32[256,1], index: 11, kind: input, shape index: {}]
  %s12 = inlined_call_operand.hbm [shape: f32[256,256], index: 12, kind: input, shape index: {}]
  %s13 = inlined_call_operand.vmem [shape: f32[256,1], index: 13, kind: input, shape index: {}]
  %s14 = inlined_call_operand.vmem [shape: f32[3,256], index: 14, kind: input, shape index: {}]
  %s15 = inlined_call_operand.vmem [shape: f32[3,1], index: 15, kind: input, shape index: {}]
  %s16 = inlined_call_operand.<no memory space> [shape: f32[1], index: 16, kind: input, shape index: {}]
  %s17 = inlined_call_operand.vmem [shape: f32[2,25,1024], index: 17, kind: output, shape index: {0}]
  %s18 = inlined_call_operand.vmem [shape: f32[2,3,1], index: 18, kind: output, shape index: {1}]
  %19 = xla_tuple %s17, %s18
  %s20 = sld [smem:[#allocation0]]
  $region117: #{tpu_custom_call.1} parent=0
    _
  %s22 = ssub.s32 1, %s20
  %s23 = scalar_select 0, %s22, %s20
  %24 = sst [smem:[#allocation4]] %s16
  $region1: #{tpu_custom_call.1} parent=0
    #allocation5 [shape = 'u8[294912]{0}', space=vmem, size = 0x48000, scoped, tag = 'input window, operand 2, single buffered']
    #allocation6 [shape = 's32[2]{0}', space=sflag, size = 0x8, scoped, tag = 'scoped memory for tpu_custom_call.1']
    #allocation7 [shape = 'u8[262144]{0}', space=vmem, size = 0x40000, scoped, tag = 'input window, operand 12, single buffered']
    #allocation8 [shape = 's32[1]{0}', space=sflag, size = 0x4, scoped, tag = 'scoped memory for tpu_custom_call.1']
    %25 = vsyncpa [#allocation6], 0
    %26 = vsyncpa [#allocation8], 0
    loop: start=0, step=1, limit=4
    $region2: #{tpu_custom_call.1} parent=1 // loop_pre_header
      _
    $region3: #{tpu_custom_call.1} parent=1 // loop_header
      %s28 = sphi 0, %s32
      %p29 = scmp.ge.s32.totalorder %s28, 4
      %s38 = sphi 0, %s40
      %s41 = sphi 0, %s38
      %s42 = sphi 0, %s41
      %s58 = sphi 0, %s42
      %s64 = sphi 0, %s66
      %s67 = sphi 0, %s64
      %s68 = sphi 0, %s67
      %s84 = sphi 0, %s68
      %s88 = sphi 0, %s88
      %s90 = sphi 0, %s88
      %s91 = sphi 0, %s90
      %s105 = sphi 0, %s91
      %s109 = sphi 0, %s109
      %s111 = sphi 0, %s109
      %s112 = sphi 0, %s111
      %s126 = sphi 0, %s112
      %s130 = sphi 0, %s130
      %s132 = sphi 0, %s130
      %s133 = sphi 0, %s132
      %s147 = sphi 0, %s133
      %s151 = sphi 0, %s151
      %s153 = sphi 0, %s151
      %s154 = sphi 0, %s153
      %s168 = sphi 0, %s154
      %s172 = sphi 0, %s172
      %s174 = sphi 0, %s172
      %s175 = sphi 0, %s174
      %s189 = sphi 0, %s175
      %s193 = sphi 0, %s193
      %s195 = sphi 0, %s193
      %s196 = sphi 0, %s195
      %s210 = sphi 0, %s196
      %s214 = sphi 0, %s214
      %s216 = sphi 0, %s214
      %s217 = sphi 0, %s216
      %s231 = sphi 0, %s217
      %s235 = sphi 0, %s235
      %s237 = sphi 0, %s235
      %s238 = sphi 0, %s237
      %s252 = sphi 0, %s238
      %s256 = sphi 0, %s256
      %s258 = sphi 0, %s256
      %s259 = sphi 0, %s258
      %s273 = sphi 0, %s259
      %s277 = sphi 0, %s277
      %s279 = sphi 0, %s277
      %s280 = sphi 0, %s279
      %s294 = sphi 0, %s280
      %s298 = sphi 0, %s298
      %s300 = sphi 0, %s298
      %s301 = sphi 0, %s300
      %s315 = sphi 0, %s301
      %s319 = sphi 0, %s319
      %s321 = sphi 0, %s319
      %s322 = sphi 0, %s321
      %s336 = sphi 0, %s322
      %s340 = sphi 0, %s340
      %s342 = sphi 0, %s340
      %s343 = sphi 0, %s342
      %s357 = sphi 0, %s343
      %s361 = sphi 0, %s361
      %s363 = sphi 0, %s361
      %s364 = sphi 0, %s363
      %s378 = sphi 0, %s364
      %s382 = sphi 0, %s382
      %s384 = sphi 0, %s382
      %s385 = sphi 0, %s384
      %s399 = sphi 0, %s385
      %s405 = sphi 0, %s407
      %s408 = sphi 0, %s405
      %s409 = sphi 0, %s408
      %s425 = sphi 0, %s409
      %s431 = sphi 0, %s433
      %s434 = sphi 0, %s431
      %s435 = sphi 0, %s434
      %s451 = sphi 0, %s435
    $region4: #{tpu_custom_call.1} parent=1 // loop_header_branch
      %31 = sbr.rel (%p29) target = $region8
    $region5: #{tpu_custom_call.1} parent=1 // loop_body
      %s33 = ssub.s32 %s28, 1
      %s34 = ssub.s32 %s28, 2
      %s35 = sadd.s32 %s28, 1
      %s36 = ssub.s32 %s28, %s35
      %p37 = scmp.eq.s32.totalorder %s36, 0
      %s39 = sadd.s32 %s38, 1
      %s40 = scalar_select %p37, %s38, %s39
      %p43 = pneg %p37
      %p44 = scmp.eq.s32.totalorder %s28, 1
      %p45 = por %p43, %p44
      %p46 = scmp.ne.s32.totalorder %s38, %s41
      %p47 = scmp.eq.s32.totalorder %s28, 0
      %p48 = por %p46, %p47
      %p49 = scmp.ne.s32.totalorder %s38, %s41
      %p50 = scmp.eq.s32.totalorder %s33, 1
      %p51 = por %p49, %p50
      %p52 = scmp.ne.s32.totalorder %s41, %s42
      %p53 = scmp.eq.s32.totalorder %s33, 0
      %p54 = por %p52, %p53
      %p55 = scmp.ne.s32.totalorder %s41, %s42
      %p56 = scmp.eq.s32.totalorder %s34, 1
      %p57 = por %p55, %p56
      %p59 = scmp.ne.s32.totalorder %s42, %s58
      %p60 = scmp.eq.s32.totalorder %s34, 0
      %p61 = por %p59, %p60
      %s62 = ssub.s32 %s28, %s35
      %p63 = scmp.eq.s32.totalorder %s62, 0
      %s65 = sadd.s32 %s64, 1
      %s66 = scalar_select %p63, %s64, %s65
      %p69 = pneg %p63
      %p70 = scmp.eq.s32.totalorder %s28, 1
      %p71 = por %p69, %p70
      %p72 = scmp.ne.s32.totalorder %s64, %s67
      %p73 = scmp.eq.s32.totalorder %s28, 0
      %p74 = por %p72, %p73
      %p75 = scmp.ne.s32.totalorder %s64, %s67
      %p76 = scmp.eq.s32.totalorder %s33, 1
      %p77 = por %p75, %p76
      %p78 = scmp.ne.s32.totalorder %s67, %s68
      %p79 = scmp.eq.s32.totalorder %s33, 0
      %p80 = por %p78, %p79
      %p81 = scmp.ne.s32.totalorder %s67, %s68
      %p82 = scmp.eq.s32.totalorder %s34, 1
      %p83 = por %p81, %p82
      %p85 = scmp.ne.s32.totalorder %s68, %s84
      %p86 = scmp.eq.s32.totalorder %s34, 0
      %p87 = por %p85, %p86
      %s89 = sadd.s32 %s88, 1
      %p92 = scmp.eq.s32.totalorder %s28, 1
      %p93 = scmp.ne.s32.totalorder %s88, %s90
      %p94 = scmp.eq.s32.totalorder %s28, 0
      %p95 = por %p93, %p94
      %p96 = scmp.ne.s32.totalorder %s88, %s90
      %p97 = scmp.eq.s32.totalorder %s33, 1
      %p98 = por %p96, %p97
      %p99 = scmp.ne.s32.totalorder %s90, %s91
      %p100 = scmp.eq.s32.totalorder %s33, 0
      %p101 = por %p99, %p100
      %p102 = scmp.ne.s32.totalorder %s90, %s91
      %p103 = scmp.eq.s32.totalorder %s34, 1
      %p104 = por %p102, %p103
      %p106 = scmp.ne.s32.totalorder %s91, %s105
      %p107 = scmp.eq.s32.totalorder %s34, 0
      %p108 = por %p106, %p107
      %s110 = sadd.s32 %s109, 1
      %p113 = scmp.eq.s32.totalorder %s28, 1
      %p114 = scmp.ne.s32.totalorder %s109, %s111
      %p115 = scmp.eq.s32.totalorder %s28, 0
      %p116 = por %p114, %p115
      %p117 = scmp.ne.s32.totalorder %s109, %s111
      %p118 = scmp.eq.s32.totalorder %s33, 1
      %p119 = por %p117, %p118
      %p120 = scmp.ne.s32.totalorder %s111, %s112
      %p121 = scmp.eq.s32.totalorder %s33, 0
      %p122 = por %p120, %p121
      %p123 = scmp.ne.s32.totalorder %s111, %s112
      %p124 = scmp.eq.s32.totalorder %s34, 1
      %p125 = por %p123, %p124
      %p127 = scmp.ne.s32.totalorder %s112, %s126
      %p128 = scmp.eq.s32.totalorder %s34, 0
      %p129 = por %p127, %p128
      %s131 = sadd.s32 %s130, 1
      %p134 = scmp.eq.s32.totalorder %s28, 1
      %p135 = scmp.ne.s32.totalorder %s130, %s132
      %p136 = scmp.eq.s32.totalorder %s28, 0
      %p137 = por %p135, %p136
      %p138 = scmp.ne.s32.totalorder %s130, %s132
      %p139 = scmp.eq.s32.totalorder %s33, 1
      %p140 = por %p138, %p139
      %p141 = scmp.ne.s32.totalorder %s132, %s133
      %p142 = scmp.eq.s32.totalorder %s33, 0
      %p143 = por %p141, %p142
      %p144 = scmp.ne.s32.totalorder %s132, %s133
      %p145 = scmp.eq.s32.totalorder %s34, 1
      %p146 = por %p144, %p145
      %p148 = scmp.ne.s32.totalorder %s133, %s147
      %p149 = scmp.eq.s32.totalorder %s34, 0
      %p150 = por %p148, %p149
      %s152 = sadd.s32 %s151, 1
      %p155 = scmp.eq.s32.totalorder %s28, 1
      %p156 = scmp.ne.s32.totalorder %s151, %s153
      %p157 = scmp.eq.s32.totalorder %s28, 0
      %p158 = por %p156, %p157
      %p159 = scmp.ne.s32.totalorder %s151, %s153
      %p160 = scmp.eq.s32.totalorder %s33, 1
      %p161 = por %p159, %p160
      %p162 = scmp.ne.s32.totalorder %s153, %s154
      %p163 = scmp.eq.s32.totalorder %s33, 0
      %p164 = por %p162, %p163
      %p165 = scmp.ne.s32.totalorder %s153, %s154
      %p166 = scmp.eq.s32.totalorder %s34, 1
      %p167 = por %p165, %p166
      %p169 = scmp.ne.s32.totalorder %s154, %s168
      %p170 = scmp.eq.s32.totalorder %s34, 0
      %p171 = por %p169, %p170
      %s173 = sadd.s32 %s172, 1
      %p176 = scmp.eq.s32.totalorder %s28, 1
      %p177 = scmp.ne.s32.totalorder %s172, %s174
      %p178 = scmp.eq.s32.totalorder %s28, 0
      %p179 = por %p177, %p178
      %p180 = scmp.ne.s32.totalorder %s172, %s174
      %p181 = scmp.eq.s32.totalorder %s33, 1
      %p182 = por %p180, %p181
      %p183 = scmp.ne.s32.totalorder %s174, %s175
      %p184 = scmp.eq.s32.totalorder %s33, 0
      %p185 = por %p183, %p184
      %p186 = scmp.ne.s32.totalorder %s174, %s175
      %p187 = scmp.eq.s32.totalorder %s34, 1
      %p188 = por %p186, %p187
      %p190 = scmp.ne.s32.totalorder %s175, %s189
      %p191 = scmp.eq.s32.totalorder %s34, 0
      %p192 = por %p190, %p191
      %s194 = sadd.s32 %s193, 1
      %p197 = scmp.eq.s32.totalorder %s28, 1
      %p198 = scmp.ne.s32.totalorder %s193, %s195
      %p199 = scmp.eq.s32.totalorder %s28, 0
      %p200 = por %p198, %p199
      %p201 = scmp.ne.s32.totalorder %s193, %s195
      %p202 = scmp.eq.s32.totalorder %s33, 1
      %p203 = por %p201, %p202
      %p204 = scmp.ne.s32.totalorder %s195, %s196
      %p205 = scmp.eq.s32.totalorder %s33, 0
      %p206 = por %p204, %p205
      %p207 = scmp.ne.s32.totalorder %s195, %s196
      %p208 = scmp.eq.s32.totalorder %s34, 1
      %p209 = por %p207, %p208
      %p211 = scmp.ne.s32.totalorder %s196, %s210
      %p212 = scmp.eq.s32.totalorder %s34, 0
      %p213 = por %p211, %p212
      %s215 = sadd.s32 %s214, 1
      %p218 = scmp.eq.s32.totalorder %s28, 1
      %p219 = scmp.ne.s32.totalorder %s214, %s216
      %p220 = scmp.eq.s32.totalorder %s28, 0
      %p221 = por %p219, %p220
      %p222 = scmp.ne.s32.totalorder %s214, %s216
      %p223 = scmp.eq.s32.totalorder %s33, 1
      %p224 = por %p222, %p223
      %p225 = scmp.ne.s32.totalorder %s216, %s217
      %p226 = scmp.eq.s32.totalorder %s33, 0
      %p227 = por %p225, %p226
      %p228 = scmp.ne.s32.totalorder %s216, %s217
      %p229 = scmp.eq.s32.totalorder %s34, 1
      %p230 = por %p228, %p229
      %p232 = scmp.ne.s32.totalorder %s217, %s231
      %p233 = scmp.eq.s32.totalorder %s34, 0
      %p234 = por %p232, %p233
      %s236 = sadd.s32 %s235, 1
      %p239 = scmp.eq.s32.totalorder %s28, 1
      %p240 = scmp.ne.s32.totalorder %s235, %s237
      %p241 = scmp.eq.s32.totalorder %s28, 0
      %p242 = por %p240, %p241
      %p243 = scmp.ne.s32.totalorder %s235, %s237
      %p244 = scmp.eq.s32.totalorder %s33, 1
      %p245 = por %p243, %p244
      %p246 = scmp.ne.s32.totalorder %s237, %s238
      %p247 = scmp.eq.s32.totalorder %s33, 0
      %p248 = por %p246, %p247
      %p249 = scmp.ne.s32.totalorder %s237, %s238
      %p250 = scmp.eq.s32.totalorder %s34, 1
      %p251 = por %p249, %p250
      %p253 = scmp.ne.s32.totalorder %s238, %s252
      %p254 = scmp.eq.s32.totalorder %s34, 0
      %p255 = por %p253, %p254
      %s257 = sadd.s32 %s256, 1
      %p260 = scmp.eq.s32.totalorder %s28, 1
      %p261 = scmp.ne.s32.totalorder %s256, %s258
      %p262 = scmp.eq.s32.totalorder %s28, 0
      %p263 = por %p261, %p262
      %p264 = scmp.ne.s32.totalorder %s256, %s258
      %p265 = scmp.eq.s32.totalorder %s33, 1
      %p266 = por %p264, %p265
      %p267 = scmp.ne.s32.totalorder %s258, %s259
      %p268 = scmp.eq.s32.totalorder %s33, 0
      %p269 = por %p267, %p268
      %p270 = scmp.ne.s32.totalorder %s258, %s259
      %p271 = scmp.eq.s32.totalorder %s34, 1
      %p272 = por %p270, %p271
      %p274 = scmp.ne.s32.totalorder %s259, %s273
      %p275 = scmp.eq.s32.totalorder %s34, 0
      %p276 = por %p274, %p275
      %s278 = sadd.s32 %s277, 1
      %p281 = scmp.eq.s32.totalorder %s28, 1
      %p282 = scmp.ne.s32.totalorder %s277, %s279
      %p283 = scmp.eq.s32.totalorder %s28, 0
      %p284 = por %p282, %p283
      %p285 = scmp.ne.s32.totalorder %s277, %s279
      %p286 = scmp.eq.s32.totalorder %s33, 1
      %p287 = por %p285, %p286
      %p288 = scmp.ne.s32.totalorder %s279, %s280
      %p289 = scmp.eq.s32.totalorder %s33, 0
      %p290 = por %p288, %p289
      %p291 = scmp.ne.s32.totalorder %s279, %s280
      %p292 = scmp.eq.s32.totalorder %s34, 1
      %p293 = por %p291, %p292
      %p295 = scmp.ne.s32.totalorder %s280, %s294
      %p296 = scmp.eq.s32.totalorder %s34, 0
      %p297 = por %p295, %p296
      %s299 = sadd.s32 %s298, 1
      %p302 = scmp.eq.s32.totalorder %s28, 1
      %p303 = scmp.ne.s32.totalorder %s298, %s300
      %p304 = scmp.eq.s32.totalorder %s28, 0
      %p305 = por %p303, %p304
      %p306 = scmp.ne.s32.totalorder %s298, %s300
      %p307 = scmp.eq.s32.totalorder %s33, 1
      %p308 = por %p306, %p307
      %p309 = scmp.ne.s32.totalorder %s300, %s301
      %p310 = scmp.eq.s32.totalorder %s33, 0
      %p311 = por %p309, %p310
      %p312 = scmp.ne.s32.totalorder %s300, %s301
      %p313 = scmp.eq.s32.totalorder %s34, 1
      %p314 = por %p312, %p313
      %p316 = scmp.ne.s32.totalorder %s301, %s315
      %p317 = scmp.eq.s32.totalorder %s34, 0
      %p318 = por %p316, %p317
      %s320 = sadd.s32 %s319, 1
      %p323 = scmp.eq.s32.totalorder %s28, 1
      %p324 = scmp.ne.s32.totalorder %s319, %s321
      %p325 = scmp.eq.s32.totalorder %s28, 0
      %p326 = por %p324, %p325
      %p327 = scmp.ne.s32.totalorder %s319, %s321
      %p328 = scmp.eq.s32.totalorder %s33, 1
      %p329 = por %p327, %p328
      %p330 = scmp.ne.s32.totalorder %s321, %s322
      %p331 = scmp.eq.s32.totalorder %s33, 0
      %p332 = por %p330, %p331
      %p333 = scmp.ne.s32.totalorder %s321, %s322
      %p334 = scmp.eq.s32.totalorder %s34, 1
      %p335 = por %p333, %p334
      %p337 = scmp.ne.s32.totalorder %s322, %s336
      %p338 = scmp.eq.s32.totalorder %s34, 0
      %p339 = por %p337, %p338
      %s341 = sadd.s32 %s340, 1
      %p344 = scmp.eq.s32.totalorder %s28, 1
      %p345 = scmp.ne.s32.totalorder %s340, %s342
      %p346 = scmp.eq.s32.totalorder %s28, 0
      %p347 = por %p345, %p346
      %p348 = scmp.ne.s32.totalorder %s340, %s342
      %p349 = scmp.eq.s32.totalorder %s33, 1
      %p350 = por %p348, %p349
      %p351 = scmp.ne.s32.totalorder %s342, %s343
      %p352 = scmp.eq.s32.totalorder %s33, 0
      %p353 = por %p351, %p352
      %p354 = scmp.ne.s32.totalorder %s342, %s343
      %p355 = scmp.eq.s32.totalorder %s34, 1
      %p356 = por %p354, %p355
      %p358 = scmp.ne.s32.totalorder %s343, %s357
      %p359 = scmp.eq.s32.totalorder %s34, 0
      %p360 = por %p358, %p359
      %s362 = sadd.s32 %s361, 1
      %p365 = scmp.eq.s32.totalorder %s28, 1
      %p366 = scmp.ne.s32.totalorder %s361, %s363
      %p367 = scmp.eq.s32.totalorder %s28, 0
      %p368 = por %p366, %p367
      %p369 = scmp.ne.s32.totalorder %s361, %s363
      %p370 = scmp.eq.s32.totalorder %s33, 1
      %p371 = por %p369, %p370
      %p372 = scmp.ne.s32.totalorder %s363, %s364
      %p373 = scmp.eq.s32.totalorder %s33, 0
      %p374 = por %p372, %p373
      %p375 = scmp.ne.s32.totalorder %s363, %s364
      %p376 = scmp.eq.s32.totalorder %s34, 1
      %p377 = por %p375, %p376
      %p379 = scmp.ne.s32.totalorder %s364, %s378
      %p380 = scmp.eq.s32.totalorder %s34, 0
      %p381 = por %p379, %p380
      %s383 = sadd.s32 %s382, 1
      %p386 = scmp.eq.s32.totalorder %s28, 1
      %p387 = scmp.ne.s32.totalorder %s382, %s384
      %p388 = scmp.eq.s32.totalorder %s28, 0
      %p389 = por %p387, %p388
      %p390 = scmp.ne.s32.totalorder %s382, %s384
      %p391 = scmp.eq.s32.totalorder %s33, 1
      %p392 = por %p390, %p391
      %p393 = scmp.ne.s32.totalorder %s384, %s385
      %p394 = scmp.eq.s32.totalorder %s33, 0
      %p395 = por %p393, %p394
      %p396 = scmp.ne.s32.totalorder %s384, %s385
      %p397 = scmp.eq.s32.totalorder %s34, 1
      %p398 = por %p396, %p397
      %p400 = scmp.ne.s32.totalorder %s385, %s399
      %p401 = scmp.eq.s32.totalorder %s34, 0
      %p402 = por %p400, %p401
      %s403 = ssub.s32 %s28, %s35
      %p404 = scmp.eq.s32.totalorder %s403, 0
      %s406 = sadd.s32 %s405, 1
      %s407 = scalar_select %p404, %s405, %s406
      %p410 = pneg %p404
      %p411 = scmp.eq.s32.totalorder %s28, 1
      %p412 = por %p410, %p411
      %p413 = scmp.ne.s32.totalorder %s405, %s408
      %p414 = scmp.eq.s32.totalorder %s28, 0
      %p415 = por %p413, %p414
      %p416 = scmp.ne.s32.totalorder %s405, %s408
      %p417 = scmp.eq.s32.totalorder %s33, 1
      %p418 = por %p416, %p417
      %p419 = scmp.ne.s32.totalorder %s408, %s409
      %p420 = scmp.eq.s32.totalorder %s33, 0
      %p421 = por %p419, %p420
      %p422 = scmp.ne.s32.totalorder %s408, %s409
      %p423 = scmp.eq.s32.totalorder %s34, 1
      %p424 = por %p422, %p423
      %p426 = scmp.ne.s32.totalorder %s409, %s425
      %p427 = scmp.eq.s32.totalorder %s34, 0
      %p428 = por %p426, %p427
      %s429 = ssub.s32 %s28, %s35
      %p430 = scmp.eq.s32.totalorder %s429, 0
      %s432 = sadd.s32 %s431, 1
      %s433 = scalar_select %p430, %s431, %s432
      %p436 = pneg %p430
      %p437 = scmp.eq.s32.totalorder %s28, 1
      %p438 = por %p436, %p437
      %p439 = scmp.ne.s32.totalorder %s431, %s434
      %p440 = scmp.eq.s32.totalorder %s28, 0
      %p441 = por %p439, %p440
      %p442 = scmp.ne.s32.totalorder %s431, %s434
      %p443 = scmp.eq.s32.totalorder %s33, 1
      %p444 = por %p442, %p443
      %p445 = scmp.ne.s32.totalorder %s434, %s435
      %p446 = scmp.eq.s32.totalorder %s33, 0
      %p447 = por %p445, %p446
      %p448 = scmp.ne.s32.totalorder %s434, %s435
      %p449 = scmp.eq.s32.totalorder %s34, 1
      %p450 = por %p448, %p449
      %p452 = scmp.ne.s32.totalorder %s435, %s451
      %p453 = scmp.eq.s32.totalorder %s34, 0
      %p454 = por %p452, %p453
      %p455 = scmp.le.s32.totalorder 1, %s28
      %p456 = scmp.lt.s32.totalorder %s28, 3
      %p457 = pnand %p455, %p456
      %p458 = pneg %p457
      // Predicated region
      $region9: #{tpu_custom_call.1} parent=5 // pred_check
        _
      $region10: #{tpu_custom_call.1} parent=5 // pred_check_branch
        %460 = sbr.rel (%p457) target = $region12
      $region11: #{tpu_custom_call.1} parent=5 // pred_region
        %s461 = ssub.s32 %s28, 1
        // Predicated region
        $region13: #{tpu_custom_call.1} parent=11 // pred_check
          %p462 = pneg %p101
        $region14: #{tpu_custom_call.1} parent=11 // pred_check_branch
          %464 = sbr.rel (%p462) target = $region16
        $region15: #{tpu_custom_call.1} parent=11 // pred_region
          %s466 = ssub.s32 9216, 9216
          %467 = vsyncadd [#allocation6], %s466
          %s468 = sshll.u32 [#allocation5], 4
          %s469 = int_to_ptr.vmem [resolvable:$true] %s468
          %474 = dma.hbm_to_vmem [thread:$0]  %s2, 9216, %s469, [#allocation6], 128, 128, 8
        $region16: #{tpu_custom_call.1} parent=11 // pred_fallthru
          _
        // Predicated region
        $region17: #{tpu_custom_call.1} parent=11 // pred_check
          %p475 = pneg %p122
        $region18: #{tpu_custom_call.1} parent=11 // pred_check_branch
          %477 = sbr.rel (%p475) target = $region20
        $region19: #{tpu_custom_call.1} parent=11 // pred_region
          _
        $region20: #{tpu_custom_call.1} parent=11 // pred_fallthru
          _
        // Predicated region
        $region21: #{tpu_custom_call.1} parent=11 // pred_check
          %p478 = pneg %p143
        $region22: #{tpu_custom_call.1} parent=11 // pred_check_branch
          %480 = sbr.rel (%p478) target = $region24
        $region23: #{tpu_custom_call.1} parent=11 // pred_region
          _
        $region24: #{tpu_custom_call.1} parent=11 // pred_fallthru
          _
        // Predicated region
        $region25: #{tpu_custom_call.1} parent=11 // pred_check
          %p481 = pneg %p164
        $region26: #{tpu_custom_call.1} parent=11 // pred_check_branch
          %483 = sbr.rel (%p481) target = $region28
        $region27: #{tpu_custom_call.1} parent=11 // pred_region
          _
        $region28: #{tpu_custom_call.1} parent=11 // pred_fallthru
          _
        // Predicated region
        $region29: #{tpu_custom_call.1} parent=11 // pred_check
          %p484 = pneg %p185
        $region30: #{tpu_custom_call.1} parent=11 // pred_check_branch
          %486 = sbr.rel (%p484) target = $region32
        $region31: #{tpu_custom_call.1} parent=11 // pred_region
          _
        $region32: #{tpu_custom_call.1} parent=11 // pred_fallthru
          _
        // Predicated region
        $region33: #{tpu_custom_call.1} parent=11 // pred_check
          %p487 = pneg %p206
        $region34: #{tpu_custom_call.1} parent=11 // pred_check_branch
          %489 = sbr.rel (%p487) target = $region36
        $region35: #{tpu_custom_call.1} parent=11 // pred_region
          _
        $region36: #{tpu_custom_call.1} parent=11 // pred_fallthru
          _
        // Predicated region
        $region37: #{tpu_custom_call.1} parent=11 // pred_check
          %p490 = pneg %p227
        $region38: #{tpu_custom_call.1} parent=11 // pred_check_branch
          %492 = sbr.rel (%p490) target = $region40
        $region39: #{tpu_custom_call.1} parent=11 // pred_region
          _
        $region40: #{tpu_custom_call.1} parent=11 // pred_fallthru
          _
        // Predicated region
        $region41: #{tpu_custom_call.1} parent=11 // pred_check
          %p493 = pneg %p248
        $region42: #{tpu_custom_call.1} parent=11 // pred_check_branch
          %495 = sbr.rel (%p493) target = $region44
        $region43: #{tpu_custom_call.1} parent=11 // pred_region
          _
        $region44: #{tpu_custom_call.1} parent=11 // pred_fallthru
          _
        // Predicated region
        $region45: #{tpu_custom_call.1} parent=11 // pred_check
          %p496 = pneg %p269
        $region46: #{tpu_custom_call.1} parent=11 // pred_check_branch
          %498 = sbr.rel (%p496) target = $region48
        $region47: #{tpu_custom_call.1} parent=11 // pred_region
          _
        $region48: #{tpu_custom_call.1} parent=11 // pred_fallthru
          _
        // Predicated region
        $region49: #{tpu_custom_call.1} parent=11 // pred_check
          %p499 = pneg %p290
        $region50: #{tpu_custom_call.1} parent=11 // pred_check_branch
          %501 = sbr.rel (%p499) target = $region52
        $region51: #{tpu_custom_call.1} parent=11 // pred_region
          _
        $region52: #{tpu_custom_call.1} parent=11 // pred_fallthru
          _
        // Predicated region
        $region53: #{tpu_custom_call.1} parent=11 // pred_check
          %p502 = pneg %p311
        $region54: #{tpu_custom_call.1} parent=11 // pred_check_branch
          %504 = sbr.rel (%p502) target = $region56
        $region55: #{tpu_custom_call.1} parent=11 // pred_region
          %s506 = ssub.s32 8192, 8192
          %507 = vsyncadd [#allocation8], %s506
          %s508 = sshll.u32 [#allocation7], 4
          %s509 = int_to_ptr.vmem [resolvable:$true] %s508
          %514 = dma.hbm_to_vmem [thread:$0]  %s12, 8192, %s509, [#allocation8], 256, 256, 16
        $region56: #{tpu_custom_call.1} parent=11 // pred_fallthru
          _
        // Predicated region
        $region57: #{tpu_custom_call.1} parent=11 // pred_check
          %p515 = pneg %p332
        $region58: #{tpu_custom_call.1} parent=11 // pred_check_branch
          %517 = sbr.rel (%p515) target = $region60
        $region59: #{tpu_custom_call.1} parent=11 // pred_region
          _
        $region60: #{tpu_custom_call.1} parent=11 // pred_fallthru
          _
        // Predicated region
        $region61: #{tpu_custom_call.1} parent=11 // pred_check
          %p518 = pneg %p353
        $region62: #{tpu_custom_call.1} parent=11 // pred_check_branch
          %520 = sbr.rel (%p518) target = $region64
        $region63: #{tpu_custom_call.1} parent=11 // pred_region
          _
        $region64: #{tpu_custom_call.1} parent=11 // pred_fallthru
          _
        // Predicated region
        $region65: #{tpu_custom_call.1} parent=11 // pred_check
          %p521 = pneg %p374
        $region66: #{tpu_custom_call.1} parent=11 // pred_check_branch
          %523 = sbr.rel (%p521) target = $region68
        $region67: #{tpu_custom_call.1} parent=11 // pred_region
          _
        $region68: #{tpu_custom_call.1} parent=11 // pred_fallthru
          _
        // Predicated region
        $region69: #{tpu_custom_call.1} parent=11 // pred_check
          %p524 = pneg %p395
        $region70: #{tpu_custom_call.1} parent=11 // pred_check_branch
          %526 = sbr.rel (%p524) target = $region72
        $region71: #{tpu_custom_call.1} parent=11 // pred_region
          _
        $region72: #{tpu_custom_call.1} parent=11 // pred_fallthru
          _
      $region12: #{tpu_custom_call.1} parent=5 // pred_fallthru
        _
      %p527 = scmp.lt.s32.totalorder %s28, 2
      // Predicated region
      $region73: #{tpu_custom_call.1} parent=5 // pred_check
        %p528 = pneg %p527
      $region74: #{tpu_custom_call.1} parent=5 // pred_check_branch
        %530 = sbr.rel (%p528) target = $region76
      $region75: #{tpu_custom_call.1} parent=5 // pred_region
        // Predicated region
        $region77: #{tpu_custom_call.1} parent=75 // pred_check
          %p531 = pneg %p48
        $region78: #{tpu_custom_call.1} parent=75 // pred_check_branch
          %533 = sbr.rel (%p531) target = $region80
        $region79: #{tpu_custom_call.1} parent=75 // pred_region
          %p534 = scmp.lt.s32.totalorder %s28, 1
          %s535 = scalar_select %p534, %s28, 1
          %s536 = smul.addr %s535, 2
          %s537 = smul.addr %s536, 8
          %s538 = scalar_lea.vmem %s0, %s537
        $region80: #{tpu_custom_call.1} parent=75 // pred_fallthru
          _
        // Predicated region
        $region81: #{tpu_custom_call.1} parent=75 // pred_check
          %p539 = pneg %p74
        $region82: #{tpu_custom_call.1} parent=75 // pred_check_branch
          %541 = sbr.rel (%p539) target = $region84
        $region83: #{tpu_custom_call.1} parent=75 // pred_region
          %p542 = scmp.lt.s32.totalorder %s28, 1
          %s543 = scalar_select %p542, %s28, 1
          %s544 = smul.addr %s543, 32
          %s545 = smul.addr %s544, 8
          %s546 = scalar_lea.vmem %s1, %s545
        $region84: #{tpu_custom_call.1} parent=75 // pred_fallthru
          _
      $region76: #{tpu_custom_call.1} parent=5 // pred_fallthru
        _
      %p547 = scmp.le.s32.totalorder 1, %s28
      %p548 = scmp.lt.s32.totalorder %s28, 3
      %p549 = pnand %p547, %p548
      %p550 = pneg %p549
      // Predicated region
      $region85: #{tpu_custom_call.1} parent=5 // pred_check
        _
      $region86: #{tpu_custom_call.1} parent=5 // pred_check_branch
        %552 = sbr.rel (%p549) target = $region88
      $region87: #{tpu_custom_call.1} parent=5 // pred_region
        %s553 = ssub.s32 %s28, 1
        // Predicated region
        $region89: #{tpu_custom_call.1} parent=87 // pred_check
          %p554 = pneg %p101
        $region90: #{tpu_custom_call.1} parent=87 // pred_check_branch
          %556 = sbr.rel (%p554) target = $region92
        $region91: #{tpu_custom_call.1} parent=87 // pred_region
          %557 = dma.done [#allocation6], 9216
        $region92: #{tpu_custom_call.1} parent=87 // pred_fallthru
          _
        // Predicated region
        $region93: #{tpu_custom_call.1} parent=87 // pred_check
          %p558 = pneg %p311
        $region94: #{tpu_custom_call.1} parent=87 // pred_check_branch
          %560 = sbr.rel (%p558) target = $region96
        $region95: #{tpu_custom_call.1} parent=87 // pred_region
          %561 = dma.done [#allocation8], 8192
        $region96: #{tpu_custom_call.1} parent=87 // pred_fallthru
          _
        %p562 = scmp.lt.s32.totalorder %s33, 1
        %s563 = scalar_select %p562, %s33, 1
        %s564 = smul.addr %s563, 2
        %s565 = smul.addr %s564, 8
        %s566 = scalar_lea.vmem %s0, %s565
        %p567 = pneg %p54
        %p568 = pneg %p51
        %p569 = scmp.lt.s32.totalorder %s33, 1
        %s570 = scalar_select %p569, %s33, 1
        %s571 = smul.addr %s570, 32
        %s572 = smul.addr %s571, 8
        %s573 = scalar_lea.vmem %s1, %s572
        %p574 = pneg %p80
        %p575 = pneg %p77
        %p576 = pneg %p101
        %p577 = pneg %p98
        %p578 = pneg %p122
        %p579 = pneg %p119
        %p580 = pneg %p143
        %p581 = pneg %p140
        %p582 = pneg %p164
        %p583 = pneg %p161
        %p584 = pneg %p185
        %p585 = pneg %p182
        %p586 = pneg %p206
        %p587 = pneg %p203
        %p588 = pneg %p227
        %p589 = pneg %p224
        %p590 = pneg %p248
        %p591 = pneg %p245
        %p592 = pneg %p269
        %p593 = pneg %p266
        %p594 = pneg %p290
        %p595 = pneg %p287
        %p596 = pneg %p311
        %p597 = pneg %p308
        %p598 = pneg %p332
        %p599 = pneg %p329
        %p600 = pneg %p353
        %p601 = pneg %p350
        %p602 = pneg %p374
        %p603 = pneg %p371
        %p604 = pneg %p395
        %p605 = pneg %p392
        %p606 = pneg %p421
        %p607 = pneg %p418
        %p608 = scmp.lt.s32.totalorder %s33, 1
        %s609 = scalar_select %p608, %s33, 1
        %s610 = smul.addr %s609, 32
        %s611 = smul.addr %s610, 8
        %s612 = scalar_lea.vmem %s17, %s611
        %p613 = pneg %p447
        %p614 = pneg %p444
        %p615 = scmp.lt.s32.totalorder %s33, 1
        %s616 = scalar_select %p615, %s33, 1
        %s617 = smul.addr %s616, 4
        %s618 = scalar_lea.vmem %s18, %s617
        %p619 = scmp.lt.s32.totalorder %s33, 1
        %s620 = scalar_select %p619, %s33, 1
        %s621 = smul.addr %s620, 2
        %s622 = smul.addr %s621, 8
        %s623 = scalar_lea.vmem %s0, %s622
        %p624 = scmp.lt.s32.totalorder %s33, 1
        %s625 = scalar_select %p624, %s33, 1
        %s626 = smul.addr %s625, 32
        %s627 = smul.addr %s626, 8
        %s628 = scalar_lea.vmem %s1, %s627
        %p629 = scmp.lt.s32.totalorder %s33, 1
        %s630 = scalar_select %p629, %s33, 1
        %s631 = smul.addr %s630, 32
        %s632 = smul.addr %s631, 8
        %s633 = scalar_lea.vmem %s17, %s632
        %p634 = scmp.lt.s32.totalorder %s33, 1
        %s635 = scalar_select %p634, %s33, 1
        %s636 = smul.addr %s635, 4
        %s637 = scalar_lea.vmem %s18, %s636
        %v638 = vld [vmem:[%s623] sm:$0xff]
        %v639 = vld [vmem:[%s623 + $0x8] sm:$0xff]
        %v640 = vld [vmem:[#allocation5] sm:$0xff]
        %v641 = vld [vmem:[#allocation5 + $0x8] sm:$0xff]
        %v642 = vld [vmem:[#allocation5 + $0x10] sm:$0xff]
        %v643 = vld [vmem:[#allocation5 + $0x18] sm:$0xff]
        %v644 = vld [vmem:[#allocation5 + $0x20] sm:$0xff]
        %v645 = vld [vmem:[#allocation5 + $0x28] sm:$0xff]
        %v646 = vld [vmem:[#allocation5 + $0x30] sm:$0xff]
        %v647 = vld [vmem:[#allocation5 + $0x38] sm:$0xff]
        %vm648 = vcmask 523264
        %v650 = vsel %vm648, %v638, 0
        %v653 = vsel %vm648, %v639, 0
        %655 = vmatprep.subr.mxu0 0.0
        %656 = vmatpush1.msra.mxu0 %v640
        %657 = vmatprep.subr.mxu0 0.0
        %658 = vmatpush1.msra.mxu0 %v641
        %659 = vmatprep.subr.mxu0 0.0
        %660 = vmatpush1.msra.mxu0 %v642
        %661 = vmatprep.subr.mxu0 0.0
        %662 = vmatpush1.msra.mxu0 %v643
        %663 = vmatprep.subr.mxu0 0.0
        %664 = vmatpush1.msra.mxu0 %v644
        %665 = vmatprep.subr.mxu0 0.0
        %666 = vmatpush1.msra.mxu0 %v645
        %667 = vmatprep.subr.mxu0 0.0
        %668 = vmatpush1.msra.mxu0 %v646
        %669 = vmatprep.subr.mxu0 0.0
        %670 = vmatpush1.msra.mxu0 %v647
        %671 = vmatprep.subr.mxu0 0.0
        %672 = vmatpush1.msra.mxu0 0.0
        %673 = vmatprep.subr.mxu0 0.0
        %674 = vmatpush1.msra.mxu0 0.0
        %675 = vmatprep.subr.mxu0 0.0
        %676 = vmatpush1.msra.mxu0 0.0
        %677 = vmatprep.subr.mxu0 0.0
        %678 = vmatpush1.msra.mxu0 0.0
        %679 = vmatprep.subr.mxu0 0.0
        %680 = vmatpush1.msra.mxu0 0.0
        %681 = vmatprep.subr.mxu0 0.0
        %682 = vmatpush1.msra.mxu0 0.0
        %683 = vmatprep.subr.mxu0 0.0
        %684 = vmatpush1.msra.mxu0 0.0
        %685 = vmatprep.subr.mxu0 0.0
        %686 = vmatpush1.msra.mxu0 0.0
        %687 = vmatprep.subr.mxu0 0.0
        %688 = vmatpush1.msra.mxu0 0.0
        %689 = vmatprep.subr.mxu0 0.0
        %690 = vmatpush1.msra.mxu0 0.0
        %691 = vmatprep.subr.mxu0 0.0
        %692 = vmatpush1.msra.mxu0 0.0
        %693 = vmatprep.subr.mxu0 0.0
        %694 = vmatpush1.msra.mxu0 0.0
        %695 = vmatprep.subr.mxu0 0.0
        %696 = vmatpush1.msra.mxu0 0.0
        %697 = vmatprep.subr.mxu0 0.0
        %698 = vmatpush1.msra.mxu0 0.0
        %699 = vmatprep.subr.mxu0 0.0
        %700 = vmatpush1.msra.mxu0 0.0
        %701 = vmatprep.subr.mxu0 0.0
        %702 = vmatpush1.msra.mxu0 0.0
        %703 = vmatprep.subr.mxu0 0.0
        %704 = vmatpush1.msra.mxu0 0.0
        %705 = vmatprep.subr.mxu0 0.0
        %706 = vmatpush1.msra.mxu0 0.0
        %707 = vmatprep.subr.mxu0 0.0
        %708 = vmatpush1.msra.mxu0 0.0
        %709 = vmatprep.subr.mxu0 0.0
        %710 = vmatpush1.msra.mxu0 0.0
        %711 = vmatprep.subr.mxu0 0.0
        %712 = vmatpush1.msra.mxu0 0.0
        %713 = vmatprep.subr.mxu0 0.0
        %714 = vmatpush1.msra.mxu0 0.0
        %715 = vmatprep.subr.mxu0 0.0
        %716 = vmatpush1.msra.mxu0 0.0
        %717 = vmatprep.subr.mxu0 0.0
        %718 = vmatpush1.msra.mxu0 0.0
        %719 = vmatprep.mubr.f32.mxu0 0.0
        %720 = vmatmul.mubr.f32.gmra.mrb[0].mxu0 %v650
        %v721 = vpop.f32.mrb[0].mxu0
        %v722 = vadd.f32 0.0, %v721
        %v723 = vpop.f32.mrb[0].mxu0
        %724 = vmatprep.mubr.f32.mxu0 0.0
        %725 = vmatmul.mubr.f32.gmra.mrb[0].mxu0 %v653
        %v726 = vpop.f32.mrb[0].mxu0
        %v727 = vadd.f32 0.0, %v726
        %v728 = vpop.f32.mrb[0].mxu0
        %729 = vdwg.mxu0
        %s730 = scalar_lea.vmem [#allocation5], 64
        %v731 = vld [vmem:[%s730] sm:$0xff]
        %v732 = vld [vmem:[%s730 + $0x8] sm:$0xff]
        %v733 = vld [vmem:[%s730 + $0x10] sm:$0xff]
        %v734 = vld [vmem:[%s730 + $0x18] sm:$0xff]
        %v735 = vld [vmem:[%s730 + $0x20] sm:$0xff]
        %v736 = vld [vmem:[%s730 + $0x28] sm:$0xff]
        %v737 = vld [vmem:[%s730 + $0x30] sm:$0xff]
        %v738 = vld [vmem:[%s730 + $0x38] sm:$0xff]
        %739 = vmatprep.subr.mxu0 0.0
        %740 = vmatpush1.msra.mxu0 %v731
        %741 = vmatprep.subr.mxu0 0.0
        %742 = vmatpush1.msra.mxu0 %v732
        %743 = vmatprep.subr.mxu0 0.0
        %744 = vmatpush1.msra.mxu0 %v733
        %745 = vmatprep.subr.mxu0 0.0
        %746 = vmatpush1.msra.mxu0 %v734
        %747 = vmatprep.subr.mxu0 0.0
        %748 = vmatpush1.msra.mxu0 %v735
        %749 = vmatprep.subr.mxu0 0.0
        %750 = vmatpush1.msra.mxu0 %v736
        %751 = vmatprep.subr.mxu0 0.0
        %752 = vmatpush1.msra.mxu0 %v737
        %753 = vmatprep.subr.mxu0 0.0
        %754 = vmatpush1.msra.mxu0 %v738
        %755 = vmatprep.subr.mxu0 0.0
        %756 = vmatpush1.msra.mxu0 0.0
        %757 = vmatprep.subr.mxu0 0.0
        %758 = vmatpush1.msra.mxu0 0.0
        %759 = vmatprep.subr.mxu0 0.0
        %760 = vmatpush1.msra.mxu0 0.0
        %761 = vmatprep.subr.mxu0 0.0
        %762 = vmatpush1.msra.mxu0 0.0
        %763 = vmatprep.subr.mxu0 0.0
        %764 = vmatpush1.msra.mxu0 0.0
        %765 = vmatprep.subr.mxu0 0.0
        %766 = vmatpush1.msra.mxu0 0.0
        %767 = vmatprep.subr.mxu0 0.0
        %768 = vmatpush1.msra.mxu0 0.0
        %769 = vmatprep.subr.mxu0 0.0
        %770 = vmatpush1.msra.mxu0 0.0
        %771 = vmatprep.subr.mxu0 0.0
        %772 = vmatpush1.msra.mxu0 0.0
        %773 = vmatprep.subr.mxu0 0.0
        %774 = vmatpush1.msra.mxu0 0.0
        %775 = vmatprep.subr.mxu0 0.0
        %776 = vmatpush1.msra.mxu0 0.0
        %777 = vmatprep.subr.mxu0 0.0
        %778 = vmatpush1.msra.mxu0 0.0
        %779 = vmatprep.subr.mxu0 0.0
        %780 = vmatpush1.msra.mxu0 0.0
        %781 = vmatprep.subr.mxu0 0.0
        %782 = vmatpush1.msra.mxu0 0.0
        %783 = vmatprep.subr.mxu0 0.0
        %784 = vmatpush1.msra.mxu0 0.0
        %785 = vmatprep.subr.mxu0 0.0
        %786 = vmatpush1.msra.mxu0 0.0
        %787 = vmatprep.subr.mxu0 0.0
        %788 = vmatpush1.msra.mxu0 0.0
        %789 = vmatprep.subr.mxu0 0.0
        %790 = vmatpush1.msra.mxu0 0.0
        %791 = vmatprep.subr.mxu0 0.0
        %792 = vmatpush1.msra.mxu0 0.0
        %793 = vmatprep.subr.mxu0 0.0
        %794 = vmatpush1.msra.mxu0 0.0
        %795 = vmatprep.subr.mxu0 0.0
        %796 = vmatpush1.msra.mxu0 0.0
        %797 = vmatprep.subr.mxu0 0.0
        %798 = vmatpush1.msra.mxu0 0.0
        %799 = vmatprep.subr.mxu0 0.0
        %800 = vmatpush1.msra.mxu0 0.0
        %801 = vmatprep.subr.mxu0 0.0
        %802 = vmatpush1.msra.mxu0 0.0
        %803 = vmatprep.mubr.f32.mxu0 0.0
        %804 = vmatmul.mubr.f32.gmra.mrb[0].mxu0 %v650
        %v805 = vpop.f32.mrb[0].mxu0
        %v806 = vadd.f32 0.0, %v805
        %v807 = vpop.f32.mrb[0].mxu0
        %808 = vmatprep.mubr.f32.mxu0 0.0
        %809 = vmatmul.mubr.f32.gmra.mrb[0].mxu0 %v653
        %v810 = vpop.f32.mrb[0].mxu0
        %v811 = vadd.f32 0.0, %v810
        %v812 = vpop.f32.mrb[0].mxu0
        %813 = vdwg.mxu0
        %s814 = scalar_lea.vmem [#allocation5], 128
        %v815 = vld [vmem:[%s814] sm:$0xff]
        %v816 = vld [vmem:[%s814 + $0x8] sm:$0xff]
        %v817 = vld [vmem:[%s814 + $0x10] sm:$0xff]
        %v818 = vld [vmem:[%s814 + $0x18] sm:$0xff]
        %v819 = vld [vmem:[%s814 + $0x20] sm:$0xff]
        %v820 = vld [vmem:[%s814 + $0x28] sm:$0xff]
        %v821 = vld [vmem:[%s814 + $0x30] sm:$0xff]
        %v822 = vld [vmem:[%s814 + $0x38] sm:$0xff]
        %823 = vmatprep.subr.mxu0 0.0
        %824 = vmatpush1.msra.mxu0 %v815
        %825 = vmatprep.subr.mxu0 0.0
        %826 = vmatpush1.msra.mxu0 %v816
        %827 = vmatprep.subr.mxu0 0.0
        %828 = vmatpush1.msra.mxu0 %v817
        %829 = vmatprep.subr.mxu0 0.0
        %830 = vmatpush1.msra.mxu0 %v818
        %831 = vmatprep.subr.mxu0 0.0
        %832 = vmatpush1.msra.mxu0 %v819
        %833 = vmatprep.subr.mxu0 0.0
        %834 = vmatpush1.msra.mxu0 %v820
        %835 = vmatprep.subr.mxu0 0.0
        %836 = vmatpush1.msra.mxu0 %v821
        %837 = vmatprep.subr.mxu0 0.0
        %838 = vmatpush1.msra.mxu0 %v822
        %839 = vmatprep.subr.mxu0 0.0
        %840 = vmatpush1.msra.mxu0 0.0
        %841 = vmatprep.subr.mxu0 0.0
        %842 = vmatpush1.msra.mxu0 0.0
        %843 = vmatprep.subr.mxu0 0.0
        %844 = vmatpush1.msra.mxu0 0.0
        %845 = vmatprep.subr.mxu0 0.0
        %846 = vmatpush1.msra.mxu0 0.0
        %847 = vmatprep.subr.mxu0 0.0
        %848 = vmatpush1.msra.mxu0 0.0
        %849 = vmatprep.subr.mxu0 0.0
        %850 = vmatpush1.msra.mxu0 0.0
        %851 = vmatprep.subr.mxu0 0.0
        %852 = vmatpush1.msra.mxu0 0.0
        %853 = vmatprep.subr.mxu0 0.0
        %854 = vmatpush1.msra.mxu0 0.0
        %855 = vmatprep.subr.mxu0 0.0
        %856 = vmatpush1.msra.mxu0 0.0
        %857 = vmatprep.subr.mxu0 0.0
        %858 = vmatpush1.msra.mxu0 0.0
        %859 = vmatprep.subr.mxu0 0.0
        %860 = vmatpush1.msra.mxu0 0.0
        %861 = vmatprep.subr.mxu0 0.0
        %862 = vmatpush1.msra.mxu0 0.0
        %863 = vmatprep.subr.mxu0 0.0
        %864 = vmatpush1.msra.mxu0 0.0
        %865 = vmatprep.subr.mxu0 0.0
        %866 = vmatpush1.msra.mxu0 0.0
        %867 = vmatprep.subr.mxu0 0.0
        %868 = vmatpush1.msra.mxu0 0.0
        %869 = vmatprep.subr.mxu0 0.0
        %870 = vmatpush1.msra.mxu0 0.0
        %871 = vmatprep.subr.mxu0 0.0
        %872 = vmatpush1.msra.mxu0 0.0
        %873 = vmatprep.subr.mxu0 0.0
        %874 = vmatpush1.msra.mxu0 0.0
        %875 = vmatprep.subr.mxu0 0.0
        %876 = vmatpush1.msra.mxu0 0.0
        %877 = vmatprep.subr.mxu0 0.0
        %878 = vmatpush1.msra.mxu0 0.0
        %879 = vmatprep.subr.mxu0 0.0
        %880 = vmatpush1.msra.mxu0 0.0
        %881 = vmatprep.subr.mxu0 0.0
        %882 = vmatpush1.msra.mxu0 0.0
        %883 = vmatprep.subr.mxu0 0.0
        %884 = vmatpush1.msra.mxu0 0.0
        %885 = vmatprep.subr.mxu0 0.0
        %886 = vmatpush1.msra.mxu0 0.0
        %887 = vmatprep.mubr.f32.mxu0 0.0
        %888 = vmatmul.mubr.f32.gmra.mrb[0].mxu0 %v650
        %v889 = vpop.f32.mrb[0].mxu0
        %v890 = vadd.f32 0.0, %v889
        %v891 = vpop.f32.mrb[0].mxu0
        %892 = vmatprep.mubr.f32.mxu0 0.0
        %893 = vmatmul.mubr.f32.gmra.mrb[0].mxu0 %v653
        %v894 = vpop.f32.mrb[0].mxu0
        %v895 = vadd.f32 0.0, %v894
        %v896 = vpop.f32.mrb[0].mxu0
        %897 = vdwg.mxu0
        %s898 = scalar_lea.vmem [#allocation5], 192
        %v899 = vld [vmem:[%s898] sm:$0xff]
        %v900 = vld [vmem:[%s898 + $0x8] sm:$0xff]
        %v901 = vld [vmem:[%s898 + $0x10] sm:$0xff]
        %v902 = vld [vmem:[%s898 + $0x18] sm:$0xff]
        %v903 = vld [vmem:[%s898 + $0x20] sm:$0xff]
        %v904 = vld [vmem:[%s898 + $0x28] sm:$0xff]
        %v905 = vld [vmem:[%s898 + $0x30] sm:$0xff]
        %v906 = vld [vmem:[%s898 + $0x38] sm:$0xff]
        %907 = vmatprep.subr.mxu0 0.0
        %908 = vmatpush1.msra.mxu0 %v899
        %909 = vmatprep.subr.mxu0 0.0
        %910 = vmatpush1.msra.mxu0 %v900
        %911 = vmatprep.subr.mxu0 0.0
        %912 = vmatpush1.msra.mxu0 %v901
        %913 = vmatprep.subr.mxu0 0.0
        %914 = vmatpush1.msra.mxu0 %v902
        %915 = vmatprep.subr.mxu0 0.0
        %916 = vmatpush1.msra.mxu0 %v903
        %917 = vmatprep.subr.mxu0 0.0
        %918 = vmatpush1.msra.mxu0 %v904
        %919 = vmatprep.subr.mxu0 0.0
        %920 = vmatpush1.msra.mxu0 %v905
        %921 = vmatprep.subr.mxu0 0.0
        %922 = vmatpush1.msra.mxu0 %v906
        %923 = vmatprep.subr.mxu0 0.0
        %924 = vmatpush1.msra.mxu0 0.0
        %925 = vmatprep.subr.mxu0 0.0
        %926 = vmatpush1.msra.mxu0 0.0
        %927 = vmatprep.subr.mxu0 0.0
        %928 = vmatpush1.msra.mxu0 0.0
        %929 = vmatprep.subr.mxu0 0.0
        %930 = vmatpush1.msra.mxu0 0.0
        %931 = vmatprep.subr.mxu0 0.0
        %932 = vmatpush1.msra.mxu0 0.0
        %933 = vmatprep.subr.mxu0 0.0
        %934 = vmatpush1.msra.mxu0 0.0
        %935 = vmatprep.subr.mxu0 0.0
        %936 = vmatpush1.msra.mxu0 0.0
        %937 = vmatprep.subr.mxu0 0.0
        %938 = vmatpush1.msra.mxu0 0.0
        %939 = vmatprep.subr.mxu0 0.0
        %940 = vmatpush1.msra.mxu0 0.0
        %941 = vmatprep.subr.mxu0 0.0
        %942 = vmatpush1.msra.mxu0 0.0
        %943 = vmatprep.subr.mxu0 0.0
        %944 = vmatpush1.msra.mxu0 0.0
        %945 = vmatprep.subr.mxu0 0.0
        %946 = vmatpush1.msra.mxu0 0.0
        %947 = vmatprep.subr.mxu0 0.0
        %948 = vmatpush1.msra.mxu0 0.0
        %949 = vmatprep.subr.mxu0 0.0
        %950 = vmatpush1.msra.mxu0 0.0
        %951 = vmatprep.subr.mxu0 0.0
        %952 = vmatpush1.msra.mxu0 0.0
        %953 = vmatprep.subr.mxu0 0.0
        %954 = vmatpush1.msra.mxu0 0.0
        %955 = vmatprep.subr.mxu0 0.0
        %956 = vmatpush1.msra.mxu0 0.0
        %957 = vmatprep.subr.mxu0 0.0
        %958 = vmatpush1.msra.mxu0 0.0
        %959 = vmatprep.subr.mxu0 0.0
        %960 = vmatpush1.msra.mxu0 0.0
        %961 = vmatprep.subr.mxu0 0.0
        %962 = vmatpush1.msra.mxu0 0.0
        %963 = vmatprep.subr.mxu0 0.0
        %964 = vmatpush1.msra.mxu0 0.0
        %965 = vmatprep.subr.mxu0 0.0
        %966 = vmatpush1.msra.mxu0 0.0
        %967 = vmatprep.subr.mxu0 0.0
        %968 = vmatpush1.msra.mxu0 0.0
        %969 = vmatprep.subr.mxu0 0.0
        %970 = vmatpush1.msra.mxu0 0.0
        %971 = vmatprep.mubr.f32.mxu0 0.0
        %972 = vmatmul.mubr.f32.gmra.mrb[0].mxu0 %v650
        %v973 = vpop.f32.mrb[0].mxu0
        %v974 = vadd.f32 0.0, %v973
        %v975 = vpop.f32.mrb[0].mxu0
        %976 = vmatprep.mubr.f32.mxu0 0.0
        %977 = vmatmul.mubr.f32.gmra.mrb[0].mxu0 %v653
        %v978 = vpop.f32.mrb[0].mxu0
        %v979 = vadd.f32 0.0, %v978
        %v980 = vpop.f32.mrb[0].mxu0
        %981 = vdwg.mxu0
        %s982 = scalar_lea.vmem [#allocation5], 256
        %v983 = vld [vmem:[%s982] sm:$0xff]
        %v984 = vld [vmem:[%s982 + $0x8] sm:$0xff]
        %v985 = vld [vmem:[%s982 + $0x10] sm:$0xff]
        %v986 = vld [vmem:[%s982 + $0x18] sm:$0xff]
        %v987 = vld [vmem:[%s982 + $0x20] sm:$0xff]
        %v988 = vld [vmem:[%s982 + $0x28] sm:$0xff]
        %v989 = vld [vmem:[%s982 + $0x30] sm:$0xff]
        %v990 = vld [vmem:[%s982 + $0x38] sm:$0xff]
        %991 = vmatprep.subr.mxu0 0.0
        %992 = vmatpush1.msra.mxu0 %v983
        %993 = vmatprep.subr.mxu0 0.0
        %994 = vmatpush1.msra.mxu0 %v984
        %995 = vmatprep.subr.mxu0 0.0
        %996 = vmatpush1.msra.mxu0 %v985
        %997 = vmatprep.subr.mxu0 0.0
        %998 = vmatpush1.msra.mxu0 %v986
        %999 = vmatprep.subr.mxu0 0.0
        %1000 = vmatpush1.msra.mxu0 %v987
        %1001 = vmatprep.subr.mxu0 0.0
        %1002 = vmatpush1.msra.mxu0 %v988
        %1003 = vmatprep.subr.mxu0 0.0
        %1004 = vmatpush1.msra.mxu0 %v989
        %1005 = vmatprep.subr.mxu0 0.0
        %1006 = vmatpush1.msra.mxu0 %v990
        %1007 = vmatprep.subr.mxu0 0.0
        %1008 = vmatpush1.msra.mxu0 0.0
        %1009 = vmatprep.subr.mxu0 0.0
        %1010 = vmatpush1.msra.mxu0 0.0
        %1011 = vmatprep.subr.mxu0 0.0
        %1012 = vmatpush1.msra.mxu0 0.0
        %1013 = vmatprep.subr.mxu0 0.0
        %1014 = vmatpush1.msra.mxu0 0.0
        %1015 = vmatprep.subr.mxu0 0.0
        %1016 = vmatpush1.msra.mxu0 0.0
        %1017 = vmatprep.subr.mxu0 0.0
        %1018 = vmatpush1.msra.mxu0 0.0
        %1019 = vmatprep.subr.mxu0 0.0
        %1020 = vmatpush1.msra.mxu0 0.0
        %1021 = vmatprep.subr.mxu0 0.0
        %1022 = vmatpush1.msra.mxu0 0.0
        %1023 = vmatprep.subr.mxu0 0.0
        %1024 = vmatpush1.msra.mxu0 0.0
        %1025 = vmatprep.subr.mxu0 0.0
        %1026 = vmatpush1.msra.mxu0 0.0
        %1027 = vmatprep.subr.mxu0 0.0
        %1028 = vmatpush1.msra.mxu0 0.0
        %1029 = vmatprep.subr.mxu0 0.0
        %1030 = vmatpush1.msra.mxu0 0.0
        %1031 = vmatprep.subr.mxu0 0.0
        %1032 = vmatpush1.msra.mxu0 0.0
        %1033 = vmatprep.subr.mxu0 0.0
        %1034 = vmatpush1.msra.mxu0 0.0
        %1035 = vmatprep.subr.mxu0 0.0
        %1036 = vmatpush1.msra.mxu0 0.0
        %1037 = vmatprep.subr.mxu0 0.0
        %1038 = vmatpush1.msra.mxu0 0.0
        %1039 = vmatprep.subr.mxu0 0.0
        %1040 = vmatpush1.msra.mxu0 0.0
        %1041 = vmatprep.subr.mxu0 0.0
        %1042 = vmatpush1.msra.mxu0 0.0
        %1043 = vmatprep.subr.mxu0 0.0
        %1044 = vmatpush1.msra.mxu0 0.0
        %1045 = vmatprep.subr.mxu0 0.0
        %1046 = vmatpush1.msra.mxu0 0.0
        %1047 = vmatprep.subr.mxu0 0.0
        %1048 = vmatpush1.msra.mxu0 0.0
        %1049 = vmatprep.subr.mxu0 0.0
        %1050 = vmatpush1.msra.mxu0 0.0
        %1051 = vmatprep.subr.mxu0 0.0
        %1052 = vmatpush1.msra.mxu0 0.0
        %1053 = vmatprep.subr.mxu0 0.0
        %1054 = vmatpush1.msra.mxu0 0.0
        %1055 = vmatprep.mubr.f32.mxu0 0.0
        %1056 = vmatmul.mubr.f32.gmra.mrb[0].mxu0 %v650
        %v1057 = vpop.f32.mrb[0].mxu0
        %v1058 = vadd.f32 0.0, %v1057
        %v1059 = vpop.f32.mrb[0].mxu0
        %1060 = vmatprep.mubr.f32.mxu0 0.0
        %1061 = vmatmul.mubr.f32.gmra.mrb[0].mxu0 %v653
        %v1062 = vpop.f32.mrb[0].mxu0
        %v1063 = vadd.f32 0.0, %v1062
        %v1064 = vpop.f32.mrb[0].mxu0
        %1065 = vdwg.mxu0
        %s1066 = scalar_lea.vmem [#allocation5], 320
        %v1067 = vld [vmem:[%s1066] sm:$0xff]
        %v1068 = vld [vmem:[%s1066 + $0x8] sm:$0xff]
        %v1069 = vld [vmem:[%s1066 + $0x10] sm:$0xff]
        %v1070 = vld [vmem:[%s1066 + $0x18] sm:$0xff]
        %v1071 = vld [vmem:[%s1066 + $0x20] sm:$0xff]
        %v1072 = vld [vmem:[%s1066 + $0x28] sm:$0xff]
        %v1073 = vld [vmem:[%s1066 + $0x30] sm:$0xff]
        %v1074 = vld [vmem:[%s1066 + $0x38] sm:$0xff]
        %1075 = vmatprep.subr.mxu0 0.0
        %1076 = vmatpush1.msra.mxu0 %v1067
        %1077 = vmatprep.subr.mxu0 0.0
        %1078 = vmatpush1.msra.mxu0 %v1068
        %1079 = vmatprep.subr.mxu0 0.0
        %1080 = vmatpush1.msra.mxu0 %v1069
        %1081 = vmatprep.subr.mxu0 0.0
        %1082 = vmatpush1.msra.mxu0 %v1070
        %1083 = vmatprep.subr.mxu0 0.0
        %1084 = vmatpush1.msra.mxu0 %v1071
        %1085 = vmatprep.subr.mxu0 0.0
        %1086 = vmatpush1.msra.mxu0 %v1072
        %1087 = vmatprep.subr.mxu0 0.0
        %1088 = vmatpush1.msra.mxu0 %v1073
        %1089 = vmatprep.subr.mxu0 0.0
        %1090 = vmatpush1.msra.mxu0 %v1074
        %1091 = vmatprep.subr.mxu0 0.0
        %1092 = vmatpush1.msra.mxu0 0.0
        %1093 = vmatprep.subr.mxu0 0.0
        %1094 = vmatpush1.msra.mxu0 0.0
        %1095 = vmatprep.subr.mxu0 0.0
        %1096 = vmatpush1.msra.mxu0 0.0
        %1097 = vmatprep.subr.mxu0 0.0
        %1098 = vmatpush1.msra.mxu0 0.0
        %1099 = vmatprep.subr.mxu0 0.0
        %1100 = vmatpush1.msra.mxu0 0.0
        %1101 = vmatprep.subr.mxu0 0.0
        %1102 = vmatpush1.msra.mxu0 0.0
        %1103 = vmatprep.subr.mxu0 0.0
        %1104 = vmatpush1.msra.mxu0 0.0
        %1105 = vmatprep.subr.mxu0 0.0
        %1106 = vmatpush1.msra.mxu0 0.0
        %1107 = vmatprep.subr.mxu0 0.0
        %1108 = vmatpush1.msra.mxu0 0.0
        %1109 = vmatprep.subr.mxu0 0.0
        %1110 = vmatpush1.msra.mxu0 0.0
        %1111 = vmatprep.subr.mxu0 0.0
        %1112 = vmatpush1.msra.mxu0 0.0
        %1113 = vmatprep.subr.mxu0 0.0
        %1114 = vmatpush1.msra.mxu0 0.0
        %1115 = vmatprep.subr.mxu0 0.0
        %1116 = vmatpush1.msra.mxu0 0.0
        %1117 = vmatprep.subr.mxu0 0.0
        %1118 = vmatpush1.msra.mxu0 0.0
        %1119 = vmatprep.subr.mxu0 0.0
        %1120 = vmatpush1.msra.mxu0 0.0
        %1121 = vmatprep.subr.mxu0 0.0
        %1122 = vmatpush1.msra.mxu0 0.0
        %1123 = vmatprep.subr.mxu0 0.0
        %1124 = vmatpush1.msra.mxu0 0.0
        %1125 = vmatprep.subr.mxu0 0.0
        %1126 = vmatpush1.msra.mxu0 0.0
        %1127 = vmatprep.subr.mxu0 0.0
        %1128 = vmatpush1.msra.mxu0 0.0
        %1129 = vmatprep.subr.mxu0 0.0
        %1130 = vmatpush1.msra.mxu0 0.0
        %1131 = vmatprep.subr.mxu0 0.0
        %1132 = vmatpush1.msra.mxu0 0.0
        %1133 = vmatprep.subr.mxu0 0.0
        %1134 = vmatpush1.msra.mxu0 0.0
        %1135 = vmatprep.subr.mxu0 0.0
        %1136 = vmatpush1.msra.mxu0 0.0
        %1137 = vmatprep.subr.mxu0 0.0
        %1138 = vmatpush1.msra.mxu0 0.0
        %1139 = vmatprep.mubr.f32.mxu0 0.0
        %1140 = vmatmul.mubr.f32.gmra.mrb[0].mxu0 %v650
        %v1141 = vpop.f32.mrb[0].mxu0
        %v1142 = vadd.f32 0.0, %v1141
        %v1143 = vpop.f32.mrb[0].mxu0
        %1144 = vmatprep.mubr.f32.mxu0 0.0
        %1145 = vmatmul.mubr.f32.gmra.mrb[0].mxu0 %v653
        %v1146 = vpop.f32.mrb[0].mxu0
        %v1147 = vadd.f32 0.0, %v1146
        %v1148 = vpop.f32.mrb[0].mxu0
        %1149 = vdwg.mxu0
        %s1150 = scalar_lea.vmem [#allocation5], 384
        %v1151 = vld [vmem:[%s1150] sm:$0xff]
        %v1152 = vld [vmem:[%s1150 + $0x8] sm:$0xff]
        %v1153 = vld [vmem:[%s1150 + $0x10] sm:$0xff]
        %v1154 = vld [vmem:[%s1150 + $0x18] sm:$0xff]
        %v1155 = vld [vmem:[%s1150 + $0x20] sm:$0xff]
        %v1156 = vld [vmem:[%s1150 + $0x28] sm:$0xff]
        %v1157 = vld [vmem:[%s1150 + $0x30] sm:$0xff]
        %v1158 = vld [vmem:[%s1150 + $0x38] sm:$0xff]
        %1159 = vmatprep.subr.mxu0 0.0
        %1160 = vmatpush1.msra.mxu0 %v1151
        %1161 = vmatprep.subr.mxu0 0.0
        %1162 = vmatpush1.msra.mxu0 %v1152
        %1163 = vmatprep.subr.mxu0 0.0
        %1164 = vmatpush1.msra.mxu0 %v1153
        %1165 = vmatprep.subr.mxu0 0.0
        %1166 = vmatpush1.msra.mxu0 %v1154
        %1167 = vmatprep.subr.mxu0 0.0
        %1168 = vmatpush1.msra.mxu0 %v1155
        %1169 = vmatprep.subr.mxu0 0.0
        %1170 = vmatpush1.msra.mxu0 %v1156
        %1171 = vmatprep.subr.mxu0 0.0
        %1172 = vmatpush1.msra.mxu0 %v1157
        %1173 = vmatprep.subr.mxu0 0.0
        %1174 = vmatpush1.msra.mxu0 %v1158
        %1175 = vmatprep.subr.mxu0 0.0
        %1176 = vmatpush1.msra.mxu0 0.0
        %1177 = vmatprep.subr.mxu0 0.0
        %1178 = vmatpush1.msra.mxu0 0.0
        %1179 = vmatprep.subr.mxu0 0.0
        %1180 = vmatpush1.msra.mxu0 0.0
        %1181 = vmatprep.subr.mxu0 0.0
        %1182 = vmatpush1.msra.mxu0 0.0
        %1183 = vmatprep.subr.mxu0 0.0
        %1184 = vmatpush1.msra.mxu0 0.0
        %1185 = vmatprep.subr.mxu0 0.0
        %1186 = vmatpush1.msra.mxu0 0.0
        %1187 = vmatprep.subr.mxu0 0.0
        %1188 = vmatpush1.msra.mxu0 0.0
        %1189 = vmatprep.subr.mxu0 0.0
        %1190 = vmatpush1.msra.mxu0 0.0
        %1191 = vmatprep.subr.mxu0 0.0
        %1192 = vmatpush1.msra.mxu0 0.0
        %1193 = vmatprep.subr.mxu0 0.0
        %1194 = vmatpush1.msra.mxu0 0.0
        %1195 = vmatprep.subr.mxu0 0.0
        %1196 = vmatpush1.msra.mxu0 0.0
        %1197 = vmatprep.subr.mxu0 0.0
        %1198 = vmatpush1.msra.mxu0 0.0
        %1199 = vmatprep.subr.mxu0 0.0
        %1200 = vmatpush1.msra.mxu0 0.0
        %1201 = vmatprep.subr.mxu0 0.0
        %1202 = vmatpush1.msra.mxu0 0.0
        %1203 = vmatprep.subr.mxu0 0.0
        %1204 = vmatpush1.msra.mxu0 0.0
        %1205 = vmatprep.subr.mxu0 0.0
        %1206 = vmatpush1.msra.mxu0 0.0
        %1207 = vmatprep.subr.mxu0 0.0
        %1208 = vmatpush1.msra.mxu0 0.0
        %1209 = vmatprep.subr.mxu0 0.0
        %1210 = vmatpush1.msra.mxu0 0.0
        %1211 = vmatprep.subr.mxu0 0.0
        %1212 = vmatpush1.msra.mxu0 0.0
        %1213 = vmatprep.subr.mxu0 0.0
        %1214 = vmatpush1.msra.mxu0 0.0
        %1215 = vmatprep.subr.mxu0 0.0
        %1216 = vmatpush1.msra.mxu0 0.0
        %1217 = vmatprep.subr.mxu0 0.0
        %1218 = vmatpush1.msra.mxu0 0.0
        %1219 = vmatprep.subr.mxu0 0.0
        %1220 = vmatpush1.msra.mxu0 0.0
        %1221 = vmatprep.subr.mxu0 0.0
        %1222 = vmatpush1.msra.mxu0 0.0
        %1223 = vmatprep.mubr.f32.mxu0 0.0
        %1224 = vmatmul.mubr.f32.gmra.mrb[0].mxu0 %v650
        %v1225 = vpop.f32.mrb[0].mxu0
        %v1226 = vadd.f32 0.0, %v1225
        %v1227 = vpop.f32.mrb[0].mxu0
        %1228 = vmatprep.mubr.f32.mxu0 0.0
        %1229 = vmatmul.mubr.f32.gmra.mrb[0].mxu0 %v653
        %v1230 = vpop.f32.mrb[0].mxu0
        %v1231 = vadd.f32 0.0, %v1230
        %v1232 = vpop.f32.mrb[0].mxu0
        %1233 = vdwg.mxu0
        %s1234 = scalar_lea.vmem [#allocation5], 448
        %v1235 = vld [vmem:[%s1234] sm:$0xff]
        %v1236 = vld [vmem:[%s1234 + $0x8] sm:$0xff]
        %v1237 = vld [vmem:[%s1234 + $0x10] sm:$0xff]
        %v1238 = vld [vmem:[%s1234 + $0x18] sm:$0xff]
        %v1239 = vld [vmem:[%s1234 + $0x20] sm:$0xff]
        %v1240 = vld [vmem:[%s1234 + $0x28] sm:$0xff]
        %v1241 = vld [vmem:[%s1234 + $0x30] sm:$0xff]
        %v1242 = vld [vmem:[%s1234 + $0x38] sm:$0xff]
        %1243 = vmatprep.subr.mxu0 0.0
        %1244 = vmatpush1.msra.mxu0 %v1235
        %1245 = vmatprep.subr.mxu0 0.0
        %1246 = vmatpush1.msra.mxu0 %v1236
        %1247 = vmatprep.subr.mxu0 0.0
        %1248 = vmatpush1.msra.mxu0 %v1237
        %1249 = vmatprep.subr.mxu0 0.0
        %1250 = vmatpush1.msra.mxu0 %v1238
        %1251 = vmatprep.subr.mxu0 0.0
        %1252 = vmatpush1.msra.mxu0 %v1239
        %1253 = vmatprep.subr.mxu0 0.0
        %1254 = vmatpush1.msra.mxu0 %v1240
        %1255 = vmatprep.subr.mxu0 0.0
        %1256 = vmatpush1.msra.mxu0 %v1241
        %1257 = vmatprep.subr.mxu0 0.0
        %1258 = vmatpush1.msra.mxu0 %v1242
        %1259 = vmatprep.subr.mxu0 0.0
        %1260 = vmatpush1.msra.mxu0 0.0
        %1261 = vmatprep.subr.mxu0 0.0
        %1262 = vmatpush1.msra.mxu0 0.0
        %1263 = vmatprep.subr.mxu0 0.0
        %1264 = vmatpush1.msra.mxu0 0.0
        %1265 = vmatprep.subr.mxu0 0.0
        %1266 = vmatpush1.msra.mxu0 0.0
        %1267 = vmatprep.subr.mxu0 0.0
        %1268 = vmatpush1.msra.mxu0 0.0
        %1269 = vmatprep.subr.mxu0 0.0
        %1270 = vmatpush1.msra.mxu0 0.0
        %1271 = vmatprep.subr.mxu0 0.0
        %1272 = vmatpush1.msra.mxu0 0.0
        %1273 = vmatprep.subr.mxu0 0.0
        %1274 = vmatpush1.msra.mxu0 0.0
        %1275 = vmatprep.subr.mxu0 0.0
        %1276 = vmatpush1.msra.mxu0 0.0
        %1277 = vmatprep.subr.mxu0 0.0
        %1278 = vmatpush1.msra.mxu0 0.0
        %1279 = vmatprep.subr.mxu0 0.0
        %1280 = vmatpush1.msra.mxu0 0.0
        %1281 = vmatprep.subr.mxu0 0.0
        %1282 = vmatpush1.msra.mxu0 0.0
        %1283 = vmatprep.subr.mxu0 0.0
        %1284 = vmatpush1.msra.mxu0 0.0
        %1285 = vmatprep.subr.mxu0 0.0
        %1286 = vmatpush1.msra.mxu0 0.0
        %1287 = vmatprep.subr.mxu0 0.0
        %1288 = vmatpush1.msra.mxu0 0.0
        %1289 = vmatprep.subr.mxu0 0.0
        %1290 = vmatpush1.msra.mxu0 0.0
        %1291 = vmatprep.subr.mxu0 0.0
        %1292 = vmatpush1.msra.mxu0 0.0
        %1293 = vmatprep.subr.mxu0 0.0
        %1294 = vmatpush1.msra.mxu0 0.0
        %1295 = vmatprep.subr.mxu0 0.0
        %1296 = vmatpush1.msra.mxu0 0.0
        %1297 = vmatprep.subr.mxu0 0.0
        %1298 = vmatpush1.msra.mxu0 0.0
        %1299 = vmatprep.subr.mxu0 0.0
        %1300 = vmatpush1.msra.mxu0 0.0
        %1301 = vmatprep.subr.mxu0 0.0
        %1302 = vmatpush1.msra.mxu0 0.0
        %1303 = vmatprep.subr.mxu0 0.0
        %1304 = vmatpush1.msra.mxu0 0.0
        %1305 = vmatprep.subr.mxu0 0.0
        %1306 = vmatpush1.msra.mxu0 0.0
        %1307 = vmatprep.mubr.f32.mxu0 0.0
        %1308 = vmatmul.mubr.f32.gmra.mrb[0].mxu0 %v650
        %v1309 = vpop.f32.mrb[0].mxu0
        %v1310 = vadd.f32 0.0, %v1309
        %v1311 = vpop.f32.mrb[0].mxu0
        %1312 = vmatprep.mubr.f32.mxu0 0.0
        %1313 = vmatmul.mubr.f32.gmra.mrb[0].mxu0 %v653
        %v1314 = vpop.f32.mrb[0].mxu0
        %v1315 = vadd.f32 0.0, %v1314
        %v1316 = vpop.f32.mrb[0].mxu0
        %1317 = vdwg.mxu0
        %s1318 = scalar_lea.vmem [#allocation5], 512
        %v1319 = vld [vmem:[%s1318] sm:$0xff]
        %v1320 = vld [vmem:[%s1318 + $0x8] sm:$0xff]
        %v1321 = vld [vmem:[%s1318 + $0x10] sm:$0xff]
        %v1322 = vld [vmem:[%s1318 + $0x18] sm:$0xff]
        %v1323 = vld [vmem:[%s1318 + $0x20] sm:$0xff]
        %v1324 = vld [vmem:[%s1318 + $0x28] sm:$0xff]
        %v1325 = vld [vmem:[%s1318 + $0x30] sm:$0xff]
        %v1326 = vld [vmem:[%s1318 + $0x38] sm:$0xff]
        %1327 = vmatprep.subr.mxu0 0.0
        %1328 = vmatpush1.msra.mxu0 %v1319
        %1329 = vmatprep.subr.mxu0 0.0
        %1330 = vmatpush1.msra.mxu0 %v1320
        %1331 = vmatprep.subr.mxu0 0.0
        %1332 = vmatpush1.msra.mxu0 %v1321
        %1333 = vmatprep.subr.mxu0 0.0
        %1334 = vmatpush1.msra.mxu0 %v1322
        %1335 = vmatprep.subr.mxu0 0.0
        %1336 = vmatpush1.msra.mxu0 %v1323
        %1337 = vmatprep.subr.mxu0 0.0
        %1338 = vmatpush1.msra.mxu0 %v1324
        %1339 = vmatprep.subr.mxu0 0.0
        %1340 = vmatpush1.msra.mxu0 %v1325
        %1341 = vmatprep.subr.mxu0 0.0
        %1342 = vmatpush1.msra.mxu0 %v1326
        %1343 = vmatprep.subr.mxu0 0.0
        %1344 = vmatpush1.msra.mxu0 0.0
        %1345 = vmatprep.subr.mxu0 0.0
        %1346 = vmatpush1.msra.mxu0 0.0
        %1347 = vmatprep.subr.mxu0 0.0
        %1348 = vmatpush1.msra.mxu0 0.0
        %1349 = vmatprep.subr.mxu0 0.0
        %1350 = vmatpush1.msra.mxu0 0.0
        %1351 = vmatprep.subr.mxu0 0.0
        %1352 = vmatpush1.msra.mxu0 0.0
        %1353 = vmatprep.subr.mxu0 0.0
        %1354 = vmatpush1.msra.mxu0 0.0
        %1355 = vmatprep.subr.mxu0 0.0
        %1356 = vmatpush1.msra.mxu0 0.0
        %1357 = vmatprep.subr.mxu0 0.0
        %1358 = vmatpush1.msra.mxu0 0.0
        %1359 = vmatprep.subr.mxu0 0.0
        %1360 = vmatpush1.msra.mxu0 0.0
        %1361 = vmatprep.subr.mxu0 0.0
        %1362 = vmatpush1.msra.mxu0 0.0
        %1363 = vmatprep.subr.mxu0 0.0
        %1364 = vmatpush1.msra.mxu0 0.0
        %1365 = vmatprep.subr.mxu0 0.0
        %1366 = vmatpush1.msra.mxu0 0.0
        %1367 = vmatprep.subr.mxu0 0.0
        %1368 = vmatpush1.msra.mxu0 0.0
        %1369 = vmatprep.subr.mxu0 0.0
        %1370 = vmatpush1.msra.mxu0 0.0
        %1371 = vmatprep.subr.mxu0 0.0
        %1372 = vmatpush1.msra.mxu0 0.0
        %1373 = vmatprep.subr.mxu0 0.0
        %1374 = vmatpush1.msra.mxu0 0.0
        %1375 = vmatprep.subr.mxu0 0.0
        %1376 = vmatpush1.msra.mxu0 0.0
        %1377 = vmatprep.subr.mxu0 0.0
        %1378 = vmatpush1.msra.mxu0 0.0
        %1379 = vmatprep.subr.mxu0 0.0
        %1380 = vmatpush1.msra.mxu0 0.0
        %1381 = vmatprep.subr.mxu0 0.0
        %1382 = vmatpush1.msra.mxu0 0.0
        %1383 = vmatprep.subr.mxu0 0.0
        %1384 = vmatpush1.msra.mxu0 0.0
        %1385 = vmatprep.subr.mxu0 0.0
        %1386 = vmatpush1.msra.mxu0 0.0
        %1387 = vmatprep.subr.mxu0 0.0
        %1388 = vmatpush1.msra.mxu0 0.0
        %1389 = vmatprep.subr.mxu0 0.0
        %1390 = vmatpush1.msra.mxu0 0.0
        %1391 = vmatprep.mubr.f32.mxu0 0.0
        %1392 = vmatmul.mubr.f32.gmra.mrb[0].mxu0 %v650
        %v1393 = vpop.f32.mrb[0].mxu0
        %v1394 = vadd.f32 0.0, %v1393
        %v1395 = vpop.f32.mrb[0].mxu0
        %1396 = vmatprep.mubr.f32.mxu0 0.0
        %1397 = vmatmul.mubr.f32.gmra.mrb[0].mxu0 %v653
        %v1398 = vpop.f32.mrb[0].mxu0
        %v1399 = vadd.f32 0.0, %v1398
        %v1400 = vpop.f32.mrb[0].mxu0
        %1401 = vdwg.mxu0
        %v1402 = vld [vmem:[%s3] sm:$0xff]
        %v1403 = vld [vmem:[%s3 + $0x8] sm:$0xff]
        %v1404 = vld [vmem:[%s3 + $0x10] sm:$0xff]
        %v1405 = vld [vmem:[%s3 + $0x18] sm:$0x1]
        %v1407 = vsel %vm648, %v1402, 0
        %v1410 = vsel %vm648, %v1403, 0
        %v1413 = vsel %vm648, %v1404, 0
        %v1416 = vsel %vm648, %v1405, 0
        %1418 = vmatprep.subr.mxu0 0.0
        %1419 = vmatpush1.msra.mxu0 %v1058
        %1420 = vmatprep.subr.mxu0 0.0
        %1421 = vmatpush1.msra.mxu0 %v1063
        %1422 = vmatprep.subr.mxu0 0.0
        %1423 = vmatpush1.msra.mxu0 %v974
        %1424 = vmatprep.subr.mxu0 0.0
        %1425 = vmatpush1.msra.mxu0 %v979
        %1426 = vmatprep.subr.mxu0 0.0
        %1427 = vmatpush1.msra.mxu0 %v806
        %1428 = vmatprep.subr.mxu0 0.0
        %1429 = vmatpush1.msra.mxu0 %v811
        %1430 = vmatprep.subr.mxu0 0.0
        %1431 = vmatpush1.msra.mxu0 %v722
        %1432 = vmatprep.subr.mxu0 0.0
        %1433 = vmatpush1.msra.mxu0 %v727
        %1434 = vmatprep.subr.mxu0 0.0
        %1435 = vmatpush1.msra.mxu0 0.0
        %1436 = vmatprep.subr.mxu0 0.0
        %1437 = vmatpush1.msra.mxu0 0.0
        %1438 = vmatprep.subr.mxu0 0.0
        %1439 = vmatpush1.msra.mxu0 0.0
        %1440 = vmatprep.subr.mxu0 0.0
        %1441 = vmatpush1.msra.mxu0 0.0
        %1442 = vmatprep.subr.mxu0 0.0
        %1443 = vmatpush1.msra.mxu0 0.0
        %1444 = vmatprep.subr.mxu0 0.0
        %1445 = vmatpush1.msra.mxu0 0.0
        %1446 = vmatprep.subr.mxu0 0.0
        %1447 = vmatpush1.msra.mxu0 0.0
        %1448 = vmatprep.subr.mxu0 0.0
        %1449 = vmatpush1.msra.mxu0 0.0
        %1450 = vmatprep.subr.mxu0 0.0
        %1451 = vmatpush1.msra.mxu0 0.0
        %1452 = vmatprep.subr.mxu0 0.0
        %1453 = vmatpush1.msra.mxu0 0.0
        %1454 = vmatprep.subr.mxu0 0.0
        %1455 = vmatpush1.msra.mxu0 0.0
        %1456 = vmatprep.subr.mxu0 0.0
        %1457 = vmatpush1.msra.mxu0 0.0
        %1458 = vmatprep.subr.mxu0 0.0
        %1459 = vmatpush1.msra.mxu0 0.0
        %1460 = vmatprep.subr.mxu0 0.0
        %1461 = vmatpush1.msra.mxu0 0.0
        %1462 = vmatprep.subr.mxu0 0.0
        %1463 = vmatpush1.msra.mxu0 0.0
        %1464 = vmatprep.subr.mxu0 0.0
        %1465 = vmatpush1.msra.mxu0 0.0
        %1466 = vmatprep.subr.mxu0 0.0
        %1467 = vmatpush1.msra.mxu0 0.0
        %1468 = vmatprep.subr.mxu0 0.0
        %1469 = vmatpush1.msra.mxu0 0.0
        %1470 = vmatprep.subr.mxu0 0.0
        %1471 = vmatpush1.msra.mxu0 0.0
        %1472 = vmatprep.subr.mxu0 0.0
        %1473 = vmatpush1.msra.mxu0 0.0
        %1474 = vmatprep.subr.mxu0 0.0
        %1475 = vmatpush1.msra.mxu0 0.0
        %1476 = vmatprep.subr.mxu0 0.0
        %1477 = vmatpush1.msra.mxu0 0.0
        %1478 = vmatprep.subr.mxu0 0.0
        %1479 = vmatpush1.msra.mxu0 0.0
        %1480 = vmatprep.subr.mxu0 0.0
        %1481 = vmatpush1.msra.mxu0 0.0
        %1482 = vmatprep.mubr.f32.mxu0 0.0
        %1483 = vmatmul.mubr.f32.gmra.mrb[0].mxu0 %v1407
        %v1484 = vpop.f32.mrb[0].mxu0
        %v1485 = vadd.f32 0.0, %v1484
        %v1486 = vpop.f32.mrb[0].mxu0
        %1487 = vmatprep.mubr.f32.mxu0 0.0
        %1488 = vmatmul.mubr.f32.gmra.mrb[0].mxu0 %v1410
        %v1489 = vpop.f32.mrb[0].mxu0
        %v1490 = vadd.f32 0.0, %v1489
        %v1491 = vpop.f32.mrb[0].mxu0
        %1492 = vmatprep.mubr.f32.mxu0 0.0
        %1493 = vmatmul.mubr.f32.gmra.mrb[0].mxu0 %v1413
        %v1494 = vpop.f32.mrb[0].mxu0
        %v1495 = vadd.f32 0.0, %v1494
        %v1496 = vpop.f32.mrb[0].mxu0
        %1497 = vmatprep.mubr.f32.mxu0 0.0
        %1498 = vmatmul.mubr.f32.gmra.mrb[0].mxu0 %v1416
        %v1499 = vpop.f32.mrb[0].mxu0
        %v1500 = vadd.f32 0.0, %v1499
        %v1501 = vpop.f32.mrb[0].mxu0
        %1502 = vdwg.mxu0
        %1503 = vst.msk [vmem:[#allocation2] sm:$0xff] %vm648, %v1485
        %1504 = vst.msk [vmem:[#allocation2 + $0x10] sm:$0xff] %vm648, %v1490
        %1505 = vst.msk [vmem:[#allocation2 + $0x20] sm:$0xff] %vm648, %v1495
        %vm1506 = vcmask 516096
        %1507 = vst.msk [vmem:[#allocation2 + $0x30] sm:$0x1] %vm1506, %v1500
        %s1508 = scalar_lea.vmem %s3, 32
        %v1509 = vld [vmem:[%s1508] sm:$0xff]
        %v1510 = vld [vmem:[%s1508 + $0x8] sm:$0xff]
        %v1511 = vld [vmem:[%s1508 + $0x10] sm:$0xff]
        %v1512 = vld [vmem:[%s1508 + $0x18] sm:$0x1]
        %v1514 = vsel %vm648, %v1509, 0
        %v1517 = vsel %vm648, %v1510, 0
        %v1520 = vsel %vm648, %v1511, 0
        %v1523 = vsel %vm648, %v1512, 0
        %1525 = vmatprep.subr.mxu0 0.0
        %1526 = vmatpush1.msra.mxu0 %v1142
        %1527 = vmatprep.subr.mxu0 0.0
        %1528 = vmatpush1.msra.mxu0 %v1147
        %1529 = vmatprep.subr.mxu0 0.0
        %1530 = vmatpush1.msra.mxu0 %v1058
        %1531 = vmatprep.subr.mxu0 0.0
        %1532 = vmatpush1.msra.mxu0 %v1063
        %1533 = vmatprep.subr.mxu0 0.0
        %1534 = vmatpush1.msra.mxu0 %v890
        %1535 = vmatprep.subr.mxu0 0.0
        %1536 = vmatpush1.msra.mxu0 %v895
        %1537 = vmatprep.subr.mxu0 0.0
        %1538 = vmatpush1.msra.mxu0 %v806
        %1539 = vmatprep.subr.mxu0 0.0
        %1540 = vmatpush1.msra.mxu0 %v811
        %1541 = vmatprep.subr.mxu0 0.0
        %1542 = vmatpush1.msra.mxu0 0.0
        %1543 = vmatprep.subr.mxu0 0.0
        %1544 = vmatpush1.msra.mxu0 0.0
        %1545 = vmatprep.subr.mxu0 0.0
        %1546 = vmatpush1.msra.mxu0 0.0
        %1547 = vmatprep.subr.mxu0 0.0
        %1548 = vmatpush1.msra.mxu0 0.0
        %1549 = vmatprep.subr.mxu0 0.0
        %1550 = vmatpush1.msra.mxu0 0.0
        %1551 = vmatprep.subr.mxu0 0.0
        %1552 = vmatpush1.msra.mxu0 0.0
        %1553 = vmatprep.subr.mxu0 0.0
        %1554 = vmatpush1.msra.mxu0 0.0
        %1555 = vmatprep.subr.mxu0 0.0
        %1556 = vmatpush1.msra.mxu0 0.0
        %1557 = vmatprep.subr.mxu0 0.0
        %1558 = vmatpush1.msra.mxu0 0.0
        %1559 = vmatprep.subr.mxu0 0.0
        %1560 = vmatpush1.msra.mxu0 0.0
        %1561 = vmatprep.subr.mxu0 0.0
        %1562 = vmatpush1.msra.mxu0 0.0
        %1563 = vmatprep.subr.mxu0 0.0
        %1564 = vmatpush1.msra.mxu0 0.0
        %1565 = vmatprep.subr.mxu0 0.0
        %1566 = vmatpush1.msra.mxu0 0.0
        %1567 = vmatprep.subr.mxu0 0.0
        %1568 = vmatpush1.msra.mxu0 0.0
        %1569 = vmatprep.subr.mxu0 0.0
        %1570 = vmatpush1.msra.mxu0 0.0
        %1571 = vmatprep.subr.mxu0 0.0
        %1572 = vmatpush1.msra.mxu0 0.0
        %1573 = vmatprep.subr.mxu0 0.0
        %1574 = vmatpush1.msra.mxu0 0.0
        %1575 = vmatprep.subr.mxu0 0.0
        %1576 = vmatpush1.msra.mxu0 0.0
        %1577 = vmatprep.subr.mxu0 0.0
        %1578 = vmatpush1.msra.mxu0 0.0
        %1579 = vmatprep.subr.mxu0 0.0
        %1580 = vmatpush1.msra.mxu0 0.0
        %1581 = vmatprep.subr.mxu0 0.0
        %1582 = vmatpush1.msra.mxu0 0.0
        %1583 = vmatprep.subr.mxu0 0.0
        %1584 = vmatpush1.msra.mxu0 0.0
        %1585 = vmatprep.subr.mxu0 0.0
        %1586 = vmatpush1.msra.mxu0 0.0
        %1587 = vmatprep.subr.mxu0 0.0
        %1588 = vmatpush1.msra.mxu0 0.0
        %1589 = vmatprep.mubr.f32.mxu0 0.0
        %1590 = vmatmul.mubr.f32.gmra.mrb[0].mxu0 %v1514
        %v1591 = vpop.f32.mrb[0].mxu0
        %v1592 = vadd.f32 0.0, %v1591
        %v1593 = vpop.f32.mrb[0].mxu0
        %1594 = vmatprep.mubr.f32.mxu0 0.0
        %1595 = vmatmul.mubr.f32.gmra.mrb[0].mxu0 %v1517
        %v1596 = vpop.f32.mrb[0].mxu0
        %v1597 = vadd.f32 0.0, %v1596
        %v1598 = vpop.f32.mrb[0].mxu0
        %1599 = vmatprep.mubr.f32.mxu0 0.0
        %1600 = vmatmul.mubr.f32.gmra.mrb[0].mxu0 %v1520
        %v1601 = vpop.f32.mrb[0].mxu0
        %v1602 = vadd.f32 0.0, %v1601
        %v1603 = vpop.f32.mrb[0].mxu0
        %1604 = vmatprep.mubr.f32.mxu0 0.0
        %1605 = vmatmul.mubr.f32.gmra.mrb[0].mxu0 %v1523
        %v1606 = vpop.f32.mrb[0].mxu0
        %v1607 = vadd.f32 0.0, %v1606
        %v1608 = vpop.f32.mrb[0].mxu0
        %1609 = vdwg.mxu0
        %1614 = vrot.lane.b32.xlu0 %v1592, 64
        %v1615 = vpop.permute.xlu0 %1614
        %1616 = vrot.lane.b32.xlu0 %v1597, 64
        %v1617 = vpop.permute.xlu0 %1616
        %1618 = vrot.lane.b32.xlu0 %v1602, 64
        %v1619 = vpop.permute.xlu0 %1618
        %1620 = vrot.lane.b32.xlu0 %v1607, 64
        %v1621 = vpop.permute.xlu0 %1620
        %vm1626 = vcmask 1048064
        %1627 = vst.msk [vmem:[#allocation2] sm:$0xff] %vm1626, %v1615
        %1628 = vst.msk [vmem:[#allocation2 + $0x10] sm:$0xff] %vm1626, %v1617
        %1629 = vst.msk [vmem:[#allocation2 + $0x20] sm:$0xff] %vm1626, %v1619
        %vm1630 = vcmask 1040896
        %1631 = vst.msk [vmem:[#allocation2 + $0x30] sm:$0x1] %vm1630, %v1621
        %s1632 = scalar_lea.vmem %s3, 64
        %v1633 = vld [vmem:[%s1632] sm:$0xff]
        %v1634 = vld [vmem:[%s1632 + $0x8] sm:$0xff]
        %v1635 = vld [vmem:[%s1632 + $0x10] sm:$0xff]
        %v1636 = vld [vmem:[%s1632 + $0x18] sm:$0x1]
        %v1638 = vsel %vm648, %v1633, 0
        %v1641 = vsel %vm648, %v1634, 0
        %v1644 = vsel %vm648, %v1635, 0
        %v1647 = vsel %vm648, %v1636, 0
        %1649 = vmatprep.subr.mxu0 0.0
        %1650 = vmatpush1.msra.mxu0 %v1310
        %1651 = vmatprep.subr.mxu0 0.0
        %1652 = vmatpush1.msra.mxu0 %v1315
        %1653 = vmatprep.subr.mxu0 0.0
        %1654 = vmatpush1.msra.mxu0 %v1226
        %1655 = vmatprep.subr.mxu0 0.0
        %1656 = vmatpush1.msra.mxu0 %v1231
        %1657 = vmatprep.subr.mxu0 0.0
        %1658 = vmatpush1.msra.mxu0 %v1058
        %1659 = vmatprep.subr.mxu0 0.0
        %1660 = vmatpush1.msra.mxu0 %v1063
        %1661 = vmatprep.subr.mxu0 0.0
        %1662 = vmatpush1.msra.mxu0 %v974
        %1663 = vmatprep.subr.mxu0 0.0
        %1664 = vmatpush1.msra.mxu0 %v979
        %1665 = vmatprep.subr.mxu0 0.0
        %1666 = vmatpush1.msra.mxu0 0.0
        %1667 = vmatprep.subr.mxu0 0.0
        %1668 = vmatpush1.msra.mxu0 0.0
        %1669 = vmatprep.subr.mxu0 0.0
        %1670 = vmatpush1.msra.mxu0 0.0
        %1671 = vmatprep.subr.mxu0 0.0
        %1672 = vmatpush1.msra.mxu0 0.0
        %1673 = vmatprep.subr.mxu0 0.0
        %1674 = vmatpush1.msra.mxu0 0.0
        %1675 = vmatprep.subr.mxu0 0.0
        %1676 = vmatpush1.msra.mxu0 0.0
        %1677 = vmatprep.subr.mxu0 0.0
        %1678 = vmatpush1.msra.mxu0 0.0
        %1679 = vmatprep.subr.mxu0 0.0
        %1680 = vmatpush1.msra.mxu0 0.0
        %1681 = vmatprep.subr.mxu0 0.0
        %1682 = vmatpush1.msra.mxu0 0.0
        %1683 = vmatprep.subr.mxu0 0.0
        %1684 = vmatpush1.msra.mxu0 0.0
        %1685 = vmatprep.subr.mxu0 0.0
        %1686 = vmatpush1.msra.mxu0 0.0
        %1687 = vmatprep.subr.mxu0 0.0
        %1688 = vmatpush1.msra.mxu0 0.0
        %1689 = vmatprep.subr.mxu0 0.0
        %1690 = vmatpush1.msra.mxu0 0.0
        %1691 = vmatprep.subr.mxu0 0.0
        %1692 = vmatpush1.msra.mxu0 0.0
        %1693 = vmatprep.subr.mxu0 0.0
        %1694 = vmatpush1.msra.mxu0 0.0
        %1695 = vmatprep.subr.mxu0 0.0
        %1696 = vmatpush1.msra.mxu0 0.0
        %1697 = vmatprep.subr.mxu0 0.0
        %1698 = vmatpush1.msra.mxu0 0.0
        %1699 = vmatprep.subr.mxu0 0.0
        %1700 = vmatpush1.msra.mxu0 0.0
        %1701 = vmatprep.subr.mxu0 0.0
        %1702 = vmatpush1.msra.mxu0 0.0
        %1703 = vmatprep.subr.mxu0 0.0
        %1704 = vmatpush1.msra.mxu0 0.0
        %1705 = vmatprep.subr.mxu0 0.0
        %1706 = vmatpush1.msra.mxu0 0.0
        %1707 = vmatprep.subr.mxu0 0.0
        %1708 = vmatpush1.msra.mxu0 0.0
        %1709 = vmatprep.subr.mxu0 0.0
        %1710 = vmatpush1.msra.mxu0 0.0
        %1711 = vmatprep.subr.mxu0 0.0
        %1712 = vmatpush1.msra.mxu0 0.0
        %1713 = vmatprep.mubr.f32.mxu0 0.0
        %1714 = vmatmul.mubr.f32.gmra.mrb[0].mxu0 %v1638
        %v1715 = vpop.f32.mrb[0].mxu0
        %v1716 = vadd.f32 0.0, %v1715
        %v1717 = vpop.f32.mrb[0].mxu0
        %1718 = vmatprep.mubr.f32.mxu0 0.0
        %1719 = vmatmul.mubr.f32.gmra.mrb[0].mxu0 %v1641
        %v1720 = vpop.f32.mrb[0].mxu0
        %v1721 = vadd.f32 0.0, %v1720
        %v1722 = vpop.f32.mrb[0].mxu0
        %1723 = vmatprep.mubr.f32.mxu0 0.0
        %1724 = vmatmul.mubr.f32.gmra.mrb[0].mxu0 %v1644
        %v1725 = vpop.f32.mrb[0].mxu0
        %v1726 = vadd.f32 0.0, %v1725
        %v1727 = vpop.f32.mrb[0].mxu0
        %1728 = vmatprep.mubr.f32.mxu0 0.0
        %1729 = vmatmul.mubr.f32.gmra.mrb[0].mxu0 %v1647
        %v1730 = vpop.f32.mrb[0].mxu0
        %v1731 = vadd.f32 0.0, %v1730
        %v1732 = vpop.f32.mrb[0].mxu0
        %1733 = vdwg.mxu0
        %1734 = vst.msk [vmem:[#allocation2 + $0x8] sm:$0xff] %vm648, %v1716
        %1735 = vst.msk [vmem:[#allocation2 + $0x18] sm:$0xff] %vm648, %v1721
        %1736 = vst.msk [vmem:[#allocation2 + $0x28] sm:$0xff] %vm648, %v1726
        %1737 = vst.msk [vmem:[#allocation2 + $0x38] sm:$0x1] %vm1506, %v1731
        %s1738 = scalar_lea.vmem %s3, 96
        %v1739 = vld [vmem:[%s1738] sm:$0xff]
        %v1740 = vld [vmem:[%s1738 + $0x8] sm:$0xff]
        %v1741 = vld [vmem:[%s1738 + $0x10] sm:$0xff]
        %v1742 = vld [vmem:[%s1738 + $0x18] sm:$0x1]
        %v1744 = vsel %vm648, %v1739, 0
        %v1747 = vsel %vm648, %v1740, 0
        %v1750 = vsel %vm648, %v1741, 0
        %v1753 = vsel %vm648, %v1742, 0
        %1755 = vmatprep.subr.mxu0 0.0
        %1756 = vmatpush1.msra.mxu0 %v1394
        %1757 = vmatprep.subr.mxu0 0.0
        %1758 = vmatpush1.msra.mxu0 %v1399
        %1759 = vmatprep.subr.mxu0 0.0
        %1760 = vmatpush1.msra.mxu0 %v1310
        %1761 = vmatprep.subr.mxu0 0.0
        %1762 = vmatpush1.msra.mxu0 %v1315
        %1763 = vmatprep.subr.mxu0 0.0
        %1764 = vmatpush1.msra.mxu0 %v1142
        %1765 = vmatprep.subr.mxu0 0.0
        %1766 = vmatpush1.msra.mxu0 %v1147
        %1767 = vmatprep.subr.mxu0 0.0
        %1768 = vmatpush1.msra.mxu0 %v1058
        %1769 = vmatprep.subr.mxu0 0.0
        %1770 = vmatpush1.msra.mxu0 %v1063
        %1771 = vmatprep.subr.mxu0 0.0
        %1772 = vmatpush1.msra.mxu0 0.0
        %1773 = vmatprep.subr.mxu0 0.0
        %1774 = vmatpush1.msra.mxu0 0.0
        %1775 = vmatprep.subr.mxu0 0.0
        %1776 = vmatpush1.msra.mxu0 0.0
        %1777 = vmatprep.subr.mxu0 0.0
        %1778 = vmatpush1.msra.mxu0 0.0
        %1779 = vmatprep.subr.mxu0 0.0
        %1780 = vmatpush1.msra.mxu0 0.0
        %1781 = vmatprep.subr.mxu0 0.0
        %1782 = vmatpush1.msra.mxu0 0.0
        %1783 = vmatprep.subr.mxu0 0.0
        %1784 = vmatpush1.msra.mxu0 0.0
        %1785 = vmatprep.subr.mxu0 0.0
        %1786 = vmatpush1.msra.mxu0 0.0
        %1787 = vmatprep.subr.mxu0 0.0
        %1788 = vmatpush1.msra.mxu0 0.0
        %1789 = vmatprep.subr.mxu0 0.0
        %1790 = vmatpush1.msra.mxu0 0.0
        %1791 = vmatprep.subr.mxu0 0.0
        %1792 = vmatpush1.msra.mxu0 0.0
        %1793 = vmatprep.subr.mxu0 0.0
        %1794 = vmatpush1.msra.mxu0 0.0
        %1795 = vmatprep.subr.mxu0 0.0
        %1796 = vmatpush1.msra.mxu0 0.0
        %1797 = vmatprep.subr.mxu0 0.0
        %1798 = vmatpush1.msra.mxu0 0.0
        %1799 = vmatprep.subr.mxu0 0.0
        %1800 = vmatpush1.msra.mxu0 0.0
        %1801 = vmatprep.subr.mxu0 0.0
        %1802 = vmatpush1.msra.mxu0 0.0
        %1803 = vmatprep.subr.mxu0 0.0
        %1804 = vmatpush1.msra.mxu0 0.0
        %1805 = vmatprep.subr.mxu0 0.0
        %1806 = vmatpush1.msra.mxu0 0.0
        %1807 = vmatprep.subr.mxu0 0.0
        %1808 = vmatpush1.msra.mxu0 0.0
        %1809 = vmatprep.subr.mxu0 0.0
        %1810 = vmatpush1.msra.mxu0 0.0
        %1811 = vmatprep.subr.mxu0 0.0
        %1812 = vmatpush1.msra.mxu0 0.0
        %1813 = vmatprep.subr.mxu0 0.0
        %1814 = vmatpush1.msra.mxu0 0.0
        %1815 = vmatprep.subr.mxu0 0.0
        %1816 = vmatpush1.msra.mxu0 0.0
        %1817 = vmatprep.subr.mxu0 0.0
        %1818 = vmatpush1.msra.mxu0 0.0
        %1819 = vmatprep.mubr.f32.mxu0 0.0
        %1820 = vmatmul.mubr.f32.gmra.mrb[0].mxu0 %v1744
        %v1821 = vpop.f32.mrb[0].mxu0
        %v1822 = vadd.f32 0.0, %v1821
        %v1823 = vpop.f32.mrb[0].mxu0
        %1824 = vmatprep.mubr.f32.mxu0 0.0
        %1825 = vmatmul.mubr.f32.gmra.mrb[0].mxu0 %v1747
        %v1826 = vpop.f32.mrb[0].mxu0
        %v1827 = vadd.f32 0.0, %v1826
        %v1828 = vpop.f32.mrb[0].mxu0
        %1829 = vmatprep.mubr.f32.mxu0 0.0
        %1830 = vmatmul.mubr.f32.gmra.mrb[0].mxu0 %v1750
        %v1831 = vpop.f32.mrb[0].mxu0
        %v1832 = vadd.f32 0.0, %v1831
        %v1833 = vpop.f32.mrb[0].mxu0
        %1834 = vmatprep.mubr.f32.mxu0 0.0
        %1835 = vmatmul.mubr.f32.gmra.mrb[0].mxu0 %v1753
        %v1836 = vpop.f32.mrb[0].mxu0
        %v1837 = vadd.f32 0.0, %v1836
        %v1838 = vpop.f32.mrb[0].mxu0
        %1839 = vdwg.mxu0
        %1844 = vrot.lane.b32.xlu0 %v1822, 64
        %v1845 = vpop.permute.xlu0 %1844
        %1846 = vrot.lane.b32.xlu0 %v1827, 64
        %v1847 = vpop.permute.xlu0 %1846
        %1848 = vrot.lane.b32.xlu0 %v1832, 64
        %v1849 = vpop.permute.xlu0 %1848
        %1850 = vrot.lane.b32.xlu0 %v1837, 64
        %v1851 = vpop.permute.xlu0 %1850
        %1856 = vst.msk [vmem:[#allocation2 + $0x8] sm:$0xff] %vm1626, %v1845
        %1857 = vst.msk [vmem:[#allocation2 + $0x18] sm:$0xff] %vm1626, %v1847
        %1858 = vst.msk [vmem:[#allocation2 + $0x28] sm:$0xff] %vm1626, %v1849
        %1859 = vst.msk [vmem:[#allocation2 + $0x38] sm:$0x1] %vm1630, %v1851
        %v1860 = vld [vmem:[#allocation2] sm:$0xff]
        %v1861 = vld [vmem:[#allocation2 + $0x8] sm:$0xff]
        %v1862 = vld [vmem:[#allocation2 + $0x10] sm:$0xff]
        %v1863 = vld [vmem:[#allocation2 + $0x18] sm:$0xff]
        %v1864 = vld [vmem:[#allocation2 + $0x20] sm:$0xff]
        %v1865 = vld [vmem:[#allocation2 + $0x28] sm:$0xff]
        %v1866 = vld [vmem:[#allocation2 + $0x30] sm:$0x1]
        %v1867 = vld [vmem:[#allocation2 + $0x38] sm:$0x1]
        %v1868 = vld [vmem:[%s4] sm:$0xff]
        %v1869 = vld [vmem:[%s4 + $0x8] sm:$0xff]
        %v1870 = vld [vmem:[%s4 + $0x10] sm:$0xff]
        %v1871 = vld [vmem:[%s4 + $0x18] sm:$0x1]
        %1873 = vset.pattern.permute.xlu0 0
        %1874 = vperm.xlu0 %1873, %v1868
        %v1875 = vpop.permute.xlu0 %1874
        %1878 = vset.pattern.permute.xlu0 0
        %1879 = vperm.xlu0 %1878, %v1869
        %v1880 = vpop.permute.xlu0 %1879
        %1883 = vset.pattern.permute.xlu0 0
        %1884 = vperm.xlu0 %1883, %v1870
        %v1885 = vpop.permute.xlu0 %1884
        %1888 = vset.pattern.permute.xlu0 0
        %1889 = vperm.xlu0 %1888, %v1871
        %v1890 = vpop.permute.xlu0 %1889
        %v1892 = vadd.f32 %v1860, %v1875
        %v1893 = vadd.f32 %v1861, %v1875
        %v1894 = vadd.f32 %v1862, %v1880
        %v1895 = vadd.f32 %v1863, %v1880
        %v1896 = vadd.f32 %v1864, %v1885
        %v1897 = vadd.f32 %v1865, %v1885
        %v1898 = vadd.f32 %v1866, %v1890
        %v1899 = vadd.f32 %v1867, %v1890
        %v1900 = vld [vmem:[%s5] sm:$0xff]
        %v1901 = vld [vmem:[%s5 + $0x8] sm:$0xff]
        %v1902 = vld [vmem:[%s5 + $0x10] sm:$0xff]
        %v1903 = vld [vmem:[%s5 + $0x18] sm:$0xff]
        %v1904 = vld [vmem:[%s5 + $0x20] sm:$0xff]
        %v1905 = vld [vmem:[%s5 + $0x28] sm:$0xff]
        %v1906 = vld [vmem:[%s5 + $0x30] sm:$0xff]
        %v1907 = vld [vmem:[%s5 + $0x38] sm:$0xff]
        %v1908 = vld [vmem:[%s5 + $0x40] sm:$0xff]
        %v1909 = vld [vmem:[%s5 + $0x48] sm:$0xff]
        %v1910 = vld [vmem:[%s5 + $0x50] sm:$0xff]
        %v1911 = vld [vmem:[%s5 + $0x58] sm:$0xff]
        %v1912 = vld [vmem:[%s5 + $0x60] sm:$0xff]
        %v1913 = vld [vmem:[%s5 + $0x68] sm:$0xff]
        %v1914 = vld [vmem:[%s5 + $0x70] sm:$0xff]
        %v1915 = vld [vmem:[%s5 + $0x78] sm:$0xff]
        %v1916 = vld [vmem:[%s5 + $0x80] sm:$0xff]
        %v1917 = vld [vmem:[%s5 + $0x88] sm:$0xff]
        %v1918 = vld [vmem:[%s5 + $0x90] sm:$0xff]
        %v1919 = vld [vmem:[%s5 + $0x98] sm:$0xff]
        %v1920 = vld [vmem:[%s5 + $0xa0] sm:$0xff]
        %v1921 = vld [vmem:[%s5 + $0xa8] sm:$0xff]
        %v1922 = vld [vmem:[%s5 + $0xb0] sm:$0xff]
        %v1923 = vld [vmem:[%s5 + $0xb8] sm:$0xff]
        %v1924 = vld [vmem:[%s5 + $0xc0] sm:$0xff]
        %v1925 = vld [vmem:[%s5 + $0xc8] sm:$0xff]
        %v1926 = vld [vmem:[%s5 + $0xd0] sm:$0xff]
        %v1927 = vld [vmem:[%s5 + $0xd8] sm:$0xff]
        %v1928 = vld [vmem:[%s5 + $0xe0] sm:$0xff]
        %v1929 = vld [vmem:[%s5 + $0xe8] sm:$0xff]
        %v1930 = vld [vmem:[%s5 + $0xf0] sm:$0xff]
        %v1931 = vld [vmem:[%s5 + $0xf8] sm:$0xff]
        %v1932 = vld [vmem:[%s5 + $0x100] sm:$0xff]
        %v1933 = vld [vmem:[%s5 + $0x108] sm:$0xff]
        %v1934 = vld [vmem:[%s5 + $0x110] sm:$0xff]
        %v1935 = vld [vmem:[%s5 + $0x118] sm:$0xff]
        %v1936 = vld [vmem:[%s5 + $0x120] sm:$0xff]
        %v1937 = vld [vmem:[%s5 + $0x128] sm:$0xff]
        %v1938 = vld [vmem:[%s5 + $0x130] sm:$0xff]
        %v1939 = vld [vmem:[%s5 + $0x138] sm:$0xff]
        %v1940 = vld [vmem:[%s5 + $0x140] sm:$0xff]
        %v1941 = vld [vmem:[%s5 + $0x148] sm:$0xff]
        %v1942 = vld [vmem:[%s5 + $0x150] sm:$0xff]
        %v1943 = vld [vmem:[%s5 + $0x158] sm:$0xff]
        %v1944 = vld [vmem:[%s5 + $0x160] sm:$0xff]
        %v1945 = vld [vmem:[%s5 + $0x168] sm:$0xff]
        %v1946 = vld [vmem:[%s5 + $0x170] sm:$0xff]
        %v1947 = vld [vmem:[%s5 + $0x178] sm:$0xff]
        %v1948 = vld [vmem:[%s5 + $0x180] sm:$0xff]
        %v1949 = vld [vmem:[%s5 + $0x188] sm:$0xff]
        %v1950 = vld [vmem:[%s5 + $0x190] sm:$0xff]
        %v1951 = vld [vmem:[%s5 + $0x198] sm:$0xff]
        %v1952 = vld [vmem:[%s5 + $0x1a0] sm:$0xff]
        %v1953 = vld [vmem:[%s5 + $0x1a8] sm:$0xff]
        %v1954 = vld [vmem:[%s5 + $0x1b0] sm:$0xff]
        %v1955 = vld [vmem:[%s5 + $0x1b8] sm:$0xff]
        %v1956 = vld [vmem:[%s5 + $0x1c0] sm:$0xff]
        %v1957 = vld [vmem:[%s5 + $0x1c8] sm:$0xff]
        %v1958 = vld [vmem:[%s5 + $0x1d0] sm:$0xff]
        %v1959 = vld [vmem:[%s5 + $0x1d8] sm:$0xff]
        %v1960 = vld [vmem:[%s5 + $0x1e0] sm:$0xff]
        %v1961 = vld [vmem:[%s5 + $0x1e8] sm:$0xff]
        %v1962 = vld [vmem:[%s5 + $0x1f0] sm:$0xff]
        %v1963 = vld [vmem:[%s5 + $0x1f8] sm:$0xff]
        %v1964 = vld [vmem:[%s5 + $0x200] sm:$0xff]
        %v1965 = vld [vmem:[%s5 + $0x208] sm:$0xff]
        %v1966 = vld [vmem:[%s5 + $0x210] sm:$0xff]
        %v1967 = vld [vmem:[%s5 + $0x218] sm:$0xff]
        %v1968 = vld [vmem:[%s5 + $0x220] sm:$0xff]
        %v1969 = vld [vmem:[%s5 + $0x228] sm:$0xff]
        %v1970 = vld [vmem:[%s5 + $0x230] sm:$0xff]
        %v1971 = vld [vmem:[%s5 + $0x238] sm:$0xff]
        %v1972 = vld [vmem:[%s5 + $0x240] sm:$0xff]
        %v1973 = vld [vmem:[%s5 + $0x248] sm:$0xff]
        %v1974 = vld [vmem:[%s5 + $0x250] sm:$0xff]
        %v1975 = vld [vmem:[%s5 + $0x258] sm:$0xff]
        %v1976 = vld [vmem:[%s5 + $0x260] sm:$0xff]
        %v1977 = vld [vmem:[%s5 + $0x268] sm:$0xff]
        %v1978 = vld [vmem:[%s5 + $0x270] sm:$0xff]
        %v1979 = vld [vmem:[%s5 + $0x278] sm:$0xff]
        %v1980 = vld [vmem:[%s5 + $0x280] sm:$0xff]
        %v1981 = vld [vmem:[%s5 + $0x288] sm:$0xff]
        %v1982 = vld [vmem:[%s5 + $0x290] sm:$0xff]
        %v1983 = vld [vmem:[%s5 + $0x298] sm:$0xff]
        %v1984 = vld [vmem:[%s5 + $0x2a0] sm:$0xff]
        %v1985 = vld [vmem:[%s5 + $0x2a8] sm:$0xff]
        %v1986 = vld [vmem:[%s5 + $0x2b0] sm:$0xff]
        %v1987 = vld [vmem:[%s5 + $0x2b8] sm:$0xff]
        %v1988 = vld [vmem:[%s5 + $0x2c0] sm:$0xff]
        %v1989 = vld [vmem:[%s5 + $0x2c8] sm:$0xff]
        %v1990 = vld [vmem:[%s5 + $0x2d0] sm:$0xff]
        %v1991 = vld [vmem:[%s5 + $0x2d8] sm:$0xff]
        %v1992 = vld [vmem:[%s5 + $0x2e0] sm:$0xff]
        %v1993 = vld [vmem:[%s5 + $0x2e8] sm:$0xff]
        %v1994 = vld [vmem:[%s5 + $0x2f0] sm:$0xff]
        %v1995 = vld [vmem:[%s5 + $0x2f8] sm:$0xff]
        %v1996 = vld [vmem:[%s5 + $0x300] sm:$0xff]
        %v1997 = vld [vmem:[%s5 + $0x308] sm:$0xff]
        %v1998 = vld [vmem:[%s5 + $0x310] sm:$0xff]
        %v1999 = vld [vmem:[%s5 + $0x318] sm:$0xff]
        %v2000 = vld [vmem:[%s5 + $0x320] sm:$0xff]
        %v2001 = vld [vmem:[%s5 + $0x328] sm:$0xff]
        %v2002 = vld [vmem:[%s5 + $0x330] sm:$0xff]
        %v2003 = vld [vmem:[%s5 + $0x338] sm:$0xff]
        %v2004 = vld [vmem:[%s5 + $0x340] sm:$0xff]
        %v2005 = vld [vmem:[%s5 + $0x348] sm:$0xff]
        %v2006 = vld [vmem:[%s5 + $0x350] sm:$0xff]
        %v2007 = vld [vmem:[%s5 + $0x358] sm:$0xff]
        %v2008 = vld [vmem:[%s5 + $0x360] sm:$0xff]
        %v2009 = vld [vmem:[%s5 + $0x368] sm:$0xff]
        %v2010 = vld [vmem:[%s5 + $0x370] sm:$0xff]
        %v2011 = vld [vmem:[%s5 + $0x378] sm:$0xff]
        %v2012 = vld [vmem:[%s5 + $0x380] sm:$0xff]
        %v2013 = vld [vmem:[%s5 + $0x388] sm:$0xff]
        %v2014 = vld [vmem:[%s5 + $0x390] sm:$0xff]
        %v2015 = vld [vmem:[%s5 + $0x398] sm:$0xff]
        %v2016 = vld [vmem:[%s5 + $0x3a0] sm:$0xff]
        %v2017 = vld [vmem:[%s5 + $0x3a8] sm:$0xff]
        %v2018 = vld [vmem:[%s5 + $0x3b0] sm:$0xff]
        %v2019 = vld [vmem:[%s5 + $0x3b8] sm:$0xff]
        %v2020 = vld [vmem:[%s5 + $0x3c0] sm:$0xff]
        %v2021 = vld [vmem:[%s5 + $0x3c8] sm:$0xff]
        %v2022 = vld [vmem:[%s5 + $0x3d0] sm:$0xff]
        %v2023 = vld [vmem:[%s5 + $0x3d8] sm:$0xff]
        %v2024 = vld [vmem:[%s5 + $0x3e0] sm:$0xff]
        %v2025 = vld [vmem:[%s5 + $0x3e8] sm:$0xff]
        %v2026 = vld [vmem:[%s5 + $0x3f0] sm:$0xff]
        %v2027 = vld [vmem:[%s5 + $0x3f8] sm:$0xff]
        %v2028 = vld [vmem:[%s5 + $0x400] sm:$0xff]
        %v2029 = vld [vmem:[%s5 + $0x408] sm:$0xff]
        %v2030 = vld [vmem:[%s5 + $0x410] sm:$0xff]
        %v2031 = vld [vmem:[%s5 + $0x418] sm:$0xff]
        %v2032 = vld [vmem:[%s5 + $0x420] sm:$0xff]
        %v2033 = vld [vmem:[%s5 + $0x428] sm:$0xff]
        %v2034 = vld [vmem:[%s5 + $0x430] sm:$0xff]
        %v2035 = vld [vmem:[%s5 + $0x438] sm:$0xff]
        %v2036 = vld [vmem:[%s5 + $0x440] sm:$0xff]
        %v2037 = vld [vmem:[%s5 + $0x448] sm:$0xff]
        %v2038 = vld [vmem:[%s5 + $0x450] sm:$0xff]
        %v2039 = vld [vmem:[%s5 + $0x458] sm:$0xff]
        %v2040 = vld [vmem:[%s5 + $0x460] sm:$0xff]
        %v2041 = vld [vmem:[%s5 + $0x468] sm:$0xff]
        %v2042 = vld [vmem:[%s5 + $0x470] sm:$0xff]
        %v2043 = vld [vmem:[%s5 + $0x478] sm:$0xff]
        %v2044 = vld [vmem:[%s5 + $0x480] sm:$0xff]
        %v2045 = vld [vmem:[%s5 + $0x488] sm:$0xff]
        %v2046 = vld [vmem:[%s5 + $0x490] sm:$0xff]
        %v2047 = vld [vmem:[%s5 + $0x498] sm:$0xff]
        %v2048 = vld [vmem:[%s5 + $0x4a0] sm:$0xff]
        %v2049 = vld [vmem:[%s5 + $0x4a8] sm:$0xff]
        %v2050 = vld [vmem:[%s5 + $0x4b0] sm:$0xff]
        %v2051 = vld [vmem:[%s5 + $0x4b8] sm:$0xff]
        %v2052 = vld [vmem:[%s5 + $0x4c0] sm:$0xff]
        %v2053 = vld [vmem:[%s5 + $0x4c8] sm:$0xff]
        %v2054 = vld [vmem:[%s5 + $0x4d0] sm:$0xff]
        %v2055 = vld [vmem:[%s5 + $0x4d8] sm:$0xff]
        %v2056 = vld [vmem:[%s5 + $0x4e0] sm:$0xff]
        %v2057 = vld [vmem:[%s5 + $0x4e8] sm:$0xff]
        %v2058 = vld [vmem:[%s5 + $0x4f0] sm:$0xff]
        %v2059 = vld [vmem:[%s5 + $0x4f8] sm:$0xff]
        %v2060 = vld [vmem:[%s5 + $0x500] sm:$0xff]
        %v2061 = vld [vmem:[%s5 + $0x508] sm:$0xff]
        %v2062 = vld [vmem:[%s5 + $0x510] sm:$0xff]
        %v2063 = vld [vmem:[%s5 + $0x518] sm:$0xff]
        %v2064 = vld [vmem:[%s5 + $0x520] sm:$0xff]
        %v2065 = vld [vmem:[%s5 + $0x528] sm:$0xff]
        %v2066 = vld [vmem:[%s5 + $0x530] sm:$0xff]
        %v2067 = vld [vmem:[%s5 + $0x538] sm:$0xff]
        %v2068 = vld [vmem:[%s5 + $0x540] sm:$0xff]
        %v2069 = vld [vmem:[%s5 + $0x548] sm:$0xff]
        %v2070 = vld [vmem:[%s5 + $0x550] sm:$0xff]
        %v2071 = vld [vmem:[%s5 + $0x558] sm:$0xff]
        %v2072 = vld [vmem:[%s5 + $0x560] sm:$0xff]
        %v2073 = vld [vmem:[%s5 + $0x568] sm:$0xff]
        %v2074 = vld [vmem:[%s5 + $0x570] sm:$0xff]
        %v2075 = vld [vmem:[%s5 + $0x578] sm:$0xff]
        %v2076 = vld [vmem:[%s5 + $0x580] sm:$0xff]
        %v2077 = vld [vmem:[%s5 + $0x588] sm:$0xff]
        %v2078 = vld [vmem:[%s5 + $0x590] sm:$0xff]
        %v2079 = vld [vmem:[%s5 + $0x598] sm:$0xff]
        %v2080 = vld [vmem:[%s5 + $0x5a0] sm:$0xff]
        %v2081 = vld [vmem:[%s5 + $0x5a8] sm:$0xff]
        %v2082 = vld [vmem:[%s5 + $0x5b0] sm:$0xff]
        %v2083 = vld [vmem:[%s5 + $0x5b8] sm:$0xff]
        %v2084 = vld [vmem:[%s5 + $0x5c0] sm:$0xff]
        %v2085 = vld [vmem:[%s5 + $0x5c8] sm:$0xff]
        %v2086 = vld [vmem:[%s5 + $0x5d0] sm:$0xff]
        %v2087 = vld [vmem:[%s5 + $0x5d8] sm:$0xff]
        %v2088 = vld [vmem:[%s5 + $0x5e0] sm:$0xff]
        %v2089 = vld [vmem:[%s5 + $0x5e8] sm:$0xff]
        %v2090 = vld [vmem:[%s5 + $0x5f0] sm:$0xff]
        %v2091 = vld [vmem:[%s5 + $0x5f8] sm:$0xff]
        %v2092 = vld [vmem:[%s5 + $0x600] sm:$0xff]
        %v2093 = vld [vmem:[%s5 + $0x608] sm:$0xff]
        %v2094 = vld [vmem:[%s5 + $0x610] sm:$0xff]
        %v2095 = vld [vmem:[%s5 + $0x618] sm:$0xff]
        %v2096 = vld [vmem:[%s5 + $0x620] sm:$0xff]
        %v2097 = vld [vmem:[%s5 + $0x628] sm:$0xff]
        %v2098 = vld [vmem:[%s5 + $0x630] sm:$0xff]
        %v2099 = vld [vmem:[%s5 + $0x638] sm:$0xff]
        %v2100 = vld [vmem:[%s5 + $0x640] sm:$0xff]
        %v2101 = vld [vmem:[%s5 + $0x648] sm:$0xff]
        %v2102 = vld [vmem:[%s5 + $0x650] sm:$0xff]
        %v2103 = vld [vmem:[%s5 + $0x658] sm:$0xff]
        %v2104 = vld [vmem:[%s5 + $0x660] sm:$0xff]
        %v2105 = vld [vmem:[%s5 + $0x668] sm:$0xff]
        %v2106 = vld [vmem:[%s5 + $0x670] sm:$0xff]
        %v2107 = vld [vmem:[%s5 + $0x678] sm:$0xff]
        %v2108 = vld [vmem:[%s5 + $0x680] sm:$0xff]
        %v2109 = vld [vmem:[%s5 + $0x688] sm:$0xff]
        %v2110 = vld [vmem:[%s5 + $0x690] sm:$0xff]
        %v2111 = vld [vmem:[%s5 + $0x698] sm:$0xff]
        %v2112 = vld [vmem:[%s5 + $0x6a0] sm:$0xff]
        %v2113 = vld [vmem:[%s5 + $0x6a8] sm:$0xff]
        %v2114 = vld [vmem:[%s5 + $0x6b0] sm:$0xff]
        %v2115 = vld [vmem:[%s5 + $0x6b8] sm:$0xff]
        %v2116 = vld [vmem:[%s5 + $0x6c0] sm:$0xff]
        %v2117 = vld [vmem:[%s5 + $0x6c8] sm:$0xff]
        %v2118 = vld [vmem:[%s5 + $0x6d0] sm:$0xff]
        %v2119 = vld [vmem:[%s5 + $0x6d8] sm:$0xff]
        %v2120 = vld [vmem:[%s5 + $0x6e0] sm:$0xff]
        %v2121 = vld [vmem:[%s5 + $0x6e8] sm:$0xff]
        %v2122 = vld [vmem:[%s5 + $0x6f0] sm:$0xff]
        %v2123 = vld [vmem:[%s5 + $0x6f8] sm:$0xff]
        %v2124 = vld [vmem:[%s5 + $0x700] sm:$0xff]
        %v2125 = vld [vmem:[%s5 + $0x708] sm:$0xff]
        %v2126 = vld [vmem:[%s5 + $0x710] sm:$0xff]
        %v2127 = vld [vmem:[%s5 + $0x718] sm:$0xff]
        %v2128 = vld [vmem:[%s5 + $0x720] sm:$0xff]
        %v2129 = vld [vmem:[%s5 + $0x728] sm:$0xff]
        %v2130 = vld [vmem:[%s5 + $0x730] sm:$0xff]
        %v2131 = vld [vmem:[%s5 + $0x738] sm:$0xff]
        %v2132 = vld [vmem:[%s5 + $0x740] sm:$0xff]
        %v2133 = vld [vmem:[%s5 + $0x748] sm:$0xff]
        %v2134 = vld [vmem:[%s5 + $0x750] sm:$0xff]
        %v2135 = vld [vmem:[%s5 + $0x758] sm:$0xff]
        %v2136 = vld [vmem:[%s5 + $0x760] sm:$0xff]
        %v2137 = vld [vmem:[%s5 + $0x768] sm:$0xff]
        %v2138 = vld [vmem:[%s5 + $0x770] sm:$0xff]
        %v2139 = vld [vmem:[%s5 + $0x778] sm:$0xff]
        %v2140 = vld [vmem:[%s5 + $0x780] sm:$0xff]
        %v2141 = vld [vmem:[%s5 + $0x788] sm:$0xff]
        %v2142 = vld [vmem:[%s5 + $0x790] sm:$0xff]
        %v2143 = vld [vmem:[%s5 + $0x798] sm:$0xff]
        %v2144 = vld [vmem:[%s5 + $0x7a0] sm:$0xff]
        %v2145 = vld [vmem:[%s5 + $0x7a8] sm:$0xff]
        %v2146 = vld [vmem:[%s5 + $0x7b0] sm:$0xff]
        %v2147 = vld [vmem:[%s5 + $0x7b8] sm:$0xff]
        %v2148 = vld [vmem:[%s5 + $0x7c0] sm:$0xff]
        %v2149 = vld [vmem:[%s5 + $0x7c8] sm:$0xff]
        %v2150 = vld [vmem:[%s5 + $0x7d0] sm:$0xff]
        %v2151 = vld [vmem:[%s5 + $0x7d8] sm:$0xff]
        %v2152 = vld [vmem:[%s5 + $0x7e0] sm:$0xff]
        %v2153 = vld [vmem:[%s5 + $0x7e8] sm:$0xff]
        %v2154 = vld [vmem:[%s5 + $0x7f0] sm:$0xff]
        %v2155 = vld [vmem:[%s5 + $0x7f8] sm:$0xff]
        %v2156 = vld [vmem:[%s628] sm:$0xff]
        %v2157 = vld [vmem:[%s628 + $0x8] sm:$0xff]
        %v2158 = vld [vmem:[%s628 + $0x10] sm:$0xff]
        %v2159 = vld [vmem:[%s628 + $0x18] sm:$0xff]
        %v2160 = vld [vmem:[%s628 + $0x20] sm:$0xff]
        %v2161 = vld [vmem:[%s628 + $0x28] sm:$0xff]
        %v2162 = vld [vmem:[%s628 + $0x30] sm:$0xff]
        %v2163 = vld [vmem:[%s628 + $0x38] sm:$0xff]
        %v2164 = vld [vmem:[%s628 + $0x40] sm:$0xff]
        %v2165 = vld [vmem:[%s628 + $0x48] sm:$0xff]
        %v2166 = vld [vmem:[%s628 + $0x50] sm:$0xff]
        %v2167 = vld [vmem:[%s628 + $0x58] sm:$0xff]
        %v2168 = vld [vmem:[%s628 + $0x60] sm:$0xff]
        %v2169 = vld [vmem:[%s628 + $0x68] sm:$0xff]
        %v2170 = vld [vmem:[%s628 + $0x70] sm:$0xff]
        %v2171 = vld [vmem:[%s628 + $0x78] sm:$0xff]
        %v2172 = vld [vmem:[%s628 + $0x80] sm:$0xff]
        %v2173 = vld [vmem:[%s628 + $0x88] sm:$0xff]
        %v2174 = vld [vmem:[%s628 + $0x90] sm:$0xff]
        %v2175 = vld [vmem:[%s628 + $0x98] sm:$0xff]
        %v2176 = vld [vmem:[%s628 + $0xa0] sm:$0xff]
        %v2177 = vld [vmem:[%s628 + $0xa8] sm:$0xff]
        %v2178 = vld [vmem:[%s628 + $0xb0] sm:$0xff]
        %v2179 = vld [vmem:[%s628 + $0xb8] sm:$0xff]
        %v2180 = vld [vmem:[%s628 + $0xc0] sm:$0x1]
        %v2181 = vld [vmem:[%s628 + $0xc8] sm:$0x1]
        %v2182 = vld [vmem:[%s628 + $0xd0] sm:$0x1]
        %v2183 = vld [vmem:[%s628 + $0xd8] sm:$0x1]
        %v2184 = vld [vmem:[%s628 + $0xe0] sm:$0x1]
        %v2185 = vld [vmem:[%s628 + $0xe8] sm:$0x1]
        %v2186 = vld [vmem:[%s628 + $0xf0] sm:$0x1]
        %v2187 = vld [vmem:[%s628 + $0xf8] sm:$0x1]
        %v2188 = vmax.f32 %v2156, %v2164
        %v2189 = vmax.f32 %v2188, %v2172
        %vm2190 = vcmask 1040384
        %v2191 = vsel %vm2190, %v2180, -inf
        %v2192 = vmax.f32 %v2189, %v2191
        %v2193 = vrot.slane %v2192, 4
        %v2194 = vmax.f32 %v2192, %v2193
        %v2195 = vrot.slane %v2194, 2
        %v2196 = vmax.f32 %v2194, %v2195
        %v2197 = vrot.slane %v2196, 1
        %v2198 = vmax.f32 %v2196, %v2197
        %v2199 = vmax.f32 %v2157, %v2165
        %v2200 = vmax.f32 %v2199, %v2173
        %v2201 = vsel %vm2190, %v2181, -inf
        %v2202 = vmax.f32 %v2200, %v2201
        %v2203 = vrot.slane %v2202, 4
        %v2204 = vmax.f32 %v2202, %v2203
        %v2205 = vrot.slane %v2204, 2
        %v2206 = vmax.f32 %v2204, %v2205
        %v2207 = vrot.slane %v2206, 1
        %v2208 = vmax.f32 %v2206, %v2207
        %v2209 = vmax.f32 %v2158, %v2166
        %v2210 = vmax.f32 %v2209, %v2174
        %v2211 = vsel %vm2190, %v2182, -inf
        %v2212 = vmax.f32 %v2210, %v2211
        %v2213 = vrot.slane %v2212, 4
        %v2214 = vmax.f32 %v2212, %v2213
        %v2215 = vrot.slane %v2214, 2
        %v2216 = vmax.f32 %v2214, %v2215
        %v2217 = vrot.slane %v2216, 1
        %v2218 = vmax.f32 %v2216, %v2217
        %v2219 = vmax.f32 %v2159, %v2167
        %v2220 = vmax.f32 %v2219, %v2175
        %v2221 = vsel %vm2190, %v2183, -inf
        %v2222 = vmax.f32 %v2220, %v2221
        %v2223 = vrot.slane %v2222, 4
        %v2224 = vmax.f32 %v2222, %v2223
        %v2225 = vrot.slane %v2224, 2
        %v2226 = vmax.f32 %v2224, %v2225
        %v2227 = vrot.slane %v2226, 1
        %v2228 = vmax.f32 %v2226, %v2227
        %v2229 = vmax.f32 %v2160, %v2168
        %v2230 = vmax.f32 %v2229, %v2176
        %v2231 = vsel %vm2190, %v2184, -inf
        %v2232 = vmax.f32 %v2230, %v2231
        %v2233 = vrot.slane %v2232, 4
        %v2234 = vmax.f32 %v2232, %v2233
        %v2235 = vrot.slane %v2234, 2
        %v2236 = vmax.f32 %v2234, %v2235
        %v2237 = vrot.slane %v2236, 1
        %v2238 = vmax.f32 %v2236, %v2237
        %v2239 = vmax.f32 %v2161, %v2169
        %v2240 = vmax.f32 %v2239, %v2177
        %v2241 = vsel %vm2190, %v2185, -inf
        %v2242 = vmax.f32 %v2240, %v2241
        %v2243 = vrot.slane %v2242, 4
        %v2244 = vmax.f32 %v2242, %v2243
        %v2245 = vrot.slane %v2244, 2
        %v2246 = vmax.f32 %v2244, %v2245
        %v2247 = vrot.slane %v2246, 1
        %v2248 = vmax.f32 %v2246, %v2247
        %v2249 = vmax.f32 %v2162, %v2170
        %v2250 = vmax.f32 %v2249, %v2178
        %v2251 = vsel %vm2190, %v2186, -inf
        %v2252 = vmax.f32 %v2250, %v2251
        %v2253 = vrot.slane %v2252, 4
        %v2254 = vmax.f32 %v2252, %v2253
        %v2255 = vrot.slane %v2254, 2
        %v2256 = vmax.f32 %v2254, %v2255
        %v2257 = vrot.slane %v2256, 1
        %v2258 = vmax.f32 %v2256, %v2257
        %v2259 = vmax.f32 %v2163, %v2171
        %v2260 = vmax.f32 %v2259, %v2179
        %v2261 = vsel %vm2190, %v2187, -inf
        %v2262 = vmax.f32 %v2260, %v2261
        %v2263 = vrot.slane %v2262, 4
        %v2264 = vmax.f32 %v2262, %v2263
        %v2265 = vrot.slane %v2264, 2
        %v2266 = vmax.f32 %v2264, %v2265
        %v2267 = vrot.slane %v2266, 1
        %v2268 = vmax.f32 %v2266, %v2267
        %v2269 = vsub.f32 %v2156, %v2198
        %v2270 = vsub.f32 %v2157, %v2208
        %v2271 = vsub.f32 %v2158, %v2218
        %v2272 = vsub.f32 %v2159, %v2228
        %v2273 = vsub.f32 %v2160, %v2238
        %v2274 = vsub.f32 %v2161, %v2248
        %v2275 = vsub.f32 %v2162, %v2258
        %v2276 = vsub.f32 %v2163, %v2268
        %v2277 = vsub.f32 %v2164, %v2198
        %v2278 = vsub.f32 %v2165, %v2208
        %v2279 = vsub.f32 %v2166, %v2218
        %v2280 = vsub.f32 %v2167, %v2228
        %v2281 = vsub.f32 %v2168, %v2238
        %v2282 = vsub.f32 %v2169, %v2248
        %v2283 = vsub.f32 %v2170, %v2258
        %v2284 = vsub.f32 %v2171, %v2268
        %v2285 = vsub.f32 %v2172, %v2198
        %v2286 = vsub.f32 %v2173, %v2208
        %v2287 = vsub.f32 %v2174, %v2218
        %v2288 = vsub.f32 %v2175, %v2228
        %v2289 = vsub.f32 %v2176, %v2238
        %v2290 = vsub.f32 %v2177, %v2248
        %v2291 = vsub.f32 %v2178, %v2258
        %v2292 = vsub.f32 %v2179, %v2268
        %v2293 = vsub.f32 %v2180, %v2198
        %v2294 = vsub.f32 %v2181, %v2208
        %v2295 = vsub.f32 %v2182, %v2218
        %v2296 = vsub.f32 %v2183, %v2228
        %v2297 = vsub.f32 %v2184, %v2238
        %v2298 = vsub.f32 %v2185, %v2248
        %v2299 = vsub.f32 %v2186, %v2258
        %v2300 = vsub.f32 %v2187, %v2268
        %v2301 = vmul.f32 %v2269, 1.442695
        %v2302 = vpow.pop %v2301
        %v2303 = vmul.f32 %v2270, 1.442695
        %v2304 = vpow.pop %v2303
        %v2305 = vmul.f32 %v2271, 1.442695
        %v2306 = vpow.pop %v2305
        %v2307 = vmul.f32 %v2272, 1.442695
        %v2308 = vpow.pop %v2307
        %v2309 = vmul.f32 %v2273, 1.442695
        %v2310 = vpow.pop %v2309
        %v2311 = vmul.f32 %v2274, 1.442695
        %v2312 = vpow.pop %v2311
        %v2313 = vmul.f32 %v2275, 1.442695
        %v2314 = vpow.pop %v2313
        %v2315 = vmul.f32 %v2276, 1.442695
        %v2316 = vpow.pop %v2315
        %v2317 = vmul.f32 %v2277, 1.442695
        %v2318 = vpow.pop %v2317
        %v2319 = vmul.f32 %v2278, 1.442695
        %v2320 = vpow.pop %v2319
        %v2321 = vmul.f32 %v2279, 1.442695
        %v2322 = vpow.pop %v2321
        %v2323 = vmul.f32 %v2280, 1.442695
        %v2324 = vpow.pop %v2323
        %v2325 = vmul.f32 %v2281, 1.442695
        %v2326 = vpow.pop %v2325
        %v2327 = vmul.f32 %v2282, 1.442695
        %v2328 = vpow.pop %v2327
        %v2329 = vmul.f32 %v2283, 1.442695
        %v2330 = vpow.pop %v2329
        %v2331 = vmul.f32 %v2284, 1.442695
        %v2332 = vpow.pop %v2331
        %v2333 = vmul.f32 %v2285, 1.442695
        %v2334 = vpow.pop %v2333
        %v2335 = vmul.f32 %v2286, 1.442695
        %v2336 = vpow.pop %v2335
        %v2337 = vmul.f32 %v2287, 1.442695
        %v2338 = vpow.pop %v2337
        %v2339 = vmul.f32 %v2288, 1.442695
        %v2340 = vpow.pop %v2339
        %v2341 = vmul.f32 %v2289, 1.442695
        %v2342 = vpow.pop %v2341
        %v2343 = vmul.f32 %v2290, 1.442695
        %v2344 = vpow.pop %v2343
        %v2345 = vmul.f32 %v2291, 1.442695
        %v2346 = vpow.pop %v2345
        %v2347 = vmul.f32 %v2292, 1.442695
        %v2348 = vpow.pop %v2347
        %v2349 = vmul.f32 %v2293, 1.442695
        %v2350 = vpow.pop %v2349
        %v2351 = vmul.f32 %v2294, 1.442695
        %v2352 = vpow.pop %v2351
        %v2353 = vmul.f32 %v2295, 1.442695
        %v2354 = vpow.pop %v2353
        %v2355 = vmul.f32 %v2296, 1.442695
        %v2356 = vpow.pop %v2355
        %v2357 = vmul.f32 %v2297, 1.442695
        %v2358 = vpow.pop %v2357
        %v2359 = vmul.f32 %v2298, 1.442695
        %v2360 = vpow.pop %v2359
        %v2361 = vmul.f32 %v2299, 1.442695
        %v2362 = vpow.pop %v2361
        %v2363 = vmul.f32 %v2300, 1.442695
        %v2364 = vpow.pop %v2363
        %v2365 = vadd.f32 %v2302, %v2318
        %v2366 = vadd.f32 %v2365, %v2334
        %v2367 = vsel %vm2190, %v2350, 0.0
        %v2368 = vadd.f32 %v2366, %v2367
        %v2369 = vrot.slane %v2368, 4
        %v2370 = vadd.f32 %v2368, %v2369
        %v2371 = vrot.slane %v2370, 2
        %v2372 = vadd.f32 %v2370, %v2371
        %v2373 = vrot.slane %v2372, 1
        %v2374 = vadd.f32 %v2372, %v2373
        %v2375 = vadd.f32 %v2304, %v2320
        %v2376 = vadd.f32 %v2375, %v2336
        %v2377 = vsel %vm2190, %v2352, 0.0
        %v2378 = vadd.f32 %v2376, %v2377
        %v2379 = vrot.slane %v2378, 4
        %v2380 = vadd.f32 %v2378, %v2379
        %v2381 = vrot.slane %v2380, 2
        %v2382 = vadd.f32 %v2380, %v2381
        %v2383 = vrot.slane %v2382, 1
        %v2384 = vadd.f32 %v2382, %v2383
        %v2385 = vadd.f32 %v2306, %v2322
        %v2386 = vadd.f32 %v2385, %v2338
        %v2387 = vsel %vm2190, %v2354, 0.0
        %v2388 = vadd.f32 %v2386, %v2387
        %v2389 = vrot.slane %v2388, 4
        %v2390 = vadd.f32 %v2388, %v2389
        %v2391 = vrot.slane %v2390, 2
        %v2392 = vadd.f32 %v2390, %v2391
        %v2393 = vrot.slane %v2392, 1
        %v2394 = vadd.f32 %v2392, %v2393
        %v2395 = vadd.f32 %v2308, %v2324
        %v2396 = vadd.f32 %v2395, %v2340
        %v2397 = vsel %vm2190, %v2356, 0.0
        %v2398 = vadd.f32 %v2396, %v2397
        %v2399 = vrot.slane %v2398, 4
        %v2400 = vadd.f32 %v2398, %v2399
        %v2401 = vrot.slane %v2400, 2
        %v2402 = vadd.f32 %v2400, %v2401
        %v2403 = vrot.slane %v2402, 1
        %v2404 = vadd.f32 %v2402, %v2403
        %v2405 = vadd.f32 %v2310, %v2326
        %v2406 = vadd.f32 %v2405, %v2342
        %v2407 = vsel %vm2190, %v2358, 0.0
        %v2408 = vadd.f32 %v2406, %v2407
        %v2409 = vrot.slane %v2408, 4
        %v2410 = vadd.f32 %v2408, %v2409
        %v2411 = vrot.slane %v2410, 2
        %v2412 = vadd.f32 %v2410, %v2411
        %v2413 = vrot.slane %v2412, 1
        %v2414 = vadd.f32 %v2412, %v2413
        %v2415 = vadd.f32 %v2312, %v2328
        %v2416 = vadd.f32 %v2415, %v2344
        %v2417 = vsel %vm2190, %v2360, 0.0
        %v2418 = vadd.f32 %v2416, %v2417
        %v2419 = vrot.slane %v2418, 4
        %v2420 = vadd.f32 %v2418, %v2419
        %v2421 = vrot.slane %v2420, 2
        %v2422 = vadd.f32 %v2420, %v2421
        %v2423 = vrot.slane %v2422, 1
        %v2424 = vadd.f32 %v2422, %v2423
        %v2425 = vadd.f32 %v2314, %v2330
        %v2426 = vadd.f32 %v2425, %v2346
        %v2427 = vsel %vm2190, %v2362, 0.0
        %v2428 = vadd.f32 %v2426, %v2427
        %v2429 = vrot.slane %v2428, 4
        %v2430 = vadd.f32 %v2428, %v2429
        %v2431 = vrot.slane %v2430, 2
        %v2432 = vadd.f32 %v2430, %v2431
        %v2433 = vrot.slane %v2432, 1
        %v2434 = vadd.f32 %v2432, %v2433
        %v2435 = vadd.f32 %v2316, %v2332
        %v2436 = vadd.f32 %v2435, %v2348
        %v2437 = vsel %vm2190, %v2364, 0.0
        %v2438 = vadd.f32 %v2436, %v2437
        %v2439 = vrot.slane %v2438, 4
        %v2440 = vadd.f32 %v2438, %v2439
        %v2441 = vrot.slane %v2440, 2
        %v2442 = vadd.f32 %v2440, %v2441
        %v2443 = vrot.slane %v2442, 1
        %v2444 = vadd.f32 %v2442, %v2443
        %v2445 = vrcp.pop %v2374
        %v2446 = vmul.f32 %v2302, %v2445
        %v2447 = vrcp.pop %v2384
        %v2448 = vmul.f32 %v2304, %v2447
        %v2449 = vrcp.pop %v2394
        %v2450 = vmul.f32 %v2306, %v2449
        %v2451 = vrcp.pop %v2404
        %v2452 = vmul.f32 %v2308, %v2451
        %v2453 = vrcp.pop %v2414
        %v2454 = vmul.f32 %v2310, %v2453
        %v2455 = vrcp.pop %v2424
        %v2456 = vmul.f32 %v2312, %v2455
        %v2457 = vrcp.pop %v2434
        %v2458 = vmul.f32 %v2314, %v2457
        %v2459 = vrcp.pop %v2444
        %v2460 = vmul.f32 %v2316, %v2459
        %v2461 = vmul.f32 %v2318, %v2445
        %v2462 = vmul.f32 %v2320, %v2447
        %v2463 = vmul.f32 %v2322, %v2449
        %v2464 = vmul.f32 %v2324, %v2451
        %v2465 = vmul.f32 %v2326, %v2453
        %v2466 = vmul.f32 %v2328, %v2455
        %v2467 = vmul.f32 %v2330, %v2457
        %v2468 = vmul.f32 %v2332, %v2459
        %v2469 = vmul.f32 %v2334, %v2445
        %v2470 = vmul.f32 %v2336, %v2447
        %v2471 = vmul.f32 %v2338, %v2449
        %v2472 = vmul.f32 %v2340, %v2451
        %v2473 = vmul.f32 %v2342, %v2453
        %v2474 = vmul.f32 %v2344, %v2455
        %v2475 = vmul.f32 %v2346, %v2457
        %v2476 = vmul.f32 %v2348, %v2459
        %v2477 = vmul.f32 %v2350, %v2445
        %v2478 = vmul.f32 %v2352, %v2447
        %v2479 = vmul.f32 %v2354, %v2449
        %v2480 = vmul.f32 %v2356, %v2451
        %v2481 = vmul.f32 %v2358, %v2453
        %v2482 = vmul.f32 %v2360, %v2455
        %v2483 = vmul.f32 %v2362, %v2457
        %v2484 = vmul.f32 %v2364, %v2459
        %v2485 = vlaneseq
        %v2486 = vshrl.u32 %v2485, 7
        %v2487 = vadd.s32 %v2486, 8
        %v2488 = vadd.s32 %v2486, 16
        %v2489 = vadd.s32 %v2486, 24
        %v2490 = vmax.f32 %v2446, %v2461
        %v2491 = vmax.f32 %v2490, %v2469
        %v2492 = vsel %vm2190, %v2477, -inf
        %v2493 = vmax.f32 %v2491, %v2492
        %v2494 = vrot.slane %v2493, 4
        %v2495 = vmax.f32 %v2493, %v2494
        %v2496 = vrot.slane %v2495, 2
        %v2497 = vmax.f32 %v2495, %v2496
        %v2498 = vrot.slane %v2497, 1
        %v2499 = vmax.f32 %v2497, %v2498
        %v2500 = vmax.f32 %v2448, %v2462
        %v2501 = vmax.f32 %v2500, %v2470
        %v2502 = vsel %vm2190, %v2478, -inf
        %v2503 = vmax.f32 %v2501, %v2502
        %v2504 = vrot.slane %v2503, 4
        %v2505 = vmax.f32 %v2503, %v2504
        %v2506 = vrot.slane %v2505, 2
        %v2507 = vmax.f32 %v2505, %v2506
        %v2508 = vrot.slane %v2507, 1
        %v2509 = vmax.f32 %v2507, %v2508
        %v2510 = vmax.f32 %v2450, %v2463
        %v2511 = vmax.f32 %v2510, %v2471
        %v2512 = vsel %vm2190, %v2479, -inf
        %v2513 = vmax.f32 %v2511, %v2512
        %v2514 = vrot.slane %v2513, 4
        %v2515 = vmax.f32 %v2513, %v2514
        %v2516 = vrot.slane %v2515, 2
        %v2517 = vmax.f32 %v2515, %v2516
        %v2518 = vrot.slane %v2517, 1
        %v2519 = vmax.f32 %v2517, %v2518
        %v2520 = vmax.f32 %v2452, %v2464
        %v2521 = vmax.f32 %v2520, %v2472
        %v2522 = vsel %vm2190, %v2480, -inf
        %v2523 = vmax.f32 %v2521, %v2522
        %v2524 = vrot.slane %v2523, 4
        %v2525 = vmax.f32 %v2523, %v2524
        %v2526 = vrot.slane %v2525, 2
        %v2527 = vmax.f32 %v2525, %v2526
        %v2528 = vrot.slane %v2527, 1
        %v2529 = vmax.f32 %v2527, %v2528
        %v2530 = vmax.f32 %v2454, %v2465
        %v2531 = vmax.f32 %v2530, %v2473
        %v2532 = vsel %vm2190, %v2481, -inf
        %v2533 = vmax.f32 %v2531, %v2532
        %v2534 = vrot.slane %v2533, 4
        %v2535 = vmax.f32 %v2533, %v2534
        %v2536 = vrot.slane %v2535, 2
        %v2537 = vmax.f32 %v2535, %v2536
        %v2538 = vrot.slane %v2537, 1
        %v2539 = vmax.f32 %v2537, %v2538
        %v2540 = vmax.f32 %v2456, %v2466
        %v2541 = vmax.f32 %v2540, %v2474
        %v2542 = vsel %vm2190, %v2482, -inf
        %v2543 = vmax.f32 %v2541, %v2542
        %v2544 = vrot.slane %v2543, 4
        %v2545 = vmax.f32 %v2543, %v2544
        %v2546 = vrot.slane %v2545, 2
        %v2547 = vmax.f32 %v2545, %v2546
        %v2548 = vrot.slane %v2547, 1
        %v2549 = vmax.f32 %v2547, %v2548
        %v2550 = vmax.f32 %v2458, %v2467
        %v2551 = vmax.f32 %v2550, %v2475
        %v2552 = vsel %vm2190, %v2483, -inf
        %v2553 = vmax.f32 %v2551, %v2552
        %v2554 = vrot.slane %v2553, 4
        %v2555 = vmax.f32 %v2553, %v2554
        %v2556 = vrot.slane %v2555, 2
        %v2557 = vmax.f32 %v2555, %v2556
        %v2558 = vrot.slane %v2557, 1
        %v2559 = vmax.f32 %v2557, %v2558
        %v2560 = vmax.f32 %v2460, %v2468
        %v2561 = vmax.f32 %v2560, %v2476
        %v2562 = vsel %vm2190, %v2484, -inf
        %v2563 = vmax.f32 %v2561, %v2562
        %v2564 = vrot.slane %v2563, 4
        %v2565 = vmax.f32 %v2563, %v2564
        %v2566 = vrot.slane %v2565, 2
        %v2567 = vmax.f32 %v2565, %v2566
        %v2568 = vrot.slane %v2567, 1
        %v2569 = vmax.f32 %v2567, %v2568
        %v2578 = vcombine.low %v2499, %v2509
        %v2579 = vcombine.low %v2519, %v2529
        %v2580 = vcombine.low %v2539, %v2549
        %v2581 = vcombine.low %v2559, %v2569
        %v2583 = vunpack.c.l.s4 1966171168
        %v2584 = vunpack.c.0.s8 %v2583
        %v2585 = vlaneseq
        %v2586 = vshrl.u32 %v2585, 7
        %v2587 = vsub.s32 %v2584, %v2586
        %v2588 = vrot.slane %v2578, %v2587
        %v2590 = vunpack.c.l.s4 1966171168
        %v2591 = vunpack.c.0.s8 %v2590
        %v2592 = vlaneseq
        %v2593 = vshrl.u32 %v2592, 7
        %v2594 = vsub.s32 %v2591, %v2593
        %v2595 = vrot.slane %v2579, %v2594
        %v2597 = vunpack.c.l.s4 1966171168
        %v2598 = vunpack.c.0.s8 %v2597
        %v2599 = vlaneseq
        %v2600 = vshrl.u32 %v2599, 7
        %v2601 = vsub.s32 %v2598, %v2600
        %v2602 = vrot.slane %v2580, %v2601
        %v2604 = vunpack.c.l.s4 1966171168
        %v2605 = vunpack.c.0.s8 %v2604
        %v2606 = vlaneseq
        %v2607 = vshrl.u32 %v2606, 7
        %v2608 = vsub.s32 %v2605, %v2607
        %v2609 = vrot.slane %v2581, %v2608
        %v2610 = vcombine.low %v2588, %v2595
        %v2611 = vcombine.low %v2602, %v2609
        %v2613 = vunpack.c.l.s4 1966171168
        %v2614 = vunpack.c.0.s8 %v2613
        %v2615 = vlaneseq
        %v2616 = vshrl.u32 %v2615, 7
        %v2617 = vsub.s32 %v2614, %v2616
        %v2618 = vrot.slane %v2610, %v2617
        %v2620 = vunpack.c.l.s4 1966171168
        %v2621 = vunpack.c.0.s8 %v2620
        %v2622 = vlaneseq
        %v2623 = vshrl.u32 %v2622, 7
        %v2624 = vsub.s32 %v2621, %v2623
        %v2625 = vrot.slane %v2611, %v2624
        %v2626 = vcombine.low %v2618, %v2625
        %2628 = vst [vmem:[#allocation3] ss:$8 sm:$0xf] %v2626
        %2629 = vst [vmem:[#allocation3] ss:$8 sm:$0xf0] %v2626
        %vm2630 = vcmp.eq.f32.partialorder %v2446, %v2499
        %vm2631 = vcmp.eq.f32.partialorder %v2448, %v2509
        %vm2632 = vcmp.eq.f32.partialorder %v2450, %v2519
        %vm2633 = vcmp.eq.f32.partialorder %v2452, %v2529
        %vm2634 = vcmp.eq.f32.partialorder %v2454, %v2539
        %vm2635 = vcmp.eq.f32.partialorder %v2456, %v2549
        %vm2636 = vcmp.eq.f32.partialorder %v2458, %v2559
        %vm2637 = vcmp.eq.f32.partialorder %v2460, %v2569
        %vm2638 = vcmp.eq.f32.partialorder %v2461, %v2499
        %vm2639 = vcmp.eq.f32.partialorder %v2462, %v2509
        %vm2640 = vcmp.eq.f32.partialorder %v2463, %v2519
        %vm2641 = vcmp.eq.f32.partialorder %v2464, %v2529
        %vm2642 = vcmp.eq.f32.partialorder %v2465, %v2539
        %vm2643 = vcmp.eq.f32.partialorder %v2466, %v2549
        %vm2644 = vcmp.eq.f32.partialorder %v2467, %v2559
        %vm2645 = vcmp.eq.f32.partialorder %v2468, %v2569
        %vm2646 = vcmp.eq.f32.partialorder %v2469, %v2499
        %vm2647 = vcmp.eq.f32.partialorder %v2470, %v2509
        %vm2648 = vcmp.eq.f32.partialorder %v2471, %v2519
        %vm2649 = vcmp.eq.f32.partialorder %v2472, %v2529
        %vm2650 = vcmp.eq.f32.partialorder %v2473, %v2539
        %vm2651 = vcmp.eq.f32.partialorder %v2474, %v2549
        %vm2652 = vcmp.eq.f32.partialorder %v2475, %v2559
        %vm2653 = vcmp.eq.f32.partialorder %v2476, %v2569
        %vm2654 = vcmp.eq.f32.partialorder %v2477, %v2499
        %vm2655 = vcmp.eq.f32.partialorder %v2478, %v2509
        %vm2656 = vcmp.eq.f32.partialorder %v2479, %v2519
        %vm2657 = vcmp.eq.f32.partialorder %v2480, %v2529
        %vm2658 = vcmp.eq.f32.partialorder %v2481, %v2539
        %vm2659 = vcmp.eq.f32.partialorder %v2482, %v2549
        %vm2660 = vcmp.eq.f32.partialorder %v2483, %v2559
        %vm2661 = vcmp.eq.f32.partialorder %v2484, %v2569
        %v2662 = vsel %vm2630, %v2486, 25
        %v2663 = vsel %vm2631, %v2486, 25
        %v2664 = vsel %vm2632, %v2486, 25
        %v2665 = vsel %vm2633, %v2486, 25
        %v2666 = vsel %vm2634, %v2486, 25
        %v2667 = vsel %vm2635, %v2486, 25
        %v2668 = vsel %vm2636, %v2486, 25
        %v2669 = vsel %vm2637, %v2486, 25
        %v2670 = vsel %vm2638, %v2487, 25
        %v2671 = vsel %vm2639, %v2487, 25
        %v2672 = vsel %vm2640, %v2487, 25
        %v2673 = vsel %vm2641, %v2487, 25
        %v2674 = vsel %vm2642, %v2487, 25
        %v2675 = vsel %vm2643, %v2487, 25
        %v2676 = vsel %vm2644, %v2487, 25
        %v2677 = vsel %vm2645, %v2487, 25
        %v2678 = vsel %vm2646, %v2488, 25
        %v2679 = vsel %vm2647, %v2488, 25
        %v2680 = vsel %vm2648, %v2488, 25
        %v2681 = vsel %vm2649, %v2488, 25
        %v2682 = vsel %vm2650, %v2488, 25
        %v2683 = vsel %vm2651, %v2488, 25
        %v2684 = vsel %vm2652, %v2488, 25
        %v2685 = vsel %vm2653, %v2488, 25
        %v2686 = vsel %vm2654, %v2489, 25
        %v2687 = vsel %vm2655, %v2489, 25
        %v2688 = vsel %vm2656, %v2489, 25
        %v2689 = vsel %vm2657, %v2489, 25
        %v2690 = vsel %vm2658, %v2489, 25
        %v2691 = vsel %vm2659, %v2489, 25
        %v2692 = vsel %vm2660, %v2489, 25
        %v2693 = vsel %vm2661, %v2489, 25
        %vm2694 = vcmp.lt.s32.totalorder %v2662, %v2670
        %v2695 = vsel %vm2694, %v2662, %v2670
        %vm2696 = vcmp.lt.s32.totalorder %v2695, %v2678
        %v2697 = vsel %vm2696, %v2695, %v2678
        %v2698 = vsel %vm2190, %v2686, 2147483647
        %vm2699 = vcmp.lt.s32.totalorder %v2697, %v2698
        %v2700 = vsel %vm2699, %v2697, %v2698
        %v2701 = vrot.slane %v2700, 4
        %vm2702 = vcmp.lt.s32.totalorder %v2700, %v2701
        %v2703 = vsel %vm2702, %v2700, %v2701
        %v2704 = vrot.slane %v2703, 2
        %vm2705 = vcmp.lt.s32.totalorder %v2703, %v2704
        %v2706 = vsel %vm2705, %v2703, %v2704
        %v2707 = vrot.slane %v2706, 1
        %vm2708 = vcmp.lt.s32.totalorder %v2706, %v2707
        %v2709 = vsel %vm2708, %v2706, %v2707
        %vm2710 = vcmp.lt.s32.totalorder %v2663, %v2671
        %v2711 = vsel %vm2710, %v2663, %v2671
        %vm2712 = vcmp.lt.s32.totalorder %v2711, %v2679
        %v2713 = vsel %vm2712, %v2711, %v2679
        %v2714 = vsel %vm2190, %v2687, 2147483647
        %vm2715 = vcmp.lt.s32.totalorder %v2713, %v2714
        %v2716 = vsel %vm2715, %v2713, %v2714
        %v2717 = vrot.slane %v2716, 4
        %vm2718 = vcmp.lt.s32.totalorder %v2716, %v2717
        %v2719 = vsel %vm2718, %v2716, %v2717
        %v2720 = vrot.slane %v2719, 2
        %vm2721 = vcmp.lt.s32.totalorder %v2719, %v2720
        %v2722 = vsel %vm2721, %v2719, %v2720
        %v2723 = vrot.slane %v2722, 1
        %vm2724 = vcmp.lt.s32.totalorder %v2722, %v2723
        %v2725 = vsel %vm2724, %v2722, %v2723
        %vm2726 = vcmp.lt.s32.totalorder %v2664, %v2672
        %v2727 = vsel %vm2726, %v2664, %v2672
        %vm2728 = vcmp.lt.s32.totalorder %v2727, %v2680
        %v2729 = vsel %vm2728, %v2727, %v2680
        %v2730 = vsel %vm2190, %v2688, 2147483647
        %vm2731 = vcmp.lt.s32.totalorder %v2729, %v2730
        %v2732 = vsel %vm2731, %v2729, %v2730
        %v2733 = vrot.slane %v2732, 4
        %vm2734 = vcmp.lt.s32.totalorder %v2732, %v2733
        %v2735 = vsel %vm2734, %v2732, %v2733
        %v2736 = vrot.slane %v2735, 2
        %vm2737 = vcmp.lt.s32.totalorder %v2735, %v2736
        %v2738 = vsel %vm2737, %v2735, %v2736
        %v2739 = vrot.slane %v2738, 1
        %vm2740 = vcmp.lt.s32.totalorder %v2738, %v2739
        %v2741 = vsel %vm2740, %v2738, %v2739
        %vm2742 = vcmp.lt.s32.totalorder %v2665, %v2673
        %v2743 = vsel %vm2742, %v2665, %v2673
        %vm2744 = vcmp.lt.s32.totalorder %v2743, %v2681
        %v2745 = vsel %vm2744, %v2743, %v2681
        %v2746 = vsel %vm2190, %v2689, 2147483647
        %vm2747 = vcmp.lt.s32.totalorder %v2745, %v2746
        %v2748 = vsel %vm2747, %v2745, %v2746
        %v2749 = vrot.slane %v2748, 4
        %vm2750 = vcmp.lt.s32.totalorder %v2748, %v2749
        %v2751 = vsel %vm2750, %v2748, %v2749
        %v2752 = vrot.slane %v2751, 2
        %vm2753 = vcmp.lt.s32.totalorder %v2751, %v2752
        %v2754 = vsel %vm2753, %v2751, %v2752
        %v2755 = vrot.slane %v2754, 1
        %vm2756 = vcmp.lt.s32.totalorder %v2754, %v2755
        %v2757 = vsel %vm2756, %v2754, %v2755
        %vm2758 = vcmp.lt.s32.totalorder %v2666, %v2674
        %v2759 = vsel %vm2758, %v2666, %v2674
        %vm2760 = vcmp.lt.s32.totalorder %v2759, %v2682
        %v2761 = vsel %vm2760, %v2759, %v2682
        %v2762 = vsel %vm2190, %v2690, 2147483647
        %vm2763 = vcmp.lt.s32.totalorder %v2761, %v2762
        %v2764 = vsel %vm2763, %v2761, %v2762
        %v2765 = vrot.slane %v2764, 4
        %vm2766 = vcmp.lt.s32.totalorder %v2764, %v2765
        %v2767 = vsel %vm2766, %v2764, %v2765
        %v2768 = vrot.slane %v2767, 2
        %vm2769 = vcmp.lt.s32.totalorder %v2767, %v2768
        %v2770 = vsel %vm2769, %v2767, %v2768
        %v2771 = vrot.slane %v2770, 1
        %vm2772 = vcmp.lt.s32.totalorder %v2770, %v2771
        %v2773 = vsel %vm2772, %v2770, %v2771
        %vm2774 = vcmp.lt.s32.totalorder %v2667, %v2675
        %v2775 = vsel %vm2774, %v2667, %v2675
        %vm2776 = vcmp.lt.s32.totalorder %v2775, %v2683
        %v2777 = vsel %vm2776, %v2775, %v2683
        %v2778 = vsel %vm2190, %v2691, 2147483647
        %vm2779 = vcmp.lt.s32.totalorder %v2777, %v2778
        %v2780 = vsel %vm2779, %v2777, %v2778
        %v2781 = vrot.slane %v2780, 4
        %vm2782 = vcmp.lt.s32.totalorder %v2780, %v2781
        %v2783 = vsel %vm2782, %v2780, %v2781
        %v2784 = vrot.slane %v2783, 2
        %vm2785 = vcmp.lt.s32.totalorder %v2783, %v2784
        %v2786 = vsel %vm2785, %v2783, %v2784
        %v2787 = vrot.slane %v2786, 1
        %vm2788 = vcmp.lt.s32.totalorder %v2786, %v2787
        %v2789 = vsel %vm2788, %v2786, %v2787
        %vm2790 = vcmp.lt.s32.totalorder %v2668, %v2676
        %v2791 = vsel %vm2790, %v2668, %v2676
        %vm2792 = vcmp.lt.s32.totalorder %v2791, %v2684
        %v2793 = vsel %vm2792, %v2791, %v2684
        %v2794 = vsel %vm2190, %v2692, 2147483647
        %vm2795 = vcmp.lt.s32.totalorder %v2793, %v2794
        %v2796 = vsel %vm2795, %v2793, %v2794
        %v2797 = vrot.slane %v2796, 4
        %vm2798 = vcmp.lt.s32.totalorder %v2796, %v2797
        %v2799 = vsel %vm2798, %v2796, %v2797
        %v2800 = vrot.slane %v2799, 2
        %vm2801 = vcmp.lt.s32.totalorder %v2799, %v2800
        %v2802 = vsel %vm2801, %v2799, %v2800
        %v2803 = vrot.slane %v2802, 1
        %vm2804 = vcmp.lt.s32.totalorder %v2802, %v2803
        %v2805 = vsel %vm2804, %v2802, %v2803
        %vm2806 = vcmp.lt.s32.totalorder %v2669, %v2677
        %v2807 = vsel %vm2806, %v2669, %v2677
        %vm2808 = vcmp.lt.s32.totalorder %v2807, %v2685
        %v2809 = vsel %vm2808, %v2807, %v2685
        %v2810 = vsel %vm2190, %v2693, 2147483647
        %vm2811 = vcmp.lt.s32.totalorder %v2809, %v2810
        %v2812 = vsel %vm2811, %v2809, %v2810
        %v2813 = vrot.slane %v2812, 4
        %vm2814 = vcmp.lt.s32.totalorder %v2812, %v2813
        %v2815 = vsel %vm2814, %v2812, %v2813
        %v2816 = vrot.slane %v2815, 2
        %vm2817 = vcmp.lt.s32.totalorder %v2815, %v2816
        %v2818 = vsel %vm2817, %v2815, %v2816
        %v2819 = vrot.slane %v2818, 1
        %vm2820 = vcmp.lt.s32.totalorder %v2818, %v2819
        %v2821 = vsel %vm2820, %v2818, %v2819
        %vm2822 = vcmp.eq.s32.totalorder %v2486, %v2709
        %vm2823 = vcmp.eq.s32.totalorder %v2486, %v2725
        %vm2824 = vcmp.eq.s32.totalorder %v2486, %v2741
        %vm2825 = vcmp.eq.s32.totalorder %v2486, %v2757
        %vm2826 = vcmp.eq.s32.totalorder %v2486, %v2773
        %vm2827 = vcmp.eq.s32.totalorder %v2486, %v2789
        %vm2828 = vcmp.eq.s32.totalorder %v2486, %v2805
        %vm2829 = vcmp.eq.s32.totalorder %v2486, %v2821
        %vm2830 = vcmp.eq.s32.totalorder %v2487, %v2709
        %vm2831 = vcmp.eq.s32.totalorder %v2487, %v2725
        %vm2832 = vcmp.eq.s32.totalorder %v2487, %v2741
        %vm2833 = vcmp.eq.s32.totalorder %v2487, %v2757
        %vm2834 = vcmp.eq.s32.totalorder %v2487, %v2773
        %vm2835 = vcmp.eq.s32.totalorder %v2487, %v2789
        %vm2836 = vcmp.eq.s32.totalorder %v2487, %v2805
        %vm2837 = vcmp.eq.s32.totalorder %v2487, %v2821
        %vm2838 = vcmp.eq.s32.totalorder %v2488, %v2709
        %vm2839 = vcmp.eq.s32.totalorder %v2488, %v2725
        %vm2840 = vcmp.eq.s32.totalorder %v2488, %v2741
        %vm2841 = vcmp.eq.s32.totalorder %v2488, %v2757
        %vm2842 = vcmp.eq.s32.totalorder %v2488, %v2773
        %vm2843 = vcmp.eq.s32.totalorder %v2488, %v2789
        %vm2844 = vcmp.eq.s32.totalorder %v2488, %v2805
        %vm2845 = vcmp.eq.s32.totalorder %v2488, %v2821
        %vm2846 = vcmp.eq.s32.totalorder %v2489, %v2709
        %vm2847 = vcmp.eq.s32.totalorder %v2489, %v2725
        %vm2848 = vcmp.eq.s32.totalorder %v2489, %v2741
        %vm2849 = vcmp.eq.s32.totalorder %v2489, %v2757
        %vm2850 = vcmp.eq.s32.totalorder %v2489, %v2773
        %vm2851 = vcmp.eq.s32.totalorder %v2489, %v2789
        %vm2852 = vcmp.eq.s32.totalorder %v2489, %v2805
        %vm2853 = vcmp.eq.s32.totalorder %v2489, %v2821
        %v2854 = vsel %vm2822, -1.0, %v2446
        %v2855 = vsel %vm2823, -1.0, %v2448
        %v2856 = vsel %vm2824, -1.0, %v2450
        %v2857 = vsel %vm2825, -1.0, %v2452
        %v2858 = vsel %vm2826, -1.0, %v2454
        %v2859 = vsel %vm2827, -1.0, %v2456
        %v2860 = vsel %vm2828, -1.0, %v2458
        %v2861 = vsel %vm2829, -1.0, %v2460
        %v2862 = vsel %vm2830, -1.0, %v2461
        %v2863 = vsel %vm2831, -1.0, %v2462
        %v2864 = vsel %vm2832, -1.0, %v2463
        %v2865 = vsel %vm2833, -1.0, %v2464
        %v2866 = vsel %vm2834, -1.0, %v2465
        %v2867 = vsel %vm2835, -1.0, %v2466
        %v2868 = vsel %vm2836, -1.0, %v2467
        %v2869 = vsel %vm2837, -1.0, %v2468
        %v2870 = vsel %vm2838, -1.0, %v2469
        %v2871 = vsel %vm2839, -1.0, %v2470
        %v2872 = vsel %vm2840, -1.0, %v2471
        %v2873 = vsel %vm2841, -1.0, %v2472
        %v2874 = vsel %vm2842, -1.0, %v2473
        %v2875 = vsel %vm2843, -1.0, %v2474
        %v2876 = vsel %vm2844, -1.0, %v2475
        %v2877 = vsel %vm2845, -1.0, %v2476
        %v2878 = vsel %vm2846, -1.0, %v2477
        %v2879 = vsel %vm2847, -1.0, %v2478
        %v2880 = vsel %vm2848, -1.0, %v2479
        %v2881 = vsel %vm2849, -1.0, %v2480
        %v2882 = vsel %vm2850, -1.0, %v2481
        %v2883 = vsel %vm2851, -1.0, %v2482
        %v2884 = vsel %vm2852, -1.0, %v2483
        %v2885 = vsel %vm2853, -1.0, %v2484
        %v2886 = vmax.f32 %v2854, %v2862
        %v2887 = vmax.f32 %v2886, %v2870
        %v2888 = vsel %vm2190, %v2878, -inf
        %v2889 = vmax.f32 %v2887, %v2888
        %v2890 = vrot.slane %v2889, 4
        %v2891 = vmax.f32 %v2889, %v2890
        %v2892 = vrot.slane %v2891, 2
        %v2893 = vmax.f32 %v2891, %v2892
        %v2894 = vrot.slane %v2893, 1
        %v2895 = vmax.f32 %v2893, %v2894
        %v2896 = vmax.f32 %v2855, %v2863
        %v2897 = vmax.f32 %v2896, %v2871
        %v2898 = vsel %vm2190, %v2879, -inf
        %v2899 = vmax.f32 %v2897, %v2898
        %v2900 = vrot.slane %v2899, 4
        %v2901 = vmax.f32 %v2899, %v2900
        %v2902 = vrot.slane %v2901, 2
        %v2903 = vmax.f32 %v2901, %v2902
        %v2904 = vrot.slane %v2903, 1
        %v2905 = vmax.f32 %v2903, %v2904
        %v2906 = vmax.f32 %v2856, %v2864
        %v2907 = vmax.f32 %v2906, %v2872
        %v2908 = vsel %vm2190, %v2880, -inf
        %v2909 = vmax.f32 %v2907, %v2908
        %v2910 = vrot.slane %v2909, 4
        %v2911 = vmax.f32 %v2909, %v2910
        %v2912 = vrot.slane %v2911, 2
        %v2913 = vmax.f32 %v2911, %v2912
        %v2914 = vrot.slane %v2913, 1
        %v2915 = vmax.f32 %v2913, %v2914
        %v2916 = vmax.f32 %v2857, %v2865
        %v2917 = vmax.f32 %v2916, %v2873
        %v2918 = vsel %vm2190, %v2881, -inf
        %v2919 = vmax.f32 %v2917, %v2918
        %v2920 = vrot.slane %v2919, 4
        %v2921 = vmax.f32 %v2919, %v2920
        %v2922 = vrot.slane %v2921, 2
        %v2923 = vmax.f32 %v2921, %v2922
        %v2924 = vrot.slane %v2923, 1
        %v2925 = vmax.f32 %v2923, %v2924
        %v2926 = vmax.f32 %v2858, %v2866
        %v2927 = vmax.f32 %v2926, %v2874
        %v2928 = vsel %vm2190, %v2882, -inf
        %v2929 = vmax.f32 %v2927, %v2928
        %v2930 = vrot.slane %v2929, 4
        %v2931 = vmax.f32 %v2929, %v2930
        %v2932 = vrot.slane %v2931, 2
        %v2933 = vmax.f32 %v2931, %v2932
        %v2934 = vrot.slane %v2933, 1
        %v2935 = vmax.f32 %v2933, %v2934
        %v2936 = vmax.f32 %v2859, %v2867
        %v2937 = vmax.f32 %v2936, %v2875
        %v2938 = vsel %vm2190, %v2883, -inf
        %v2939 = vmax.f32 %v2937, %v2938
        %v2940 = vrot.slane %v2939, 4
        %v2941 = vmax.f32 %v2939, %v2940
        %v2942 = vrot.slane %v2941, 2
        %v2943 = vmax.f32 %v2941, %v2942
        %v2944 = vrot.slane %v2943, 1
        %v2945 = vmax.f32 %v2943, %v2944
        %v2946 = vmax.f32 %v2860, %v2868
        %v2947 = vmax.f32 %v2946, %v2876
        %v2948 = vsel %vm2190, %v2884, -inf
        %v2949 = vmax.f32 %v2947, %v2948
        %v2950 = vrot.slane %v2949, 4
        %v2951 = vmax.f32 %v2949, %v2950
        %v2952 = vrot.slane %v2951, 2
        %v2953 = vmax.f32 %v2951, %v2952
        %v2954 = vrot.slane %v2953, 1
        %v2955 = vmax.f32 %v2953, %v2954
        %v2956 = vmax.f32 %v2861, %v2869
        %v2957 = vmax.f32 %v2956, %v2877
        %v2958 = vsel %vm2190, %v2885, -inf
        %v2959 = vmax.f32 %v2957, %v2958
        %v2960 = vrot.slane %v2959, 4
        %v2961 = vmax.f32 %v2959, %v2960
        %v2962 = vrot.slane %v2961, 2
        %v2963 = vmax.f32 %v2961, %v2962
        %v2964 = vrot.slane %v2963, 1
        %v2965 = vmax.f32 %v2963, %v2964
        %v2974 = vcombine.low %v2895, %v2905
        %v2975 = vcombine.low %v2915, %v2925
        %v2976 = vcombine.low %v2935, %v2945
        %v2977 = vcombine.low %v2955, %v2965
        %v2979 = vunpack.c.l.s4 1966171168
        %v2980 = vunpack.c.0.s8 %v2979
        %v2981 = vlaneseq
        %v2982 = vshrl.u32 %v2981, 7
        %v2983 = vsub.s32 %v2980, %v2982
        %v2984 = vrot.slane %v2974, %v2983
        %v2986 = vunpack.c.l.s4 1966171168
        %v2987 = vunpack.c.0.s8 %v2986
        %v2988 = vlaneseq
        %v2989 = vshrl.u32 %v2988, 7
        %v2990 = vsub.s32 %v2987, %v2989
        %v2991 = vrot.slane %v2975, %v2990
        %v2993 = vunpack.c.l.s4 1966171168
        %v2994 = vunpack.c.0.s8 %v2993
        %v2995 = vlaneseq
        %v2996 = vshrl.u32 %v2995, 7
        %v2997 = vsub.s32 %v2994, %v2996
        %v2998 = vrot.slane %v2976, %v2997
        %v3000 = vunpack.c.l.s4 1966171168
        %v3001 = vunpack.c.0.s8 %v3000
        %v3002 = vlaneseq
        %v3003 = vshrl.u32 %v3002, 7
        %v3004 = vsub.s32 %v3001, %v3003
        %v3005 = vrot.slane %v2977, %v3004
        %v3006 = vcombine.low %v2984, %v2991
        %v3007 = vcombine.low %v2998, %v3005
        %v3009 = vunpack.c.l.s4 1966171168
        %v3010 = vunpack.c.0.s8 %v3009
        %v3011 = vlaneseq
        %v3012 = vshrl.u32 %v3011, 7
        %v3013 = vsub.s32 %v3010, %v3012
        %v3014 = vrot.slane %v3006, %v3013
        %v3016 = vunpack.c.l.s4 1966171168
        %v3017 = vunpack.c.0.s8 %v3016
        %v3018 = vlaneseq
        %v3019 = vshrl.u32 %v3018, 7
        %v3020 = vsub.s32 %v3017, %v3019
        %v3021 = vrot.slane %v3007, %v3020
        %v3022 = vcombine.low %v3014, %v3021
        %s3024 = scalar_lea.vmem [#allocation3], 1
        %3025 = vst [vmem:[%s3024] ss:$8 sm:$0xf] %v3022
        %3026 = vst [vmem:[%s3024] ss:$8 sm:$0xf0] %v3022
        %vm3027 = vcmp.eq.f32.partialorder %v2854, %v2895
        %vm3028 = vcmp.eq.f32.partialorder %v2855, %v2905
        %vm3029 = vcmp.eq.f32.partialorder %v2856, %v2915
        %vm3030 = vcmp.eq.f32.partialorder %v2857, %v2925
        %vm3031 = vcmp.eq.f32.partialorder %v2858, %v2935
        %vm3032 = vcmp.eq.f32.partialorder %v2859, %v2945
        %vm3033 = vcmp.eq.f32.partialorder %v2860, %v2955
        %vm3034 = vcmp.eq.f32.partialorder %v2861, %v2965
        %vm3035 = vcmp.eq.f32.partialorder %v2862, %v2895
        %vm3036 = vcmp.eq.f32.partialorder %v2863, %v2905
        %vm3037 = vcmp.eq.f32.partialorder %v2864, %v2915
        %vm3038 = vcmp.eq.f32.partialorder %v2865, %v2925
        %vm3039 = vcmp.eq.f32.partialorder %v2866, %v2935
        %vm3040 = vcmp.eq.f32.partialorder %v2867, %v2945
        %vm3041 = vcmp.eq.f32.partialorder %v2868, %v2955
        %vm3042 = vcmp.eq.f32.partialorder %v2869, %v2965
        %vm3043 = vcmp.eq.f32.partialorder %v2870, %v2895
        %vm3044 = vcmp.eq.f32.partialorder %v2871, %v2905
        %vm3045 = vcmp.eq.f32.partialorder %v2872, %v2915
        %vm3046 = vcmp.eq.f32.partialorder %v2873, %v2925
        %vm3047 = vcmp.eq.f32.partialorder %v2874, %v2935
        %vm3048 = vcmp.eq.f32.partialorder %v2875, %v2945
        %vm3049 = vcmp.eq.f32.partialorder %v2876, %v2955
        %vm3050 = vcmp.eq.f32.partialorder %v2877, %v2965
        %vm3051 = vcmp.eq.f32.partialorder %v2878, %v2895
        %vm3052 = vcmp.eq.f32.partialorder %v2879, %v2905
        %vm3053 = vcmp.eq.f32.partialorder %v2880, %v2915
        %vm3054 = vcmp.eq.f32.partialorder %v2881, %v2925
        %vm3055 = vcmp.eq.f32.partialorder %v2882, %v2935
        %vm3056 = vcmp.eq.f32.partialorder %v2883, %v2945
        %vm3057 = vcmp.eq.f32.partialorder %v2884, %v2955
        %vm3058 = vcmp.eq.f32.partialorder %v2885, %v2965
        %v3059 = vsel %vm3027, %v2486, 25
        %v3060 = vsel %vm3028, %v2486, 25
        %v3061 = vsel %vm3029, %v2486, 25
        %v3062 = vsel %vm3030, %v2486, 25
        %v3063 = vsel %vm3031, %v2486, 25
        %v3064 = vsel %vm3032, %v2486, 25
        %v3065 = vsel %vm3033, %v2486, 25
        %v3066 = vsel %vm3034, %v2486, 25
        %v3067 = vsel %vm3035, %v2487, 25
        %v3068 = vsel %vm3036, %v2487, 25
        %v3069 = vsel %vm3037, %v2487, 25
        %v3070 = vsel %vm3038, %v2487, 25
        %v3071 = vsel %vm3039, %v2487, 25
        %v3072 = vsel %vm3040, %v2487, 25
        %v3073 = vsel %vm3041, %v2487, 25
        %v3074 = vsel %vm3042, %v2487, 25
        %v3075 = vsel %vm3043, %v2488, 25
        %v3076 = vsel %vm3044, %v2488, 25
        %v3077 = vsel %vm3045, %v2488, 25
        %v3078 = vsel %vm3046, %v2488, 25
        %v3079 = vsel %vm3047, %v2488, 25
        %v3080 = vsel %vm3048, %v2488, 25
        %v3081 = vsel %vm3049, %v2488, 25
        %v3082 = vsel %vm3050, %v2488, 25
        %v3083 = vsel %vm3051, %v2489, 25
        %v3084 = vsel %vm3052, %v2489, 25
        %v3085 = vsel %vm3053, %v2489, 25
        %v3086 = vsel %vm3054, %v2489, 25
        %v3087 = vsel %vm3055, %v2489, 25
        %v3088 = vsel %vm3056, %v2489, 25
        %v3089 = vsel %vm3057, %v2489, 25
        %v3090 = vsel %vm3058, %v2489, 25
        %vm3091 = vcmp.lt.s32.totalorder %v3059, %v3067
        %v3092 = vsel %vm3091, %v3059, %v3067
        %vm3093 = vcmp.lt.s32.totalorder %v3092, %v3075
        %v3094 = vsel %vm3093, %v3092, %v3075
        %v3095 = vsel %vm2190, %v3083, 2147483647
        %vm3096 = vcmp.lt.s32.totalorder %v3094, %v3095
        %v3097 = vsel %vm3096, %v3094, %v3095
        %v3098 = vrot.slane %v3097, 4
        %vm3099 = vcmp.lt.s32.totalorder %v3097, %v3098
        %v3100 = vsel %vm3099, %v3097, %v3098
        %v3101 = vrot.slane %v3100, 2
        %vm3102 = vcmp.lt.s32.totalorder %v3100, %v3101
        %v3103 = vsel %vm3102, %v3100, %v3101
        %v3104 = vrot.slane %v3103, 1
        %vm3105 = vcmp.lt.s32.totalorder %v3103, %v3104
        %v3106 = vsel %vm3105, %v3103, %v3104
        %vm3107 = vcmp.lt.s32.totalorder %v3060, %v3068
        %v3108 = vsel %vm3107, %v3060, %v3068
        %vm3109 = vcmp.lt.s32.totalorder %v3108, %v3076
        %v3110 = vsel %vm3109, %v3108, %v3076
        %v3111 = vsel %vm2190, %v3084, 2147483647
        %vm3112 = vcmp.lt.s32.totalorder %v3110, %v3111
        %v3113 = vsel %vm3112, %v3110, %v3111
        %v3114 = vrot.slane %v3113, 4
        %vm3115 = vcmp.lt.s32.totalorder %v3113, %v3114
        %v3116 = vsel %vm3115, %v3113, %v3114
        %v3117 = vrot.slane %v3116, 2
        %vm3118 = vcmp.lt.s32.totalorder %v3116, %v3117
        %v3119 = vsel %vm3118, %v3116, %v3117
        %v3120 = vrot.slane %v3119, 1
        %vm3121 = vcmp.lt.s32.totalorder %v3119, %v3120
        %v3122 = vsel %vm3121, %v3119, %v3120
        %vm3123 = vcmp.lt.s32.totalorder %v3061, %v3069
        %v3124 = vsel %vm3123, %v3061, %v3069
        %vm3125 = vcmp.lt.s32.totalorder %v3124, %v3077
        %v3126 = vsel %vm3125, %v3124, %v3077
        %v3127 = vsel %vm2190, %v3085, 2147483647
        %vm3128 = vcmp.lt.s32.totalorder %v3126, %v3127
        %v3129 = vsel %vm3128, %v3126, %v3127
        %v3130 = vrot.slane %v3129, 4
        %vm3131 = vcmp.lt.s32.totalorder %v3129, %v3130
        %v3132 = vsel %vm3131, %v3129, %v3130
        %v3133 = vrot.slane %v3132, 2
        %vm3134 = vcmp.lt.s32.totalorder %v3132, %v3133
        %v3135 = vsel %vm3134, %v3132, %v3133
        %v3136 = vrot.slane %v3135, 1
        %vm3137 = vcmp.lt.s32.totalorder %v3135, %v3136
        %v3138 = vsel %vm3137, %v3135, %v3136
        %vm3139 = vcmp.lt.s32.totalorder %v3062, %v3070
        %v3140 = vsel %vm3139, %v3062, %v3070
        %vm3141 = vcmp.lt.s32.totalorder %v3140, %v3078
        %v3142 = vsel %vm3141, %v3140, %v3078
        %v3143 = vsel %vm2190, %v3086, 2147483647
        %vm3144 = vcmp.lt.s32.totalorder %v3142, %v3143
        %v3145 = vsel %vm3144, %v3142, %v3143
        %v3146 = vrot.slane %v3145, 4
        %vm3147 = vcmp.lt.s32.totalorder %v3145, %v3146
        %v3148 = vsel %vm3147, %v3145, %v3146
        %v3149 = vrot.slane %v3148, 2
        %vm3150 = vcmp.lt.s32.totalorder %v3148, %v3149
        %v3151 = vsel %vm3150, %v3148, %v3149
        %v3152 = vrot.slane %v3151, 1
        %vm3153 = vcmp.lt.s32.totalorder %v3151, %v3152
        %v3154 = vsel %vm3153, %v3151, %v3152
        %vm3155 = vcmp.lt.s32.totalorder %v3063, %v3071
        %v3156 = vsel %vm3155, %v3063, %v3071
        %vm3157 = vcmp.lt.s32.totalorder %v3156, %v3079
        %v3158 = vsel %vm3157, %v3156, %v3079
        %v3159 = vsel %vm2190, %v3087, 2147483647
        %vm3160 = vcmp.lt.s32.totalorder %v3158, %v3159
        %v3161 = vsel %vm3160, %v3158, %v3159
        %v3162 = vrot.slane %v3161, 4
        %vm3163 = vcmp.lt.s32.totalorder %v3161, %v3162
        %v3164 = vsel %vm3163, %v3161, %v3162
        %v3165 = vrot.slane %v3164, 2
        %vm3166 = vcmp.lt.s32.totalorder %v3164, %v3165
        %v3167 = vsel %vm3166, %v3164, %v3165
        %v3168 = vrot.slane %v3167, 1
        %vm3169 = vcmp.lt.s32.totalorder %v3167, %v3168
        %v3170 = vsel %vm3169, %v3167, %v3168
        %vm3171 = vcmp.lt.s32.totalorder %v3064, %v3072
        %v3172 = vsel %vm3171, %v3064, %v3072
        %vm3173 = vcmp.lt.s32.totalorder %v3172, %v3080
        %v3174 = vsel %vm3173, %v3172, %v3080
        %v3175 = vsel %vm2190, %v3088, 2147483647
        %vm3176 = vcmp.lt.s32.totalorder %v3174, %v3175
        %v3177 = vsel %vm3176, %v3174, %v3175
        %v3178 = vrot.slane %v3177, 4
        %vm3179 = vcmp.lt.s32.totalorder %v3177, %v3178
        %v3180 = vsel %vm3179, %v3177, %v3178
        %v3181 = vrot.slane %v3180, 2
        %vm3182 = vcmp.lt.s32.totalorder %v3180, %v3181
        %v3183 = vsel %vm3182, %v3180, %v3181
        %v3184 = vrot.slane %v3183, 1
        %vm3185 = vcmp.lt.s32.totalorder %v3183, %v3184
        %v3186 = vsel %vm3185, %v3183, %v3184
        %vm3187 = vcmp.lt.s32.totalorder %v3065, %v3073
        %v3188 = vsel %vm3187, %v3065, %v3073
        %vm3189 = vcmp.lt.s32.totalorder %v3188, %v3081
        %v3190 = vsel %vm3189, %v3188, %v3081
        %v3191 = vsel %vm2190, %v3089, 2147483647
        %vm3192 = vcmp.lt.s32.totalorder %v3190, %v3191
        %v3193 = vsel %vm3192, %v3190, %v3191
        %v3194 = vrot.slane %v3193, 4
        %vm3195 = vcmp.lt.s32.totalorder %v3193, %v3194
        %v3196 = vsel %vm3195, %v3193, %v3194
        %v3197 = vrot.slane %v3196, 2
        %vm3198 = vcmp.lt.s32.totalorder %v3196, %v3197
        %v3199 = vsel %vm3198, %v3196, %v3197
        %v3200 = vrot.slane %v3199, 1
        %vm3201 = vcmp.lt.s32.totalorder %v3199, %v3200
        %v3202 = vsel %vm3201, %v3199, %v3200
        %vm3203 = vcmp.lt.s32.totalorder %v3066, %v3074
        %v3204 = vsel %vm3203, %v3066, %v3074
        %vm3205 = vcmp.lt.s32.totalorder %v3204, %v3082
        %v3206 = vsel %vm3205, %v3204, %v3082
        %v3207 = vsel %vm2190, %v3090, 2147483647
        %vm3208 = vcmp.lt.s32.totalorder %v3206, %v3207
        %v3209 = vsel %vm3208, %v3206, %v3207
        %v3210 = vrot.slane %v3209, 4
        %vm3211 = vcmp.lt.s32.totalorder %v3209, %v3210
        %v3212 = vsel %vm3211, %v3209, %v3210
        %v3213 = vrot.slane %v3212, 2
        %vm3214 = vcmp.lt.s32.totalorder %v3212, %v3213
        %v3215 = vsel %vm3214, %v3212, %v3213
        %v3216 = vrot.slane %v3215, 1
        %vm3217 = vcmp.lt.s32.totalorder %v3215, %v3216
        %v3218 = vsel %vm3217, %v3215, %v3216
        %vm3219 = vcmp.eq.s32.totalorder %v2486, %v3106
        %vm3220 = vcmp.eq.s32.totalorder %v2486, %v3122
        %vm3221 = vcmp.eq.s32.totalorder %v2486, %v3138
        %vm3222 = vcmp.eq.s32.totalorder %v2486, %v3154
        %vm3223 = vcmp.eq.s32.totalorder %v2486, %v3170
        %vm3224 = vcmp.eq.s32.totalorder %v2486, %v3186
        %vm3225 = vcmp.eq.s32.totalorder %v2486, %v3202
        %vm3226 = vcmp.eq.s32.totalorder %v2486, %v3218
        %vm3227 = vcmp.eq.s32.totalorder %v2487, %v3106
        %vm3228 = vcmp.eq.s32.totalorder %v2487, %v3122
        %vm3229 = vcmp.eq.s32.totalorder %v2487, %v3138
        %vm3230 = vcmp.eq.s32.totalorder %v2487, %v3154
        %vm3231 = vcmp.eq.s32.totalorder %v2487, %v3170
        %vm3232 = vcmp.eq.s32.totalorder %v2487, %v3186
        %vm3233 = vcmp.eq.s32.totalorder %v2487, %v3202
        %vm3234 = vcmp.eq.s32.totalorder %v2487, %v3218
        %vm3235 = vcmp.eq.s32.totalorder %v2488, %v3106
        %vm3236 = vcmp.eq.s32.totalorder %v2488, %v3122
        %vm3237 = vcmp.eq.s32.totalorder %v2488, %v3138
        %vm3238 = vcmp.eq.s32.totalorder %v2488, %v3154
        %vm3239 = vcmp.eq.s32.totalorder %v2488, %v3170
        %vm3240 = vcmp.eq.s32.totalorder %v2488, %v3186
        %vm3241 = vcmp.eq.s32.totalorder %v2488, %v3202
        %vm3242 = vcmp.eq.s32.totalorder %v2488, %v3218
        %vm3243 = vcmp.eq.s32.totalorder %v2489, %v3106
        %vm3244 = vcmp.eq.s32.totalorder %v2489, %v3122
        %vm3245 = vcmp.eq.s32.totalorder %v2489, %v3138
        %vm3246 = vcmp.eq.s32.totalorder %v2489, %v3154
        %vm3247 = vcmp.eq.s32.totalorder %v2489, %v3170
        %vm3248 = vcmp.eq.s32.totalorder %v2489, %v3186
        %vm3249 = vcmp.eq.s32.totalorder %v2489, %v3202
        %vm3250 = vcmp.eq.s32.totalorder %v2489, %v3218
        %v3251 = vsel %vm3219, -1.0, %v2854
        %v3252 = vsel %vm3220, -1.0, %v2855
        %v3253 = vsel %vm3221, -1.0, %v2856
        %v3254 = vsel %vm3222, -1.0, %v2857
        %v3255 = vsel %vm3223, -1.0, %v2858
        %v3256 = vsel %vm3224, -1.0, %v2859
        %v3257 = vsel %vm3225, -1.0, %v2860
        %v3258 = vsel %vm3226, -1.0, %v2861
        %v3259 = vsel %vm3227, -1.0, %v2862
        %v3260 = vsel %vm3228, -1.0, %v2863
        %v3261 = vsel %vm3229, -1.0, %v2864
        %v3262 = vsel %vm3230, -1.0, %v2865
        %v3263 = vsel %vm3231, -1.0, %v2866
        %v3264 = vsel %vm3232, -1.0, %v2867
        %v3265 = vsel %vm3233, -1.0, %v2868
        %v3266 = vsel %vm3234, -1.0, %v2869
        %v3267 = vsel %vm3235, -1.0, %v2870
        %v3268 = vsel %vm3236, -1.0, %v2871
        %v3269 = vsel %vm3237, -1.0, %v2872
        %v3270 = vsel %vm3238, -1.0, %v2873
        %v3271 = vsel %vm3239, -1.0, %v2874
        %v3272 = vsel %vm3240, -1.0, %v2875
        %v3273 = vsel %vm3241, -1.0, %v2876
        %v3274 = vsel %vm3242, -1.0, %v2877
        %v3275 = vsel %vm3243, -1.0, %v2878
        %v3276 = vsel %vm3244, -1.0, %v2879
        %v3277 = vsel %vm3245, -1.0, %v2880
        %v3278 = vsel %vm3246, -1.0, %v2881
        %v3279 = vsel %vm3247, -1.0, %v2882
        %v3280 = vsel %vm3248, -1.0, %v2883
        %v3281 = vsel %vm3249, -1.0, %v2884
        %v3282 = vsel %vm3250, -1.0, %v2885
        %v3283 = vmax.f32 %v3251, %v3259
        %v3284 = vmax.f32 %v3283, %v3267
        %v3285 = vsel %vm2190, %v3275, -inf
        %v3286 = vmax.f32 %v3284, %v3285
        %v3287 = vrot.slane %v3286, 4
        %v3288 = vmax.f32 %v3286, %v3287
        %v3289 = vrot.slane %v3288, 2
        %v3290 = vmax.f32 %v3288, %v3289
        %v3291 = vrot.slane %v3290, 1
        %v3292 = vmax.f32 %v3290, %v3291
        %v3293 = vmax.f32 %v3252, %v3260
        %v3294 = vmax.f32 %v3293, %v3268
        %v3295 = vsel %vm2190, %v3276, -inf
        %v3296 = vmax.f32 %v3294, %v3295
        %v3297 = vrot.slane %v3296, 4
        %v3298 = vmax.f32 %v3296, %v3297
        %v3299 = vrot.slane %v3298, 2
        %v3300 = vmax.f32 %v3298, %v3299
        %v3301 = vrot.slane %v3300, 1
        %v3302 = vmax.f32 %v3300, %v3301
        %v3303 = vmax.f32 %v3253, %v3261
        %v3304 = vmax.f32 %v3303, %v3269
        %v3305 = vsel %vm2190, %v3277, -inf
        %v3306 = vmax.f32 %v3304, %v3305
        %v3307 = vrot.slane %v3306, 4
        %v3308 = vmax.f32 %v3306, %v3307
        %v3309 = vrot.slane %v3308, 2
        %v3310 = vmax.f32 %v3308, %v3309
        %v3311 = vrot.slane %v3310, 1
        %v3312 = vmax.f32 %v3310, %v3311
        %v3313 = vmax.f32 %v3254, %v3262
        %v3314 = vmax.f32 %v3313, %v3270
        %v3315 = vsel %vm2190, %v3278, -inf
        %v3316 = vmax.f32 %v3314, %v3315
        %v3317 = vrot.slane %v3316, 4
        %v3318 = vmax.f32 %v3316, %v3317
        %v3319 = vrot.slane %v3318, 2
        %v3320 = vmax.f32 %v3318, %v3319
        %v3321 = vrot.slane %v3320, 1
        %v3322 = vmax.f32 %v3320, %v3321
        %v3323 = vmax.f32 %v3255, %v3263
        %v3324 = vmax.f32 %v3323, %v3271
        %v3325 = vsel %vm2190, %v3279, -inf
        %v3326 = vmax.f32 %v3324, %v3325
        %v3327 = vrot.slane %v3326, 4
        %v3328 = vmax.f32 %v3326, %v3327
        %v3329 = vrot.slane %v3328, 2
        %v3330 = vmax.f32 %v3328, %v3329
        %v3331 = vrot.slane %v3330, 1
        %v3332 = vmax.f32 %v3330, %v3331
        %v3333 = vmax.f32 %v3256, %v3264
        %v3334 = vmax.f32 %v3333, %v3272
        %v3335 = vsel %vm2190, %v3280, -inf
        %v3336 = vmax.f32 %v3334, %v3335
        %v3337 = vrot.slane %v3336, 4
        %v3338 = vmax.f32 %v3336, %v3337
        %v3339 = vrot.slane %v3338, 2
        %v3340 = vmax.f32 %v3338, %v3339
        %v3341 = vrot.slane %v3340, 1
        %v3342 = vmax.f32 %v3340, %v3341
        %v3343 = vmax.f32 %v3257, %v3265
        %v3344 = vmax.f32 %v3343, %v3273
        %v3345 = vsel %vm2190, %v3281, -inf
        %v3346 = vmax.f32 %v3344, %v3345
        %v3347 = vrot.slane %v3346, 4
        %v3348 = vmax.f32 %v3346, %v3347
        %v3349 = vrot.slane %v3348, 2
        %v3350 = vmax.f32 %v3348, %v3349
        %v3351 = vrot.slane %v3350, 1
        %v3352 = vmax.f32 %v3350, %v3351
        %v3353 = vmax.f32 %v3258, %v3266
        %v3354 = vmax.f32 %v3353, %v3274
        %v3355 = vsel %vm2190, %v3282, -inf
        %v3356 = vmax.f32 %v3354, %v3355
        %v3357 = vrot.slane %v3356, 4
        %v3358 = vmax.f32 %v3356, %v3357
        %v3359 = vrot.slane %v3358, 2
        %v3360 = vmax.f32 %v3358, %v3359
        %v3361 = vrot.slane %v3360, 1
        %v3362 = vmax.f32 %v3360, %v3361
        %v3371 = vcombine.low %v3292, %v3302
        %v3372 = vcombine.low %v3312, %v3322
        %v3373 = vcombine.low %v3332, %v3342
        %v3374 = vcombine.low %v3352, %v3362
        %v3376 = vunpack.c.l.s4 1966171168
        %v3377 = vunpack.c.0.s8 %v3376
        %v3378 = vlaneseq
        %v3379 = vshrl.u32 %v3378, 7
        %v3380 = vsub.s32 %v3377, %v3379
        %v3381 = vrot.slane %v3371, %v3380
        %v3383 = vunpack.c.l.s4 1966171168
        %v3384 = vunpack.c.0.s8 %v3383
        %v3385 = vlaneseq
        %v3386 = vshrl.u32 %v3385, 7
        %v3387 = vsub.s32 %v3384, %v3386
        %v3388 = vrot.slane %v3372, %v3387
        %v3390 = vunpack.c.l.s4 1966171168
        %v3391 = vunpack.c.0.s8 %v3390
        %v3392 = vlaneseq
        %v3393 = vshrl.u32 %v3392, 7
        %v3394 = vsub.s32 %v3391, %v3393
        %v3395 = vrot.slane %v3373, %v3394
        %v3397 = vunpack.c.l.s4 1966171168
        %v3398 = vunpack.c.0.s8 %v3397
        %v3399 = vlaneseq
        %v3400 = vshrl.u32 %v3399, 7
        %v3401 = vsub.s32 %v3398, %v3400
        %v3402 = vrot.slane %v3374, %v3401
        %v3403 = vcombine.low %v3381, %v3388
        %v3404 = vcombine.low %v3395, %v3402
        %v3406 = vunpack.c.l.s4 1966171168
        %v3407 = vunpack.c.0.s8 %v3406
        %v3408 = vlaneseq
        %v3409 = vshrl.u32 %v3408, 7
        %v3410 = vsub.s32 %v3407, %v3409
        %v3411 = vrot.slane %v3403, %v3410
        %v3413 = vunpack.c.l.s4 1966171168
        %v3414 = vunpack.c.0.s8 %v3413
        %v3415 = vlaneseq
        %v3416 = vshrl.u32 %v3415, 7
        %v3417 = vsub.s32 %v3414, %v3416
        %v3418 = vrot.slane %v3404, %v3417
        %v3419 = vcombine.low %v3411, %v3418
        %s3421 = scalar_lea.vmem [#allocation3], 2
        %3422 = vst [vmem:[%s3421] ss:$8 sm:$0xf] %v3419
        %3423 = vst [vmem:[%s3421] ss:$8 sm:$0xf0] %v3419
        %vm3424 = vcmp.eq.f32.partialorder %v3251, %v3292
        %vm3425 = vcmp.eq.f32.partialorder %v3252, %v3302
        %vm3426 = vcmp.eq.f32.partialorder %v3253, %v3312
        %vm3427 = vcmp.eq.f32.partialorder %v3254, %v3322
        %vm3428 = vcmp.eq.f32.partialorder %v3255, %v3332
        %vm3429 = vcmp.eq.f32.partialorder %v3256, %v3342
        %vm3430 = vcmp.eq.f32.partialorder %v3257, %v3352
        %vm3431 = vcmp.eq.f32.partialorder %v3258, %v3362
        %vm3432 = vcmp.eq.f32.partialorder %v3259, %v3292
        %vm3433 = vcmp.eq.f32.partialorder %v3260, %v3302
        %vm3434 = vcmp.eq.f32.partialorder %v3261, %v3312
        %vm3435 = vcmp.eq.f32.partialorder %v3262, %v3322
        %vm3436 = vcmp.eq.f32.partialorder %v3263, %v3332
        %vm3437 = vcmp.eq.f32.partialorder %v3264, %v3342
        %vm3438 = vcmp.eq.f32.partialorder %v3265, %v3352
        %vm3439 = vcmp.eq.f32.partialorder %v3266, %v3362
        %vm3440 = vcmp.eq.f32.partialorder %v3267, %v3292
        %vm3441 = vcmp.eq.f32.partialorder %v3268, %v3302
        %vm3442 = vcmp.eq.f32.partialorder %v3269, %v3312
        %vm3443 = vcmp.eq.f32.partialorder %v3270, %v3322
        %vm3444 = vcmp.eq.f32.partialorder %v3271, %v3332
        %vm3445 = vcmp.eq.f32.partialorder %v3272, %v3342
        %vm3446 = vcmp.eq.f32.partialorder %v3273, %v3352
        %vm3447 = vcmp.eq.f32.partialorder %v3274, %v3362
        %vm3448 = vcmp.eq.f32.partialorder %v3275, %v3292
        %vm3449 = vcmp.eq.f32.partialorder %v3276, %v3302
        %vm3450 = vcmp.eq.f32.partialorder %v3277, %v3312
        %vm3451 = vcmp.eq.f32.partialorder %v3278, %v3322
        %vm3452 = vcmp.eq.f32.partialorder %v3279, %v3332
        %vm3453 = vcmp.eq.f32.partialorder %v3280, %v3342
        %vm3454 = vcmp.eq.f32.partialorder %v3281, %v3352
        %vm3455 = vcmp.eq.f32.partialorder %v3282, %v3362
        %v3456 = vsel %vm3424, %v2486, 25
        %v3457 = vsel %vm3425, %v2486, 25
        %v3458 = vsel %vm3426, %v2486, 25
        %v3459 = vsel %vm3427, %v2486, 25
        %v3460 = vsel %vm3428, %v2486, 25
        %v3461 = vsel %vm3429, %v2486, 25
        %v3462 = vsel %vm3430, %v2486, 25
        %v3463 = vsel %vm3431, %v2486, 25
        %v3464 = vsel %vm3432, %v2487, 25
        %v3465 = vsel %vm3433, %v2487, 25
        %v3466 = vsel %vm3434, %v2487, 25
        %v3467 = vsel %vm3435, %v2487, 25
        %v3468 = vsel %vm3436, %v2487, 25
        %v3469 = vsel %vm3437, %v2487, 25
        %v3470 = vsel %vm3438, %v2487, 25
        %v3471 = vsel %vm3439, %v2487, 25
        %v3472 = vsel %vm3440, %v2488, 25
        %v3473 = vsel %vm3441, %v2488, 25
        %v3474 = vsel %vm3442, %v2488, 25
        %v3475 = vsel %vm3443, %v2488, 25
        %v3476 = vsel %vm3444, %v2488, 25
        %v3477 = vsel %vm3445, %v2488, 25
        %v3478 = vsel %vm3446, %v2488, 25
        %v3479 = vsel %vm3447, %v2488, 25
        %v3480 = vsel %vm3448, %v2489, 25
        %v3481 = vsel %vm3449, %v2489, 25
        %v3482 = vsel %vm3450, %v2489, 25
        %v3483 = vsel %vm3451, %v2489, 25
        %v3484 = vsel %vm3452, %v2489, 25
        %v3485 = vsel %vm3453, %v2489, 25
        %v3486 = vsel %vm3454, %v2489, 25
        %v3487 = vsel %vm3455, %v2489, 25
        %vm3488 = vcmp.lt.s32.totalorder %v3456, %v3464
        %v3489 = vsel %vm3488, %v3456, %v3464
        %vm3490 = vcmp.lt.s32.totalorder %v3489, %v3472
        %v3491 = vsel %vm3490, %v3489, %v3472
        %v3492 = vsel %vm2190, %v3480, 2147483647
        %vm3493 = vcmp.lt.s32.totalorder %v3491, %v3492
        %v3494 = vsel %vm3493, %v3491, %v3492
        %v3495 = vrot.slane %v3494, 4
        %vm3496 = vcmp.lt.s32.totalorder %v3494, %v3495
        %v3497 = vsel %vm3496, %v3494, %v3495
        %v3498 = vrot.slane %v3497, 2
        %vm3499 = vcmp.lt.s32.totalorder %v3497, %v3498
        %v3500 = vsel %vm3499, %v3497, %v3498
        %v3501 = vrot.slane %v3500, 1
        %vm3502 = vcmp.lt.s32.totalorder %v3500, %v3501
        %v3503 = vsel %vm3502, %v3500, %v3501
        %vm3504 = vcmp.lt.s32.totalorder %v3457, %v3465
        %v3505 = vsel %vm3504, %v3457, %v3465
        %vm3506 = vcmp.lt.s32.totalorder %v3505, %v3473
        %v3507 = vsel %vm3506, %v3505, %v3473
        %v3508 = vsel %vm2190, %v3481, 2147483647
        %vm3509 = vcmp.lt.s32.totalorder %v3507, %v3508
        %v3510 = vsel %vm3509, %v3507, %v3508
        %v3511 = vrot.slane %v3510, 4
        %vm3512 = vcmp.lt.s32.totalorder %v3510, %v3511
        %v3513 = vsel %vm3512, %v3510, %v3511
        %v3514 = vrot.slane %v3513, 2
        %vm3515 = vcmp.lt.s32.totalorder %v3513, %v3514
        %v3516 = vsel %vm3515, %v3513, %v3514
        %v3517 = vrot.slane %v3516, 1
        %vm3518 = vcmp.lt.s32.totalorder %v3516, %v3517
        %v3519 = vsel %vm3518, %v3516, %v3517
        %vm3520 = vcmp.lt.s32.totalorder %v3458, %v3466
        %v3521 = vsel %vm3520, %v3458, %v3466
        %vm3522 = vcmp.lt.s32.totalorder %v3521, %v3474
        %v3523 = vsel %vm3522, %v3521, %v3474
        %v3524 = vsel %vm2190, %v3482, 2147483647
        %vm3525 = vcmp.lt.s32.totalorder %v3523, %v3524
        %v3526 = vsel %vm3525, %v3523, %v3524
        %v3527 = vrot.slane %v3526, 4
        %vm3528 = vcmp.lt.s32.totalorder %v3526, %v3527
        %v3529 = vsel %vm3528, %v3526, %v3527
        %v3530 = vrot.slane %v3529, 2
        %vm3531 = vcmp.lt.s32.totalorder %v3529, %v3530
        %v3532 = vsel %vm3531, %v3529, %v3530
        %v3533 = vrot.slane %v3532, 1
        %vm3534 = vcmp.lt.s32.totalorder %v3532, %v3533
        %v3535 = vsel %vm3534, %v3532, %v3533
        %vm3536 = vcmp.lt.s32.totalorder %v3459, %v3467
        %v3537 = vsel %vm3536, %v3459, %v3467
        %vm3538 = vcmp.lt.s32.totalorder %v3537, %v3475
        %v3539 = vsel %vm3538, %v3537, %v3475
        %v3540 = vsel %vm2190, %v3483, 2147483647
        %vm3541 = vcmp.lt.s32.totalorder %v3539, %v3540
        %v3542 = vsel %vm3541, %v3539, %v3540
        %v3543 = vrot.slane %v3542, 4
        %vm3544 = vcmp.lt.s32.totalorder %v3542, %v3543
        %v3545 = vsel %vm3544, %v3542, %v3543
        %v3546 = vrot.slane %v3545, 2
        %vm3547 = vcmp.lt.s32.totalorder %v3545, %v3546
        %v3548 = vsel %vm3547, %v3545, %v3546
        %v3549 = vrot.slane %v3548, 1
        %vm3550 = vcmp.lt.s32.totalorder %v3548, %v3549
        %v3551 = vsel %vm3550, %v3548, %v3549
        %vm3552 = vcmp.lt.s32.totalorder %v3460, %v3468
        %v3553 = vsel %vm3552, %v3460, %v3468
        %vm3554 = vcmp.lt.s32.totalorder %v3553, %v3476
        %v3555 = vsel %vm3554, %v3553, %v3476
        %v3556 = vsel %vm2190, %v3484, 2147483647
        %vm3557 = vcmp.lt.s32.totalorder %v3555, %v3556
        %v3558 = vsel %vm3557, %v3555, %v3556
        %v3559 = vrot.slane %v3558, 4
        %vm3560 = vcmp.lt.s32.totalorder %v3558, %v3559
        %v3561 = vsel %vm3560, %v3558, %v3559
        %v3562 = vrot.slane %v3561, 2
        %vm3563 = vcmp.lt.s32.totalorder %v3561, %v3562
        %v3564 = vsel %vm3563, %v3561, %v3562
        %v3565 = vrot.slane %v3564, 1
        %vm3566 = vcmp.lt.s32.totalorder %v3564, %v3565
        %v3567 = vsel %vm3566, %v3564, %v3565
        %vm3568 = vcmp.lt.s32.totalorder %v3461, %v3469
        %v3569 = vsel %vm3568, %v3461, %v3469
        %vm3570 = vcmp.lt.s32.totalorder %v3569, %v3477
        %v3571 = vsel %vm3570, %v3569, %v3477
        %v3572 = vsel %vm2190, %v3485, 2147483647
        %vm3573 = vcmp.lt.s32.totalorder %v3571, %v3572
        %v3574 = vsel %vm3573, %v3571, %v3572
        %v3575 = vrot.slane %v3574, 4
        %vm3576 = vcmp.lt.s32.totalorder %v3574, %v3575
        %v3577 = vsel %vm3576, %v3574, %v3575
        %v3578 = vrot.slane %v3577, 2
        %vm3579 = vcmp.lt.s32.totalorder %v3577, %v3578
        %v3580 = vsel %vm3579, %v3577, %v3578
        %v3581 = vrot.slane %v3580, 1
        %vm3582 = vcmp.lt.s32.totalorder %v3580, %v3581
        %v3583 = vsel %vm3582, %v3580, %v3581
        %vm3584 = vcmp.lt.s32.totalorder %v3462, %v3470
        %v3585 = vsel %vm3584, %v3462, %v3470
        %vm3586 = vcmp.lt.s32.totalorder %v3585, %v3478
        %v3587 = vsel %vm3586, %v3585, %v3478
        %v3588 = vsel %vm2190, %v3486, 2147483647
        %vm3589 = vcmp.lt.s32.totalorder %v3587, %v3588
        %v3590 = vsel %vm3589, %v3587, %v3588
        %v3591 = vrot.slane %v3590, 4
        %vm3592 = vcmp.lt.s32.totalorder %v3590, %v3591
        %v3593 = vsel %vm3592, %v3590, %v3591
        %v3594 = vrot.slane %v3593, 2
        %vm3595 = vcmp.lt.s32.totalorder %v3593, %v3594
        %v3596 = vsel %vm3595, %v3593, %v3594
        %v3597 = vrot.slane %v3596, 1
        %vm3598 = vcmp.lt.s32.totalorder %v3596, %v3597
        %v3599 = vsel %vm3598, %v3596, %v3597
        %vm3600 = vcmp.lt.s32.totalorder %v3463, %v3471
        %v3601 = vsel %vm3600, %v3463, %v3471
        %vm3602 = vcmp.lt.s32.totalorder %v3601, %v3479
        %v3603 = vsel %vm3602, %v3601, %v3479
        %v3604 = vsel %vm2190, %v3487, 2147483647
        %vm3605 = vcmp.lt.s32.totalorder %v3603, %v3604
        %v3606 = vsel %vm3605, %v3603, %v3604
        %v3607 = vrot.slane %v3606, 4
        %vm3608 = vcmp.lt.s32.totalorder %v3606, %v3607
        %v3609 = vsel %vm3608, %v3606, %v3607
        %v3610 = vrot.slane %v3609, 2
        %vm3611 = vcmp.lt.s32.totalorder %v3609, %v3610
        %v3612 = vsel %vm3611, %v3609, %v3610
        %v3613 = vrot.slane %v3612, 1
        %vm3614 = vcmp.lt.s32.totalorder %v3612, %v3613
        %v3615 = vsel %vm3614, %v3612, %v3613
        %vm3616 = vcmp.eq.s32.totalorder %v2486, %v3503
        %vm3617 = vcmp.eq.s32.totalorder %v2486, %v3519
        %vm3618 = vcmp.eq.s32.totalorder %v2486, %v3535
        %vm3619 = vcmp.eq.s32.totalorder %v2486, %v3551
        %vm3620 = vcmp.eq.s32.totalorder %v2486, %v3567
        %vm3621 = vcmp.eq.s32.totalorder %v2486, %v3583
        %vm3622 = vcmp.eq.s32.totalorder %v2486, %v3599
        %vm3623 = vcmp.eq.s32.totalorder %v2486, %v3615
        %vm3624 = vcmp.eq.s32.totalorder %v2487, %v3503
        %vm3625 = vcmp.eq.s32.totalorder %v2487, %v3519
        %vm3626 = vcmp.eq.s32.totalorder %v2487, %v3535
        %vm3627 = vcmp.eq.s32.totalorder %v2487, %v3551
        %vm3628 = vcmp.eq.s32.totalorder %v2487, %v3567
        %vm3629 = vcmp.eq.s32.totalorder %v2487, %v3583
        %vm3630 = vcmp.eq.s32.totalorder %v2487, %v3599
        %vm3631 = vcmp.eq.s32.totalorder %v2487, %v3615
        %vm3632 = vcmp.eq.s32.totalorder %v2488, %v3503
        %vm3633 = vcmp.eq.s32.totalorder %v2488, %v3519
        %vm3634 = vcmp.eq.s32.totalorder %v2488, %v3535
        %vm3635 = vcmp.eq.s32.totalorder %v2488, %v3551
        %vm3636 = vcmp.eq.s32.totalorder %v2488, %v3567
        %vm3637 = vcmp.eq.s32.totalorder %v2488, %v3583
        %vm3638 = vcmp.eq.s32.totalorder %v2488, %v3599
        %vm3639 = vcmp.eq.s32.totalorder %v2488, %v3615
        %vm3640 = vcmp.eq.s32.totalorder %v2489, %v3503
        %vm3641 = vcmp.eq.s32.totalorder %v2489, %v3519
        %vm3642 = vcmp.eq.s32.totalorder %v2489, %v3535
        %vm3643 = vcmp.eq.s32.totalorder %v2489, %v3551
        %vm3644 = vcmp.eq.s32.totalorder %v2489, %v3567
        %vm3645 = vcmp.eq.s32.totalorder %v2489, %v3583
        %vm3646 = vcmp.eq.s32.totalorder %v2489, %v3599
        %vm3647 = vcmp.eq.s32.totalorder %v2489, %v3615
        %v3648 = vsel %vm3616, -1.0, %v3251
        %v3649 = vsel %vm3617, -1.0, %v3252
        %v3650 = vsel %vm3618, -1.0, %v3253
        %v3651 = vsel %vm3619, -1.0, %v3254
        %v3652 = vsel %vm3620, -1.0, %v3255
        %v3653 = vsel %vm3621, -1.0, %v3256
        %v3654 = vsel %vm3622, -1.0, %v3257
        %v3655 = vsel %vm3623, -1.0, %v3258
        %v3656 = vsel %vm3624, -1.0, %v3259
        %v3657 = vsel %vm3625, -1.0, %v3260
        %v3658 = vsel %vm3626, -1.0, %v3261
        %v3659 = vsel %vm3627, -1.0, %v3262
        %v3660 = vsel %vm3628, -1.0, %v3263
        %v3661 = vsel %vm3629, -1.0, %v3264
        %v3662 = vsel %vm3630, -1.0, %v3265
        %v3663 = vsel %vm3631, -1.0, %v3266
        %v3664 = vsel %vm3632, -1.0, %v3267
        %v3665 = vsel %vm3633, -1.0, %v3268
        %v3666 = vsel %vm3634, -1.0, %v3269
        %v3667 = vsel %vm3635, -1.0, %v3270
        %v3668 = vsel %vm3636, -1.0, %v3271
        %v3669 = vsel %vm3637, -1.0, %v3272
        %v3670 = vsel %vm3638, -1.0, %v3273
        %v3671 = vsel %vm3639, -1.0, %v3274
        %v3672 = vsel %vm3640, -1.0, %v3275
        %v3673 = vsel %vm3641, -1.0, %v3276
        %v3674 = vsel %vm3642, -1.0, %v3277
        %v3675 = vsel %vm3643, -1.0, %v3278
        %v3676 = vsel %vm3644, -1.0, %v3279
        %v3677 = vsel %vm3645, -1.0, %v3280
        %v3678 = vsel %vm3646, -1.0, %v3281
        %v3679 = vsel %vm3647, -1.0, %v3282
        %v3680 = vmax.f32 %v3648, %v3656
        %v3681 = vmax.f32 %v3680, %v3664
        %v3682 = vsel %vm2190, %v3672, -inf
        %v3683 = vmax.f32 %v3681, %v3682
        %v3684 = vrot.slane %v3683, 4
        %v3685 = vmax.f32 %v3683, %v3684
        %v3686 = vrot.slane %v3685, 2
        %v3687 = vmax.f32 %v3685, %v3686
        %v3688 = vrot.slane %v3687, 1
        %v3689 = vmax.f32 %v3687, %v3688
        %v3690 = vmax.f32 %v3649, %v3657
        %v3691 = vmax.f32 %v3690, %v3665
        %v3692 = vsel %vm2190, %v3673, -inf
        %v3693 = vmax.f32 %v3691, %v3692
        %v3694 = vrot.slane %v3693, 4
        %v3695 = vmax.f32 %v3693, %v3694
        %v3696 = vrot.slane %v3695, 2
        %v3697 = vmax.f32 %v3695, %v3696
        %v3698 = vrot.slane %v3697, 1
        %v3699 = vmax.f32 %v3697, %v3698
        %v3700 = vmax.f32 %v3650, %v3658
        %v3701 = vmax.f32 %v3700, %v3666
        %v3702 = vsel %vm2190, %v3674, -inf
        %v3703 = vmax.f32 %v3701, %v3702
        %v3704 = vrot.slane %v3703, 4
        %v3705 = vmax.f32 %v3703, %v3704
        %v3706 = vrot.slane %v3705, 2
        %v3707 = vmax.f32 %v3705, %v3706
        %v3708 = vrot.slane %v3707, 1
        %v3709 = vmax.f32 %v3707, %v3708
        %v3710 = vmax.f32 %v3651, %v3659
        %v3711 = vmax.f32 %v3710, %v3667
        %v3712 = vsel %vm2190, %v3675, -inf
        %v3713 = vmax.f32 %v3711, %v3712
        %v3714 = vrot.slane %v3713, 4
        %v3715 = vmax.f32 %v3713, %v3714
        %v3716 = vrot.slane %v3715, 2
        %v3717 = vmax.f32 %v3715, %v3716
        %v3718 = vrot.slane %v3717, 1
        %v3719 = vmax.f32 %v3717, %v3718
        %v3720 = vmax.f32 %v3652, %v3660
        %v3721 = vmax.f32 %v3720, %v3668
        %v3722 = vsel %vm2190, %v3676, -inf
        %v3723 = vmax.f32 %v3721, %v3722
        %v3724 = vrot.slane %v3723, 4
        %v3725 = vmax.f32 %v3723, %v3724
        %v3726 = vrot.slane %v3725, 2
        %v3727 = vmax.f32 %v3725, %v3726
        %v3728 = vrot.slane %v3727, 1
        %v3729 = vmax.f32 %v3727, %v3728
        %v3730 = vmax.f32 %v3653, %v3661
        %v3731 = vmax.f32 %v3730, %v3669
        %v3732 = vsel %vm2190, %v3677, -inf
        %v3733 = vmax.f32 %v3731, %v3732
        %v3734 = vrot.slane %v3733, 4
        %v3735 = vmax.f32 %v3733, %v3734
        %v3736 = vrot.slane %v3735, 2
        %v3737 = vmax.f32 %v3735, %v3736
        %v3738 = vrot.slane %v3737, 1
        %v3739 = vmax.f32 %v3737, %v3738
        %v3740 = vmax.f32 %v3654, %v3662
        %v3741 = vmax.f32 %v3740, %v3670
        %v3742 = vsel %vm2190, %v3678, -inf
        %v3743 = vmax.f32 %v3741, %v3742
        %v3744 = vrot.slane %v3743, 4
        %v3745 = vmax.f32 %v3743, %v3744
        %v3746 = vrot.slane %v3745, 2
        %v3747 = vmax.f32 %v3745, %v3746
        %v3748 = vrot.slane %v3747, 1
        %v3749 = vmax.f32 %v3747, %v3748
        %v3750 = vmax.f32 %v3655, %v3663
        %v3751 = vmax.f32 %v3750, %v3671
        %v3752 = vsel %vm2190, %v3679, -inf
        %v3753 = vmax.f32 %v3751, %v3752
        %v3754 = vrot.slane %v3753, 4
        %v3755 = vmax.f32 %v3753, %v3754
        %v3756 = vrot.slane %v3755, 2
        %v3757 = vmax.f32 %v3755, %v3756
        %v3758 = vrot.slane %v3757, 1
        %v3759 = vmax.f32 %v3757, %v3758
        %v3768 = vcombine.low %v3689, %v3699
        %v3769 = vcombine.low %v3709, %v3719
        %v3770 = vcombine.low %v3729, %v3739
        %v3771 = vcombine.low %v3749, %v3759
        %v3773 = vunpack.c.l.s4 1966171168
        %v3774 = vunpack.c.0.s8 %v3773
        %v3775 = vlaneseq
        %v3776 = vshrl.u32 %v3775, 7
        %v3777 = vsub.s32 %v3774, %v3776
        %v3778 = vrot.slane %v3768, %v3777
        %v3780 = vunpack.c.l.s4 1966171168
        %v3781 = vunpack.c.0.s8 %v3780
        %v3782 = vlaneseq
        %v3783 = vshrl.u32 %v3782, 7
        %v3784 = vsub.s32 %v3781, %v3783
        %v3785 = vrot.slane %v3769, %v3784
        %v3787 = vunpack.c.l.s4 1966171168
        %v3788 = vunpack.c.0.s8 %v3787
        %v3789 = vlaneseq
        %v3790 = vshrl.u32 %v3789, 7
        %v3791 = vsub.s32 %v3788, %v3790
        %v3792 = vrot.slane %v3770, %v3791
        %v3794 = vunpack.c.l.s4 1966171168
        %v3795 = vunpack.c.0.s8 %v3794
        %v3796 = vlaneseq
        %v3797 = vshrl.u32 %v3796, 7
        %v3798 = vsub.s32 %v3795, %v3797
        %v3799 = vrot.slane %v3771, %v3798
        %v3800 = vcombine.low %v3778, %v3785
        %v3801 = vcombine.low %v3792, %v3799
        %v3803 = vunpack.c.l.s4 1966171168
        %v3804 = vunpack.c.0.s8 %v3803
        %v3805 = vlaneseq
        %v3806 = vshrl.u32 %v3805, 7
        %v3807 = vsub.s32 %v3804, %v3806
        %v3808 = vrot.slane %v3800, %v3807
        %v3810 = vunpack.c.l.s4 1966171168
        %v3811 = vunpack.c.0.s8 %v3810
        %v3812 = vlaneseq
        %v3813 = vshrl.u32 %v3812, 7
        %v3814 = vsub.s32 %v3811, %v3813
        %v3815 = vrot.slane %v3801, %v3814
        %v3816 = vcombine.low %v3808, %v3815
        %s3818 = scalar_lea.vmem [#allocation3], 3
        %3819 = vst [vmem:[%s3818] ss:$8 sm:$0xf] %v3816
        %3820 = vst [vmem:[%s3818] ss:$8 sm:$0xf0] %v3816
        %v3821 = vadd.f32 %v2499, %v2895
        %v3822 = vadd.f32 %v2509, %v2905
        %v3823 = vadd.f32 %v2519, %v2915
        %v3824 = vadd.f32 %v2529, %v2925
        %v3825 = vadd.f32 %v2539, %v2935
        %v3826 = vadd.f32 %v2549, %v2945
        %v3827 = vadd.f32 %v2559, %v2955
        %v3828 = vadd.f32 %v2569, %v2965
        %v3829 = vadd.f32 %v3821, %v3292
        %v3830 = vadd.f32 %v3822, %v3302
        %v3831 = vadd.f32 %v3823, %v3312
        %v3832 = vadd.f32 %v3824, %v3322
        %v3833 = vadd.f32 %v3825, %v3332
        %v3834 = vadd.f32 %v3826, %v3342
        %v3835 = vadd.f32 %v3827, %v3352
        %v3836 = vadd.f32 %v3828, %v3362
        %v3837 = vadd.f32 %v3829, %v3689
        %v3838 = vadd.f32 %v3830, %v3699
        %v3839 = vadd.f32 %v3831, %v3709
        %v3840 = vadd.f32 %v3832, %v3719
        %v3841 = vadd.f32 %v3833, %v3729
        %v3842 = vadd.f32 %v3834, %v3739
        %v3843 = vadd.f32 %v3835, %v3749
        %v3844 = vadd.f32 %v3836, %v3759
        %v3845 = vmul.f32 %v3837, 0.25
        %v3846 = vmul.f32 %v3838, 0.25
        %v3847 = vmul.f32 %v3839, 0.25
        %v3848 = vmul.f32 %v3840, 0.25
        %v3849 = vmul.f32 %v3841, 0.25
        %v3850 = vmul.f32 %v3842, 0.25
        %v3851 = vmul.f32 %v3843, 0.25
        %v3852 = vmul.f32 %v3844, 0.25
        %v3861 = vcombine.low %v3845, %v3846
        %v3862 = vcombine.low %v3847, %v3848
        %v3863 = vcombine.low %v3849, %v3850
        %v3864 = vcombine.low %v3851, %v3852
        %v3866 = vunpack.c.l.s4 1966171168
        %v3867 = vunpack.c.0.s8 %v3866
        %v3868 = vlaneseq
        %v3869 = vshrl.u32 %v3868, 7
        %v3870 = vsub.s32 %v3867, %v3869
        %v3871 = vrot.slane %v3861, %v3870
        %v3873 = vunpack.c.l.s4 1966171168
        %v3874 = vunpack.c.0.s8 %v3873
        %v3875 = vlaneseq
        %v3876 = vshrl.u32 %v3875, 7
        %v3877 = vsub.s32 %v3874, %v3876
        %v3878 = vrot.slane %v3862, %v3877
        %v3880 = vunpack.c.l.s4 1966171168
        %v3881 = vunpack.c.0.s8 %v3880
        %v3882 = vlaneseq
        %v3883 = vshrl.u32 %v3882, 7
        %v3884 = vsub.s32 %v3881, %v3883
        %v3885 = vrot.slane %v3863, %v3884
        %v3887 = vunpack.c.l.s4 1966171168
        %v3888 = vunpack.c.0.s8 %v3887
        %v3889 = vlaneseq
        %v3890 = vshrl.u32 %v3889, 7
        %v3891 = vsub.s32 %v3888, %v3890
        %v3892 = vrot.slane %v3864, %v3891
        %v3893 = vcombine.low %v3871, %v3878
        %v3894 = vcombine.low %v3885, %v3892
        %v3896 = vunpack.c.l.s4 1966171168
        %v3897 = vunpack.c.0.s8 %v3896
        %v3898 = vlaneseq
        %v3899 = vshrl.u32 %v3898, 7
        %v3900 = vsub.s32 %v3897, %v3899
        %v3901 = vrot.slane %v3893, %v3900
        %v3903 = vunpack.c.l.s4 1966171168
        %v3904 = vunpack.c.0.s8 %v3903
        %v3905 = vlaneseq
        %v3906 = vshrl.u32 %v3905, 7
        %v3907 = vsub.s32 %v3904, %v3906
        %v3908 = vrot.slane %v3894, %v3907
        %v3909 = vcombine.low %v3901, %v3908
        %s3911 = scalar_lea.vmem [#allocation3], 4
        %3912 = vst [vmem:[%s3911] ss:$8 sm:$0xf] %v3909
        %3913 = vst [vmem:[%s3911] ss:$8 sm:$0xf0] %v3909
        %v3914 = vld [vmem:[%s6] sm:$0xff]
        %v3915 = vld [vmem:[%s6 + $0x8] sm:$0xff]
        %v3916 = vld [vmem:[%s6 + $0x10] sm:$0xff]
        %v3917 = vld [vmem:[%s6 + $0x18] sm:$0xff]
        %v3918 = vld [vmem:[%s6 + $0x20] sm:$0xff]
        %v3919 = vld [vmem:[%s6 + $0x28] sm:$0xff]
        %v3920 = vld [vmem:[%s6 + $0x30] sm:$0xff]
        %v3921 = vld [vmem:[%s6 + $0x38] sm:$0xff]
        %v3922 = vld [vmem:[#allocation3] sm:$0x1f]
        %v3923 = vld [vmem:[#allocation3 + $0x8] sm:$0x1f]
        %v3924 = vld [vmem:[#allocation3 + $0x10] sm:$0x1f]
        %v3925 = vld [vmem:[#allocation3 + $0x18] sm:$0x1f]
        %v3926 = vld [vmem:[#allocation3 + $0x20] sm:$0x1f]
        %v3927 = vld [vmem:[#allocation3 + $0x28] sm:$0x1f]
        %v3928 = vld [vmem:[#allocation3 + $0x30] sm:$0x1f]
        %v3929 = vld [vmem:[#allocation3 + $0x38] sm:$0x1f]
        %v3930 = vld [vmem:[%s7] sm:$0xff]
        %v3931 = vld [vmem:[%s7 + $0x8] sm:$0xff]
        %v3932 = vld [vmem:[%s7 + $0x10] sm:$0xff]
        %v3933 = vld [vmem:[%s7 + $0x18] sm:$0xff]
        %v3934 = vld [vmem:[%s7 + $0x20] sm:$0xff]
        %v3935 = vld [vmem:[%s7 + $0x28] sm:$0xff]
        %v3936 = vld [vmem:[%s7 + $0x30] sm:$0xff]
        %v3937 = vld [vmem:[%s7 + $0x38] sm:$0xff]
        %3939 = vset.pattern.permute.xlu0 0
        %3940 = vperm.xlu0 %3939, %v3930
        %v3941 = vpop.permute.xlu0 %3940
        %3944 = vset.pattern.permute.xlu0 0
        %3945 = vperm.xlu0 %3944, %v3931
        %v3946 = vpop.permute.xlu0 %3945
        %3949 = vset.pattern.permute.xlu0 0
        %3950 = vperm.xlu0 %3949, %v3932
        %v3951 = vpop.permute.xlu0 %3950
        %3954 = vset.pattern.permute.xlu0 0
        %3955 = vperm.xlu0 %3954, %v3933
        %v3956 = vpop.permute.xlu0 %3955
        %3959 = vset.pattern.permute.xlu0 0
        %3960 = vperm.xlu0 %3959, %v3934
        %v3961 = vpop.permute.xlu0 %3960
        %3964 = vset.pattern.permute.xlu0 0
        %3965 = vperm.xlu0 %3964, %v3935
        %v3966 = vpop.permute.xlu0 %3965
        %3969 = vset.pattern.permute.xlu0 0
        %3970 = vperm.xlu0 %3969, %v3936
        %v3971 = vpop.permute.xlu0 %3970
        %3974 = vset.pattern.permute.xlu0 0
        %3975 = vperm.xlu0 %3974, %v3937
        %v3976 = vpop.permute.xlu0 %3975
        %vm3978 = vcmask 39936
        %v3980 = vsel %vm3978, %v3914, 0
        %v3983 = vsel %vm3978, %v3915, 0
        %v3986 = vsel %vm3978, %v3916, 0
        %v3989 = vsel %vm3978, %v3917, 0
        %v3992 = vsel %vm3978, %v3918, 0
        %v3995 = vsel %vm3978, %v3919, 0
        %v3998 = vsel %vm3978, %v3920, 0
        %v4001 = vsel %vm3978, %v3921, 0
        %vm4003 = vcmask 1044480
        %v4005 = vsel %vm4003, %v3922, 0
        %v4008 = vsel %vm4003, %v3923, 0
        %v4011 = vsel %vm4003, %v3924, 0
        %v4014 = vsel %vm4003, %v3925, 0
        %v4017 = vsel %vm4003, %v3926, 0
        %v4020 = vsel %vm4003, %v3927, 0
        %v4023 = vsel %vm4003, %v3928, 0
        %v4026 = vsel %vm4003, %v3929, 0
        %4028 = vmatprep.subr.mxu0 %v4008
        %4029 = vmatpush1.msra.mxu0 %v4005
        %4030 = vmatprep.subr.mxu0 0.0
        %4031 = vmatpush1.msra.mxu0 0.0
        %4032 = vmatprep.subr.mxu0 0.0
        %4033 = vmatpush1.msra.mxu0 0.0
        %4034 = vmatprep.subr.mxu0 0.0
        %4035 = vmatpush1.msra.mxu0 0.0
        %4036 = vmatprep.subr.mxu0 0.0
        %4037 = vmatpush1.msra.mxu0 0.0
        %4038 = vmatprep.subr.mxu0 0.0
        %4039 = vmatpush1.msra.mxu0 0.0
        %4040 = vmatprep.subr.mxu0 0.0
        %4041 = vmatpush1.msra.mxu0 0.0
        %4042 = vmatprep.subr.mxu0 0.0
        %4043 = vmatpush1.msra.mxu0 0.0
        %4044 = vmatprep.subr.mxu0 0.0
        %4045 = vmatpush1.msra.mxu0 0.0
        %4046 = vmatprep.subr.mxu0 0.0
        %4047 = vmatpush1.msra.mxu0 0.0
        %4048 = vmatprep.subr.mxu0 0.0
        %4049 = vmatpush1.msra.mxu0 0.0
        %4050 = vmatprep.subr.mxu0 0.0
        %4051 = vmatpush1.msra.mxu0 0.0
        %4052 = vmatprep.subr.mxu0 0.0
        %4053 = vmatpush1.msra.mxu0 0.0
        %4054 = vmatprep.subr.mxu0 0.0
        %4055 = vmatpush1.msra.mxu0 0.0
        %4056 = vmatprep.subr.mxu0 0.0
        %4057 = vmatpush1.msra.mxu0 0.0
        %4058 = vmatprep.subr.mxu0 0.0
        %4059 = vmatpush1.msra.mxu0 0.0
        %4060 = vmatprep.subr.mxu0 0.0
        %4061 = vmatpush1.msra.mxu0 0.0
        %4062 = vmatprep.subr.mxu0 0.0
        %4063 = vmatpush1.msra.mxu0 0.0
        %4064 = vmatprep.subr.mxu0 0.0
        %4065 = vmatpush1.msra.mxu0 0.0
        %4066 = vmatprep.subr.mxu0 0.0
        %4067 = vmatpush1.msra.mxu0 0.0
        %4068 = vmatprep.subr.mxu0 0.0
        %4069 = vmatpush1.msra.mxu0 0.0
        %4070 = vmatprep.subr.mxu0 0.0
        %4071 = vmatpush1.msra.mxu0 0.0
        %4072 = vmatprep.subr.mxu0 0.0
        %4073 = vmatpush1.msra.mxu0 0.0
        %4074 = vmatprep.subr.mxu0 0.0
        %4075 = vmatpush1.msra.mxu0 0.0
        %4076 = vmatprep.subr.mxu0 0.0
        %4077 = vmatpush1.msra.mxu0 0.0
        %4078 = vmatprep.subr.mxu0 0.0
        %4079 = vmatpush1.msra.mxu0 0.0
        %4080 = vmatprep.subr.mxu0 0.0
        %4081 = vmatpush1.msra.mxu0 0.0
        %4082 = vmatprep.subr.mxu0 0.0
        %4083 = vmatpush1.msra.mxu0 0.0
        %4084 = vmatprep.subr.mxu0 0.0
        %4085 = vmatpush1.msra.mxu0 0.0
        %4086 = vmatprep.subr.mxu0 0.0
        %4087 = vmatpush1.msra.mxu0 0.0
        %4088 = vmatprep.subr.mxu0 0.0
        %4089 = vmatpush1.msra.mxu0 0.0
        %4090 = vmatprep.subr.mxu0 0.0
        %4091 = vmatpush1.msra.mxu0 0.0
        %4092 = vmatprep.mubr.f32.mxu0 0.0
        %4093 = vmatmul.mubr.f32.gmra.mrb[0].mxu0 %v3980
        %v4094 = vpop.f32.mrb[0].mxu0
        %v4095 = vadd.f32 %v3941, %v4094
        %v4096 = vpop.f32.mrb[0].mxu0
        %v4097 = vadd.f32 %v3941, %v4096
        %4098 = vmatprep.mubr.f32.mxu0 0.0
        %4099 = vmatmul.mubr.f32.gmra.mrb[0].mxu0 %v3983
        %v4100 = vpop.f32.mrb[0].mxu0
        %v4101 = vadd.f32 %v3946, %v4100
        %v4102 = vpop.f32.mrb[0].mxu0
        %v4103 = vadd.f32 %v3946, %v4102
        %4104 = vmatprep.mubr.f32.mxu0 0.0
        %4105 = vmatmul.mubr.f32.gmra.mrb[0].mxu0 %v3986
        %v4106 = vpop.f32.mrb[0].mxu0
        %v4107 = vadd.f32 %v3951, %v4106
        %v4108 = vpop.f32.mrb[0].mxu0
        %v4109 = vadd.f32 %v3951, %v4108
        %4110 = vmatprep.mubr.f32.mxu0 0.0
        %4111 = vmatmul.mubr.f32.gmra.mrb[0].mxu0 %v3989
        %v4112 = vpop.f32.mrb[0].mxu0
        %v4113 = vadd.f32 %v3956, %v4112
        %v4114 = vpop.f32.mrb[0].mxu0
        %v4115 = vadd.f32 %v3956, %v4114
        %4116 = vmatprep.mubr.f32.mxu0 0.0
        %4117 = vmatmul.mubr.f32.gmra.mrb[0].mxu0 %v3992
        %v4118 = vpop.f32.mrb[0].mxu0
        %v4119 = vadd.f32 %v3961, %v4118
        %v4120 = vpop.f32.mrb[0].mxu0
        %v4121 = vadd.f32 %v3961, %v4120
        %4122 = vmatprep.mubr.f32.mxu0 0.0
        %4123 = vmatmul.mubr.f32.gmra.mrb[0].mxu0 %v3995
        %v4124 = vpop.f32.mrb[0].mxu0
        %v4125 = vadd.f32 %v3966, %v4124
        %v4126 = vpop.f32.mrb[0].mxu0
        %v4127 = vadd.f32 %v3966, %v4126
        %4128 = vmatprep.mubr.f32.mxu0 0.0
        %4129 = vmatmul.mubr.f32.gmra.mrb[0].mxu0 %v3998
        %v4130 = vpop.f32.mrb[0].mxu0
        %v4131 = vadd.f32 %v3971, %v4130
        %v4132 = vpop.f32.mrb[0].mxu0
        %v4133 = vadd.f32 %v3971, %v4132
        %4134 = vmatprep.mubr.f32.mxu0 0.0
        %4135 = vmatmul.mubr.f32.gmra.mrb[0].mxu0 %v4001
        %v4136 = vpop.f32.mrb[0].mxu0
        %v4137 = vadd.f32 %v3976, %v4136
        %v4138 = vpop.f32.mrb[0].mxu0
        %v4139 = vadd.f32 %v3976, %v4138
        %4140 = vdwg.mxu0
        %4141 = vmatprep.subr.mxu0 %v4014
        %4142 = vmatpush1.msra.mxu0 %v4011
        %4143 = vmatprep.subr.mxu0 0.0
        %4144 = vmatpush1.msra.mxu0 0.0
        %4145 = vmatprep.subr.mxu0 0.0
        %4146 = vmatpush1.msra.mxu0 0.0
        %4147 = vmatprep.subr.mxu0 0.0
        %4148 = vmatpush1.msra.mxu0 0.0
        %4149 = vmatprep.subr.mxu0 0.0
        %4150 = vmatpush1.msra.mxu0 0.0
        %4151 = vmatprep.subr.mxu0 0.0
        %4152 = vmatpush1.msra.mxu0 0.0
        %4153 = vmatprep.subr.mxu0 0.0
        %4154 = vmatpush1.msra.mxu0 0.0
        %4155 = vmatprep.subr.mxu0 0.0
        %4156 = vmatpush1.msra.mxu0 0.0
        %4157 = vmatprep.subr.mxu0 0.0
        %4158 = vmatpush1.msra.mxu0 0.0
        %4159 = vmatprep.subr.mxu0 0.0
        %4160 = vmatpush1.msra.mxu0 0.0
        %4161 = vmatprep.subr.mxu0 0.0
        %4162 = vmatpush1.msra.mxu0 0.0
        %4163 = vmatprep.subr.mxu0 0.0
        %4164 = vmatpush1.msra.mxu0 0.0
        %4165 = vmatprep.subr.mxu0 0.0
        %4166 = vmatpush1.msra.mxu0 0.0
        %4167 = vmatprep.subr.mxu0 0.0
        %4168 = vmatpush1.msra.mxu0 0.0
        %4169 = vmatprep.subr.mxu0 0.0
        %4170 = vmatpush1.msra.mxu0 0.0
        %4171 = vmatprep.subr.mxu0 0.0
        %4172 = vmatpush1.msra.mxu0 0.0
        %4173 = vmatprep.subr.mxu0 0.0
        %4174 = vmatpush1.msra.mxu0 0.0
        %4175 = vmatprep.subr.mxu0 0.0
        %4176 = vmatpush1.msra.mxu0 0.0
        %4177 = vmatprep.subr.mxu0 0.0
        %4178 = vmatpush1.msra.mxu0 0.0
        %4179 = vmatprep.subr.mxu0 0.0
        %4180 = vmatpush1.msra.mxu0 0.0
        %4181 = vmatprep.subr.mxu0 0.0
        %4182 = vmatpush1.msra.mxu0 0.0
        %4183 = vmatprep.subr.mxu0 0.0
        %4184 = vmatpush1.msra.mxu0 0.0
        %4185 = vmatprep.subr.mxu0 0.0
        %4186 = vmatpush1.msra.mxu0 0.0
        %4187 = vmatprep.subr.mxu0 0.0
        %4188 = vmatpush1.msra.mxu0 0.0
        %4189 = vmatprep.subr.mxu0 0.0
        %4190 = vmatpush1.msra.mxu0 0.0
        %4191 = vmatprep.subr.mxu0 0.0
        %4192 = vmatpush1.msra.mxu0 0.0
        %4193 = vmatprep.subr.mxu0 0.0
        %4194 = vmatpush1.msra.mxu0 0.0
        %4195 = vmatprep.subr.mxu0 0.0
        %4196 = vmatpush1.msra.mxu0 0.0
        %4197 = vmatprep.subr.mxu0 0.0
        %4198 = vmatpush1.msra.mxu0 0.0
        %4199 = vmatprep.subr.mxu0 0.0
        %4200 = vmatpush1.msra.mxu0 0.0
        %4201 = vmatprep.subr.mxu0 0.0
        %4202 = vmatpush1.msra.mxu0 0.0
        %4203 = vmatprep.subr.mxu0 0.0
        %4204 = vmatpush1.msra.mxu0 0.0
        %4205 = vmatprep.mubr.f32.mxu0 0.0
        %4206 = vmatmul.mubr.f32.gmra.mrb[0].mxu0 %v3980
        %v4207 = vpop.f32.mrb[0].mxu0
        %v4208 = vadd.f32 %v3941, %v4207
        %v4209 = vpop.f32.mrb[0].mxu0
        %v4210 = vadd.f32 %v3941, %v4209
        %4211 = vmatprep.mubr.f32.mxu0 0.0
        %4212 = vmatmul.mubr.f32.gmra.mrb[0].mxu0 %v3983
        %v4213 = vpop.f32.mrb[0].mxu0
        %v4214 = vadd.f32 %v3946, %v4213
        %v4215 = vpop.f32.mrb[0].mxu0
        %v4216 = vadd.f32 %v3946, %v4215
        %4217 = vmatprep.mubr.f32.mxu0 0.0
        %4218 = vmatmul.mubr.f32.gmra.mrb[0].mxu0 %v3986
        %v4219 = vpop.f32.mrb[0].mxu0
        %v4220 = vadd.f32 %v3951, %v4219
        %v4221 = vpop.f32.mrb[0].mxu0
        %v4222 = vadd.f32 %v3951, %v4221
        %4223 = vmatprep.mubr.f32.mxu0 0.0
        %4224 = vmatmul.mubr.f32.gmra.mrb[0].mxu0 %v3989
        %v4225 = vpop.f32.mrb[0].mxu0
        %v4226 = vadd.f32 %v3956, %v4225
        %v4227 = vpop.f32.mrb[0].mxu0
        %v4228 = vadd.f32 %v3956, %v4227
        %4229 = vmatprep.mubr.f32.mxu0 0.0
        %4230 = vmatmul.mubr.f32.gmra.mrb[0].mxu0 %v3992
        %v4231 = vpop.f32.mrb[0].mxu0
        %v4232 = vadd.f32 %v3961, %v4231
        %v4233 = vpop.f32.mrb[0].mxu0
        %v4234 = vadd.f32 %v3961, %v4233
        %4235 = vmatprep.mubr.f32.mxu0 0.0
        %4236 = vmatmul.mubr.f32.gmra.mrb[0].mxu0 %v3995
        %v4237 = vpop.f32.mrb[0].mxu0
        %v4238 = vadd.f32 %v3966, %v4237
        %v4239 = vpop.f32.mrb[0].mxu0
        %v4240 = vadd.f32 %v3966, %v4239
        %4241 = vmatprep.mubr.f32.mxu0 0.0
        %4242 = vmatmul.mubr.f32.gmra.mrb[0].mxu0 %v3998
        %v4243 = vpop.f32.mrb[0].mxu0
        %v4244 = vadd.f32 %v3971, %v4243
        %v4245 = vpop.f32.mrb[0].mxu0
        %v4246 = vadd.f32 %v3971, %v4245
        %4247 = vmatprep.mubr.f32.mxu0 0.0
        %4248 = vmatmul.mubr.f32.gmra.mrb[0].mxu0 %v4001
        %v4249 = vpop.f32.mrb[0].mxu0
        %v4250 = vadd.f32 %v3976, %v4249
        %v4251 = vpop.f32.mrb[0].mxu0
        %v4252 = vadd.f32 %v3976, %v4251
        %4253 = vdwg.mxu0
        %4254 = vmatprep.subr.mxu0 %v4020
        %4255 = vmatpush1.msra.mxu0 %v4017
        %4256 = vmatprep.subr.mxu0 0.0
        %4257 = vmatpush1.msra.mxu0 0.0
        %4258 = vmatprep.subr.mxu0 0.0
        %4259 = vmatpush1.msra.mxu0 0.0
        %4260 = vmatprep.subr.mxu0 0.0
        %4261 = vmatpush1.msra.mxu0 0.0
        %4262 = vmatprep.subr.mxu0 0.0
        %4263 = vmatpush1.msra.mxu0 0.0
        %4264 = vmatprep.subr.mxu0 0.0
        %4265 = vmatpush1.msra.mxu0 0.0
        %4266 = vmatprep.subr.mxu0 0.0
        %4267 = vmatpush1.msra.mxu0 0.0
        %4268 = vmatprep.subr.mxu0 0.0
        %4269 = vmatpush1.msra.mxu0 0.0
        %4270 = vmatprep.subr.mxu0 0.0
        %4271 = vmatpush1.msra.mxu0 0.0
        %4272 = vmatprep.subr.mxu0 0.0
        %4273 = vmatpush1.msra.mxu0 0.0
        %4274 = vmatprep.subr.mxu0 0.0
        %4275 = vmatpush1.msra.mxu0 0.0
        %4276 = vmatprep.subr.mxu0 0.0
        %4277 = vmatpush1.msra.mxu0 0.0
        %4278 = vmatprep.subr.mxu0 0.0
        %4279 = vmatpush1.msra.mxu0 0.0
        %4280 = vmatprep.subr.mxu0 0.0
        %4281 = vmatpush1.msra.mxu0 0.0
        %4282 = vmatprep.subr.mxu0 0.0
        %4283 = vmatpush1.msra.mxu0 0.0
        %4284 = vmatprep.subr.mxu0 0.0
        %4285 = vmatpush1.msra.mxu0 0.0
        %4286 = vmatprep.subr.mxu0 0.0
        %4287 = vmatpush1.msra.mxu0 0.0
        %4288 = vmatprep.subr.mxu0 0.0
        %4289 = vmatpush1.msra.mxu0 0.0
        %4290 = vmatprep.subr.mxu0 0.0
        %4291 = vmatpush1.msra.mxu0 0.0
        %4292 = vmatprep.subr.mxu0 0.0
        %4293 = vmatpush1.msra.mxu0 0.0
        %4294 = vmatprep.subr.mxu0 0.0
        %4295 = vmatpush1.msra.mxu0 0.0
        %4296 = vmatprep.subr.mxu0 0.0
        %4297 = vmatpush1.msra.mxu0 0.0
        %4298 = vmatprep.subr.mxu0 0.0
        %4299 = vmatpush1.msra.mxu0 0.0
        %4300 = vmatprep.subr.mxu0 0.0
        %4301 = vmatpush1.msra.mxu0 0.0
        %4302 = vmatprep.subr.mxu0 0.0
        %4303 = vmatpush1.msra.mxu0 0.0
        %4304 = vmatprep.subr.mxu0 0.0
        %4305 = vmatpush1.msra.mxu0 0.0
        %4306 = vmatprep.subr.mxu0 0.0
        %4307 = vmatpush1.msra.mxu0 0.0
        %4308 = vmatprep.subr.mxu0 0.0
        %4309 = vmatpush1.msra.mxu0 0.0
        %4310 = vmatprep.subr.mxu0 0.0
        %4311 = vmatpush1.msra.mxu0 0.0
        %4312 = vmatprep.subr.mxu0 0.0
        %4313 = vmatpush1.msra.mxu0 0.0
        %4314 = vmatprep.subr.mxu0 0.0
        %4315 = vmatpush1.msra.mxu0 0.0
        %4316 = vmatprep.subr.mxu0 0.0
        %4317 = vmatpush1.msra.mxu0 0.0
        %4318 = vmatprep.mubr.f32.mxu0 0.0
        %4319 = vmatmul.mubr.f32.gmra.mrb[0].mxu0 %v3980
        %v4320 = vpop.f32.mrb[0].mxu0
        %v4321 = vadd.f32 %v3941, %v4320
        %v4322 = vpop.f32.mrb[0].mxu0
        %v4323 = vadd.f32 %v3941, %v4322
        %4324 = vmatprep.mubr.f32.mxu0 0.0
        %4325 = vmatmul.mubr.f32.gmra.mrb[0].mxu0 %v3983
        %v4326 = vpop.f32.mrb[0].mxu0
        %v4327 = vadd.f32 %v3946, %v4326
        %v4328 = vpop.f32.mrb[0].mxu0
        %v4329 = vadd.f32 %v3946, %v4328
        %4330 = vmatprep.mubr.f32.mxu0 0.0
        %4331 = vmatmul.mubr.f32.gmra.mrb[0].mxu0 %v3986
        %v4332 = vpop.f32.mrb[0].mxu0
        %v4333 = vadd.f32 %v3951, %v4332
        %v4334 = vpop.f32.mrb[0].mxu0
        %v4335 = vadd.f32 %v3951, %v4334
        %4336 = vmatprep.mubr.f32.mxu0 0.0
        %4337 = vmatmul.mubr.f32.gmra.mrb[0].mxu0 %v3989
        %v4338 = vpop.f32.mrb[0].mxu0
        %v4339 = vadd.f32 %v3956, %v4338
        %v4340 = vpop.f32.mrb[0].mxu0
        %v4341 = vadd.f32 %v3956, %v4340
        %4342 = vmatprep.mubr.f32.mxu0 0.0
        %4343 = vmatmul.mubr.f32.gmra.mrb[0].mxu0 %v3992
        %v4344 = vpop.f32.mrb[0].mxu0
        %v4345 = vadd.f32 %v3961, %v4344
        %v4346 = vpop.f32.mrb[0].mxu0
        %v4347 = vadd.f32 %v3961, %v4346
        %4348 = vmatprep.mubr.f32.mxu0 0.0
        %4349 = vmatmul.mubr.f32.gmra.mrb[0].mxu0 %v3995
        %v4350 = vpop.f32.mrb[0].mxu0
        %v4351 = vadd.f32 %v3966, %v4350
        %v4352 = vpop.f32.mrb[0].mxu0
        %v4353 = vadd.f32 %v3966, %v4352
        %4354 = vmatprep.mubr.f32.mxu0 0.0
        %4355 = vmatmul.mubr.f32.gmra.mrb[0].mxu0 %v3998
        %v4356 = vpop.f32.mrb[0].mxu0
        %v4357 = vadd.f32 %v3971, %v4356
        %v4358 = vpop.f32.mrb[0].mxu0
        %v4359 = vadd.f32 %v3971, %v4358
        %4360 = vmatprep.mubr.f32.mxu0 0.0
        %4361 = vmatmul.mubr.f32.gmra.mrb[0].mxu0 %v4001
        %v4362 = vpop.f32.mrb[0].mxu0
        %v4363 = vadd.f32 %v3976, %v4362
        %v4364 = vpop.f32.mrb[0].mxu0
        %v4365 = vadd.f32 %v3976, %v4364
        %4366 = vdwg.mxu0
        %4367 = vmatprep.subr.mxu0 %v4026
        %4368 = vmatpush1.msra.mxu0 %v4023
        %4369 = vmatprep.subr.mxu0 0.0
        %4370 = vmatpush1.msra.mxu0 0.0
        %4371 = vmatprep.subr.mxu0 0.0
        %4372 = vmatpush1.msra.mxu0 0.0
        %4373 = vmatprep.subr.mxu0 0.0
        %4374 = vmatpush1.msra.mxu0 0.0
        %4375 = vmatprep.subr.mxu0 0.0
        %4376 = vmatpush1.msra.mxu0 0.0
        %4377 = vmatprep.subr.mxu0 0.0
        %4378 = vmatpush1.msra.mxu0 0.0
        %4379 = vmatprep.subr.mxu0 0.0
        %4380 = vmatpush1.msra.mxu0 0.0
        %4381 = vmatprep.subr.mxu0 0.0
        %4382 = vmatpush1.msra.mxu0 0.0
        %4383 = vmatprep.subr.mxu0 0.0
        %4384 = vmatpush1.msra.mxu0 0.0
        %4385 = vmatprep.subr.mxu0 0.0
        %4386 = vmatpush1.msra.mxu0 0.0
        %4387 = vmatprep.subr.mxu0 0.0
        %4388 = vmatpush1.msra.mxu0 0.0
        %4389 = vmatprep.subr.mxu0 0.0
        %4390 = vmatpush1.msra.mxu0 0.0
        %4391 = vmatprep.subr.mxu0 0.0
        %4392 = vmatpush1.msra.mxu0 0.0
        %4393 = vmatprep.subr.mxu0 0.0
        %4394 = vmatpush1.msra.mxu0 0.0
        %4395 = vmatprep.subr.mxu0 0.0
        %4396 = vmatpush1.msra.mxu0 0.0
        %4397 = vmatprep.subr.mxu0 0.0
        %4398 = vmatpush1.msra.mxu0 0.0
        %4399 = vmatprep.subr.mxu0 0.0
        %4400 = vmatpush1.msra.mxu0 0.0
        %4401 = vmatprep.subr.mxu0 0.0
        %4402 = vmatpush1.msra.mxu0 0.0
        %4403 = vmatprep.subr.mxu0 0.0
        %4404 = vmatpush1.msra.mxu0 0.0
        %4405 = vmatprep.subr.mxu0 0.0
        %4406 = vmatpush1.msra.mxu0 0.0
        %4407 = vmatprep.subr.mxu0 0.0
        %4408 = vmatpush1.msra.mxu0 0.0
        %4409 = vmatprep.subr.mxu0 0.0
        %4410 = vmatpush1.msra.mxu0 0.0
        %4411 = vmatprep.subr.mxu0 0.0
        %4412 = vmatpush1.msra.mxu0 0.0
        %4413 = vmatprep.subr.mxu0 0.0
        %4414 = vmatpush1.msra.mxu0 0.0
        %4415 = vmatprep.subr.mxu0 0.0
        %4416 = vmatpush1.msra.mxu0 0.0
        %4417 = vmatprep.subr.mxu0 0.0
        %4418 = vmatpush1.msra.mxu0 0.0
        %4419 = vmatprep.subr.mxu0 0.0
        %4420 = vmatpush1.msra.mxu0 0.0
        %4421 = vmatprep.subr.mxu0 0.0
        %4422 = vmatpush1.msra.mxu0 0.0
        %4423 = vmatprep.subr.mxu0 0.0
        %4424 = vmatpush1.msra.mxu0 0.0
        %4425 = vmatprep.subr.mxu0 0.0
        %4426 = vmatpush1.msra.mxu0 0.0
        %4427 = vmatprep.subr.mxu0 0.0
        %4428 = vmatpush1.msra.mxu0 0.0
        %4429 = vmatprep.subr.mxu0 0.0
        %4430 = vmatpush1.msra.mxu0 0.0
        %4431 = vmatprep.mubr.f32.mxu0 0.0
        %4432 = vmatmul.mubr.f32.gmra.mrb[0].mxu0 %v3980
        %v4433 = vpop.f32.mrb[0].mxu0
        %v4434 = vadd.f32 %v3941, %v4433
        %v4435 = vpop.f32.mrb[0].mxu0
        %v4436 = vadd.f32 %v3941, %v4435
        %4437 = vmatprep.mubr.f32.mxu0 0.0
        %4438 = vmatmul.mubr.f32.gmra.mrb[0].mxu0 %v3983
        %v4439 = vpop.f32.mrb[0].mxu0
        %v4440 = vadd.f32 %v3946, %v4439
        %v4441 = vpop.f32.mrb[0].mxu0
        %v4442 = vadd.f32 %v3946, %v4441
        %4443 = vmatprep.mubr.f32.mxu0 0.0
        %4444 = vmatmul.mubr.f32.gmra.mrb[0].mxu0 %v3986
        %v4445 = vpop.f32.mrb[0].mxu0
        %v4446 = vadd.f32 %v3951, %v4445
        %v4447 = vpop.f32.mrb[0].mxu0
        %v4448 = vadd.f32 %v3951, %v4447
        %4449 = vmatprep.mubr.f32.mxu0 0.0
        %4450 = vmatmul.mubr.f32.gmra.mrb[0].mxu0 %v3989
        %v4451 = vpop.f32.mrb[0].mxu0
        %v4452 = vadd.f32 %v3956, %v4451
        %v4453 = vpop.f32.mrb[0].mxu0
        %v4454 = vadd.f32 %v3956, %v4453
        %4455 = vmatprep.mubr.f32.mxu0 0.0
        %4456 = vmatmul.mubr.f32.gmra.mrb[0].mxu0 %v3992
        %v4457 = vpop.f32.mrb[0].mxu0
        %v4458 = vadd.f32 %v3961, %v4457
        %v4459 = vpop.f32.mrb[0].mxu0
        %v4460 = vadd.f32 %v3961, %v4459
        %4461 = vmatprep.mubr.f32.mxu0 0.0
        %4462 = vmatmul.mubr.f32.gmra.mrb[0].mxu0 %v3995
        %v4463 = vpop.f32.mrb[0].mxu0
        %v4464 = vadd.f32 %v3966, %v4463
        %v4465 = vpop.f32.mrb[0].mxu0
        %v4466 = vadd.f32 %v3966, %v4465
        %4467 = vmatprep.mubr.f32.mxu0 0.0
        %4468 = vmatmul.mubr.f32.gmra.mrb[0].mxu0 %v3998
        %v4469 = vpop.f32.mrb[0].mxu0
        %v4470 = vadd.f32 %v3971, %v4469
        %v4471 = vpop.f32.mrb[0].mxu0
        %v4472 = vadd.f32 %v3971, %v4471
        %4473 = vmatprep.mubr.f32.mxu0 0.0
        %4474 = vmatmul.mubr.f32.gmra.mrb[0].mxu0 %v4001
        %v4475 = vpop.f32.mrb[0].mxu0
        %v4476 = vadd.f32 %v3976, %v4475
        %v4477 = vpop.f32.mrb[0].mxu0
        %v4478 = vadd.f32 %v3976, %v4477
        %4479 = vdwg.mxu0
        %v4480 = vmax.f32 %v4095, 0.0
        %v4481 = vmax.f32 %v4097, 0.0
        %v4482 = vmax.f32 %v4208, 0.0
        %v4483 = vmax.f32 %v4210, 0.0
        %v4484 = vmax.f32 %v4321, 0.0
        %v4485 = vmax.f32 %v4323, 0.0
        %v4486 = vmax.f32 %v4434, 0.0
        %v4487 = vmax.f32 %v4436, 0.0
        %v4488 = vmax.f32 %v4101, 0.0
        %v4489 = vmax.f32 %v4103, 0.0
        %v4490 = vmax.f32 %v4214, 0.0
        %v4491 = vmax.f32 %v4216, 0.0
        %v4492 = vmax.f32 %v4327, 0.0
        %v4493 = vmax.f32 %v4329, 0.0
        %v4494 = vmax.f32 %v4440, 0.0
        %v4495 = vmax.f32 %v4442, 0.0
        %v4496 = vmax.f32 %v4107, 0.0
        %v4497 = vmax.f32 %v4109, 0.0
        %v4498 = vmax.f32 %v4220, 0.0
        %v4499 = vmax.f32 %v4222, 0.0
        %v4500 = vmax.f32 %v4333, 0.0
        %v4501 = vmax.f32 %v4335, 0.0
        %v4502 = vmax.f32 %v4446, 0.0
        %v4503 = vmax.f32 %v4448, 0.0
        %v4504 = vmax.f32 %v4113, 0.0
        %v4505 = vmax.f32 %v4115, 0.0
        %v4506 = vmax.f32 %v4226, 0.0
        %v4507 = vmax.f32 %v4228, 0.0
        %v4508 = vmax.f32 %v4339, 0.0
        %v4509 = vmax.f32 %v4341, 0.0
        %v4510 = vmax.f32 %v4452, 0.0
        %v4511 = vmax.f32 %v4454, 0.0
        %v4512 = vmax.f32 %v4119, 0.0
        %v4513 = vmax.f32 %v4121, 0.0
        %v4514 = vmax.f32 %v4232, 0.0
        %v4515 = vmax.f32 %v4234, 0.0
        %v4516 = vmax.f32 %v4345, 0.0
        %v4517 = vmax.f32 %v4347, 0.0
        %v4518 = vmax.f32 %v4458, 0.0
        %v4519 = vmax.f32 %v4460, 0.0
        %v4520 = vmax.f32 %v4125, 0.0
        %v4521 = vmax.f32 %v4127, 0.0
        %v4522 = vmax.f32 %v4238, 0.0
        %v4523 = vmax.f32 %v4240, 0.0
        %v4524 = vmax.f32 %v4351, 0.0
        %v4525 = vmax.f32 %v4353, 0.0
        %v4526 = vmax.f32 %v4464, 0.0
        %v4527 = vmax.f32 %v4466, 0.0
        %v4528 = vmax.f32 %v4131, 0.0
        %v4529 = vmax.f32 %v4133, 0.0
        %v4530 = vmax.f32 %v4244, 0.0
        %v4531 = vmax.f32 %v4246, 0.0
        %v4532 = vmax.f32 %v4357, 0.0
        %v4533 = vmax.f32 %v4359, 0.0
        %v4534 = vmax.f32 %v4470, 0.0
        %v4535 = vmax.f32 %v4472, 0.0
        %v4536 = vmax.f32 %v4137, 0.0
        %v4537 = vmax.f32 %v4139, 0.0
        %v4538 = vmax.f32 %v4250, 0.0
        %v4539 = vmax.f32 %v4252, 0.0
        %v4540 = vmax.f32 %v4363, 0.0
        %v4541 = vmax.f32 %v4365, 0.0
        %v4542 = vmax.f32 %v4476, 0.0
        %v4543 = vmax.f32 %v4478, 0.0
        %v4544 = vld [vmem:[%s8] sm:$0xff]
        %v4545 = vld [vmem:[%s8 + $0x8] sm:$0xff]
        %v4546 = vld [vmem:[%s8 + $0x10] sm:$0xff]
        %v4547 = vld [vmem:[%s8 + $0x18] sm:$0x1]
        %v4548 = vld [vmem:[%s9] sm:$0xff]
        %v4549 = vld [vmem:[%s9 + $0x8] sm:$0xff]
        %v4550 = vld [vmem:[%s9 + $0x10] sm:$0xff]
        %v4551 = vld [vmem:[%s9 + $0x18] sm:$0x1]
        %4553 = vset.pattern.permute.xlu0 0
        %4554 = vperm.xlu0 %4553, %v4548
        %v4555 = vpop.permute.xlu0 %4554
        %4558 = vset.pattern.permute.xlu0 0
        %4559 = vperm.xlu0 %4558, %v4549
        %v4560 = vpop.permute.xlu0 %4559
        %4563 = vset.pattern.permute.xlu0 0
        %4564 = vperm.xlu0 %4563, %v4550
        %v4565 = vpop.permute.xlu0 %4564
        %4568 = vset.pattern.permute.xlu0 0
        %4569 = vperm.xlu0 %4568, %v4551
        %v4570 = vpop.permute.xlu0 %4569
        %v4573 = vsel %vm648, %v4544, 0
        %v4576 = vsel %vm648, %v4545, 0
        %v4579 = vsel %vm648, %v4546, 0
        %v4582 = vsel %vm648, %v4547, 0
        %4584 = vmatprep.subr.mxu0 %v4481
        %4585 = vmatpush1.msra.mxu0 %v4480
        %4586 = vmatprep.subr.mxu0 %v4489
        %4587 = vmatpush1.msra.mxu0 %v4488
        %4588 = vmatprep.subr.mxu0 %v4497
        %4589 = vmatpush1.msra.mxu0 %v4496
        %4590 = vmatprep.subr.mxu0 %v4505
        %4591 = vmatpush1.msra.mxu0 %v4504
        %4592 = vmatprep.subr.mxu0 %v4513
        %4593 = vmatpush1.msra.mxu0 %v4512
        %4594 = vmatprep.subr.mxu0 %v4521
        %4595 = vmatpush1.msra.mxu0 %v4520
        %4596 = vmatprep.subr.mxu0 %v4529
        %4597 = vmatpush1.msra.mxu0 %v4528
        %4598 = vmatprep.subr.mxu0 %v4537
        %4599 = vmatpush1.msra.mxu0 %v4536
        %4600 = vmatprep.subr.mxu0 0.0
        %4601 = vmatpush1.msra.mxu0 0.0
        %4602 = vmatprep.subr.mxu0 0.0
        %4603 = vmatpush1.msra.mxu0 0.0
        %4604 = vmatprep.subr.mxu0 0.0
        %4605 = vmatpush1.msra.mxu0 0.0
        %4606 = vmatprep.subr.mxu0 0.0
        %4607 = vmatpush1.msra.mxu0 0.0
        %4608 = vmatprep.subr.mxu0 0.0
        %4609 = vmatpush1.msra.mxu0 0.0
        %4610 = vmatprep.subr.mxu0 0.0
        %4611 = vmatpush1.msra.mxu0 0.0
        %4612 = vmatprep.subr.mxu0 0.0
        %4613 = vmatpush1.msra.mxu0 0.0
        %4614 = vmatprep.subr.mxu0 0.0
        %4615 = vmatpush1.msra.mxu0 0.0
        %4616 = vmatprep.subr.mxu0 0.0
        %4617 = vmatpush1.msra.mxu0 0.0
        %4618 = vmatprep.subr.mxu0 0.0
        %4619 = vmatpush1.msra.mxu0 0.0
        %4620 = vmatprep.subr.mxu0 0.0
        %4621 = vmatpush1.msra.mxu0 0.0
        %4622 = vmatprep.subr.mxu0 0.0
        %4623 = vmatpush1.msra.mxu0 0.0
        %4624 = vmatprep.subr.mxu0 0.0
        %4625 = vmatpush1.msra.mxu0 0.0
        %4626 = vmatprep.subr.mxu0 0.0
        %4627 = vmatpush1.msra.mxu0 0.0
        %4628 = vmatprep.subr.mxu0 0.0
        %4629 = vmatpush1.msra.mxu0 0.0
        %4630 = vmatprep.subr.mxu0 0.0
        %4631 = vmatpush1.msra.mxu0 0.0
        %4632 = vmatprep.subr.mxu0 0.0
        %4633 = vmatpush1.msra.mxu0 0.0
        %4634 = vmatprep.subr.mxu0 0.0
        %4635 = vmatpush1.msra.mxu0 0.0
        %4636 = vmatprep.subr.mxu0 0.0
        %4637 = vmatpush1.msra.mxu0 0.0
        %4638 = vmatprep.subr.mxu0 0.0
        %4639 = vmatpush1.msra.mxu0 0.0
        %4640 = vmatprep.subr.mxu0 0.0
        %4641 = vmatpush1.msra.mxu0 0.0
        %4642 = vmatprep.subr.mxu0 0.0
        %4643 = vmatpush1.msra.mxu0 0.0
        %4644 = vmatprep.subr.mxu0 0.0
        %4645 = vmatpush1.msra.mxu0 0.0
        %4646 = vmatprep.subr.mxu0 0.0
        %4647 = vmatpush1.msra.mxu0 0.0
        %4648 = vmatprep.mubr.f32.mxu0 0.0
        %4649 = vmatmul.mubr.f32.gmra.mrb[0].mxu0 %v4573
        %v4650 = vpop.f32.mrb[0].mxu0
        %v4651 = vadd.f32 %v4555, %v4650
        %v4652 = vpop.f32.mrb[0].mxu0
        %v4653 = vadd.f32 %v4555, %v4652
        %4654 = vmatprep.mubr.f32.mxu0 0.0
        %4655 = vmatmul.mubr.f32.gmra.mrb[0].mxu0 %v4576
        %v4656 = vpop.f32.mrb[0].mxu0
        %v4657 = vadd.f32 %v4560, %v4656
        %v4658 = vpop.f32.mrb[0].mxu0
        %v4659 = vadd.f32 %v4560, %v4658
        %4660 = vmatprep.mubr.f32.mxu0 0.0
        %4661 = vmatmul.mubr.f32.gmra.mrb[0].mxu0 %v4579
        %v4662 = vpop.f32.mrb[0].mxu0
        %v4663 = vadd.f32 %v4565, %v4662
        %v4664 = vpop.f32.mrb[0].mxu0
        %v4665 = vadd.f32 %v4565, %v4664
        %4666 = vmatprep.mubr.f32.mxu0 0.0
        %4667 = vmatmul.mubr.f32.gmra.mrb[0].mxu0 %v4582
        %v4668 = vpop.f32.mrb[0].mxu0
        %v4669 = vadd.f32 %v4570, %v4668
        %v4670 = vpop.f32.mrb[0].mxu0
        %v4671 = vadd.f32 %v4570, %v4670
        %4672 = vdwg.mxu0
        %4673 = vmatprep.subr.mxu0 %v4483
        %4674 = vmatpush1.msra.mxu0 %v4482
        %4675 = vmatprep.subr.mxu0 %v4491
        %4676 = vmatpush1.msra.mxu0 %v4490
        %4677 = vmatprep.subr.mxu0 %v4499
        %4678 = vmatpush1.msra.mxu0 %v4498
        %4679 = vmatprep.subr.mxu0 %v4507
        %4680 = vmatpush1.msra.mxu0 %v4506
        %4681 = vmatprep.subr.mxu0 %v4515
        %4682 = vmatpush1.msra.mxu0 %v4514
        %4683 = vmatprep.subr.mxu0 %v4523
        %4684 = vmatpush1.msra.mxu0 %v4522
        %4685 = vmatprep.subr.mxu0 %v4531
        %4686 = vmatpush1.msra.mxu0 %v4530
        %4687 = vmatprep.subr.mxu0 %v4539
        %4688 = vmatpush1.msra.mxu0 %v4538
        %4689 = vmatprep.subr.mxu0 0.0
        %4690 = vmatpush1.msra.mxu0 0.0
        %4691 = vmatprep.subr.mxu0 0.0
        %4692 = vmatpush1.msra.mxu0 0.0
        %4693 = vmatprep.subr.mxu0 0.0
        %4694 = vmatpush1.msra.mxu0 0.0
        %4695 = vmatprep.subr.mxu0 0.0
        %4696 = vmatpush1.msra.mxu0 0.0
        %4697 = vmatprep.subr.mxu0 0.0
        %4698 = vmatpush1.msra.mxu0 0.0
        %4699 = vmatprep.subr.mxu0 0.0
        %4700 = vmatpush1.msra.mxu0 0.0
        %4701 = vmatprep.subr.mxu0 0.0
        %4702 = vmatpush1.msra.mxu0 0.0
        %4703 = vmatprep.subr.mxu0 0.0
        %4704 = vmatpush1.msra.mxu0 0.0
        %4705 = vmatprep.subr.mxu0 0.0
        %4706 = vmatpush1.msra.mxu0 0.0
        %4707 = vmatprep.subr.mxu0 0.0
        %4708 = vmatpush1.msra.mxu0 0.0
        %4709 = vmatprep.subr.mxu0 0.0
        %4710 = vmatpush1.msra.mxu0 0.0
        %4711 = vmatprep.subr.mxu0 0.0
        %4712 = vmatpush1.msra.mxu0 0.0
        %4713 = vmatprep.subr.mxu0 0.0
        %4714 = vmatpush1.msra.mxu0 0.0
        %4715 = vmatprep.subr.mxu0 0.0
        %4716 = vmatpush1.msra.mxu0 0.0
        %4717 = vmatprep.subr.mxu0 0.0
        %4718 = vmatpush1.msra.mxu0 0.0
        %4719 = vmatprep.subr.mxu0 0.0
        %4720 = vmatpush1.msra.mxu0 0.0
        %4721 = vmatprep.subr.mxu0 0.0
        %4722 = vmatpush1.msra.mxu0 0.0
        %4723 = vmatprep.subr.mxu0 0.0
        %4724 = vmatpush1.msra.mxu0 0.0
        %4725 = vmatprep.subr.mxu0 0.0
        %4726 = vmatpush1.msra.mxu0 0.0
        %4727 = vmatprep.subr.mxu0 0.0
        %4728 = vmatpush1.msra.mxu0 0.0
        %4729 = vmatprep.subr.mxu0 0.0
        %4730 = vmatpush1.msra.mxu0 0.0
        %4731 = vmatprep.subr.mxu0 0.0
        %4732 = vmatpush1.msra.mxu0 0.0
        %4733 = vmatprep.subr.mxu0 0.0
        %4734 = vmatpush1.msra.mxu0 0.0
        %4735 = vmatprep.subr.mxu0 0.0
        %4736 = vmatpush1.msra.mxu0 0.0
        %4737 = vmatprep.mubr.f32.mxu0 0.0
        %4738 = vmatmul.mubr.f32.gmra.mrb[0].mxu0 %v4573
        %v4739 = vpop.f32.mrb[0].mxu0
        %v4740 = vadd.f32 %v4555, %v4739
        %v4741 = vpop.f32.mrb[0].mxu0
        %v4742 = vadd.f32 %v4555, %v4741
        %4743 = vmatprep.mubr.f32.mxu0 0.0
        %4744 = vmatmul.mubr.f32.gmra.mrb[0].mxu0 %v4576
        %v4745 = vpop.f32.mrb[0].mxu0
        %v4746 = vadd.f32 %v4560, %v4745
        %v4747 = vpop.f32.mrb[0].mxu0
        %v4748 = vadd.f32 %v4560, %v4747
        %4749 = vmatprep.mubr.f32.mxu0 0.0
        %4750 = vmatmul.mubr.f32.gmra.mrb[0].mxu0 %v4579
        %v4751 = vpop.f32.mrb[0].mxu0
        %v4752 = vadd.f32 %v4565, %v4751
        %v4753 = vpop.f32.mrb[0].mxu0
        %v4754 = vadd.f32 %v4565, %v4753
        %4755 = vmatprep.mubr.f32.mxu0 0.0
        %4756 = vmatmul.mubr.f32.gmra.mrb[0].mxu0 %v4582
        %v4757 = vpop.f32.mrb[0].mxu0
        %v4758 = vadd.f32 %v4570, %v4757
        %v4759 = vpop.f32.mrb[0].mxu0
        %v4760 = vadd.f32 %v4570, %v4759
        %4761 = vdwg.mxu0
        %4762 = vmatprep.subr.mxu0 %v4485
        %4763 = vmatpush1.msra.mxu0 %v4484
        %4764 = vmatprep.subr.mxu0 %v4493
        %4765 = vmatpush1.msra.mxu0 %v4492
        %4766 = vmatprep.subr.mxu0 %v4501
        %4767 = vmatpush1.msra.mxu0 %v4500
        %4768 = vmatprep.subr.mxu0 %v4509
        %4769 = vmatpush1.msra.mxu0 %v4508
        %4770 = vmatprep.subr.mxu0 %v4517
        %4771 = vmatpush1.msra.mxu0 %v4516
        %4772 = vmatprep.subr.mxu0 %v4525
        %4773 = vmatpush1.msra.mxu0 %v4524
        %4774 = vmatprep.subr.mxu0 %v4533
        %4775 = vmatpush1.msra.mxu0 %v4532
        %4776 = vmatprep.subr.mxu0 %v4541
        %4777 = vmatpush1.msra.mxu0 %v4540
        %4778 = vmatprep.subr.mxu0 0.0
        %4779 = vmatpush1.msra.mxu0 0.0
        %4780 = vmatprep.subr.mxu0 0.0
        %4781 = vmatpush1.msra.mxu0 0.0
        %4782 = vmatprep.subr.mxu0 0.0
        %4783 = vmatpush1.msra.mxu0 0.0
        %4784 = vmatprep.subr.mxu0 0.0
        %4785 = vmatpush1.msra.mxu0 0.0
        %4786 = vmatprep.subr.mxu0 0.0
        %4787 = vmatpush1.msra.mxu0 0.0
        %4788 = vmatprep.subr.mxu0 0.0
        %4789 = vmatpush1.msra.mxu0 0.0
        %4790 = vmatprep.subr.mxu0 0.0
        %4791 = vmatpush1.msra.mxu0 0.0
        %4792 = vmatprep.subr.mxu0 0.0
        %4793 = vmatpush1.msra.mxu0 0.0
        %4794 = vmatprep.subr.mxu0 0.0
        %4795 = vmatpush1.msra.mxu0 0.0
        %4796 = vmatprep.subr.mxu0 0.0
        %4797 = vmatpush1.msra.mxu0 0.0
        %4798 = vmatprep.subr.mxu0 0.0
        %4799 = vmatpush1.msra.mxu0 0.0
        %4800 = vmatprep.subr.mxu0 0.0
        %4801 = vmatpush1.msra.mxu0 0.0
        %4802 = vmatprep.subr.mxu0 0.0
        %4803 = vmatpush1.msra.mxu0 0.0
        %4804 = vmatprep.subr.mxu0 0.0
        %4805 = vmatpush1.msra.mxu0 0.0
        %4806 = vmatprep.subr.mxu0 0.0
        %4807 = vmatpush1.msra.mxu0 0.0
        %4808 = vmatprep.subr.mxu0 0.0
        %4809 = vmatpush1.msra.mxu0 0.0
        %4810 = vmatprep.subr.mxu0 0.0
        %4811 = vmatpush1.msra.mxu0 0.0
        %4812 = vmatprep.subr.mxu0 0.0
        %4813 = vmatpush1.msra.mxu0 0.0
        %4814 = vmatprep.subr.mxu0 0.0
        %4815 = vmatpush1.msra.mxu0 0.0
        %4816 = vmatprep.subr.mxu0 0.0
        %4817 = vmatpush1.msra.mxu0 0.0
        %4818 = vmatprep.subr.mxu0 0.0
        %4819 = vmatpush1.msra.mxu0 0.0
        %4820 = vmatprep.subr.mxu0 0.0
        %4821 = vmatpush1.msra.mxu0 0.0
        %4822 = vmatprep.subr.mxu0 0.0
        %4823 = vmatpush1.msra.mxu0 0.0
        %4824 = vmatprep.subr.mxu0 0.0
        %4825 = vmatpush1.msra.mxu0 0.0
        %4826 = vmatprep.mubr.f32.mxu0 0.0
        %4827 = vmatmul.mubr.f32.gmra.mrb[0].mxu0 %v4573
        %v4828 = vpop.f32.mrb[0].mxu0
        %v4829 = vadd.f32 %v4555, %v4828
        %v4830 = vpop.f32.mrb[0].mxu0
        %v4831 = vadd.f32 %v4555, %v4830
        %4832 = vmatprep.mubr.f32.mxu0 0.0
        %4833 = vmatmul.mubr.f32.gmra.mrb[0].mxu0 %v4576
        %v4834 = vpop.f32.mrb[0].mxu0
        %v4835 = vadd.f32 %v4560, %v4834
        %v4836 = vpop.f32.mrb[0].mxu0
        %v4837 = vadd.f32 %v4560, %v4836
        %4838 = vmatprep.mubr.f32.mxu0 0.0
        %4839 = vmatmul.mubr.f32.gmra.mrb[0].mxu0 %v4579
        %v4840 = vpop.f32.mrb[0].mxu0
        %v4841 = vadd.f32 %v4565, %v4840
        %v4842 = vpop.f32.mrb[0].mxu0
        %v4843 = vadd.f32 %v4565, %v4842
        %4844 = vmatprep.mubr.f32.mxu0 0.0
        %4845 = vmatmul.mubr.f32.gmra.mrb[0].mxu0 %v4582
        %v4846 = vpop.f32.mrb[0].mxu0
        %v4847 = vadd.f32 %v4570, %v4846
        %v4848 = vpop.f32.mrb[0].mxu0
        %v4849 = vadd.f32 %v4570, %v4848
        %4850 = vdwg.mxu0
        %4851 = vmatprep.subr.mxu0 %v4487
        %4852 = vmatpush1.msra.mxu0 %v4486
        %4853 = vmatprep.subr.mxu0 %v4495
        %4854 = vmatpush1.msra.mxu0 %v4494
        %4855 = vmatprep.subr.mxu0 %v4503
        %4856 = vmatpush1.msra.mxu0 %v4502
        %4857 = vmatprep.subr.mxu0 %v4511
        %4858 = vmatpush1.msra.mxu0 %v4510
        %4859 = vmatprep.subr.mxu0 %v4519
        %4860 = vmatpush1.msra.mxu0 %v4518
        %4861 = vmatprep.subr.mxu0 %v4527
        %4862 = vmatpush1.msra.mxu0 %v4526
        %4863 = vmatprep.subr.mxu0 %v4535
        %4864 = vmatpush1.msra.mxu0 %v4534
        %4865 = vmatprep.subr.mxu0 %v4543
        %4866 = vmatpush1.msra.mxu0 %v4542
        %4867 = vmatprep.subr.mxu0 0.0
        %4868 = vmatpush1.msra.mxu0 0.0
        %4869 = vmatprep.subr.mxu0 0.0
        %4870 = vmatpush1.msra.mxu0 0.0
        %4871 = vmatprep.subr.mxu0 0.0
        %4872 = vmatpush1.msra.mxu0 0.0
        %4873 = vmatprep.subr.mxu0 0.0
        %4874 = vmatpush1.msra.mxu0 0.0
        %4875 = vmatprep.subr.mxu0 0.0
        %4876 = vmatpush1.msra.mxu0 0.0
        %4877 = vmatprep.subr.mxu0 0.0
        %4878 = vmatpush1.msra.mxu0 0.0
        %4879 = vmatprep.subr.mxu0 0.0
        %4880 = vmatpush1.msra.mxu0 0.0
        %4881 = vmatprep.subr.mxu0 0.0
        %4882 = vmatpush1.msra.mxu0 0.0
        %4883 = vmatprep.subr.mxu0 0.0
        %4884 = vmatpush1.msra.mxu0 0.0
        %4885 = vmatprep.subr.mxu0 0.0
        %4886 = vmatpush1.msra.mxu0 0.0
        %4887 = vmatprep.subr.mxu0 0.0
        %4888 = vmatpush1.msra.mxu0 0.0
        %4889 = vmatprep.subr.mxu0 0.0
        %4890 = vmatpush1.msra.mxu0 0.0
        %4891 = vmatprep.subr.mxu0 0.0
        %4892 = vmatpush1.msra.mxu0 0.0
        %4893 = vmatprep.subr.mxu0 0.0
        %4894 = vmatpush1.msra.mxu0 0.0
        %4895 = vmatprep.subr.mxu0 0.0
        %4896 = vmatpush1.msra.mxu0 0.0
        %4897 = vmatprep.subr.mxu0 0.0
        %4898 = vmatpush1.msra.mxu0 0.0
        %4899 = vmatprep.subr.mxu0 0.0
        %4900 = vmatpush1.msra.mxu0 0.0
        %4901 = vmatprep.subr.mxu0 0.0
        %4902 = vmatpush1.msra.mxu0 0.0
        %4903 = vmatprep.subr.mxu0 0.0
        %4904 = vmatpush1.msra.mxu0 0.0
        %4905 = vmatprep.subr.mxu0 0.0
        %4906 = vmatpush1.msra.mxu0 0.0
        %4907 = vmatprep.subr.mxu0 0.0
        %4908 = vmatpush1.msra.mxu0 0.0
        %4909 = vmatprep.subr.mxu0 0.0
        %4910 = vmatpush1.msra.mxu0 0.0
        %4911 = vmatprep.subr.mxu0 0.0
        %4912 = vmatpush1.msra.mxu0 0.0
        %4913 = vmatprep.subr.mxu0 0.0
        %4914 = vmatpush1.msra.mxu0 0.0
        %4915 = vmatprep.mubr.f32.mxu0 0.0
        %4916 = vmatmul.mubr.f32.gmra.mrb[0].mxu0 %v4573
        %v4917 = vpop.f32.mrb[0].mxu0
        %v4918 = vadd.f32 %v4555, %v4917
        %v4919 = vpop.f32.mrb[0].mxu0
        %v4920 = vadd.f32 %v4555, %v4919
        %4921 = vmatprep.mubr.f32.mxu0 0.0
        %4922 = vmatmul.mubr.f32.gmra.mrb[0].mxu0 %v4576
        %v4923 = vpop.f32.mrb[0].mxu0
        %v4924 = vadd.f32 %v4560, %v4923
        %v4925 = vpop.f32.mrb[0].mxu0
        %v4926 = vadd.f32 %v4560, %v4925
        %4927 = vmatprep.mubr.f32.mxu0 0.0
        %4928 = vmatmul.mubr.f32.gmra.mrb[0].mxu0 %v4579
        %v4929 = vpop.f32.mrb[0].mxu0
        %v4930 = vadd.f32 %v4565, %v4929
        %v4931 = vpop.f32.mrb[0].mxu0
        %v4932 = vadd.f32 %v4565, %v4931
        %4933 = vmatprep.mubr.f32.mxu0 0.0
        %4934 = vmatmul.mubr.f32.gmra.mrb[0].mxu0 %v4582
        %v4935 = vpop.f32.mrb[0].mxu0
        %v4936 = vadd.f32 %v4570, %v4935
        %v4937 = vpop.f32.mrb[0].mxu0
        %v4938 = vadd.f32 %v4570, %v4937
        %4939 = vdwg.mxu0
        %s4940 = sld [smem:[#allocation4]]
        %v4941 = vstv %s4940
        %v4942 = vmul.f32 %v4941, %v4651
        %v4943 = vmul.f32 %v4941, %v4653
        %v4944 = vmul.f32 %v4941, %v4740
        %v4945 = vmul.f32 %v4941, %v4742
        %v4946 = vmul.f32 %v4941, %v4829
        %v4947 = vmul.f32 %v4941, %v4831
        %v4948 = vmul.f32 %v4941, %v4918
        %v4949 = vmul.f32 %v4941, %v4920
        %v4950 = vmul.f32 %v4941, %v4657
        %v4951 = vmul.f32 %v4941, %v4659
        %v4952 = vmul.f32 %v4941, %v4746
        %v4953 = vmul.f32 %v4941, %v4748
        %v4954 = vmul.f32 %v4941, %v4835
        %v4955 = vmul.f32 %v4941, %v4837
        %v4956 = vmul.f32 %v4941, %v4924
        %v4957 = vmul.f32 %v4941, %v4926
        %v4958 = vmul.f32 %v4941, %v4663
        %v4959 = vmul.f32 %v4941, %v4665
        %v4960 = vmul.f32 %v4941, %v4752
        %v4961 = vmul.f32 %v4941, %v4754
        %v4962 = vmul.f32 %v4941, %v4841
        %v4963 = vmul.f32 %v4941, %v4843
        %v4964 = vmul.f32 %v4941, %v4930
        %v4965 = vmul.f32 %v4941, %v4932
        %v4966 = vmul.f32 %v4941, %v4669
        %v4967 = vmul.f32 %v4941, %v4671
        %v4968 = vmul.f32 %v4941, %v4758
        %v4969 = vmul.f32 %v4941, %v4760
        %v4970 = vmul.f32 %v4941, %v4847
        %v4971 = vmul.f32 %v4941, %v4849
        %v4972 = vmul.f32 %v4941, %v4936
        %v4973 = vmul.f32 %v4941, %v4938
        %4974 = vmatprep.subr.mxu0 %v1901
        %4975 = vmatpush1.msra.mxu0 %v1900
        %4976 = vmatprep.subr.mxu0 %v1909
        %4977 = vmatpush1.msra.mxu0 %v1908
        %4978 = vmatprep.subr.mxu0 %v1917
        %4979 = vmatpush1.msra.mxu0 %v1916
        %4980 = vmatprep.subr.mxu0 %v1925
        %4981 = vmatpush1.msra.mxu0 %v1924
        %4982 = vmatprep.subr.mxu0 %v1933
        %4983 = vmatpush1.msra.mxu0 %v1932
        %4984 = vmatprep.subr.mxu0 %v1941
        %4985 = vmatpush1.msra.mxu0 %v1940
        %4986 = vmatprep.subr.mxu0 %v1949
        %4987 = vmatpush1.msra.mxu0 %v1948
        %4988 = vmatprep.subr.mxu0 %v1957
        %4989 = vmatpush1.msra.mxu0 %v1956
        %4990 = vmatprep.subr.mxu0 %v1965
        %4991 = vmatpush1.msra.mxu0 %v1964
        %4992 = vmatprep.subr.mxu0 %v1973
        %4993 = vmatpush1.msra.mxu0 %v1972
        %4994 = vmatprep.subr.mxu0 %v1981
        %4995 = vmatpush1.msra.mxu0 %v1980
        %4996 = vmatprep.subr.mxu0 %v1989
        %4997 = vmatpush1.msra.mxu0 %v1988
        %4998 = vmatprep.subr.mxu0 %v1997
        %4999 = vmatpush1.msra.mxu0 %v1996
        %5000 = vmatprep.subr.mxu0 %v2005
        %5001 = vmatpush1.msra.mxu0 %v2004
        %5002 = vmatprep.subr.mxu0 %v2013
        %5003 = vmatpush1.msra.mxu0 %v2012
        %5004 = vmatprep.subr.mxu0 %v2021
        %5005 = vmatpush1.msra.mxu0 %v2020
        %5006 = vmatprep.subr.mxu0 %v2029
        %5007 = vmatpush1.msra.mxu0 %v2028
        %5008 = vmatprep.subr.mxu0 %v2037
        %5009 = vmatpush1.msra.mxu0 %v2036
        %5010 = vmatprep.subr.mxu0 %v2045
        %5011 = vmatpush1.msra.mxu0 %v2044
        %5012 = vmatprep.subr.mxu0 %v2053
        %5013 = vmatpush1.msra.mxu0 %v2052
        %5014 = vmatprep.subr.mxu0 %v2061
        %5015 = vmatpush1.msra.mxu0 %v2060
        %5016 = vmatprep.subr.mxu0 %v2069
        %5017 = vmatpush1.msra.mxu0 %v2068
        %5018 = vmatprep.subr.mxu0 %v2077
        %5019 = vmatpush1.msra.mxu0 %v2076
        %5020 = vmatprep.subr.mxu0 %v2085
        %5021 = vmatpush1.msra.mxu0 %v2084
        %5022 = vmatprep.subr.mxu0 %v2093
        %5023 = vmatpush1.msra.mxu0 %v2092
        %5024 = vmatprep.subr.mxu0 %v2101
        %5025 = vmatpush1.msra.mxu0 %v2100
        %5026 = vmatprep.subr.mxu0 %v2109
        %5027 = vmatpush1.msra.mxu0 %v2108
        %5028 = vmatprep.subr.mxu0 %v2117
        %5029 = vmatpush1.msra.mxu0 %v2116
        %5030 = vmatprep.subr.mxu0 %v2125
        %5031 = vmatpush1.msra.mxu0 %v2124
        %5032 = vmatprep.subr.mxu0 %v2133
        %5033 = vmatpush1.msra.mxu0 %v2132
        %5034 = vmatprep.subr.mxu0 %v2141
        %5035 = vmatpush1.msra.mxu0 %v2140
        %5036 = vmatprep.subr.mxu0 %v2149
        %5037 = vmatpush1.msra.mxu0 %v2148
        %5038 = vmatprep.mubr.f32.mxu0 %v1893
        %5039 = vmatmul.mubr.f32.gmra.mrb[0].mxu0 %v1892
        %v5040 = vpop.f32.mrb[0].mxu0
        %v5041 = vadd.f32 %v4942, %v5040
        %v5042 = vpop.f32.mrb[0].mxu0
        %v5043 = vadd.f32 %v4943, %v5042
        %5044 = vmatprep.mubr.f32.mxu0 %v1895
        %5045 = vmatmul.mubr.f32.gmra.mrb[0].mxu0 %v1894
        %v5046 = vpop.f32.mrb[0].mxu0
        %v5047 = vadd.f32 %v4950, %v5046
        %v5048 = vpop.f32.mrb[0].mxu0
        %v5049 = vadd.f32 %v4951, %v5048
        %5050 = vmatprep.mubr.f32.mxu0 %v1897
        %5051 = vmatmul.mubr.f32.gmra.mrb[0].mxu0 %v1896
        %v5052 = vpop.f32.mrb[0].mxu0
        %v5053 = vadd.f32 %v4958, %v5052
        %v5054 = vpop.f32.mrb[0].mxu0
        %v5055 = vadd.f32 %v4959, %v5054
        %5056 = vmatprep.mubr.f32.mxu0 %v1899
        %5057 = vmatmul.mubr.f32.gmra.mrb[0].mxu0 %v1898
        %v5058 = vpop.f32.mrb[0].mxu0
        %v5059 = vadd.f32 %v4966, %v5058
        %v5060 = vpop.f32.mrb[0].mxu0
        %v5061 = vadd.f32 %v4967, %v5060
        %5062 = vdwg.mxu0
        %5063 = vmatprep.subr.mxu0 %v1903
        %5064 = vmatpush1.msra.mxu0 %v1902
        %5065 = vmatprep.subr.mxu0 %v1911
        %5066 = vmatpush1.msra.mxu0 %v1910
        %5067 = vmatprep.subr.mxu0 %v1919
        %5068 = vmatpush1.msra.mxu0 %v1918
        %5069 = vmatprep.subr.mxu0 %v1927
        %5070 = vmatpush1.msra.mxu0 %v1926
        %5071 = vmatprep.subr.mxu0 %v1935
        %5072 = vmatpush1.msra.mxu0 %v1934
        %5073 = vmatprep.subr.mxu0 %v1943
        %5074 = vmatpush1.msra.mxu0 %v1942
        %5075 = vmatprep.subr.mxu0 %v1951
        %5076 = vmatpush1.msra.mxu0 %v1950
        %5077 = vmatprep.subr.mxu0 %v1959
        %5078 = vmatpush1.msra.mxu0 %v1958
        %5079 = vmatprep.subr.mxu0 %v1967
        %5080 = vmatpush1.msra.mxu0 %v1966
        %5081 = vmatprep.subr.mxu0 %v1975
        %5082 = vmatpush1.msra.mxu0 %v1974
        %5083 = vmatprep.subr.mxu0 %v1983
        %5084 = vmatpush1.msra.mxu0 %v1982
        %5085 = vmatprep.subr.mxu0 %v1991
        %5086 = vmatpush1.msra.mxu0 %v1990
        %5087 = vmatprep.subr.mxu0 %v1999
        %5088 = vmatpush1.msra.mxu0 %v1998
        %5089 = vmatprep.subr.mxu0 %v2007
        %5090 = vmatpush1.msra.mxu0 %v2006
        %5091 = vmatprep.subr.mxu0 %v2015
        %5092 = vmatpush1.msra.mxu0 %v2014
        %5093 = vmatprep.subr.mxu0 %v2023
        %5094 = vmatpush1.msra.mxu0 %v2022
        %5095 = vmatprep.subr.mxu0 %v2031
        %5096 = vmatpush1.msra.mxu0 %v2030
        %5097 = vmatprep.subr.mxu0 %v2039
        %5098 = vmatpush1.msra.mxu0 %v2038
        %5099 = vmatprep.subr.mxu0 %v2047
        %5100 = vmatpush1.msra.mxu0 %v2046
        %5101 = vmatprep.subr.mxu0 %v2055
        %5102 = vmatpush1.msra.mxu0 %v2054
        %5103 = vmatprep.subr.mxu0 %v2063
        %5104 = vmatpush1.msra.mxu0 %v2062
        %5105 = vmatprep.subr.mxu0 %v2071
        %5106 = vmatpush1.msra.mxu0 %v2070
        %5107 = vmatprep.subr.mxu0 %v2079
        %5108 = vmatpush1.msra.mxu0 %v2078
        %5109 = vmatprep.subr.mxu0 %v2087
        %5110 = vmatpush1.msra.mxu0 %v2086
        %5111 = vmatprep.subr.mxu0 %v2095
        %5112 = vmatpush1.msra.mxu0 %v2094
        %5113 = vmatprep.subr.mxu0 %v2103
        %5114 = vmatpush1.msra.mxu0 %v2102
        %5115 = vmatprep.subr.mxu0 %v2111
        %5116 = vmatpush1.msra.mxu0 %v2110
        %5117 = vmatprep.subr.mxu0 %v2119
        %5118 = vmatpush1.msra.mxu0 %v2118
        %5119 = vmatprep.subr.mxu0 %v2127
        %5120 = vmatpush1.msra.mxu0 %v2126
        %5121 = vmatprep.subr.mxu0 %v2135
        %5122 = vmatpush1.msra.mxu0 %v2134
        %5123 = vmatprep.subr.mxu0 %v2143
        %5124 = vmatpush1.msra.mxu0 %v2142
        %5125 = vmatprep.subr.mxu0 %v2151
        %5126 = vmatpush1.msra.mxu0 %v2150
        %5127 = vmatprep.mubr.f32.mxu0 %v1893
        %5128 = vmatmul.mubr.f32.gmra.mrb[0].mxu0 %v1892
        %v5129 = vpop.f32.mrb[0].mxu0
        %v5130 = vadd.f32 %v4944, %v5129
        %v5131 = vpop.f32.mrb[0].mxu0
        %v5132 = vadd.f32 %v4945, %v5131
        %5133 = vmatprep.mubr.f32.mxu0 %v1895
        %5134 = vmatmul.mubr.f32.gmra.mrb[0].mxu0 %v1894
        %v5135 = vpop.f32.mrb[0].mxu0
        %v5136 = vadd.f32 %v4952, %v5135
        %v5137 = vpop.f32.mrb[0].mxu0
        %v5138 = vadd.f32 %v4953, %v5137
        %5139 = vmatprep.mubr.f32.mxu0 %v1897
        %5140 = vmatmul.mubr.f32.gmra.mrb[0].mxu0 %v1896
        %v5141 = vpop.f32.mrb[0].mxu0
        %v5142 = vadd.f32 %v4960, %v5141
        %v5143 = vpop.f32.mrb[0].mxu0
        %v5144 = vadd.f32 %v4961, %v5143
        %5145 = vmatprep.mubr.f32.mxu0 %v1899
        %5146 = vmatmul.mubr.f32.gmra.mrb[0].mxu0 %v1898
        %v5147 = vpop.f32.mrb[0].mxu0
        %v5148 = vadd.f32 %v4968, %v5147
        %v5149 = vpop.f32.mrb[0].mxu0
        %v5150 = vadd.f32 %v4969, %v5149
        %5151 = vdwg.mxu0
        %5152 = vmatprep.subr.mxu0 %v1905
        %5153 = vmatpush1.msra.mxu0 %v1904
        %5154 = vmatprep.subr.mxu0 %v1913
        %5155 = vmatpush1.msra.mxu0 %v1912
        %5156 = vmatprep.subr.mxu0 %v1921
        %5157 = vmatpush1.msra.mxu0 %v1920
        %5158 = vmatprep.subr.mxu0 %v1929
        %5159 = vmatpush1.msra.mxu0 %v1928
        %5160 = vmatprep.subr.mxu0 %v1937
        %5161 = vmatpush1.msra.mxu0 %v1936
        %5162 = vmatprep.subr.mxu0 %v1945
        %5163 = vmatpush1.msra.mxu0 %v1944
        %5164 = vmatprep.subr.mxu0 %v1953
        %5165 = vmatpush1.msra.mxu0 %v1952
        %5166 = vmatprep.subr.mxu0 %v1961
        %5167 = vmatpush1.msra.mxu0 %v1960
        %5168 = vmatprep.subr.mxu0 %v1969
        %5169 = vmatpush1.msra.mxu0 %v1968
        %5170 = vmatprep.subr.mxu0 %v1977
        %5171 = vmatpush1.msra.mxu0 %v1976
        %5172 = vmatprep.subr.mxu0 %v1985
        %5173 = vmatpush1.msra.mxu0 %v1984
        %5174 = vmatprep.subr.mxu0 %v1993
        %5175 = vmatpush1.msra.mxu0 %v1992
        %5176 = vmatprep.subr.mxu0 %v2001
        %5177 = vmatpush1.msra.mxu0 %v2000
        %5178 = vmatprep.subr.mxu0 %v2009
        %5179 = vmatpush1.msra.mxu0 %v2008
        %5180 = vmatprep.subr.mxu0 %v2017
        %5181 = vmatpush1.msra.mxu0 %v2016
        %5182 = vmatprep.subr.mxu0 %v2025
        %5183 = vmatpush1.msra.mxu0 %v2024
        %5184 = vmatprep.subr.mxu0 %v2033
        %5185 = vmatpush1.msra.mxu0 %v2032
        %5186 = vmatprep.subr.mxu0 %v2041
        %5187 = vmatpush1.msra.mxu0 %v2040
        %5188 = vmatprep.subr.mxu0 %v2049
        %5189 = vmatpush1.msra.mxu0 %v2048
        %5190 = vmatprep.subr.mxu0 %v2057
        %5191 = vmatpush1.msra.mxu0 %v2056
        %5192 = vmatprep.subr.mxu0 %v2065
        %5193 = vmatpush1.msra.mxu0 %v2064
        %5194 = vmatprep.subr.mxu0 %v2073
        %5195 = vmatpush1.msra.mxu0 %v2072
        %5196 = vmatprep.subr.mxu0 %v2081
        %5197 = vmatpush1.msra.mxu0 %v2080
        %5198 = vmatprep.subr.mxu0 %v2089
        %5199 = vmatpush1.msra.mxu0 %v2088
        %5200 = vmatprep.subr.mxu0 %v2097
        %5201 = vmatpush1.msra.mxu0 %v2096
        %5202 = vmatprep.subr.mxu0 %v2105
        %5203 = vmatpush1.msra.mxu0 %v2104
        %5204 = vmatprep.subr.mxu0 %v2113
        %5205 = vmatpush1.msra.mxu0 %v2112
        %5206 = vmatprep.subr.mxu0 %v2121
        %5207 = vmatpush1.msra.mxu0 %v2120
        %5208 = vmatprep.subr.mxu0 %v2129
        %5209 = vmatpush1.msra.mxu0 %v2128
        %5210 = vmatprep.subr.mxu0 %v2137
        %5211 = vmatpush1.msra.mxu0 %v2136
        %5212 = vmatprep.subr.mxu0 %v2145
        %5213 = vmatpush1.msra.mxu0 %v2144
        %5214 = vmatprep.subr.mxu0 %v2153
        %5215 = vmatpush1.msra.mxu0 %v2152
        %5216 = vmatprep.mubr.f32.mxu0 %v1893
        %5217 = vmatmul.mubr.f32.gmra.mrb[0].mxu0 %v1892
        %v5218 = vpop.f32.mrb[0].mxu0
        %v5219 = vadd.f32 %v4946, %v5218
        %v5220 = vpop.f32.mrb[0].mxu0
        %v5221 = vadd.f32 %v4947, %v5220
        %5222 = vmatprep.mubr.f32.mxu0 %v1895
        %5223 = vmatmul.mubr.f32.gmra.mrb[0].mxu0 %v1894
        %v5224 = vpop.f32.mrb[0].mxu0
        %v5225 = vadd.f32 %v4954, %v5224
        %v5226 = vpop.f32.mrb[0].mxu0
        %v5227 = vadd.f32 %v4955, %v5226
        %5228 = vmatprep.mubr.f32.mxu0 %v1897
        %5229 = vmatmul.mubr.f32.gmra.mrb[0].mxu0 %v1896
        %v5230 = vpop.f32.mrb[0].mxu0
        %v5231 = vadd.f32 %v4962, %v5230
        %v5232 = vpop.f32.mrb[0].mxu0
        %v5233 = vadd.f32 %v4963, %v5232
        %5234 = vmatprep.mubr.f32.mxu0 %v1899
        %5235 = vmatmul.mubr.f32.gmra.mrb[0].mxu0 %v1898
        %v5236 = vpop.f32.mrb[0].mxu0
        %v5237 = vadd.f32 %v4970, %v5236
        %v5238 = vpop.f32.mrb[0].mxu0
        %v5239 = vadd.f32 %v4971, %v5238
        %5240 = vdwg.mxu0
        %5241 = vmatprep.subr.mxu0 %v1907
        %5242 = vmatpush1.msra.mxu0 %v1906
        %5243 = vmatprep.subr.mxu0 %v1915
        %5244 = vmatpush1.msra.mxu0 %v1914
        %5245 = vmatprep.subr.mxu0 %v1923
        %5246 = vmatpush1.msra.mxu0 %v1922
        %5247 = vmatprep.subr.mxu0 %v1931
        %5248 = vmatpush1.msra.mxu0 %v1930
        %5249 = vmatprep.subr.mxu0 %v1939
        %5250 = vmatpush1.msra.mxu0 %v1938
        %5251 = vmatprep.subr.mxu0 %v1947
        %5252 = vmatpush1.msra.mxu0 %v1946
        %5253 = vmatprep.subr.mxu0 %v1955
        %5254 = vmatpush1.msra.mxu0 %v1954
        %5255 = vmatprep.subr.mxu0 %v1963
        %5256 = vmatpush1.msra.mxu0 %v1962
        %5257 = vmatprep.subr.mxu0 %v1971
        %5258 = vmatpush1.msra.mxu0 %v1970
        %5259 = vmatprep.subr.mxu0 %v1979
        %5260 = vmatpush1.msra.mxu0 %v1978
        %5261 = vmatprep.subr.mxu0 %v1987
        %5262 = vmatpush1.msra.mxu0 %v1986
        %5263 = vmatprep.subr.mxu0 %v1995
        %5264 = vmatpush1.msra.mxu0 %v1994
        %5265 = vmatprep.subr.mxu0 %v2003
        %5266 = vmatpush1.msra.mxu0 %v2002
        %5267 = vmatprep.subr.mxu0 %v2011
        %5268 = vmatpush1.msra.mxu0 %v2010
        %5269 = vmatprep.subr.mxu0 %v2019
        %5270 = vmatpush1.msra.mxu0 %v2018
        %5271 = vmatprep.subr.mxu0 %v2027
        %5272 = vmatpush1.msra.mxu0 %v2026
        %5273 = vmatprep.subr.mxu0 %v2035
        %5274 = vmatpush1.msra.mxu0 %v2034
        %5275 = vmatprep.subr.mxu0 %v2043
        %5276 = vmatpush1.msra.mxu0 %v2042
        %5277 = vmatprep.subr.mxu0 %v2051
        %5278 = vmatpush1.msra.mxu0 %v2050
        %5279 = vmatprep.subr.mxu0 %v2059
        %5280 = vmatpush1.msra.mxu0 %v2058
        %5281 = vmatprep.subr.mxu0 %v2067
        %5282 = vmatpush1.msra.mxu0 %v2066
        %5283 = vmatprep.subr.mxu0 %v2075
        %5284 = vmatpush1.msra.mxu0 %v2074
        %5285 = vmatprep.subr.mxu0 %v2083
        %5286 = vmatpush1.msra.mxu0 %v2082
        %5287 = vmatprep.subr.mxu0 %v2091
        %5288 = vmatpush1.msra.mxu0 %v2090
        %5289 = vmatprep.subr.mxu0 %v2099
        %5290 = vmatpush1.msra.mxu0 %v2098
        %5291 = vmatprep.subr.mxu0 %v2107
        %5292 = vmatpush1.msra.mxu0 %v2106
        %5293 = vmatprep.subr.mxu0 %v2115
        %5294 = vmatpush1.msra.mxu0 %v2114
        %5295 = vmatprep.subr.mxu0 %v2123
        %5296 = vmatpush1.msra.mxu0 %v2122
        %5297 = vmatprep.subr.mxu0 %v2131
        %5298 = vmatpush1.msra.mxu0 %v2130
        %5299 = vmatprep.subr.mxu0 %v2139
        %5300 = vmatpush1.msra.mxu0 %v2138
        %5301 = vmatprep.subr.mxu0 %v2147
        %5302 = vmatpush1.msra.mxu0 %v2146
        %5303 = vmatprep.subr.mxu0 %v2155
        %5304 = vmatpush1.msra.mxu0 %v2154
        %5305 = vmatprep.mubr.f32.mxu0 %v1893
        %5306 = vmatmul.mubr.f32.gmra.mrb[0].mxu0 %v1892
        %v5307 = vpop.f32.mrb[0].mxu0
        %v5308 = vadd.f32 %v4948, %v5307
        %v5309 = vpop.f32.mrb[0].mxu0
        %v5310 = vadd.f32 %v4949, %v5309
        %5311 = vmatprep.mubr.f32.mxu0 %v1895
        %5312 = vmatmul.mubr.f32.gmra.mrb[0].mxu0 %v1894
        %v5313 = vpop.f32.mrb[0].mxu0
        %v5314 = vadd.f32 %v4956, %v5313
        %v5315 = vpop.f32.mrb[0].mxu0
        %v5316 = vadd.f32 %v4957, %v5315
        %5317 = vmatprep.mubr.f32.mxu0 %v1897
        %5318 = vmatmul.mubr.f32.gmra.mrb[0].mxu0 %v1896
        %v5319 = vpop.f32.mrb[0].mxu0
        %v5320 = vadd.f32 %v4964, %v5319
        %v5321 = vpop.f32.mrb[0].mxu0
        %v5322 = vadd.f32 %v4965, %v5321
        %5323 = vmatprep.mubr.f32.mxu0 %v1899
        %5324 = vmatmul.mubr.f32.gmra.mrb[0].mxu0 %v1898
        %v5325 = vpop.f32.mrb[0].mxu0
        %v5326 = vadd.f32 %v4972, %v5325
        %v5327 = vpop.f32.mrb[0].mxu0
        %v5328 = vadd.f32 %v4973, %v5327
        %5329 = vdwg.mxu0
        %5330 = vst [vmem:[%s633] sm:$0xff] %v5041
        %5331 = vst [vmem:[%s633 + $0x8] sm:$0xff] %v5043
        %5332 = vst [vmem:[%s633 + $0x10] sm:$0xff] %v5130
        %5333 = vst [vmem:[%s633 + $0x18] sm:$0xff] %v5132
        %5334 = vst [vmem:[%s633 + $0x20] sm:$0xff] %v5219
        %5335 = vst [vmem:[%s633 + $0x28] sm:$0xff] %v5221
        %5336 = vst [vmem:[%s633 + $0x30] sm:$0xff] %v5308
        %5337 = vst [vmem:[%s633 + $0x38] sm:$0xff] %v5310
        %5338 = vst [vmem:[%s633 + $0x40] sm:$0xff] %v5047
        %5339 = vst [vmem:[%s633 + $0x48] sm:$0xff] %v5049
        %5340 = vst [vmem:[%s633 + $0x50] sm:$0xff] %v5136
        %5341 = vst [vmem:[%s633 + $0x58] sm:$0xff] %v5138
        %5342 = vst [vmem:[%s633 + $0x60] sm:$0xff] %v5225
        %5343 = vst [vmem:[%s633 + $0x68] sm:$0xff] %v5227
        %5344 = vst [vmem:[%s633 + $0x70] sm:$0xff] %v5314
        %5345 = vst [vmem:[%s633 + $0x78] sm:$0xff] %v5316
        %5346 = vst [vmem:[%s633 + $0x80] sm:$0xff] %v5053
        %5347 = vst [vmem:[%s633 + $0x88] sm:$0xff] %v5055
        %5348 = vst [vmem:[%s633 + $0x90] sm:$0xff] %v5142
        %5349 = vst [vmem:[%s633 + $0x98] sm:$0xff] %v5144
        %5350 = vst [vmem:[%s633 + $0xa0] sm:$0xff] %v5231
        %5351 = vst [vmem:[%s633 + $0xa8] sm:$0xff] %v5233
        %5352 = vst [vmem:[%s633 + $0xb0] sm:$0xff] %v5320
        %5353 = vst [vmem:[%s633 + $0xb8] sm:$0xff] %v5322
        %5354 = vst [vmem:[%s633 + $0xc0] sm:$0x1] %v5059
        %5355 = vst [vmem:[%s633 + $0xc8] sm:$0x1] %v5061
        %5356 = vst [vmem:[%s633 + $0xd0] sm:$0x1] %v5148
        %5357 = vst [vmem:[%s633 + $0xd8] sm:$0x1] %v5150
        %5358 = vst [vmem:[%s633 + $0xe0] sm:$0x1] %v5237
        %5359 = vst [vmem:[%s633 + $0xe8] sm:$0x1] %v5239
        %5360 = vst [vmem:[%s633 + $0xf0] sm:$0x1] %v5326
        %5361 = vst [vmem:[%s633 + $0xf8] sm:$0x1] %v5328
        %v5362 = vsel %vm648, %v638, 0.0
        %5363 = vadd.xlane.f32.xlu0 %v5362
        %v5364 = vpop.xlane.xlu0 %5363
        %v5365 = vsel %vm648, %v639, 0.0
        %5366 = vadd.xlane.f32.xlu0 %v5365
        %v5367 = vpop.xlane.xlu0 %5366
        %v5368 = vrcp.pop 64.0
        %v5369 = vmul.f32 %v5364, %v5368
        %v5370 = vmul.f32 %v5367, %v5368
        %v5371 = vld [vmem:[%s10] sm:$0xff]
        %v5372 = vld [vmem:[%s10 + $0x8] sm:$0xff]
        %v5373 = vld [vmem:[%s10 + $0x10] sm:$0xff]
        %v5374 = vld [vmem:[%s10 + $0x18] sm:$0xff]
        %v5375 = vld [vmem:[%s10 + $0x20] sm:$0xff]
        %v5376 = vld [vmem:[%s10 + $0x28] sm:$0xff]
        %v5377 = vld [vmem:[%s10 + $0x30] sm:$0xff]
        %v5378 = vld [vmem:[%s10 + $0x38] sm:$0xff]
        %v5379 = vld [vmem:[%s10 + $0x40] sm:$0xff]
        %v5380 = vld [vmem:[%s10 + $0x48] sm:$0xff]
        %v5381 = vld [vmem:[%s10 + $0x50] sm:$0xff]
        %v5382 = vld [vmem:[%s10 + $0x58] sm:$0xff]
        %v5383 = vld [vmem:[%s10 + $0x60] sm:$0xff]
        %v5384 = vld [vmem:[%s10 + $0x68] sm:$0xff]
        %v5385 = vld [vmem:[%s10 + $0x70] sm:$0xff]
        %v5386 = vld [vmem:[%s10 + $0x78] sm:$0xff]
        %v5387 = vld [vmem:[%s10 + $0x80] sm:$0xff]
        %v5388 = vld [vmem:[%s10 + $0x88] sm:$0xff]
        %v5389 = vld [vmem:[%s10 + $0x90] sm:$0xff]
        %v5390 = vld [vmem:[%s10 + $0x98] sm:$0xff]
        %v5391 = vld [vmem:[%s10 + $0xa0] sm:$0xff]
        %v5392 = vld [vmem:[%s10 + $0xa8] sm:$0xff]
        %v5393 = vld [vmem:[%s10 + $0xb0] sm:$0xff]
        %v5394 = vld [vmem:[%s10 + $0xb8] sm:$0xff]
        %v5395 = vld [vmem:[%s10 + $0xc0] sm:$0xff]
        %v5396 = vld [vmem:[%s10 + $0xc8] sm:$0xff]
        %v5397 = vld [vmem:[%s10 + $0xd0] sm:$0xff]
        %v5398 = vld [vmem:[%s10 + $0xd8] sm:$0xff]
        %v5399 = vld [vmem:[%s10 + $0xe0] sm:$0xff]
        %v5400 = vld [vmem:[%s10 + $0xe8] sm:$0xff]
        %v5401 = vld [vmem:[%s10 + $0xf0] sm:$0xff]
        %v5402 = vld [vmem:[%s10 + $0xf8] sm:$0xff]
        %v5403 = vld [vmem:[%s11] sm:$0xff]
        %v5404 = vld [vmem:[%s11 + $0x8] sm:$0xff]
        %v5405 = vld [vmem:[%s11 + $0x10] sm:$0xff]
        %v5406 = vld [vmem:[%s11 + $0x18] sm:$0xff]
        %v5407 = vld [vmem:[%s11 + $0x20] sm:$0xff]
        %v5408 = vld [vmem:[%s11 + $0x28] sm:$0xff]
        %v5409 = vld [vmem:[%s11 + $0x30] sm:$0xff]
        %v5410 = vld [vmem:[%s11 + $0x38] sm:$0xff]
        %v5411 = vld [vmem:[%s11 + $0x40] sm:$0xff]
        %v5412 = vld [vmem:[%s11 + $0x48] sm:$0xff]
        %v5413 = vld [vmem:[%s11 + $0x50] sm:$0xff]
        %v5414 = vld [vmem:[%s11 + $0x58] sm:$0xff]
        %v5415 = vld [vmem:[%s11 + $0x60] sm:$0xff]
        %v5416 = vld [vmem:[%s11 + $0x68] sm:$0xff]
        %v5417 = vld [vmem:[%s11 + $0x70] sm:$0xff]
        %v5418 = vld [vmem:[%s11 + $0x78] sm:$0xff]
        %v5419 = vld [vmem:[%s11 + $0x80] sm:$0xff]
        %v5420 = vld [vmem:[%s11 + $0x88] sm:$0xff]
        %v5421 = vld [vmem:[%s11 + $0x90] sm:$0xff]
        %v5422 = vld [vmem:[%s11 + $0x98] sm:$0xff]
        %v5423 = vld [vmem:[%s11 + $0xa0] sm:$0xff]
        %v5424 = vld [vmem:[%s11 + $0xa8] sm:$0xff]
        %v5425 = vld [vmem:[%s11 + $0xb0] sm:$0xff]
        %v5426 = vld [vmem:[%s11 + $0xb8] sm:$0xff]
        %v5427 = vld [vmem:[%s11 + $0xc0] sm:$0xff]
        %v5428 = vld [vmem:[%s11 + $0xc8] sm:$0xff]
        %v5429 = vld [vmem:[%s11 + $0xd0] sm:$0xff]
        %v5430 = vld [vmem:[%s11 + $0xd8] sm:$0xff]
        %v5431 = vld [vmem:[%s11 + $0xe0] sm:$0xff]
        %v5432 = vld [vmem:[%s11 + $0xe8] sm:$0xff]
        %v5433 = vld [vmem:[%s11 + $0xf0] sm:$0xff]
        %v5434 = vld [vmem:[%s11 + $0xf8] sm:$0xff]
        %vm5435 = vcmask 130048
        %v5437 = vsel %vm5435, %v5371, 0
        %v5440 = vsel %vm5435, %v5372, 0
        %v5443 = vsel %vm5435, %v5373, 0
        %v5446 = vsel %vm5435, %v5374, 0
        %v5449 = vsel %vm5435, %v5375, 0
        %v5452 = vsel %vm5435, %v5376, 0
        %v5455 = vsel %vm5435, %v5377, 0
        %v5458 = vsel %vm5435, %v5378, 0
        %v5461 = vsel %vm5435, %v5379, 0
        %v5464 = vsel %vm5435, %v5380, 0
        %v5467 = vsel %vm5435, %v5381, 0
        %v5470 = vsel %vm5435, %v5382, 0
        %v5473 = vsel %vm5435, %v5383, 0
        %v5476 = vsel %vm5435, %v5384, 0
        %v5479 = vsel %vm5435, %v5385, 0
        %v5482 = vsel %vm5435, %v5386, 0
        %v5485 = vsel %vm5435, %v5387, 0
        %v5488 = vsel %vm5435, %v5388, 0
        %v5491 = vsel %vm5435, %v5389, 0
        %v5494 = vsel %vm5435, %v5390, 0
        %v5497 = vsel %vm5435, %v5391, 0
        %v5500 = vsel %vm5435, %v5392, 0
        %v5503 = vsel %vm5435, %v5393, 0
        %v5506 = vsel %vm5435, %v5394, 0
        %v5509 = vsel %vm5435, %v5395, 0
        %v5512 = vsel %vm5435, %v5396, 0
        %v5515 = vsel %vm5435, %v5397, 0
        %v5518 = vsel %vm5435, %v5398, 0
        %v5521 = vsel %vm5435, %v5399, 0
        %v5524 = vsel %vm5435, %v5400, 0
        %v5527 = vsel %vm5435, %v5401, 0
        %v5530 = vsel %vm5435, %v5402, 0
        %5532 = vmatprep.subr.mxu0 0.0
        %5533 = vmatpush1.msra.mxu0 %v5369
        %5534 = vmatprep.subr.mxu0 0.0
        %5535 = vmatpush1.msra.mxu0 %v5370
        %5536 = vmatprep.subr.mxu0 0.0
        %5537 = vmatpush1.msra.mxu0 0.0
        %5538 = vmatprep.subr.mxu0 0.0
        %5539 = vmatpush1.msra.mxu0 0.0
        %5540 = vmatprep.subr.mxu0 0.0
        %5541 = vmatpush1.msra.mxu0 0.0
        %5542 = vmatprep.subr.mxu0 0.0
        %5543 = vmatpush1.msra.mxu0 0.0
        %5544 = vmatprep.subr.mxu0 0.0
        %5545 = vmatpush1.msra.mxu0 0.0
        %5546 = vmatprep.subr.mxu0 0.0
        %5547 = vmatpush1.msra.mxu0 0.0
        %5548 = vmatprep.subr.mxu0 0.0
        %5549 = vmatpush1.msra.mxu0 0.0
        %5550 = vmatprep.subr.mxu0 0.0
        %5551 = vmatpush1.msra.mxu0 0.0
        %5552 = vmatprep.subr.mxu0 0.0
        %5553 = vmatpush1.msra.mxu0 0.0
        %5554 = vmatprep.subr.mxu0 0.0
        %5555 = vmatpush1.msra.mxu0 0.0
        %5556 = vmatprep.subr.mxu0 0.0
        %5557 = vmatpush1.msra.mxu0 0.0
        %5558 = vmatprep.subr.mxu0 0.0
        %5559 = vmatpush1.msra.mxu0 0.0
        %5560 = vmatprep.subr.mxu0 0.0
        %5561 = vmatpush1.msra.mxu0 0.0
        %5562 = vmatprep.subr.mxu0 0.0
        %5563 = vmatpush1.msra.mxu0 0.0
        %5564 = vmatprep.subr.mxu0 0.0
        %5565 = vmatpush1.msra.mxu0 0.0
        %5566 = vmatprep.subr.mxu0 0.0
        %5567 = vmatpush1.msra.mxu0 0.0
        %5568 = vmatprep.subr.mxu0 0.0
        %5569 = vmatpush1.msra.mxu0 0.0
        %5570 = vmatprep.subr.mxu0 0.0
        %5571 = vmatpush1.msra.mxu0 0.0
        %5572 = vmatprep.subr.mxu0 0.0
        %5573 = vmatpush1.msra.mxu0 0.0
        %5574 = vmatprep.subr.mxu0 0.0
        %5575 = vmatpush1.msra.mxu0 0.0
        %5576 = vmatprep.subr.mxu0 0.0
        %5577 = vmatpush1.msra.mxu0 0.0
        %5578 = vmatprep.subr.mxu0 0.0
        %5579 = vmatpush1.msra.mxu0 0.0
        %5580 = vmatprep.subr.mxu0 0.0
        %5581 = vmatpush1.msra.mxu0 0.0
        %5582 = vmatprep.subr.mxu0 0.0
        %5583 = vmatpush1.msra.mxu0 0.0
        %5584 = vmatprep.subr.mxu0 0.0
        %5585 = vmatpush1.msra.mxu0 0.0
        %5586 = vmatprep.subr.mxu0 0.0
        %5587 = vmatpush1.msra.mxu0 0.0
        %5588 = vmatprep.subr.mxu0 0.0
        %5589 = vmatpush1.msra.mxu0 0.0
        %5590 = vmatprep.subr.mxu0 0.0
        %5591 = vmatpush1.msra.mxu0 0.0
        %5592 = vmatprep.subr.mxu0 0.0
        %5593 = vmatpush1.msra.mxu0 0.0
        %5594 = vmatprep.subr.mxu0 0.0
        %5595 = vmatpush1.msra.mxu0 0.0
        %5596 = vmatprep.mubr.f32.mxu0 0.0
        %5597 = vmatmul.mubr.f32.gmra.mrb[0].mxu0 %v5437
        %v5598 = vpop.f32.mrb[0].mxu0
        %v5599 = vadd.f32 %v5403, %v5598
        %v5600 = vpop.f32.mrb[0].mxu0
        %5601 = vmatprep.mubr.f32.mxu0 0.0
        %5602 = vmatmul.mubr.f32.gmra.mrb[0].mxu0 %v5440
        %v5603 = vpop.f32.mrb[0].mxu0
        %v5604 = vadd.f32 %v5404, %v5603
        %v5605 = vpop.f32.mrb[0].mxu0
        %5606 = vmatprep.mubr.f32.mxu0 0.0
        %5607 = vmatmul.mubr.f32.gmra.mrb[0].mxu0 %v5443
        %v5608 = vpop.f32.mrb[0].mxu0
        %v5609 = vadd.f32 %v5405, %v5608
        %v5610 = vpop.f32.mrb[0].mxu0
        %5611 = vmatprep.mubr.f32.mxu0 0.0
        %5612 = vmatmul.mubr.f32.gmra.mrb[0].mxu0 %v5446
        %v5613 = vpop.f32.mrb[0].mxu0
        %v5614 = vadd.f32 %v5406, %v5613
        %v5615 = vpop.f32.mrb[0].mxu0
        %5616 = vmatprep.mubr.f32.mxu0 0.0
        %5617 = vmatmul.mubr.f32.gmra.mrb[0].mxu0 %v5449
        %v5618 = vpop.f32.mrb[0].mxu0
        %v5619 = vadd.f32 %v5407, %v5618
        %v5620 = vpop.f32.mrb[0].mxu0
        %5621 = vmatprep.mubr.f32.mxu0 0.0
        %5622 = vmatmul.mubr.f32.gmra.mrb[0].mxu0 %v5452
        %v5623 = vpop.f32.mrb[0].mxu0
        %v5624 = vadd.f32 %v5408, %v5623
        %v5625 = vpop.f32.mrb[0].mxu0
        %5626 = vmatprep.mubr.f32.mxu0 0.0
        %5627 = vmatmul.mubr.f32.gmra.mrb[0].mxu0 %v5455
        %v5628 = vpop.f32.mrb[0].mxu0
        %v5629 = vadd.f32 %v5409, %v5628
        %v5630 = vpop.f32.mrb[0].mxu0
        %5631 = vmatprep.mubr.f32.mxu0 0.0
        %5632 = vmatmul.mubr.f32.gmra.mrb[0].mxu0 %v5458
        %v5633 = vpop.f32.mrb[0].mxu0
        %v5634 = vadd.f32 %v5410, %v5633
        %v5635 = vpop.f32.mrb[0].mxu0
        %5636 = vmatprep.mubr.f32.mxu0 0.0
        %5637 = vmatmul.mubr.f32.gmra.mrb[0].mxu0 %v5461
        %v5638 = vpop.f32.mrb[0].mxu0
        %v5639 = vadd.f32 %v5411, %v5638
        %v5640 = vpop.f32.mrb[0].mxu0
        %5641 = vmatprep.mubr.f32.mxu0 0.0
        %5642 = vmatmul.mubr.f32.gmra.mrb[0].mxu0 %v5464
        %v5643 = vpop.f32.mrb[0].mxu0
        %v5644 = vadd.f32 %v5412, %v5643
        %v5645 = vpop.f32.mrb[0].mxu0
        %5646 = vmatprep.mubr.f32.mxu0 0.0
        %5647 = vmatmul.mubr.f32.gmra.mrb[0].mxu0 %v5467
        %v5648 = vpop.f32.mrb[0].mxu0
        %v5649 = vadd.f32 %v5413, %v5648
        %v5650 = vpop.f32.mrb[0].mxu0
        %5651 = vmatprep.mubr.f32.mxu0 0.0
        %5652 = vmatmul.mubr.f32.gmra.mrb[0].mxu0 %v5470
        %v5653 = vpop.f32.mrb[0].mxu0
        %v5654 = vadd.f32 %v5414, %v5653
        %v5655 = vpop.f32.mrb[0].mxu0
        %5656 = vmatprep.mubr.f32.mxu0 0.0
        %5657 = vmatmul.mubr.f32.gmra.mrb[0].mxu0 %v5473
        %v5658 = vpop.f32.mrb[0].mxu0
        %v5659 = vadd.f32 %v5415, %v5658
        %v5660 = vpop.f32.mrb[0].mxu0
        %5661 = vmatprep.mubr.f32.mxu0 0.0
        %5662 = vmatmul.mubr.f32.gmra.mrb[0].mxu0 %v5476
        %v5663 = vpop.f32.mrb[0].mxu0
        %v5664 = vadd.f32 %v5416, %v5663
        %v5665 = vpop.f32.mrb[0].mxu0
        %5666 = vmatprep.mubr.f32.mxu0 0.0
        %5667 = vmatmul.mubr.f32.gmra.mrb[0].mxu0 %v5479
        %v5668 = vpop.f32.mrb[0].mxu0
        %v5669 = vadd.f32 %v5417, %v5668
        %v5670 = vpop.f32.mrb[0].mxu0
        %5671 = vmatprep.mubr.f32.mxu0 0.0
        %5672 = vmatmul.mubr.f32.gmra.mrb[0].mxu0 %v5482
        %v5673 = vpop.f32.mrb[0].mxu0
        %v5674 = vadd.f32 %v5418, %v5673
        %v5675 = vpop.f32.mrb[0].mxu0
        %5676 = vmatprep.mubr.f32.mxu0 0.0
        %5677 = vmatmul.mubr.f32.gmra.mrb[0].mxu0 %v5485
        %v5678 = vpop.f32.mrb[0].mxu0
        %v5679 = vadd.f32 %v5419, %v5678
        %v5680 = vpop.f32.mrb[0].mxu0
        %5681 = vmatprep.mubr.f32.mxu0 0.0
        %5682 = vmatmul.mubr.f32.gmra.mrb[0].mxu0 %v5488
        %v5683 = vpop.f32.mrb[0].mxu0
        %v5684 = vadd.f32 %v5420, %v5683
        %v5685 = vpop.f32.mrb[0].mxu0
        %5686 = vmatprep.mubr.f32.mxu0 0.0
        %5687 = vmatmul.mubr.f32.gmra.mrb[0].mxu0 %v5491
        %v5688 = vpop.f32.mrb[0].mxu0
        %v5689 = vadd.f32 %v5421, %v5688
        %v5690 = vpop.f32.mrb[0].mxu0
        %5691 = vmatprep.mubr.f32.mxu0 0.0
        %5692 = vmatmul.mubr.f32.gmra.mrb[0].mxu0 %v5494
        %v5693 = vpop.f32.mrb[0].mxu0
        %v5694 = vadd.f32 %v5422, %v5693
        %v5695 = vpop.f32.mrb[0].mxu0
        %5696 = vmatprep.mubr.f32.mxu0 0.0
        %5697 = vmatmul.mubr.f32.gmra.mrb[0].mxu0 %v5497
        %v5698 = vpop.f32.mrb[0].mxu0
        %v5699 = vadd.f32 %v5423, %v5698
        %v5700 = vpop.f32.mrb[0].mxu0
        %5701 = vmatprep.mubr.f32.mxu0 0.0
        %5702 = vmatmul.mubr.f32.gmra.mrb[0].mxu0 %v5500
        %v5703 = vpop.f32.mrb[0].mxu0
        %v5704 = vadd.f32 %v5424, %v5703
        %v5705 = vpop.f32.mrb[0].mxu0
        %5706 = vmatprep.mubr.f32.mxu0 0.0
        %5707 = vmatmul.mubr.f32.gmra.mrb[0].mxu0 %v5503
        %v5708 = vpop.f32.mrb[0].mxu0
        %v5709 = vadd.f32 %v5425, %v5708
        %v5710 = vpop.f32.mrb[0].mxu0
        %5711 = vmatprep.mubr.f32.mxu0 0.0
        %5712 = vmatmul.mubr.f32.gmra.mrb[0].mxu0 %v5506
        %v5713 = vpop.f32.mrb[0].mxu0
        %v5714 = vadd.f32 %v5426, %v5713
        %v5715 = vpop.f32.mrb[0].mxu0
        %5716 = vmatprep.mubr.f32.mxu0 0.0
        %5717 = vmatmul.mubr.f32.gmra.mrb[0].mxu0 %v5509
        %v5718 = vpop.f32.mrb[0].mxu0
        %v5719 = vadd.f32 %v5427, %v5718
        %v5720 = vpop.f32.mrb[0].mxu0
        %5721 = vmatprep.mubr.f32.mxu0 0.0
        %5722 = vmatmul.mubr.f32.gmra.mrb[0].mxu0 %v5512
        %v5723 = vpop.f32.mrb[0].mxu0
        %v5724 = vadd.f32 %v5428, %v5723
        %v5725 = vpop.f32.mrb[0].mxu0
        %5726 = vmatprep.mubr.f32.mxu0 0.0
        %5727 = vmatmul.mubr.f32.gmra.mrb[0].mxu0 %v5515
        %v5728 = vpop.f32.mrb[0].mxu0
        %v5729 = vadd.f32 %v5429, %v5728
        %v5730 = vpop.f32.mrb[0].mxu0
        %5731 = vmatprep.mubr.f32.mxu0 0.0
        %5732 = vmatmul.mubr.f32.gmra.mrb[0].mxu0 %v5518
        %v5733 = vpop.f32.mrb[0].mxu0
        %v5734 = vadd.f32 %v5430, %v5733
        %v5735 = vpop.f32.mrb[0].mxu0
        %5736 = vmatprep.mubr.f32.mxu0 0.0
        %5737 = vmatmul.mubr.f32.gmra.mrb[0].mxu0 %v5521
        %v5738 = vpop.f32.mrb[0].mxu0
        %v5739 = vadd.f32 %v5431, %v5738
        %v5740 = vpop.f32.mrb[0].mxu0
        %5741 = vmatprep.mubr.f32.mxu0 0.0
        %5742 = vmatmul.mubr.f32.gmra.mrb[0].mxu0 %v5524
        %v5743 = vpop.f32.mrb[0].mxu0
        %v5744 = vadd.f32 %v5432, %v5743
        %v5745 = vpop.f32.mrb[0].mxu0
        %5746 = vmatprep.mubr.f32.mxu0 0.0
        %5747 = vmatmul.mubr.f32.gmra.mrb[0].mxu0 %v5527
        %v5748 = vpop.f32.mrb[0].mxu0
        %v5749 = vadd.f32 %v5433, %v5748
        %v5750 = vpop.f32.mrb[0].mxu0
        %5751 = vmatprep.mubr.f32.mxu0 0.0
        %5752 = vmatmul.mubr.f32.gmra.mrb[0].mxu0 %v5530
        %v5753 = vpop.f32.mrb[0].mxu0
        %v5754 = vadd.f32 %v5434, %v5753
        %v5755 = vpop.f32.mrb[0].mxu0
        %5756 = vdwg.mxu0
        %v5757 = vmax.f32 %v5599, 0.0
        %v5758 = vmax.f32 %v5604, 0.0
        %v5759 = vmax.f32 %v5609, 0.0
        %v5760 = vmax.f32 %v5614, 0.0
        %v5761 = vmax.f32 %v5619, 0.0
        %v5762 = vmax.f32 %v5624, 0.0
        %v5763 = vmax.f32 %v5629, 0.0
        %v5764 = vmax.f32 %v5634, 0.0
        %v5765 = vmax.f32 %v5639, 0.0
        %v5766 = vmax.f32 %v5644, 0.0
        %v5767 = vmax.f32 %v5649, 0.0
        %v5768 = vmax.f32 %v5654, 0.0
        %v5769 = vmax.f32 %v5659, 0.0
        %v5770 = vmax.f32 %v5664, 0.0
        %v5771 = vmax.f32 %v5669, 0.0
        %v5772 = vmax.f32 %v5674, 0.0
        %v5773 = vmax.f32 %v5679, 0.0
        %v5774 = vmax.f32 %v5684, 0.0
        %v5775 = vmax.f32 %v5689, 0.0
        %v5776 = vmax.f32 %v5694, 0.0
        %v5777 = vmax.f32 %v5699, 0.0
        %v5778 = vmax.f32 %v5704, 0.0
        %v5779 = vmax.f32 %v5709, 0.0
        %v5780 = vmax.f32 %v5714, 0.0
        %v5781 = vmax.f32 %v5719, 0.0
        %v5782 = vmax.f32 %v5724, 0.0
        %v5783 = vmax.f32 %v5729, 0.0
        %v5784 = vmax.f32 %v5734, 0.0
        %v5785 = vmax.f32 %v5739, 0.0
        %v5786 = vmax.f32 %v5744, 0.0
        %v5787 = vmax.f32 %v5749, 0.0
        %v5788 = vmax.f32 %v5754, 0.0
        %v5789 = vld [vmem:[#allocation7] sm:$0xff]
        %v5790 = vld [vmem:[#allocation7 + $0x8] sm:$0xff]
        %v5791 = vld [vmem:[#allocation7 + $0x10] sm:$0xff]
        %v5792 = vld [vmem:[#allocation7 + $0x18] sm:$0xff]
        %v5793 = vld [vmem:[#allocation7 + $0x20] sm:$0xff]
        %v5794 = vld [vmem:[#allocation7 + $0x28] sm:$0xff]
        %v5795 = vld [vmem:[#allocation7 + $0x30] sm:$0xff]
        %v5796 = vld [vmem:[#allocation7 + $0x38] sm:$0xff]
        %v5797 = vld [vmem:[#allocation7 + $0x40] sm:$0xff]
        %v5798 = vld [vmem:[#allocation7 + $0x48] sm:$0xff]
        %v5799 = vld [vmem:[#allocation7 + $0x50] sm:$0xff]
        %v5800 = vld [vmem:[#allocation7 + $0x58] sm:$0xff]
        %v5801 = vld [vmem:[#allocation7 + $0x60] sm:$0xff]
        %v5802 = vld [vmem:[#allocation7 + $0x68] sm:$0xff]
        %v5803 = vld [vmem:[#allocation7 + $0x70] sm:$0xff]
        %v5804 = vld [vmem:[#allocation7 + $0x78] sm:$0xff]
        %v5805 = vld [vmem:[#allocation7 + $0x80] sm:$0xff]
        %v5806 = vld [vmem:[#allocation7 + $0x88] sm:$0xff]
        %v5807 = vld [vmem:[#allocation7 + $0x90] sm:$0xff]
        %v5808 = vld [vmem:[#allocation7 + $0x98] sm:$0xff]
        %v5809 = vld [vmem:[#allocation7 + $0xa0] sm:$0xff]
        %v5810 = vld [vmem:[#allocation7 + $0xa8] sm:$0xff]
        %v5811 = vld [vmem:[#allocation7 + $0xb0] sm:$0xff]
        %v5812 = vld [vmem:[#allocation7 + $0xb8] sm:$0xff]
        %v5813 = vld [vmem:[#allocation7 + $0xc0] sm:$0xff]
        %v5814 = vld [vmem:[#allocation7 + $0xc8] sm:$0xff]
        %v5815 = vld [vmem:[#allocation7 + $0xd0] sm:$0xff]
        %v5816 = vld [vmem:[#allocation7 + $0xd8] sm:$0xff]
        %v5817 = vld [vmem:[#allocation7 + $0xe0] sm:$0xff]
        %v5818 = vld [vmem:[#allocation7 + $0xe8] sm:$0xff]
        %v5819 = vld [vmem:[#allocation7 + $0xf0] sm:$0xff]
        %v5820 = vld [vmem:[#allocation7 + $0xf8] sm:$0xff]
        %v5821 = vld [vmem:[#allocation7 + $0x100] sm:$0xff]
        %v5822 = vld [vmem:[#allocation7 + $0x108] sm:$0xff]
        %v5823 = vld [vmem:[#allocation7 + $0x110] sm:$0xff]
        %v5824 = vld [vmem:[#allocation7 + $0x118] sm:$0xff]
        %v5825 = vld [vmem:[#allocation7 + $0x120] sm:$0xff]
        %v5826 = vld [vmem:[#allocation7 + $0x128] sm:$0xff]
        %v5827 = vld [vmem:[#allocation7 + $0x130] sm:$0xff]
        %v5828 = vld [vmem:[#allocation7 + $0x138] sm:$0xff]
        %v5829 = vld [vmem:[#allocation7 + $0x140] sm:$0xff]
        %v5830 = vld [vmem:[#allocation7 + $0x148] sm:$0xff]
        %v5831 = vld [vmem:[#allocation7 + $0x150] sm:$0xff]
        %v5832 = vld [vmem:[#allocation7 + $0x158] sm:$0xff]
        %v5833 = vld [vmem:[#allocation7 + $0x160] sm:$0xff]
        %v5834 = vld [vmem:[#allocation7 + $0x168] sm:$0xff]
        %v5835 = vld [vmem:[#allocation7 + $0x170] sm:$0xff]
        %v5836 = vld [vmem:[#allocation7 + $0x178] sm:$0xff]
        %v5837 = vld [vmem:[#allocation7 + $0x180] sm:$0xff]
        %v5838 = vld [vmem:[#allocation7 + $0x188] sm:$0xff]
        %v5839 = vld [vmem:[#allocation7 + $0x190] sm:$0xff]
        %v5840 = vld [vmem:[#allocation7 + $0x198] sm:$0xff]
        %v5841 = vld [vmem:[#allocation7 + $0x1a0] sm:$0xff]
        %v5842 = vld [vmem:[#allocation7 + $0x1a8] sm:$0xff]
        %v5843 = vld [vmem:[#allocation7 + $0x1b0] sm:$0xff]
        %v5844 = vld [vmem:[#allocation7 + $0x1b8] sm:$0xff]
        %v5845 = vld [vmem:[#allocation7 + $0x1c0] sm:$0xff]
        %v5846 = vld [vmem:[#allocation7 + $0x1c8] sm:$0xff]
        %v5847 = vld [vmem:[#allocation7 + $0x1d0] sm:$0xff]
        %v5848 = vld [vmem:[#allocation7 + $0x1d8] sm:$0xff]
        %v5849 = vld [vmem:[#allocation7 + $0x1e0] sm:$0xff]
        %v5850 = vld [vmem:[#allocation7 + $0x1e8] sm:$0xff]
        %v5851 = vld [vmem:[#allocation7 + $0x1f0] sm:$0xff]
        %v5852 = vld [vmem:[#allocation7 + $0x1f8] sm:$0xff]
        %v5853 = vld [vmem:[%s13] sm:$0xff]
        %v5854 = vld [vmem:[%s13 + $0x8] sm:$0xff]
        %v5855 = vld [vmem:[%s13 + $0x10] sm:$0xff]
        %v5856 = vld [vmem:[%s13 + $0x18] sm:$0xff]
        %v5857 = vld [vmem:[%s13 + $0x20] sm:$0xff]
        %v5858 = vld [vmem:[%s13 + $0x28] sm:$0xff]
        %v5859 = vld [vmem:[%s13 + $0x30] sm:$0xff]
        %v5860 = vld [vmem:[%s13 + $0x38] sm:$0xff]
        %v5861 = vld [vmem:[%s13 + $0x40] sm:$0xff]
        %v5862 = vld [vmem:[%s13 + $0x48] sm:$0xff]
        %v5863 = vld [vmem:[%s13 + $0x50] sm:$0xff]
        %v5864 = vld [vmem:[%s13 + $0x58] sm:$0xff]
        %v5865 = vld [vmem:[%s13 + $0x60] sm:$0xff]
        %v5866 = vld [vmem:[%s13 + $0x68] sm:$0xff]
        %v5867 = vld [vmem:[%s13 + $0x70] sm:$0xff]
        %v5868 = vld [vmem:[%s13 + $0x78] sm:$0xff]
        %v5869 = vld [vmem:[%s13 + $0x80] sm:$0xff]
        %v5870 = vld [vmem:[%s13 + $0x88] sm:$0xff]
        %v5871 = vld [vmem:[%s13 + $0x90] sm:$0xff]
        %v5872 = vld [vmem:[%s13 + $0x98] sm:$0xff]
        %v5873 = vld [vmem:[%s13 + $0xa0] sm:$0xff]
        %v5874 = vld [vmem:[%s13 + $0xa8] sm:$0xff]
        %v5875 = vld [vmem:[%s13 + $0xb0] sm:$0xff]
        %v5876 = vld [vmem:[%s13 + $0xb8] sm:$0xff]
        %v5877 = vld [vmem:[%s13 + $0xc0] sm:$0xff]
        %v5878 = vld [vmem:[%s13 + $0xc8] sm:$0xff]
        %v5879 = vld [vmem:[%s13 + $0xd0] sm:$0xff]
        %v5880 = vld [vmem:[%s13 + $0xd8] sm:$0xff]
        %v5881 = vld [vmem:[%s13 + $0xe0] sm:$0xff]
        %v5882 = vld [vmem:[%s13 + $0xe8] sm:$0xff]
        %v5883 = vld [vmem:[%s13 + $0xf0] sm:$0xff]
        %v5884 = vld [vmem:[%s13 + $0xf8] sm:$0xff]
        %5885 = vmatprep.subr.mxu0 0.0
        %5886 = vmatpush1.msra.mxu0 %v5757
        %5887 = vmatprep.subr.mxu0 0.0
        %5888 = vmatpush1.msra.mxu0 %v5758
        %5889 = vmatprep.subr.mxu0 0.0
        %5890 = vmatpush1.msra.mxu0 %v5759
        %5891 = vmatprep.subr.mxu0 0.0
        %5892 = vmatpush1.msra.mxu0 %v5760
        %5893 = vmatprep.subr.mxu0 0.0
        %5894 = vmatpush1.msra.mxu0 %v5761
        %5895 = vmatprep.subr.mxu0 0.0
        %5896 = vmatpush1.msra.mxu0 %v5762
        %5897 = vmatprep.subr.mxu0 0.0
        %5898 = vmatpush1.msra.mxu0 %v5763
        %5899 = vmatprep.subr.mxu0 0.0
        %5900 = vmatpush1.msra.mxu0 %v5764
        %5901 = vmatprep.subr.mxu0 0.0
        %5902 = vmatpush1.msra.mxu0 %v5765
        %5903 = vmatprep.subr.mxu0 0.0
        %5904 = vmatpush1.msra.mxu0 %v5766
        %5905 = vmatprep.subr.mxu0 0.0
        %5906 = vmatpush1.msra.mxu0 %v5767
        %5907 = vmatprep.subr.mxu0 0.0
        %5908 = vmatpush1.msra.mxu0 %v5768
        %5909 = vmatprep.subr.mxu0 0.0
        %5910 = vmatpush1.msra.mxu0 %v5769
        %5911 = vmatprep.subr.mxu0 0.0
        %5912 = vmatpush1.msra.mxu0 %v5770
        %5913 = vmatprep.subr.mxu0 0.0
        %5914 = vmatpush1.msra.mxu0 %v5771
        %5915 = vmatprep.subr.mxu0 0.0
        %5916 = vmatpush1.msra.mxu0 %v5772
        %5917 = vmatprep.subr.mxu0 0.0
        %5918 = vmatpush1.msra.mxu0 %v5773
        %5919 = vmatprep.subr.mxu0 0.0
        %5920 = vmatpush1.msra.mxu0 %v5774
        %5921 = vmatprep.subr.mxu0 0.0
        %5922 = vmatpush1.msra.mxu0 %v5775
        %5923 = vmatprep.subr.mxu0 0.0
        %5924 = vmatpush1.msra.mxu0 %v5776
        %5925 = vmatprep.subr.mxu0 0.0
        %5926 = vmatpush1.msra.mxu0 %v5777
        %5927 = vmatprep.subr.mxu0 0.0
        %5928 = vmatpush1.msra.mxu0 %v5778
        %5929 = vmatprep.subr.mxu0 0.0
        %5930 = vmatpush1.msra.mxu0 %v5779
        %5931 = vmatprep.subr.mxu0 0.0
        %5932 = vmatpush1.msra.mxu0 %v5780
        %5933 = vmatprep.subr.mxu0 0.0
        %5934 = vmatpush1.msra.mxu0 %v5781
        %5935 = vmatprep.subr.mxu0 0.0
        %5936 = vmatpush1.msra.mxu0 %v5782
        %5937 = vmatprep.subr.mxu0 0.0
        %5938 = vmatpush1.msra.mxu0 %v5783
        %5939 = vmatprep.subr.mxu0 0.0
        %5940 = vmatpush1.msra.mxu0 %v5784
        %5941 = vmatprep.subr.mxu0 0.0
        %5942 = vmatpush1.msra.mxu0 %v5785
        %5943 = vmatprep.subr.mxu0 0.0
        %5944 = vmatpush1.msra.mxu0 %v5786
        %5945 = vmatprep.subr.mxu0 0.0
        %5946 = vmatpush1.msra.mxu0 %v5787
        %5947 = vmatprep.subr.mxu0 0.0
        %5948 = vmatpush1.msra.mxu0 %v5788
        %5949 = vmatprep.mubr.f32.mxu0 %v5790
        %5950 = vmatmul.mubr.f32.gmra.mrb[0].mxu0 %v5789
        %v5951 = vpop.f32.mrb[0].mxu0
        %v5952 = vadd.f32 %v5853, %v5951
        %v5953 = vpop.f32.mrb[0].mxu0
        %5954 = vmatprep.mubr.f32.mxu0 %v5792
        %5955 = vmatmul.mubr.f32.gmra.mrb[0].mxu0 %v5791
        %v5956 = vpop.f32.mrb[0].mxu0
        %v5957 = vadd.f32 %v5854, %v5956
        %v5958 = vpop.f32.mrb[0].mxu0
        %5959 = vmatprep.mubr.f32.mxu0 %v5794
        %5960 = vmatmul.mubr.f32.gmra.mrb[0].mxu0 %v5793
        %v5961 = vpop.f32.mrb[0].mxu0
        %v5962 = vadd.f32 %v5855, %v5961
        %v5963 = vpop.f32.mrb[0].mxu0
        %5964 = vmatprep.mubr.f32.mxu0 %v5796
        %5965 = vmatmul.mubr.f32.gmra.mrb[0].mxu0 %v5795
        %v5966 = vpop.f32.mrb[0].mxu0
        %v5967 = vadd.f32 %v5856, %v5966
        %v5968 = vpop.f32.mrb[0].mxu0
        %5969 = vmatprep.mubr.f32.mxu0 %v5798
        %5970 = vmatmul.mubr.f32.gmra.mrb[0].mxu0 %v5797
        %v5971 = vpop.f32.mrb[0].mxu0
        %v5972 = vadd.f32 %v5857, %v5971
        %v5973 = vpop.f32.mrb[0].mxu0
        %5974 = vmatprep.mubr.f32.mxu0 %v5800
        %5975 = vmatmul.mubr.f32.gmra.mrb[0].mxu0 %v5799
        %v5976 = vpop.f32.mrb[0].mxu0
        %v5977 = vadd.f32 %v5858, %v5976
        %v5978 = vpop.f32.mrb[0].mxu0
        %5979 = vmatprep.mubr.f32.mxu0 %v5802
        %5980 = vmatmul.mubr.f32.gmra.mrb[0].mxu0 %v5801
        %v5981 = vpop.f32.mrb[0].mxu0
        %v5982 = vadd.f32 %v5859, %v5981
        %v5983 = vpop.f32.mrb[0].mxu0
        %5984 = vmatprep.mubr.f32.mxu0 %v5804
        %5985 = vmatmul.mubr.f32.gmra.mrb[0].mxu0 %v5803
        %v5986 = vpop.f32.mrb[0].mxu0
        %v5987 = vadd.f32 %v5860, %v5986
        %v5988 = vpop.f32.mrb[0].mxu0
        %5989 = vmatprep.mubr.f32.mxu0 %v5806
        %5990 = vmatmul.mubr.f32.gmra.mrb[0].mxu0 %v5805
        %v5991 = vpop.f32.mrb[0].mxu0
        %v5992 = vadd.f32 %v5861, %v5991
        %v5993 = vpop.f32.mrb[0].mxu0
        %5994 = vmatprep.mubr.f32.mxu0 %v5808
        %5995 = vmatmul.mubr.f32.gmra.mrb[0].mxu0 %v5807
        %v5996 = vpop.f32.mrb[0].mxu0
        %v5997 = vadd.f32 %v5862, %v5996
        %v5998 = vpop.f32.mrb[0].mxu0
        %5999 = vmatprep.mubr.f32.mxu0 %v5810
        %6000 = vmatmul.mubr.f32.gmra.mrb[0].mxu0 %v5809
        %v6001 = vpop.f32.mrb[0].mxu0
        %v6002 = vadd.f32 %v5863, %v6001
        %v6003 = vpop.f32.mrb[0].mxu0
        %6004 = vmatprep.mubr.f32.mxu0 %v5812
        %6005 = vmatmul.mubr.f32.gmra.mrb[0].mxu0 %v5811
        %v6006 = vpop.f32.mrb[0].mxu0
        %v6007 = vadd.f32 %v5864, %v6006
        %v6008 = vpop.f32.mrb[0].mxu0
        %6009 = vmatprep.mubr.f32.mxu0 %v5814
        %6010 = vmatmul.mubr.f32.gmra.mrb[0].mxu0 %v5813
        %v6011 = vpop.f32.mrb[0].mxu0
        %v6012 = vadd.f32 %v5865, %v6011
        %v6013 = vpop.f32.mrb[0].mxu0
        %6014 = vmatprep.mubr.f32.mxu0 %v5816
        %6015 = vmatmul.mubr.f32.gmra.mrb[0].mxu0 %v5815
        %v6016 = vpop.f32.mrb[0].mxu0
        %v6017 = vadd.f32 %v5866, %v6016
        %v6018 = vpop.f32.mrb[0].mxu0
        %6019 = vmatprep.mubr.f32.mxu0 %v5818
        %6020 = vmatmul.mubr.f32.gmra.mrb[0].mxu0 %v5817
        %v6021 = vpop.f32.mrb[0].mxu0
        %v6022 = vadd.f32 %v5867, %v6021
        %v6023 = vpop.f32.mrb[0].mxu0
        %6024 = vmatprep.mubr.f32.mxu0 %v5820
        %6025 = vmatmul.mubr.f32.gmra.mrb[0].mxu0 %v5819
        %v6026 = vpop.f32.mrb[0].mxu0
        %v6027 = vadd.f32 %v5868, %v6026
        %v6028 = vpop.f32.mrb[0].mxu0
        %6029 = vmatprep.mubr.f32.mxu0 %v5822
        %6030 = vmatmul.mubr.f32.gmra.mrb[0].mxu0 %v5821
        %v6031 = vpop.f32.mrb[0].mxu0
        %v6032 = vadd.f32 %v5869, %v6031
        %v6033 = vpop.f32.mrb[0].mxu0
        %6034 = vmatprep.mubr.f32.mxu0 %v5824
        %6035 = vmatmul.mubr.f32.gmra.mrb[0].mxu0 %v5823
        %v6036 = vpop.f32.mrb[0].mxu0
        %v6037 = vadd.f32 %v5870, %v6036
        %v6038 = vpop.f32.mrb[0].mxu0
        %6039 = vmatprep.mubr.f32.mxu0 %v5826
        %6040 = vmatmul.mubr.f32.gmra.mrb[0].mxu0 %v5825
        %v6041 = vpop.f32.mrb[0].mxu0
        %v6042 = vadd.f32 %v5871, %v6041
        %v6043 = vpop.f32.mrb[0].mxu0
        %6044 = vmatprep.mubr.f32.mxu0 %v5828
        %6045 = vmatmul.mubr.f32.gmra.mrb[0].mxu0 %v5827
        %v6046 = vpop.f32.mrb[0].mxu0
        %v6047 = vadd.f32 %v5872, %v6046
        %v6048 = vpop.f32.mrb[0].mxu0
        %6049 = vmatprep.mubr.f32.mxu0 %v5830
        %6050 = vmatmul.mubr.f32.gmra.mrb[0].mxu0 %v5829
        %v6051 = vpop.f32.mrb[0].mxu0
        %v6052 = vadd.f32 %v5873, %v6051
        %v6053 = vpop.f32.mrb[0].mxu0
        %6054 = vmatprep.mubr.f32.mxu0 %v5832
        %6055 = vmatmul.mubr.f32.gmra.mrb[0].mxu0 %v5831
        %v6056 = vpop.f32.mrb[0].mxu0
        %v6057 = vadd.f32 %v5874, %v6056
        %v6058 = vpop.f32.mrb[0].mxu0
        %6059 = vmatprep.mubr.f32.mxu0 %v5834
        %6060 = vmatmul.mubr.f32.gmra.mrb[0].mxu0 %v5833
        %v6061 = vpop.f32.mrb[0].mxu0
        %v6062 = vadd.f32 %v5875, %v6061
        %v6063 = vpop.f32.mrb[0].mxu0
        %6064 = vmatprep.mubr.f32.mxu0 %v5836
        %6065 = vmatmul.mubr.f32.gmra.mrb[0].mxu0 %v5835
        %v6066 = vpop.f32.mrb[0].mxu0
        %v6067 = vadd.f32 %v5876, %v6066
        %v6068 = vpop.f32.mrb[0].mxu0
        %6069 = vmatprep.mubr.f32.mxu0 %v5838
        %6070 = vmatmul.mubr.f32.gmra.mrb[0].mxu0 %v5837
        %v6071 = vpop.f32.mrb[0].mxu0
        %v6072 = vadd.f32 %v5877, %v6071
        %v6073 = vpop.f32.mrb[0].mxu0
        %6074 = vmatprep.mubr.f32.mxu0 %v5840
        %6075 = vmatmul.mubr.f32.gmra.mrb[0].mxu0 %v5839
        %v6076 = vpop.f32.mrb[0].mxu0
        %v6077 = vadd.f32 %v5878, %v6076
        %v6078 = vpop.f32.mrb[0].mxu0
        %6079 = vmatprep.mubr.f32.mxu0 %v5842
        %6080 = vmatmul.mubr.f32.gmra.mrb[0].mxu0 %v5841
        %v6081 = vpop.f32.mrb[0].mxu0
        %v6082 = vadd.f32 %v5879, %v6081
        %v6083 = vpop.f32.mrb[0].mxu0
        %6084 = vmatprep.mubr.f32.mxu0 %v5844
        %6085 = vmatmul.mubr.f32.gmra.mrb[0].mxu0 %v5843
        %v6086 = vpop.f32.mrb[0].mxu0
        %v6087 = vadd.f32 %v5880, %v6086
        %v6088 = vpop.f32.mrb[0].mxu0
        %6089 = vmatprep.mubr.f32.mxu0 %v5846
        %6090 = vmatmul.mubr.f32.gmra.mrb[0].mxu0 %v5845
        %v6091 = vpop.f32.mrb[0].mxu0
        %v6092 = vadd.f32 %v5881, %v6091
        %v6093 = vpop.f32.mrb[0].mxu0
        %6094 = vmatprep.mubr.f32.mxu0 %v5848
        %6095 = vmatmul.mubr.f32.gmra.mrb[0].mxu0 %v5847
        %v6096 = vpop.f32.mrb[0].mxu0
        %v6097 = vadd.f32 %v5882, %v6096
        %v6098 = vpop.f32.mrb[0].mxu0
        %6099 = vmatprep.mubr.f32.mxu0 %v5850
        %6100 = vmatmul.mubr.f32.gmra.mrb[0].mxu0 %v5849
        %v6101 = vpop.f32.mrb[0].mxu0
        %v6102 = vadd.f32 %v5883, %v6101
        %v6103 = vpop.f32.mrb[0].mxu0
        %6104 = vmatprep.mubr.f32.mxu0 %v5852
        %6105 = vmatmul.mubr.f32.gmra.mrb[0].mxu0 %v5851
        %v6106 = vpop.f32.mrb[0].mxu0
        %v6107 = vadd.f32 %v5884, %v6106
        %v6108 = vpop.f32.mrb[0].mxu0
        %6109 = vdwg.mxu0
        %v6110 = vmax.f32 %v5952, 0.0
        %v6111 = vmax.f32 %v5957, 0.0
        %v6112 = vmax.f32 %v5962, 0.0
        %v6113 = vmax.f32 %v5967, 0.0
        %v6114 = vmax.f32 %v5972, 0.0
        %v6115 = vmax.f32 %v5977, 0.0
        %v6116 = vmax.f32 %v5982, 0.0
        %v6117 = vmax.f32 %v5987, 0.0
        %v6118 = vmax.f32 %v5992, 0.0
        %v6119 = vmax.f32 %v5997, 0.0
        %v6120 = vmax.f32 %v6002, 0.0
        %v6121 = vmax.f32 %v6007, 0.0
        %v6122 = vmax.f32 %v6012, 0.0
        %v6123 = vmax.f32 %v6017, 0.0
        %v6124 = vmax.f32 %v6022, 0.0
        %v6125 = vmax.f32 %v6027, 0.0
        %v6126 = vmax.f32 %v6032, 0.0
        %v6127 = vmax.f32 %v6037, 0.0
        %v6128 = vmax.f32 %v6042, 0.0
        %v6129 = vmax.f32 %v6047, 0.0
        %v6130 = vmax.f32 %v6052, 0.0
        %v6131 = vmax.f32 %v6057, 0.0
        %v6132 = vmax.f32 %v6062, 0.0
        %v6133 = vmax.f32 %v6067, 0.0
        %v6134 = vmax.f32 %v6072, 0.0
        %v6135 = vmax.f32 %v6077, 0.0
        %v6136 = vmax.f32 %v6082, 0.0
        %v6137 = vmax.f32 %v6087, 0.0
        %v6138 = vmax.f32 %v6092, 0.0
        %v6139 = vmax.f32 %v6097, 0.0
        %v6140 = vmax.f32 %v6102, 0.0
        %v6141 = vmax.f32 %v6107, 0.0
        %v6142 = vld [vmem:[%s14] sm:$0x77]
        %v6143 = vld [vmem:[%s15] sm:$0x7]
        %v6145 = vcombine.high %v6142, %v6142
        %6147 = vmatprep.subr.mxu0 0.0
        %6148 = vmatpush1.msra.mxu0 %v6110
        %6149 = vmatprep.subr.mxu0 0.0
        %6150 = vmatpush1.msra.mxu0 %v6111
        %6151 = vmatprep.subr.mxu0 0.0
        %6152 = vmatpush1.msra.mxu0 %v6112
        %6153 = vmatprep.subr.mxu0 0.0
        %6154 = vmatpush1.msra.mxu0 %v6113
        %6155 = vmatprep.subr.mxu0 0.0
        %6156 = vmatpush1.msra.mxu0 %v6114
        %6157 = vmatprep.subr.mxu0 0.0
        %6158 = vmatpush1.msra.mxu0 %v6115
        %6159 = vmatprep.subr.mxu0 0.0
        %6160 = vmatpush1.msra.mxu0 %v6116
        %6161 = vmatprep.subr.mxu0 0.0
        %6162 = vmatpush1.msra.mxu0 %v6117
        %6163 = vmatprep.subr.mxu0 0.0
        %6164 = vmatpush1.msra.mxu0 %v6118
        %6165 = vmatprep.subr.mxu0 0.0
        %6166 = vmatpush1.msra.mxu0 %v6119
        %6167 = vmatprep.subr.mxu0 0.0
        %6168 = vmatpush1.msra.mxu0 %v6120
        %6169 = vmatprep.subr.mxu0 0.0
        %6170 = vmatpush1.msra.mxu0 %v6121
        %6171 = vmatprep.subr.mxu0 0.0
        %6172 = vmatpush1.msra.mxu0 %v6122
        %6173 = vmatprep.subr.mxu0 0.0
        %6174 = vmatpush1.msra.mxu0 %v6123
        %6175 = vmatprep.subr.mxu0 0.0
        %6176 = vmatpush1.msra.mxu0 %v6124
        %6177 = vmatprep.subr.mxu0 0.0
        %6178 = vmatpush1.msra.mxu0 %v6125
        %6179 = vmatprep.subr.mxu0 0.0
        %6180 = vmatpush1.msra.mxu0 %v6126
        %6181 = vmatprep.subr.mxu0 0.0
        %6182 = vmatpush1.msra.mxu0 %v6127
        %6183 = vmatprep.subr.mxu0 0.0
        %6184 = vmatpush1.msra.mxu0 %v6128
        %6185 = vmatprep.subr.mxu0 0.0
        %6186 = vmatpush1.msra.mxu0 %v6129
        %6187 = vmatprep.subr.mxu0 0.0
        %6188 = vmatpush1.msra.mxu0 %v6130
        %6189 = vmatprep.subr.mxu0 0.0
        %6190 = vmatpush1.msra.mxu0 %v6131
        %6191 = vmatprep.subr.mxu0 0.0
        %6192 = vmatpush1.msra.mxu0 %v6132
        %6193 = vmatprep.subr.mxu0 0.0
        %6194 = vmatpush1.msra.mxu0 %v6133
        %6195 = vmatprep.subr.mxu0 0.0
        %6196 = vmatpush1.msra.mxu0 %v6134
        %6197 = vmatprep.subr.mxu0 0.0
        %6198 = vmatpush1.msra.mxu0 %v6135
        %6199 = vmatprep.subr.mxu0 0.0
        %6200 = vmatpush1.msra.mxu0 %v6136
        %6201 = vmatprep.subr.mxu0 0.0
        %6202 = vmatpush1.msra.mxu0 %v6137
        %6203 = vmatprep.subr.mxu0 0.0
        %6204 = vmatpush1.msra.mxu0 %v6138
        %6205 = vmatprep.subr.mxu0 0.0
        %6206 = vmatpush1.msra.mxu0 %v6139
        %6207 = vmatprep.subr.mxu0 0.0
        %6208 = vmatpush1.msra.mxu0 %v6140
        %6209 = vmatprep.subr.mxu0 0.0
        %6210 = vmatpush1.msra.mxu0 %v6141
        %6211 = vmatprep.mubr.f32.mxu0 %v6145
        %6212 = vmatmul.mubr.f32.gmra.mrb[0].mxu0 %v6142
        %v6213 = vpop.f32.mrb[0].mxu0
        %v6214 = vadd.f32 %v6143, %v6213
        %v6215 = vpop.f32.mrb[0].mxu0
        %6216 = vdwg.mxu0
        %vm6217 = vcmask 2048
        %6218 = vst.msk [vmem:[%s637] sm:$0x7] %vm6217, %v6214
        %p6219 = scmp.lt.s32.totalorder %s33, 1
        %s6220 = scalar_select %p6219, %s33, 1
        %s6221 = smul.addr %s6220, 32
        %s6222 = smul.addr %s6221, 8
        %s6223 = scalar_lea.vmem %s17, %s6222
        %p6224 = scmp.lt.s32.totalorder %s33, 1
        %s6225 = scalar_select %p6224, %s33, 1
        %s6226 = smul.addr %s6225, 4
        %s6227 = scalar_lea.vmem %s18, %s6226
        // Predicated region
        $region97: #{tpu_custom_call.1} parent=87 // pred_check
          %p6228 = pneg %p418
        $region98: #{tpu_custom_call.1} parent=87 // pred_check_branch
          %6230 = sbr.rel (%p6228) target = $region100
        $region99: #{tpu_custom_call.1} parent=87 // pred_region
          _
        $region100: #{tpu_custom_call.1} parent=87 // pred_fallthru
          _
        // Predicated region
        $region101: #{tpu_custom_call.1} parent=87 // pred_check
          %p6231 = pneg %p444
        $region102: #{tpu_custom_call.1} parent=87 // pred_check_branch
          %6233 = sbr.rel (%p6231) target = $region104
        $region103: #{tpu_custom_call.1} parent=87 // pred_region
          _
        $region104: #{tpu_custom_call.1} parent=87 // pred_fallthru
          _
      $region88: #{tpu_custom_call.1} parent=5 // pred_fallthru
        _
      %p6234 = scmp.le.s32.totalorder 2, %s28
      // Predicated region
      $region105: #{tpu_custom_call.1} parent=5 // pred_check
        %p6235 = pneg %p6234
      $region106: #{tpu_custom_call.1} parent=5 // pred_check_branch
        %6237 = sbr.rel (%p6235) target = $region108
      $region107: #{tpu_custom_call.1} parent=5 // pred_region
        %s6238 = ssub.s32 %s28, 2
        // Predicated region
        $region109: #{tpu_custom_call.1} parent=107 // pred_check
          %p6239 = pneg %p424
        $region110: #{tpu_custom_call.1} parent=107 // pred_check_branch
          %6241 = sbr.rel (%p6239) target = $region112
        $region111: #{tpu_custom_call.1} parent=107 // pred_region
          %p6242 = scmp.lt.s32.totalorder %s34, 1
          %s6243 = scalar_select %p6242, %s34, 1
          %s6244 = smul.addr %s6243, 32
          %s6245 = smul.addr %s6244, 8
          %s6246 = scalar_lea.vmem %s17, %s6245
        $region112: #{tpu_custom_call.1} parent=107 // pred_fallthru
          _
        // Predicated region
        $region113: #{tpu_custom_call.1} parent=107 // pred_check
          %p6247 = pneg %p450
        $region114: #{tpu_custom_call.1} parent=107 // pred_check_branch
          %6249 = sbr.rel (%p6247) target = $region116
        $region115: #{tpu_custom_call.1} parent=107 // pred_region
          %p6250 = scmp.lt.s32.totalorder %s34, 1
          %s6251 = scalar_select %p6250, %s34, 1
          %s6252 = smul.addr %s6251, 4
          %s6253 = scalar_lea.vmem %s18, %s6252
        $region116: #{tpu_custom_call.1} parent=107 // pred_fallthru
          _
      $region108: #{tpu_custom_call.1} parent=5 // pred_fallthru
        _
    $region6: #{tpu_custom_call.1} parent=1 // loop_footer
      %s32 = sadd.s32 1, %s28
    $region7: #{tpu_custom_call.1} parent=1 // loop_footer_branch
      %27 = sbr.rel target = $region3
    $region8: #{tpu_custom_call.1} parent=1 // loop_exit
      _
    %6254 = vsyncpa [#allocation6], 1
    %s6255 = scalar_lea.sflag [#allocation6], 1
    %6256 = vsyncpa %s6255, 1
    %6257 = vsyncpa [#allocation8], 1

</llo_original>
